<compile_context>
chip_gen: v6e
topology: v6e:2x2x1
jax: 0.10.0
libtpu: 0.0.40
codegen_flags: <defaults>
</compile_context>

<pallas_src>
import functools

import jax
import jax.numpy as jnp
from jax.experimental import pallas as pl
from jax.experimental.pallas import tpu as pltpu


# ----------------------------- in-kernel building blocks ---------------------


def _conv1d_relu(h, w_ref, b_ref, *, c_in, seq, k, matmul_dtype,
                 reduce_mean=False):
    """'same'-padded Conv1d + bias + ReLU on a position-major slab.

    h:      (seq*c_in, TB) value; row index = pos*c_in + ci, lanes = batch.
    w_ref:  (c_out, k*c_in) ref, packed k-major / ci-minor.
    b_ref:  (c_out, 1) ref.
    returns (seq*c_out, TB) value (row index = pos*c_out + co), or, when
            reduce_mean=True, the positional mean (c_out, TB)
            (== fused AdaptiveAvgPool1d(1)).
    """
    tb = h.shape[-1]
    pad = k // 2
    if pad > 0:
        zeros = jnp.zeros((pad * c_in, tb), jnp.float32)
        h_pad = jnp.concatenate([zeros, h, zeros], axis=0)   # ((seq+2p)*c_in, TB)
    else:
        h_pad = h
    w = w_ref[...].astype(matmul_dtype)                      # (c_out, k*c_in)
    b = b_ref[...]                                           # (c_out, 1)

    outs = []
    acc = None
    for pos in range(seq):
        # Sliding window == contiguous, sublane-aligned row slice of h_pad.
        col = h_pad[pos * c_in:(pos + k) * c_in, :]           # (k*c_in, TB)
        y = jnp.dot(w, col.astype(matmul_dtype),
                    preferred_element_type=jnp.float32) + b   # (c_out, TB)
        y = jnp.maximum(y, 0.0)
        if reduce_mean:
            acc = y if acc is None else acc + y
        else:
            outs.append(y)
    if reduce_mean:
        return acc * jnp.float32(1.0 / seq)                   # (c_out, TB)
    return jnp.concatenate(outs, axis=0)                      # (seq*c_out, TB)


def _maxpool2(h, *, c, seq):
    """MaxPool1d(kernel=2, stride=2): max over adjacent position row-blocks."""
    tb = h.shape[-1]
    # Aligned major-dim split (c % 8 == 0): no lane-layout change, no stride-2
    # lane slicing, no trailing-2 lane dim.
    h3 = h.reshape(seq // 2, 2 * c, tb)
    pooled = jnp.maximum(h3[:, :c, :], h3[:, c:, :])          # (seq//2, c, TB)
    return pooled.reshape((seq // 2) * c, tb)


def _fused_kernel(x_ref, w1, b1, w2, b2, w3, b3, w4, b4, wc1, bc1, wc2, bc2,
                  o_ref, *, c_ins, c_outs, ks, seq, matmul_dtype):
    """Entire Simple1DCNN forward for TB samples, resident in VMEM/vregs."""
    md = matmul_dtype
    h = x_ref[...].astype(jnp.float32)                        # (L*C0, TB)

    # features (Dropout1d = identity at inference, BatchNorm1d = Identity)
    h = _conv1d_relu(h, w1, b1, c_in=c_ins[0], seq=seq, k=ks[0],
                     matmul_dtype=md)
    h = _maxpool2(h, c=c_outs[0], seq=seq)
    h = _conv1d_relu(h, w2, b2, c_in=c_ins[1], seq=seq // 2, k=ks[1],
                     matmul_dtype=md)
    h = _maxpool2(h, c=c_outs[1], seq=seq // 2)
    h = _conv1d_relu(h, w3, b3, c_in=c_ins[2], seq=seq // 4, k=ks[2],
                     matmul_dtype=md)
    h = _maxpool2(h, c=c_outs[2], seq=seq // 4)
    # conv4 + AdaptiveAvgPool1d(1) fused: accumulate the positional mean.
    p = _conv1d_relu(h, w4, b4, c_in=c_ins[3], seq=seq // 8, k=ks[3],
                     matmul_dtype=md, reduce_mean=True)        # (8*bw, TB)

    # classifier: two 1x1 convs over a length-1 sequence == dense matmuls with
    # a TB-wide RHS (Dropout = identity at inference).
    z = jnp.dot(wc1[...].astype(md), p.astype(md),
                preferred_element_type=jnp.float32) + bc1[...]
    z = jnp.maximum(z, 0.0)                                    # (4*bw, TB)
    logits = jnp.dot(wc2[...].astype(md), z.astype(md),
                     preferred_element_type=jnp.float32) + bc2[...]

    o_ref[...] = logits.astype(o_ref.dtype)                    # (ncls, TB)


# ----------------------------- wrapper ---------------------------------------


def _choose_tb(n):
    """Pick a batch tile: lane-dense (<=128) while keeping >= 2 grid steps."""
    for cand in (128, 256, 64, 32, 16, 8, 4, 2, 1):
        if n % cand == 0 and n // cand >= 2:
            return cand
    return n


def simple1dcnn_forward(params, x, *, tb=None, matmul_dtype=jnp.float32):
    """x: (N, num_sensors, L) -> (N, num_classes). Single fused pallas_call.

    matmul_dtype=jnp.bfloat16 gives ~3x MXU throughput on v5e (f32 epilogue).
    """
    (w1, b1), (w2, b2), (w3, b3), (w4, b4), (wc1, bc1), (wc2, bc2) = params
    N, C0, L = x.shape
    conv_ws = (w1, w2, w3, w4)
    c_ins = tuple(int(w.shape[1]) for w in conv_ws)
    c_outs = tuple(int(w.shape[0]) for w in conv_ws)
    ks = tuple(int(w.shape[2]) for w in conv_ws)
    num_classes = int(wc2.shape[0])

    assert L % 8 == 0, "three MaxPool1d(2) stages require L divisible by 8"
    assert all(k % 2 == 1 for k in ks), "padding=k//2 is 'same' only for odd k"
    assert c_ins[0] == C0
    assert all(c % 8 == 0 for c in c_outs), "conv widths must be multiples of 8"

    if tb is None:
        tb = _choose_tb(N)
    assert N % tb == 0, (N, tb)

    # Layout plumbing in the wrapper (one XLA transpose over the whole input):
    # (N, C0, L) -> (L*C0, N): rows = position-major/channel-minor, lanes = batch.
    x2 = jnp.transpose(x, (2, 1, 0)).reshape(L * C0, N)

    def colify(w):      # (C_out, C_in, K) -> (C_out, K*C_in), k-major/ci-minor
        co, ci, k = w.shape
        return jnp.transpose(w, (0, 2, 1)).reshape(co, k * ci)

    w_cols = [colify(w) for w in conv_ws]
    b_cols = [b.reshape(-1, 1) for b in (b1, b2, b3, b4)]
    wc1m, wc2m = wc1[:, :, 0], wc2[:, :, 0]
    bc1c, bc2c = bc1.reshape(-1, 1), bc2.reshape(-1, 1)

    kernel = functools.partial(
        _fused_kernel, c_ins=c_ins, c_outs=c_outs, ks=ks, seq=L,
        matmul_dtype=matmul_dtype)

    in_arrays = [x2,
                 w_cols[0], b_cols[0], w_cols[1], b_cols[1],
                 w_cols[2], b_cols[2], w_cols[3], b_cols[3],
                 wc1m, bc1c, wc2m, bc2c]
    in_specs = ([pl.BlockSpec((L * C0, tb), lambda i: (0, i))]
                + [pl.BlockSpec(a.shape, lambda i: (0, 0))
                   for a in in_arrays[1:]])

    # Advisory cost estimate for XLA's scheduler.
    seq_lens = [L // (2 ** i) for i in range(4)]
    flops_per_sample = 2 * sum(w.shape[0] * w.shape[1] * w.shape[2] * s
                               for w, s in zip(conv_ws, seq_lens))
    flops_per_sample += 2 * (wc1m.shape[0] * wc1m.shape[1]
                             + wc2m.shape[0] * wc2m.shape[1])
    param_bytes = sum(int(a.size) * a.dtype.itemsize for a in in_arrays[1:])
    bytes_accessed = (int(x2.size) * x2.dtype.itemsize + param_bytes
                      + N * num_classes * 4)

    out = pl.pallas_call(
        kernel,
        out_shape=jax.ShapeDtypeStruct((num_classes, N), x.dtype),
        grid=(N // tb,),
        in_specs=in_specs,
        out_specs=pl.BlockSpec((num_classes, tb), lambda i: (0, i)),
        compiler_params=pltpu.CompilerParams(
            dimension_semantics=("parallel",),     # batch across TCs on v7x
            vmem_limit_bytes=32 * 1024 * 1024),
        cost_estimate=pl.CostEstimate(flops=int(N * flops_per_sample),
                                      transcendentals=0,
                                      bytes_accessed=int(bytes_accessed)),
    )(*in_arrays)
    return out.T                                              # (N, num_classes)


# ----------------------------- reference & params -----------------------------


def reference_forward(params, x):
    """Pure-JAX reference (high precision) for correctness checking."""
    (w1, b1), (w2, b2), (w3, b3), (w4, b4), (wc1, bc1), (wc2, bc2) = params

    def conv(h, w, b):
        k = w.shape[-1]
        pad = k // 2
        y = jax.lax.conv_general_dilated(
            h, w, window_strides=(1,), padding=[(pad, k - 1 - pad)],
            dimension_numbers=("NCH", "OIH", "NCH"),
            precision=jax.lax.Precision.HIGHEST)
        return y + b[None, :, None]

    def pool(h):
        n, c, l = h.shape
        return jnp.max(h.reshape(n, c, l // 2, 2), axis=-1)

    h = pool(jax.nn.relu(conv(x, w1, b1)))
    h = pool(jax.nn.relu(conv(h, w2, b2)))
    h = pool(jax.nn.relu(conv(h, w3, b3)))
    h = jax.nn.relu(conv(h, w4, b4))
    h = jnp.mean(h, axis=-1, keepdims=True)
    h = jax.nn.relu(conv(h, wc1, bc1))
    h = conv(h, wc2, bc2)
    return jnp.squeeze(h, axis=-1)


def init_params(key, num_sensors, num_classes, base_width):
    """Deterministic synthetic parameters (Conv1d weight: (C_out, C_in, K))."""
    shapes = [
        # features
        (base_width, num_sensors, 3),
        (base_width * 2, base_width, 5),
        (base_width * 4, base_width * 2, 7),
        (base_width * 8, base_width * 4, 9),
        # classifier
        (base_width * 4, base_width * 8, 1),
        (num_classes, base_width * 4, 1),
    ]
    params = []
    for shp in shapes:
        key, kw, kb = jax.random.split(key, 3)
        fan_in = shp[1] * shp[2]
        scale = 1.0 / jnp.sqrt(jnp.float32(fan_in))
        w = jax.random.uniform(kw, shp, jnp.float32, -scale, scale)
        b = jax.random.uniform(kb, (shp[0],), jnp.float32, -scale, scale)
        params.append((w, b))
    return params


# ----------------------------- main -------------------------------------------


if __name__ == "__main__":
    # Simple1DCNN(num_sensors=16, num_classes=3, base_width=8) on (N, 16, 32).
    # N=256 -> TB=128 (full 128-lane matmuls) and a 2-step grid (both v7x TCs).
    NUM_SENSORS = 16
    NUM_CLASSES = 3
    BASE_WIDTH = 8
    N, L = 256, 32

    key = jax.random.PRNGKey(0)
    key, kx = jax.random.split(key)
    x = jax.random.normal(kx, (N, NUM_SENSORS, L), jnp.float32)

    params = init_params(key, NUM_SENSORS, NUM_CLASSES, BASE_WIDTH)

    fwd = jax.jit(simple1dcnn_forward)
    out = jax.block_until_ready(fwd(params, x))

    assert out.shape == (N, NUM_CLASSES), out.shape
    assert out.dtype == jnp.float32

    ref = reference_forward(params, x)
    max_err = float(jnp.max(jnp.abs(out - ref)))
    assert max_err < 1e-2, f"mismatch vs reference: {max_err}"

    print("KERNEL_OK")
</pallas_src>

<mosaic_0001>
module attributes {stable_mosaic.version = 11 : i64} {
  func.func @_fused_kernel(%arg0: i32, %arg1: memref<512x128xf32, #tpu.memory_space<vmem>>, %arg2: memref<8x48xf32, #tpu.memory_space<vmem>>, %arg3: memref<8x1xf32, #tpu.memory_space<vmem>>, %arg4: memref<16x40xf32, #tpu.memory_space<vmem>>, %arg5: memref<16x1xf32, #tpu.memory_space<vmem>>, %arg6: memref<32x112xf32, #tpu.memory_space<vmem>>, %arg7: memref<32x1xf32, #tpu.memory_space<vmem>>, %arg8: memref<64x288xf32, #tpu.memory_space<vmem>>, %arg9: memref<64x1xf32, #tpu.memory_space<vmem>>, %arg10: memref<32x64xf32, #tpu.memory_space<vmem>>, %arg11: memref<32x1xf32, #tpu.memory_space<vmem>>, %arg12: memref<3x32xf32, #tpu.memory_space<vmem>>, %arg13: memref<3x1xf32, #tpu.memory_space<vmem>>, %arg14: memref<3x128xf32, #tpu.memory_space<vmem>>) attributes {dimension_semantics = [#tpu.dimension_semantics<parallel>], iteration_bounds = array<i64: 2>, scalar_prefetch = 0 : i64, scratch_operands = 0 : i64, tpu.core_type = #tpu.core_type<tc>, window_params = [{transform_indices = @transform_0, window_bounds = array<i64: 512, 128>}, {pipeline_mode = #tpu.pipeline_mode<synchronous>, transform_indices = @transform_1, window_bounds = array<i64: 8, 48>}, {pipeline_mode = #tpu.pipeline_mode<synchronous>, transform_indices = @transform_2, window_bounds = array<i64: 8, 1>}, {pipeline_mode = #tpu.pipeline_mode<synchronous>, transform_indices = @transform_3, window_bounds = array<i64: 16, 40>}, {pipeline_mode = #tpu.pipeline_mode<synchronous>, transform_indices = @transform_4, window_bounds = array<i64: 16, 1>}, {pipeline_mode = #tpu.pipeline_mode<synchronous>, transform_indices = @transform_5, window_bounds = array<i64: 32, 112>}, {pipeline_mode = #tpu.pipeline_mode<synchronous>, transform_indices = @transform_6, window_bounds = array<i64: 32, 1>}, {pipeline_mode = #tpu.pipeline_mode<synchronous>, transform_indices = @transform_7, window_bounds = array<i64: 64, 288>}, {pipeline_mode = #tpu.pipeline_mode<synchronous>, transform_indices = @transform_8, window_bounds = array<i64: 64, 1>}, {pipeline_mode = #tpu.pipeline_mode<synchronous>, transform_indices = @transform_9, window_bounds = array<i64: 32, 64>}, {pipeline_mode = #tpu.pipeline_mode<synchronous>, transform_indices = @transform_10, window_bounds = array<i64: 32, 1>}, {pipeline_mode = #tpu.pipeline_mode<synchronous>, transform_indices = @transform_11, window_bounds = array<i64: 3, 32>}, {pipeline_mode = #tpu.pipeline_mode<synchronous>, transform_indices = @transform_12, window_bounds = array<i64: 3, 1>}, {transform_indices = @transform_13, window_bounds = array<i64: 3, 128>}]} {
    %c0 = arith.constant 0 : index
    %c0_0 = arith.constant 0 : index
    %0 = vector.load %arg1[%c0, %c0_0] : memref<512x128xf32, #tpu.memory_space<vmem>>, vector<512x128xf32>
    %cst = arith.constant 0.000000e+00 : f32
    %1 = vector.broadcast %cst : f32 to vector<16x128xf32>
    %2 = tpu.concatenate %1, %0, %1 in 0 : vector<16x128xf32>, vector<512x128xf32>, vector<16x128xf32> -> vector<544x128xf32>
    %c0_1 = arith.constant 0 : index
    %c0_2 = arith.constant 0 : index
    %3 = vector.load %arg2[%c0_1, %c0_2] : memref<8x48xf32, #tpu.memory_space<vmem>>, vector<8x48xf32>
    %c0_3 = arith.constant 0 : index
    %c0_4 = arith.constant 0 : index
    %4 = vector.load %arg3[%c0_3, %c0_4] : memref<8x1xf32, #tpu.memory_space<vmem>>, vector<8x1xf32>
    %5 = vector.extract_strided_slice %2 {offsets = [0, 0], sizes = [48, 128], strides = [1, 1]} : vector<544x128xf32> to vector<48x128xf32>
    %cst_5 = arith.constant dense<0.000000e+00> : vector<8x128xf32>
    %6 = tpu.matmul %3, %5, %cst_5 {dimension_numbers = #tpu.dot_dimension_numbers<[1], [0], [0], [1], [0, 0, 1, 1], [], []>} : vector<8x48xf32>, vector<48x128xf32>, vector<8x128xf32> -> vector<8x128xf32>
    %7 = vector.broadcast %4 : vector<8x1xf32> to vector<8x128xf32>
    %8 = arith.addf %6, %7 : vector<8x128xf32>
    %cst_6 = arith.constant 0.000000e+00 : f32
    %9 = vector.broadcast %cst_6 : f32 to vector<8x128xf32>
    %10 = arith.maximumf %8, %9 : vector<8x128xf32>
    %11 = vector.extract_strided_slice %2 {offsets = [16, 0], sizes = [48, 128], strides = [1, 1]} : vector<544x128xf32> to vector<48x128xf32>
    %cst_7 = arith.constant dense<0.000000e+00> : vector<8x128xf32>
    %12 = tpu.matmul %3, %11, %cst_7 {dimension_numbers = #tpu.dot_dimension_numbers<[1], [0], [0], [1], [0, 0, 1, 1], [], []>} : vector<8x48xf32>, vector<48x128xf32>, vector<8x128xf32> -> vector<8x128xf32>
    %13 = vector.broadcast %4 : vector<8x1xf32> to vector<8x128xf32>
    %14 = arith.addf %12, %13 : vector<8x128xf32>
    %cst_8 = arith.constant 0.000000e+00 : f32
    %15 = vector.broadcast %cst_8 : f32 to vector<8x128xf32>
    %16 = arith.maximumf %14, %15 : vector<8x128xf32>
    %17 = vector.extract_strided_slice %2 {offsets = [32, 0], sizes = [48, 128], strides = [1, 1]} : vector<544x128xf32> to vector<48x128xf32>
    %cst_9 = arith.constant dense<0.000000e+00> : vector<8x128xf32>
    %18 = tpu.matmul %3, %17, %cst_9 {dimension_numbers = #tpu.dot_dimension_numbers<[1], [0], [0], [1], [0, 0, 1, 1], [], []>} : vector<8x48xf32>, vector<48x128xf32>, vector<8x128xf32> -> vector<8x128xf32>
    %19 = vector.broadcast %4 : vector<8x1xf32> to vector<8x128xf32>
    %20 = arith.addf %18, %19 : vector<8x128xf32>
    %cst_10 = arith.constant 0.000000e+00 : f32
    %21 = vector.broadcast %cst_10 : f32 to vector<8x128xf32>
    %22 = arith.maximumf %20, %21 : vector<8x128xf32>
    %23 = vector.extract_strided_slice %2 {offsets = [48, 0], sizes = [48, 128], strides = [1, 1]} : vector<544x128xf32> to vector<48x128xf32>
    %cst_11 = arith.constant dense<0.000000e+00> : vector<8x128xf32>
    %24 = tpu.matmul %3, %23, %cst_11 {dimension_numbers = #tpu.dot_dimension_numbers<[1], [0], [0], [1], [0, 0, 1, 1], [], []>} : vector<8x48xf32>, vector<48x128xf32>, vector<8x128xf32> -> vector<8x128xf32>
    %25 = vector.broadcast %4 : vector<8x1xf32> to vector<8x128xf32>
    %26 = arith.addf %24, %25 : vector<8x128xf32>
    %cst_12 = arith.constant 0.000000e+00 : f32
    %27 = vector.broadcast %cst_12 : f32 to vector<8x128xf32>
    %28 = arith.maximumf %26, %27 : vector<8x128xf32>
    %29 = vector.extract_strided_slice %2 {offsets = [64, 0], sizes = [48, 128], strides = [1, 1]} : vector<544x128xf32> to vector<48x128xf32>
    %cst_13 = arith.constant dense<0.000000e+00> : vector<8x128xf32>
    %30 = tpu.matmul %3, %29, %cst_13 {dimension_numbers = #tpu.dot_dimension_numbers<[1], [0], [0], [1], [0, 0, 1, 1], [], []>} : vector<8x48xf32>, vector<48x128xf32>, vector<8x128xf32> -> vector<8x128xf32>
    %31 = vector.broadcast %4 : vector<8x1xf32> to vector<8x128xf32>
    %32 = arith.addf %30, %31 : vector<8x128xf32>
    %cst_14 = arith.constant 0.000000e+00 : f32
    %33 = vector.broadcast %cst_14 : f32 to vector<8x128xf32>
    %34 = arith.maximumf %32, %33 : vector<8x128xf32>
    %35 = vector.extract_strided_slice %2 {offsets = [80, 0], sizes = [48, 128], strides = [1, 1]} : vector<544x128xf32> to vector<48x128xf32>
    %cst_15 = arith.constant dense<0.000000e+00> : vector<8x128xf32>
    %36 = tpu.matmul %3, %35, %cst_15 {dimension_numbers = #tpu.dot_dimension_numbers<[1], [0], [0], [1], [0, 0, 1, 1], [], []>} : vector<8x48xf32>, vector<48x128xf32>, vector<8x128xf32> -> vector<8x128xf32>
    %37 = vector.broadcast %4 : vector<8x1xf32> to vector<8x128xf32>
    %38 = arith.addf %36, %37 : vector<8x128xf32>
    %cst_16 = arith.constant 0.000000e+00 : f32
    %39 = vector.broadcast %cst_16 : f32 to vector<8x128xf32>
    %40 = arith.maximumf %38, %39 : vector<8x128xf32>
    %41 = vector.extract_strided_slice %2 {offsets = [96, 0], sizes = [48, 128], strides = [1, 1]} : vector<544x128xf32> to vector<48x128xf32>
    %cst_17 = arith.constant dense<0.000000e+00> : vector<8x128xf32>
    %42 = tpu.matmul %3, %41, %cst_17 {dimension_numbers = #tpu.dot_dimension_numbers<[1], [0], [0], [1], [0, 0, 1, 1], [], []>} : vector<8x48xf32>, vector<48x128xf32>, vector<8x128xf32> -> vector<8x128xf32>
    %43 = vector.broadcast %4 : vector<8x1xf32> to vector<8x128xf32>
    %44 = arith.addf %42, %43 : vector<8x128xf32>
    %cst_18 = arith.constant 0.000000e+00 : f32
    %45 = vector.broadcast %cst_18 : f32 to vector<8x128xf32>
    %46 = arith.maximumf %44, %45 : vector<8x128xf32>
    %47 = vector.extract_strided_slice %2 {offsets = [112, 0], sizes = [48, 128], strides = [1, 1]} : vector<544x128xf32> to vector<48x128xf32>
    %cst_19 = arith.constant dense<0.000000e+00> : vector<8x128xf32>
    %48 = tpu.matmul %3, %47, %cst_19 {dimension_numbers = #tpu.dot_dimension_numbers<[1], [0], [0], [1], [0, 0, 1, 1], [], []>} : vector<8x48xf32>, vector<48x128xf32>, vector<8x128xf32> -> vector<8x128xf32>
    %49 = vector.broadcast %4 : vector<8x1xf32> to vector<8x128xf32>
    %50 = arith.addf %48, %49 : vector<8x128xf32>
    %cst_20 = arith.constant 0.000000e+00 : f32
    %51 = vector.broadcast %cst_20 : f32 to vector<8x128xf32>
    %52 = arith.maximumf %50, %51 : vector<8x128xf32>
    %53 = vector.extract_strided_slice %2 {offsets = [128, 0], sizes = [48, 128], strides = [1, 1]} : vector<544x128xf32> to vector<48x128xf32>
    %cst_21 = arith.constant dense<0.000000e+00> : vector<8x128xf32>
    %54 = tpu.matmul %3, %53, %cst_21 {dimension_numbers = #tpu.dot_dimension_numbers<[1], [0], [0], [1], [0, 0, 1, 1], [], []>} : vector<8x48xf32>, vector<48x128xf32>, vector<8x128xf32> -> vector<8x128xf32>
    %55 = vector.broadcast %4 : vector<8x1xf32> to vector<8x128xf32>
    %56 = arith.addf %54, %55 : vector<8x128xf32>
    %cst_22 = arith.constant 0.000000e+00 : f32
    %57 = vector.broadcast %cst_22 : f32 to vector<8x128xf32>
    %58 = arith.maximumf %56, %57 : vector<8x128xf32>
    %59 = vector.extract_strided_slice %2 {offsets = [144, 0], sizes = [48, 128], strides = [1, 1]} : vector<544x128xf32> to vector<48x128xf32>
    %cst_23 = arith.constant dense<0.000000e+00> : vector<8x128xf32>
    %60 = tpu.matmul %3, %59, %cst_23 {dimension_numbers = #tpu.dot_dimension_numbers<[1], [0], [0], [1], [0, 0, 1, 1], [], []>} : vector<8x48xf32>, vector<48x128xf32>, vector<8x128xf32> -> vector<8x128xf32>
    %61 = vector.broadcast %4 : vector<8x1xf32> to vector<8x128xf32>
    %62 = arith.addf %60, %61 : vector<8x128xf32>
    %cst_24 = arith.constant 0.000000e+00 : f32
    %63 = vector.broadcast %cst_24 : f32 to vector<8x128xf32>
    %64 = arith.maximumf %62, %63 : vector<8x128xf32>
    %65 = vector.extract_strided_slice %2 {offsets = [160, 0], sizes = [48, 128], strides = [1, 1]} : vector<544x128xf32> to vector<48x128xf32>
    %cst_25 = arith.constant dense<0.000000e+00> : vector<8x128xf32>
    %66 = tpu.matmul %3, %65, %cst_25 {dimension_numbers = #tpu.dot_dimension_numbers<[1], [0], [0], [1], [0, 0, 1, 1], [], []>} : vector<8x48xf32>, vector<48x128xf32>, vector<8x128xf32> -> vector<8x128xf32>
    %67 = vector.broadcast %4 : vector<8x1xf32> to vector<8x128xf32>
    %68 = arith.addf %66, %67 : vector<8x128xf32>
    %cst_26 = arith.constant 0.000000e+00 : f32
    %69 = vector.broadcast %cst_26 : f32 to vector<8x128xf32>
    %70 = arith.maximumf %68, %69 : vector<8x128xf32>
    %71 = vector.extract_strided_slice %2 {offsets = [176, 0], sizes = [48, 128], strides = [1, 1]} : vector<544x128xf32> to vector<48x128xf32>
    %cst_27 = arith.constant dense<0.000000e+00> : vector<8x128xf32>
    %72 = tpu.matmul %3, %71, %cst_27 {dimension_numbers = #tpu.dot_dimension_numbers<[1], [0], [0], [1], [0, 0, 1, 1], [], []>} : vector<8x48xf32>, vector<48x128xf32>, vector<8x128xf32> -> vector<8x128xf32>
    %73 = vector.broadcast %4 : vector<8x1xf32> to vector<8x128xf32>
    %74 = arith.addf %72, %73 : vector<8x128xf32>
    %cst_28 = arith.constant 0.000000e+00 : f32
    %75 = vector.broadcast %cst_28 : f32 to vector<8x128xf32>
    %76 = arith.maximumf %74, %75 : vector<8x128xf32>
    %77 = vector.extract_strided_slice %2 {offsets = [192, 0], sizes = [48, 128], strides = [1, 1]} : vector<544x128xf32> to vector<48x128xf32>
    %cst_29 = arith.constant dense<0.000000e+00> : vector<8x128xf32>
    %78 = tpu.matmul %3, %77, %cst_29 {dimension_numbers = #tpu.dot_dimension_numbers<[1], [0], [0], [1], [0, 0, 1, 1], [], []>} : vector<8x48xf32>, vector<48x128xf32>, vector<8x128xf32> -> vector<8x128xf32>
    %79 = vector.broadcast %4 : vector<8x1xf32> to vector<8x128xf32>
    %80 = arith.addf %78, %79 : vector<8x128xf32>
    %cst_30 = arith.constant 0.000000e+00 : f32
    %81 = vector.broadcast %cst_30 : f32 to vector<8x128xf32>
    %82 = arith.maximumf %80, %81 : vector<8x128xf32>
    %83 = vector.extract_strided_slice %2 {offsets = [208, 0], sizes = [48, 128], strides = [1, 1]} : vector<544x128xf32> to vector<48x128xf32>
    %cst_31 = arith.constant dense<0.000000e+00> : vector<8x128xf32>
    %84 = tpu.matmul %3, %83, %cst_31 {dimension_numbers = #tpu.dot_dimension_numbers<[1], [0], [0], [1], [0, 0, 1, 1], [], []>} : vector<8x48xf32>, vector<48x128xf32>, vector<8x128xf32> -> vector<8x128xf32>
    %85 = vector.broadcast %4 : vector<8x1xf32> to vector<8x128xf32>
    %86 = arith.addf %84, %85 : vector<8x128xf32>
    %cst_32 = arith.constant 0.000000e+00 : f32
    %87 = vector.broadcast %cst_32 : f32 to vector<8x128xf32>
    %88 = arith.maximumf %86, %87 : vector<8x128xf32>
    %89 = vector.extract_strided_slice %2 {offsets = [224, 0], sizes = [48, 128], strides = [1, 1]} : vector<544x128xf32> to vector<48x128xf32>
    %cst_33 = arith.constant dense<0.000000e+00> : vector<8x128xf32>
    %90 = tpu.matmul %3, %89, %cst_33 {dimension_numbers = #tpu.dot_dimension_numbers<[1], [0], [0], [1], [0, 0, 1, 1], [], []>} : vector<8x48xf32>, vector<48x128xf32>, vector<8x128xf32> -> vector<8x128xf32>
    %91 = vector.broadcast %4 : vector<8x1xf32> to vector<8x128xf32>
    %92 = arith.addf %90, %91 : vector<8x128xf32>
    %cst_34 = arith.constant 0.000000e+00 : f32
    %93 = vector.broadcast %cst_34 : f32 to vector<8x128xf32>
    %94 = arith.maximumf %92, %93 : vector<8x128xf32>
    %95 = vector.extract_strided_slice %2 {offsets = [240, 0], sizes = [48, 128], strides = [1, 1]} : vector<544x128xf32> to vector<48x128xf32>
    %cst_35 = arith.constant dense<0.000000e+00> : vector<8x128xf32>
    %96 = tpu.matmul %3, %95, %cst_35 {dimension_numbers = #tpu.dot_dimension_numbers<[1], [0], [0], [1], [0, 0, 1, 1], [], []>} : vector<8x48xf32>, vector<48x128xf32>, vector<8x128xf32> -> vector<8x128xf32>
    %97 = vector.broadcast %4 : vector<8x1xf32> to vector<8x128xf32>
    %98 = arith.addf %96, %97 : vector<8x128xf32>
    %cst_36 = arith.constant 0.000000e+00 : f32
    %99 = vector.broadcast %cst_36 : f32 to vector<8x128xf32>
    %100 = arith.maximumf %98, %99 : vector<8x128xf32>
    %101 = vector.extract_strided_slice %2 {offsets = [256, 0], sizes = [48, 128], strides = [1, 1]} : vector<544x128xf32> to vector<48x128xf32>
    %cst_37 = arith.constant dense<0.000000e+00> : vector<8x128xf32>
    %102 = tpu.matmul %3, %101, %cst_37 {dimension_numbers = #tpu.dot_dimension_numbers<[1], [0], [0], [1], [0, 0, 1, 1], [], []>} : vector<8x48xf32>, vector<48x128xf32>, vector<8x128xf32> -> vector<8x128xf32>
    %103 = vector.broadcast %4 : vector<8x1xf32> to vector<8x128xf32>
    %104 = arith.addf %102, %103 : vector<8x128xf32>
    %cst_38 = arith.constant 0.000000e+00 : f32
    %105 = vector.broadcast %cst_38 : f32 to vector<8x128xf32>
    %106 = arith.maximumf %104, %105 : vector<8x128xf32>
    %107 = vector.extract_strided_slice %2 {offsets = [272, 0], sizes = [48, 128], strides = [1, 1]} : vector<544x128xf32> to vector<48x128xf32>
    %cst_39 = arith.constant dense<0.000000e+00> : vector<8x128xf32>
    %108 = tpu.matmul %3, %107, %cst_39 {dimension_numbers = #tpu.dot_dimension_numbers<[1], [0], [0], [1], [0, 0, 1, 1], [], []>} : vector<8x48xf32>, vector<48x128xf32>, vector<8x128xf32> -> vector<8x128xf32>
    %109 = vector.broadcast %4 : vector<8x1xf32> to vector<8x128xf32>
    %110 = arith.addf %108, %109 : vector<8x128xf32>
    %cst_40 = arith.constant 0.000000e+00 : f32
    %111 = vector.broadcast %cst_40 : f32 to vector<8x128xf32>
    %112 = arith.maximumf %110, %111 : vector<8x128xf32>
    %113 = vector.extract_strided_slice %2 {offsets = [288, 0], sizes = [48, 128], strides = [1, 1]} : vector<544x128xf32> to vector<48x128xf32>
    %cst_41 = arith.constant dense<0.000000e+00> : vector<8x128xf32>
    %114 = tpu.matmul %3, %113, %cst_41 {dimension_numbers = #tpu.dot_dimension_numbers<[1], [0], [0], [1], [0, 0, 1, 1], [], []>} : vector<8x48xf32>, vector<48x128xf32>, vector<8x128xf32> -> vector<8x128xf32>
    %115 = vector.broadcast %4 : vector<8x1xf32> to vector<8x128xf32>
    %116 = arith.addf %114, %115 : vector<8x128xf32>
    %cst_42 = arith.constant 0.000000e+00 : f32
    %117 = vector.broadcast %cst_42 : f32 to vector<8x128xf32>
    %118 = arith.maximumf %116, %117 : vector<8x128xf32>
    %119 = vector.extract_strided_slice %2 {offsets = [304, 0], sizes = [48, 128], strides = [1, 1]} : vector<544x128xf32> to vector<48x128xf32>
    %cst_43 = arith.constant dense<0.000000e+00> : vector<8x128xf32>
    %120 = tpu.matmul %3, %119, %cst_43 {dimension_numbers = #tpu.dot_dimension_numbers<[1], [0], [0], [1], [0, 0, 1, 1], [], []>} : vector<8x48xf32>, vector<48x128xf32>, vector<8x128xf32> -> vector<8x128xf32>
    %121 = vector.broadcast %4 : vector<8x1xf32> to vector<8x128xf32>
    %122 = arith.addf %120, %121 : vector<8x128xf32>
    %cst_44 = arith.constant 0.000000e+00 : f32
    %123 = vector.broadcast %cst_44 : f32 to vector<8x128xf32>
    %124 = arith.maximumf %122, %123 : vector<8x128xf32>
    %125 = vector.extract_strided_slice %2 {offsets = [320, 0], sizes = [48, 128], strides = [1, 1]} : vector<544x128xf32> to vector<48x128xf32>
    %cst_45 = arith.constant dense<0.000000e+00> : vector<8x128xf32>
    %126 = tpu.matmul %3, %125, %cst_45 {dimension_numbers = #tpu.dot_dimension_numbers<[1], [0], [0], [1], [0, 0, 1, 1], [], []>} : vector<8x48xf32>, vector<48x128xf32>, vector<8x128xf32> -> vector<8x128xf32>
    %127 = vector.broadcast %4 : vector<8x1xf32> to vector<8x128xf32>
    %128 = arith.addf %126, %127 : vector<8x128xf32>
    %cst_46 = arith.constant 0.000000e+00 : f32
    %129 = vector.broadcast %cst_46 : f32 to vector<8x128xf32>
    %130 = arith.maximumf %128, %129 : vector<8x128xf32>
    %131 = vector.extract_strided_slice %2 {offsets = [336, 0], sizes = [48, 128], strides = [1, 1]} : vector<544x128xf32> to vector<48x128xf32>
    %cst_47 = arith.constant dense<0.000000e+00> : vector<8x128xf32>
    %132 = tpu.matmul %3, %131, %cst_47 {dimension_numbers = #tpu.dot_dimension_numbers<[1], [0], [0], [1], [0, 0, 1, 1], [], []>} : vector<8x48xf32>, vector<48x128xf32>, vector<8x128xf32> -> vector<8x128xf32>
    %133 = vector.broadcast %4 : vector<8x1xf32> to vector<8x128xf32>
    %134 = arith.addf %132, %133 : vector<8x128xf32>
    %cst_48 = arith.constant 0.000000e+00 : f32
    %135 = vector.broadcast %cst_48 : f32 to vector<8x128xf32>
    %136 = arith.maximumf %134, %135 : vector<8x128xf32>
    %137 = vector.extract_strided_slice %2 {offsets = [352, 0], sizes = [48, 128], strides = [1, 1]} : vector<544x128xf32> to vector<48x128xf32>
    %cst_49 = arith.constant dense<0.000000e+00> : vector<8x128xf32>
    %138 = tpu.matmul %3, %137, %cst_49 {dimension_numbers = #tpu.dot_dimension_numbers<[1], [0], [0], [1], [0, 0, 1, 1], [], []>} : vector<8x48xf32>, vector<48x128xf32>, vector<8x128xf32> -> vector<8x128xf32>
    %139 = vector.broadcast %4 : vector<8x1xf32> to vector<8x128xf32>
    %140 = arith.addf %138, %139 : vector<8x128xf32>
    %cst_50 = arith.constant 0.000000e+00 : f32
    %141 = vector.broadcast %cst_50 : f32 to vector<8x128xf32>
    %142 = arith.maximumf %140, %141 : vector<8x128xf32>
    %143 = vector.extract_strided_slice %2 {offsets = [368, 0], sizes = [48, 128], strides = [1, 1]} : vector<544x128xf32> to vector<48x128xf32>
    %cst_51 = arith.constant dense<0.000000e+00> : vector<8x128xf32>
    %144 = tpu.matmul %3, %143, %cst_51 {dimension_numbers = #tpu.dot_dimension_numbers<[1], [0], [0], [1], [0, 0, 1, 1], [], []>} : vector<8x48xf32>, vector<48x128xf32>, vector<8x128xf32> -> vector<8x128xf32>
    %145 = vector.broadcast %4 : vector<8x1xf32> to vector<8x128xf32>
    %146 = arith.addf %144, %145 : vector<8x128xf32>
    %cst_52 = arith.constant 0.000000e+00 : f32
    %147 = vector.broadcast %cst_52 : f32 to vector<8x128xf32>
    %148 = arith.maximumf %146, %147 : vector<8x128xf32>
    %149 = vector.extract_strided_slice %2 {offsets = [384, 0], sizes = [48, 128], strides = [1, 1]} : vector<544x128xf32> to vector<48x128xf32>
    %cst_53 = arith.constant dense<0.000000e+00> : vector<8x128xf32>
    %150 = tpu.matmul %3, %149, %cst_53 {dimension_numbers = #tpu.dot_dimension_numbers<[1], [0], [0], [1], [0, 0, 1, 1], [], []>} : vector<8x48xf32>, vector<48x128xf32>, vector<8x128xf32> -> vector<8x128xf32>
    %151 = vector.broadcast %4 : vector<8x1xf32> to vector<8x128xf32>
    %152 = arith.addf %150, %151 : vector<8x128xf32>
    %cst_54 = arith.constant 0.000000e+00 : f32
    %153 = vector.broadcast %cst_54 : f32 to vector<8x128xf32>
    %154 = arith.maximumf %152, %153 : vector<8x128xf32>
    %155 = vector.extract_strided_slice %2 {offsets = [400, 0], sizes = [48, 128], strides = [1, 1]} : vector<544x128xf32> to vector<48x128xf32>
    %cst_55 = arith.constant dense<0.000000e+00> : vector<8x128xf32>
    %156 = tpu.matmul %3, %155, %cst_55 {dimension_numbers = #tpu.dot_dimension_numbers<[1], [0], [0], [1], [0, 0, 1, 1], [], []>} : vector<8x48xf32>, vector<48x128xf32>, vector<8x128xf32> -> vector<8x128xf32>
    %157 = vector.broadcast %4 : vector<8x1xf32> to vector<8x128xf32>
    %158 = arith.addf %156, %157 : vector<8x128xf32>
    %cst_56 = arith.constant 0.000000e+00 : f32
    %159 = vector.broadcast %cst_56 : f32 to vector<8x128xf32>
    %160 = arith.maximumf %158, %159 : vector<8x128xf32>
    %161 = vector.extract_strided_slice %2 {offsets = [416, 0], sizes = [48, 128], strides = [1, 1]} : vector<544x128xf32> to vector<48x128xf32>
    %cst_57 = arith.constant dense<0.000000e+00> : vector<8x128xf32>
    %162 = tpu.matmul %3, %161, %cst_57 {dimension_numbers = #tpu.dot_dimension_numbers<[1], [0], [0], [1], [0, 0, 1, 1], [], []>} : vector<8x48xf32>, vector<48x128xf32>, vector<8x128xf32> -> vector<8x128xf32>
    %163 = vector.broadcast %4 : vector<8x1xf32> to vector<8x128xf32>
    %164 = arith.addf %162, %163 : vector<8x128xf32>
    %cst_58 = arith.constant 0.000000e+00 : f32
    %165 = vector.broadcast %cst_58 : f32 to vector<8x128xf32>
    %166 = arith.maximumf %164, %165 : vector<8x128xf32>
    %167 = vector.extract_strided_slice %2 {offsets = [432, 0], sizes = [48, 128], strides = [1, 1]} : vector<544x128xf32> to vector<48x128xf32>
    %cst_59 = arith.constant dense<0.000000e+00> : vector<8x128xf32>
    %168 = tpu.matmul %3, %167, %cst_59 {dimension_numbers = #tpu.dot_dimension_numbers<[1], [0], [0], [1], [0, 0, 1, 1], [], []>} : vector<8x48xf32>, vector<48x128xf32>, vector<8x128xf32> -> vector<8x128xf32>
    %169 = vector.broadcast %4 : vector<8x1xf32> to vector<8x128xf32>
    %170 = arith.addf %168, %169 : vector<8x128xf32>
    %cst_60 = arith.constant 0.000000e+00 : f32
    %171 = vector.broadcast %cst_60 : f32 to vector<8x128xf32>
    %172 = arith.maximumf %170, %171 : vector<8x128xf32>
    %173 = vector.extract_strided_slice %2 {offsets = [448, 0], sizes = [48, 128], strides = [1, 1]} : vector<544x128xf32> to vector<48x128xf32>
    %cst_61 = arith.constant dense<0.000000e+00> : vector<8x128xf32>
    %174 = tpu.matmul %3, %173, %cst_61 {dimension_numbers = #tpu.dot_dimension_numbers<[1], [0], [0], [1], [0, 0, 1, 1], [], []>} : vector<8x48xf32>, vector<48x128xf32>, vector<8x128xf32> -> vector<8x128xf32>
    %175 = vector.broadcast %4 : vector<8x1xf32> to vector<8x128xf32>
    %176 = arith.addf %174, %175 : vector<8x128xf32>
    %cst_62 = arith.constant 0.000000e+00 : f32
    %177 = vector.broadcast %cst_62 : f32 to vector<8x128xf32>
    %178 = arith.maximumf %176, %177 : vector<8x128xf32>
    %179 = vector.extract_strided_slice %2 {offsets = [464, 0], sizes = [48, 128], strides = [1, 1]} : vector<544x128xf32> to vector<48x128xf32>
    %cst_63 = arith.constant dense<0.000000e+00> : vector<8x128xf32>
    %180 = tpu.matmul %3, %179, %cst_63 {dimension_numbers = #tpu.dot_dimension_numbers<[1], [0], [0], [1], [0, 0, 1, 1], [], []>} : vector<8x48xf32>, vector<48x128xf32>, vector<8x128xf32> -> vector<8x128xf32>
    %181 = vector.broadcast %4 : vector<8x1xf32> to vector<8x128xf32>
    %182 = arith.addf %180, %181 : vector<8x128xf32>
    %cst_64 = arith.constant 0.000000e+00 : f32
    %183 = vector.broadcast %cst_64 : f32 to vector<8x128xf32>
    %184 = arith.maximumf %182, %183 : vector<8x128xf32>
    %185 = vector.extract_strided_slice %2 {offsets = [480, 0], sizes = [48, 128], strides = [1, 1]} : vector<544x128xf32> to vector<48x128xf32>
    %cst_65 = arith.constant dense<0.000000e+00> : vector<8x128xf32>
    %186 = tpu.matmul %3, %185, %cst_65 {dimension_numbers = #tpu.dot_dimension_numbers<[1], [0], [0], [1], [0, 0, 1, 1], [], []>} : vector<8x48xf32>, vector<48x128xf32>, vector<8x128xf32> -> vector<8x128xf32>
    %187 = vector.broadcast %4 : vector<8x1xf32> to vector<8x128xf32>
    %188 = arith.addf %186, %187 : vector<8x128xf32>
    %cst_66 = arith.constant 0.000000e+00 : f32
    %189 = vector.broadcast %cst_66 : f32 to vector<8x128xf32>
    %190 = arith.maximumf %188, %189 : vector<8x128xf32>
    %191 = vector.extract_strided_slice %2 {offsets = [496, 0], sizes = [48, 128], strides = [1, 1]} : vector<544x128xf32> to vector<48x128xf32>
    %cst_67 = arith.constant dense<0.000000e+00> : vector<8x128xf32>
    %192 = tpu.matmul %3, %191, %cst_67 {dimension_numbers = #tpu.dot_dimension_numbers<[1], [0], [0], [1], [0, 0, 1, 1], [], []>} : vector<8x48xf32>, vector<48x128xf32>, vector<8x128xf32> -> vector<8x128xf32>
    %193 = vector.broadcast %4 : vector<8x1xf32> to vector<8x128xf32>
    %194 = arith.addf %192, %193 : vector<8x128xf32>
    %cst_68 = arith.constant 0.000000e+00 : f32
    %195 = vector.broadcast %cst_68 : f32 to vector<8x128xf32>
    %196 = arith.maximumf %194, %195 : vector<8x128xf32>
    %197 = tpu.concatenate %10, %16, %22, %28, %34, %40, %46, %52, %58, %64, %70, %76, %82, %88, %94, %100 in 0 : vector<8x128xf32>, vector<8x128xf32>, vector<8x128xf32>, vector<8x128xf32>, vector<8x128xf32>, vector<8x128xf32>, vector<8x128xf32>, vector<8x128xf32>, vector<8x128xf32>, vector<8x128xf32>, vector<8x128xf32>, vector<8x128xf32>, vector<8x128xf32>, vector<8x128xf32>, vector<8x128xf32>, vector<8x128xf32> -> vector<128x128xf32>
    %198 = tpu.concatenate %106, %112, %118, %124, %130, %136, %142, %148, %154, %160, %166, %172, %178, %184, %190, %196 in 0 : vector<8x128xf32>, vector<8x128xf32>, vector<8x128xf32>, vector<8x128xf32>, vector<8x128xf32>, vector<8x128xf32>, vector<8x128xf32>, vector<8x128xf32>, vector<8x128xf32>, vector<8x128xf32>, vector<8x128xf32>, vector<8x128xf32>, vector<8x128xf32>, vector<8x128xf32>, vector<8x128xf32>, vector<8x128xf32> -> vector<128x128xf32>
    %199 = tpu.concatenate %197, %198 in 0 : vector<128x128xf32>, vector<128x128xf32> -> vector<256x128xf32>
    %200 = vector.shape_cast %199 : vector<256x128xf32> to vector<16x16x128xf32>
    %201 = vector.extract_strided_slice %200 {offsets = [0, 0, 0], sizes = [16, 8, 128], strides = [1, 1, 1]} : vector<16x16x128xf32> to vector<16x8x128xf32>
    %202 = vector.extract_strided_slice %200 {offsets = [0, 8, 0], sizes = [16, 8, 128], strides = [1, 1, 1]} : vector<16x16x128xf32> to vector<16x8x128xf32>
    %203 = arith.maximumf %201, %202 : vector<16x8x128xf32>
    %204 = vector.shape_cast %203 : vector<16x8x128xf32> to vector<128x128xf32>
    %cst_69 = arith.constant 0.000000e+00 : f32
    %205 = vector.broadcast %cst_69 : f32 to vector<16x128xf32>
    %206 = tpu.concatenate %205, %204, %205 in 0 : vector<16x128xf32>, vector<128x128xf32>, vector<16x128xf32> -> vector<160x128xf32>
    %c0_70 = arith.constant 0 : index
    %c0_71 = arith.constant 0 : index
    %207 = vector.load %arg4[%c0_70, %c0_71] : memref<16x40xf32, #tpu.memory_space<vmem>>, vector<16x40xf32>
    %c0_72 = arith.constant 0 : index
    %c0_73 = arith.constant 0 : index
    %208 = vector.load %arg5[%c0_72, %c0_73] : memref<16x1xf32, #tpu.memory_space<vmem>>, vector<16x1xf32>
    %209 = vector.extract_strided_slice %206 {offsets = [0, 0], sizes = [40, 128], strides = [1, 1]} : vector<160x128xf32> to vector<40x128xf32>
    %cst_74 = arith.constant dense<0.000000e+00> : vector<16x128xf32>
    %210 = tpu.matmul %207, %209, %cst_74 {dimension_numbers = #tpu.dot_dimension_numbers<[1], [0], [0], [1], [0, 0, 1, 1], [], []>} : vector<16x40xf32>, vector<40x128xf32>, vector<16x128xf32> -> vector<16x128xf32>
    %211 = vector.broadcast %208 : vector<16x1xf32> to vector<16x128xf32>
    %212 = arith.addf %210, %211 : vector<16x128xf32>
    %cst_75 = arith.constant 0.000000e+00 : f32
    %213 = vector.broadcast %cst_75 : f32 to vector<16x128xf32>
    %214 = arith.maximumf %212, %213 : vector<16x128xf32>
    %215 = vector.extract_strided_slice %206 {offsets = [8, 0], sizes = [40, 128], strides = [1, 1]} : vector<160x128xf32> to vector<40x128xf32>
    %cst_76 = arith.constant dense<0.000000e+00> : vector<16x128xf32>
    %216 = tpu.matmul %207, %215, %cst_76 {dimension_numbers = #tpu.dot_dimension_numbers<[1], [0], [0], [1], [0, 0, 1, 1], [], []>} : vector<16x40xf32>, vector<40x128xf32>, vector<16x128xf32> -> vector<16x128xf32>
    %217 = vector.broadcast %208 : vector<16x1xf32> to vector<16x128xf32>
    %218 = arith.addf %216, %217 : vector<16x128xf32>
    %cst_77 = arith.constant 0.000000e+00 : f32
    %219 = vector.broadcast %cst_77 : f32 to vector<16x128xf32>
    %220 = arith.maximumf %218, %219 : vector<16x128xf32>
    %221 = vector.extract_strided_slice %206 {offsets = [16, 0], sizes = [40, 128], strides = [1, 1]} : vector<160x128xf32> to vector<40x128xf32>
    %cst_78 = arith.constant dense<0.000000e+00> : vector<16x128xf32>
    %222 = tpu.matmul %207, %221, %cst_78 {dimension_numbers = #tpu.dot_dimension_numbers<[1], [0], [0], [1], [0, 0, 1, 1], [], []>} : vector<16x40xf32>, vector<40x128xf32>, vector<16x128xf32> -> vector<16x128xf32>
    %223 = vector.broadcast %208 : vector<16x1xf32> to vector<16x128xf32>
    %224 = arith.addf %222, %223 : vector<16x128xf32>
    %cst_79 = arith.constant 0.000000e+00 : f32
    %225 = vector.broadcast %cst_79 : f32 to vector<16x128xf32>
    %226 = arith.maximumf %224, %225 : vector<16x128xf32>
    %227 = vector.extract_strided_slice %206 {offsets = [24, 0], sizes = [40, 128], strides = [1, 1]} : vector<160x128xf32> to vector<40x128xf32>
    %cst_80 = arith.constant dense<0.000000e+00> : vector<16x128xf32>
    %228 = tpu.matmul %207, %227, %cst_80 {dimension_numbers = #tpu.dot_dimension_numbers<[1], [0], [0], [1], [0, 0, 1, 1], [], []>} : vector<16x40xf32>, vector<40x128xf32>, vector<16x128xf32> -> vector<16x128xf32>
    %229 = vector.broadcast %208 : vector<16x1xf32> to vector<16x128xf32>
    %230 = arith.addf %228, %229 : vector<16x128xf32>
    %cst_81 = arith.constant 0.000000e+00 : f32
    %231 = vector.broadcast %cst_81 : f32 to vector<16x128xf32>
    %232 = arith.maximumf %230, %231 : vector<16x128xf32>
    %233 = vector.extract_strided_slice %206 {offsets = [32, 0], sizes = [40, 128], strides = [1, 1]} : vector<160x128xf32> to vector<40x128xf32>
    %cst_82 = arith.constant dense<0.000000e+00> : vector<16x128xf32>
    %234 = tpu.matmul %207, %233, %cst_82 {dimension_numbers = #tpu.dot_dimension_numbers<[1], [0], [0], [1], [0, 0, 1, 1], [], []>} : vector<16x40xf32>, vector<40x128xf32>, vector<16x128xf32> -> vector<16x128xf32>
    %235 = vector.broadcast %208 : vector<16x1xf32> to vector<16x128xf32>
    %236 = arith.addf %234, %235 : vector<16x128xf32>
    %cst_83 = arith.constant 0.000000e+00 : f32
    %237 = vector.broadcast %cst_83 : f32 to vector<16x128xf32>
    %238 = arith.maximumf %236, %237 : vector<16x128xf32>
    %239 = vector.extract_strided_slice %206 {offsets = [40, 0], sizes = [40, 128], strides = [1, 1]} : vector<160x128xf32> to vector<40x128xf32>
    %cst_84 = arith.constant dense<0.000000e+00> : vector<16x128xf32>
    %240 = tpu.matmul %207, %239, %cst_84 {dimension_numbers = #tpu.dot_dimension_numbers<[1], [0], [0], [1], [0, 0, 1, 1], [], []>} : vector<16x40xf32>, vector<40x128xf32>, vector<16x128xf32> -> vector<16x128xf32>
    %241 = vector.broadcast %208 : vector<16x1xf32> to vector<16x128xf32>
    %242 = arith.addf %240, %241 : vector<16x128xf32>
    %cst_85 = arith.constant 0.000000e+00 : f32
    %243 = vector.broadcast %cst_85 : f32 to vector<16x128xf32>
    %244 = arith.maximumf %242, %243 : vector<16x128xf32>
    %245 = vector.extract_strided_slice %206 {offsets = [48, 0], sizes = [40, 128], strides = [1, 1]} : vector<160x128xf32> to vector<40x128xf32>
    %cst_86 = arith.constant dense<0.000000e+00> : vector<16x128xf32>
    %246 = tpu.matmul %207, %245, %cst_86 {dimension_numbers = #tpu.dot_dimension_numbers<[1], [0], [0], [1], [0, 0, 1, 1], [], []>} : vector<16x40xf32>, vector<40x128xf32>, vector<16x128xf32> -> vector<16x128xf32>
    %247 = vector.broadcast %208 : vector<16x1xf32> to vector<16x128xf32>
    %248 = arith.addf %246, %247 : vector<16x128xf32>
    %cst_87 = arith.constant 0.000000e+00 : f32
    %249 = vector.broadcast %cst_87 : f32 to vector<16x128xf32>
    %250 = arith.maximumf %248, %249 : vector<16x128xf32>
    %251 = vector.extract_strided_slice %206 {offsets = [56, 0], sizes = [40, 128], strides = [1, 1]} : vector<160x128xf32> to vector<40x128xf32>
    %cst_88 = arith.constant dense<0.000000e+00> : vector<16x128xf32>
    %252 = tpu.matmul %207, %251, %cst_88 {dimension_numbers = #tpu.dot_dimension_numbers<[1], [0], [0], [1], [0, 0, 1, 1], [], []>} : vector<16x40xf32>, vector<40x128xf32>, vector<16x128xf32> -> vector<16x128xf32>
    %253 = vector.broadcast %208 : vector<16x1xf32> to vector<16x128xf32>
    %254 = arith.addf %252, %253 : vector<16x128xf32>
    %cst_89 = arith.constant 0.000000e+00 : f32
    %255 = vector.broadcast %cst_89 : f32 to vector<16x128xf32>
    %256 = arith.maximumf %254, %255 : vector<16x128xf32>
    %257 = vector.extract_strided_slice %206 {offsets = [64, 0], sizes = [40, 128], strides = [1, 1]} : vector<160x128xf32> to vector<40x128xf32>
    %cst_90 = arith.constant dense<0.000000e+00> : vector<16x128xf32>
    %258 = tpu.matmul %207, %257, %cst_90 {dimension_numbers = #tpu.dot_dimension_numbers<[1], [0], [0], [1], [0, 0, 1, 1], [], []>} : vector<16x40xf32>, vector<40x128xf32>, vector<16x128xf32> -> vector<16x128xf32>
    %259 = vector.broadcast %208 : vector<16x1xf32> to vector<16x128xf32>
    %260 = arith.addf %258, %259 : vector<16x128xf32>
    %cst_91 = arith.constant 0.000000e+00 : f32
    %261 = vector.broadcast %cst_91 : f32 to vector<16x128xf32>
    %262 = arith.maximumf %260, %261 : vector<16x128xf32>
    %263 = vector.extract_strided_slice %206 {offsets = [72, 0], sizes = [40, 128], strides = [1, 1]} : vector<160x128xf32> to vector<40x128xf32>
    %cst_92 = arith.constant dense<0.000000e+00> : vector<16x128xf32>
    %264 = tpu.matmul %207, %263, %cst_92 {dimension_numbers = #tpu.dot_dimension_numbers<[1], [0], [0], [1], [0, 0, 1, 1], [], []>} : vector<16x40xf32>, vector<40x128xf32>, vector<16x128xf32> -> vector<16x128xf32>
    %265 = vector.broadcast %208 : vector<16x1xf32> to vector<16x128xf32>
    %266 = arith.addf %264, %265 : vector<16x128xf32>
    %cst_93 = arith.constant 0.000000e+00 : f32
    %267 = vector.broadcast %cst_93 : f32 to vector<16x128xf32>
    %268 = arith.maximumf %266, %267 : vector<16x128xf32>
    %269 = vector.extract_strided_slice %206 {offsets = [80, 0], sizes = [40, 128], strides = [1, 1]} : vector<160x128xf32> to vector<40x128xf32>
    %cst_94 = arith.constant dense<0.000000e+00> : vector<16x128xf32>
    %270 = tpu.matmul %207, %269, %cst_94 {dimension_numbers = #tpu.dot_dimension_numbers<[1], [0], [0], [1], [0, 0, 1, 1], [], []>} : vector<16x40xf32>, vector<40x128xf32>, vector<16x128xf32> -> vector<16x128xf32>
    %271 = vector.broadcast %208 : vector<16x1xf32> to vector<16x128xf32>
    %272 = arith.addf %270, %271 : vector<16x128xf32>
    %cst_95 = arith.constant 0.000000e+00 : f32
    %273 = vector.broadcast %cst_95 : f32 to vector<16x128xf32>
    %274 = arith.maximumf %272, %273 : vector<16x128xf32>
    %275 = vector.extract_strided_slice %206 {offsets = [88, 0], sizes = [40, 128], strides = [1, 1]} : vector<160x128xf32> to vector<40x128xf32>
    %cst_96 = arith.constant dense<0.000000e+00> : vector<16x128xf32>
    %276 = tpu.matmul %207, %275, %cst_96 {dimension_numbers = #tpu.dot_dimension_numbers<[1], [0], [0], [1], [0, 0, 1, 1], [], []>} : vector<16x40xf32>, vector<40x128xf32>, vector<16x128xf32> -> vector<16x128xf32>
    %277 = vector.broadcast %208 : vector<16x1xf32> to vector<16x128xf32>
    %278 = arith.addf %276, %277 : vector<16x128xf32>
    %cst_97 = arith.constant 0.000000e+00 : f32
    %279 = vector.broadcast %cst_97 : f32 to vector<16x128xf32>
    %280 = arith.maximumf %278, %279 : vector<16x128xf32>
    %281 = vector.extract_strided_slice %206 {offsets = [96, 0], sizes = [40, 128], strides = [1, 1]} : vector<160x128xf32> to vector<40x128xf32>
    %cst_98 = arith.constant dense<0.000000e+00> : vector<16x128xf32>
    %282 = tpu.matmul %207, %281, %cst_98 {dimension_numbers = #tpu.dot_dimension_numbers<[1], [0], [0], [1], [0, 0, 1, 1], [], []>} : vector<16x40xf32>, vector<40x128xf32>, vector<16x128xf32> -> vector<16x128xf32>
    %283 = vector.broadcast %208 : vector<16x1xf32> to vector<16x128xf32>
    %284 = arith.addf %282, %283 : vector<16x128xf32>
    %cst_99 = arith.constant 0.000000e+00 : f32
    %285 = vector.broadcast %cst_99 : f32 to vector<16x128xf32>
    %286 = arith.maximumf %284, %285 : vector<16x128xf32>
    %287 = vector.extract_strided_slice %206 {offsets = [104, 0], sizes = [40, 128], strides = [1, 1]} : vector<160x128xf32> to vector<40x128xf32>
    %cst_100 = arith.constant dense<0.000000e+00> : vector<16x128xf32>
    %288 = tpu.matmul %207, %287, %cst_100 {dimension_numbers = #tpu.dot_dimension_numbers<[1], [0], [0], [1], [0, 0, 1, 1], [], []>} : vector<16x40xf32>, vector<40x128xf32>, vector<16x128xf32> -> vector<16x128xf32>
    %289 = vector.broadcast %208 : vector<16x1xf32> to vector<16x128xf32>
    %290 = arith.addf %288, %289 : vector<16x128xf32>
    %cst_101 = arith.constant 0.000000e+00 : f32
    %291 = vector.broadcast %cst_101 : f32 to vector<16x128xf32>
    %292 = arith.maximumf %290, %291 : vector<16x128xf32>
    %293 = vector.extract_strided_slice %206 {offsets = [112, 0], sizes = [40, 128], strides = [1, 1]} : vector<160x128xf32> to vector<40x128xf32>
    %cst_102 = arith.constant dense<0.000000e+00> : vector<16x128xf32>
    %294 = tpu.matmul %207, %293, %cst_102 {dimension_numbers = #tpu.dot_dimension_numbers<[1], [0], [0], [1], [0, 0, 1, 1], [], []>} : vector<16x40xf32>, vector<40x128xf32>, vector<16x128xf32> -> vector<16x128xf32>
    %295 = vector.broadcast %208 : vector<16x1xf32> to vector<16x128xf32>
    %296 = arith.addf %294, %295 : vector<16x128xf32>
    %cst_103 = arith.constant 0.000000e+00 : f32
    %297 = vector.broadcast %cst_103 : f32 to vector<16x128xf32>
    %298 = arith.maximumf %296, %297 : vector<16x128xf32>
    %299 = vector.extract_strided_slice %206 {offsets = [120, 0], sizes = [40, 128], strides = [1, 1]} : vector<160x128xf32> to vector<40x128xf32>
    %cst_104 = arith.constant dense<0.000000e+00> : vector<16x128xf32>
    %300 = tpu.matmul %207, %299, %cst_104 {dimension_numbers = #tpu.dot_dimension_numbers<[1], [0], [0], [1], [0, 0, 1, 1], [], []>} : vector<16x40xf32>, vector<40x128xf32>, vector<16x128xf32> -> vector<16x128xf32>
    %301 = vector.broadcast %208 : vector<16x1xf32> to vector<16x128xf32>
    %302 = arith.addf %300, %301 : vector<16x128xf32>
    %cst_105 = arith.constant 0.000000e+00 : f32
    %303 = vector.broadcast %cst_105 : f32 to vector<16x128xf32>
    %304 = arith.maximumf %302, %303 : vector<16x128xf32>
    %305 = tpu.concatenate %214, %220, %226, %232, %238, %244, %250, %256, %262, %268, %274, %280, %286, %292, %298, %304 in 0 : vector<16x128xf32>, vector<16x128xf32>, vector<16x128xf32>, vector<16x128xf32>, vector<16x128xf32>, vector<16x128xf32>, vector<16x128xf32>, vector<16x128xf32>, vector<16x128xf32>, vector<16x128xf32>, vector<16x128xf32>, vector<16x128xf32>, vector<16x128xf32>, vector<16x128xf32>, vector<16x128xf32>, vector<16x128xf32> -> vector<256x128xf32>
    %306 = vector.shape_cast %305 : vector<256x128xf32> to vector<8x32x128xf32>
    %307 = vector.extract_strided_slice %306 {offsets = [0, 0, 0], sizes = [8, 16, 128], strides = [1, 1, 1]} : vector<8x32x128xf32> to vector<8x16x128xf32>
    %308 = vector.extract_strided_slice %306 {offsets = [0, 16, 0], sizes = [8, 16, 128], strides = [1, 1, 1]} : vector<8x32x128xf32> to vector<8x16x128xf32>
    %309 = arith.maximumf %307, %308 : vector<8x16x128xf32>
    %310 = vector.shape_cast %309 : vector<8x16x128xf32> to vector<128x128xf32>
    %cst_106 = arith.constant 0.000000e+00 : f32
    %311 = vector.broadcast %cst_106 : f32 to vector<48x128xf32>
    %312 = tpu.concatenate %311, %310, %311 in 0 : vector<48x128xf32>, vector<128x128xf32>, vector<48x128xf32> -> vector<224x128xf32>
    %c0_107 = arith.constant 0 : index
    %c0_108 = arith.constant 0 : index
    %313 = vector.load %arg6[%c0_107, %c0_108] : memref<32x112xf32, #tpu.memory_space<vmem>>, vector<32x112xf32>
    %c0_109 = arith.constant 0 : index
    %c0_110 = arith.constant 0 : index
    %314 = vector.load %arg7[%c0_109, %c0_110] : memref<32x1xf32, #tpu.memory_space<vmem>>, vector<32x1xf32>
    %315 = vector.extract_strided_slice %312 {offsets = [0, 0], sizes = [112, 128], strides = [1, 1]} : vector<224x128xf32> to vector<112x128xf32>
    %cst_111 = arith.constant dense<0.000000e+00> : vector<32x128xf32>
    %316 = tpu.matmul %313, %315, %cst_111 {dimension_numbers = #tpu.dot_dimension_numbers<[1], [0], [0], [1], [0, 0, 1, 1], [], []>} : vector<32x112xf32>, vector<112x128xf32>, vector<32x128xf32> -> vector<32x128xf32>
    %317 = vector.broadcast %314 : vector<32x1xf32> to vector<32x128xf32>
    %318 = arith.addf %316, %317 : vector<32x128xf32>
    %cst_112 = arith.constant 0.000000e+00 : f32
    %319 = vector.broadcast %cst_112 : f32 to vector<32x128xf32>
    %320 = arith.maximumf %318, %319 : vector<32x128xf32>
    %321 = vector.extract_strided_slice %312 {offsets = [16, 0], sizes = [112, 128], strides = [1, 1]} : vector<224x128xf32> to vector<112x128xf32>
    %cst_113 = arith.constant dense<0.000000e+00> : vector<32x128xf32>
    %322 = tpu.matmul %313, %321, %cst_113 {dimension_numbers = #tpu.dot_dimension_numbers<[1], [0], [0], [1], [0, 0, 1, 1], [], []>} : vector<32x112xf32>, vector<112x128xf32>, vector<32x128xf32> -> vector<32x128xf32>
    %323 = vector.broadcast %314 : vector<32x1xf32> to vector<32x128xf32>
    %324 = arith.addf %322, %323 : vector<32x128xf32>
    %cst_114 = arith.constant 0.000000e+00 : f32
    %325 = vector.broadcast %cst_114 : f32 to vector<32x128xf32>
    %326 = arith.maximumf %324, %325 : vector<32x128xf32>
    %327 = vector.extract_strided_slice %312 {offsets = [32, 0], sizes = [112, 128], strides = [1, 1]} : vector<224x128xf32> to vector<112x128xf32>
    %cst_115 = arith.constant dense<0.000000e+00> : vector<32x128xf32>
    %328 = tpu.matmul %313, %327, %cst_115 {dimension_numbers = #tpu.dot_dimension_numbers<[1], [0], [0], [1], [0, 0, 1, 1], [], []>} : vector<32x112xf32>, vector<112x128xf32>, vector<32x128xf32> -> vector<32x128xf32>
    %329 = vector.broadcast %314 : vector<32x1xf32> to vector<32x128xf32>
    %330 = arith.addf %328, %329 : vector<32x128xf32>
    %cst_116 = arith.constant 0.000000e+00 : f32
    %331 = vector.broadcast %cst_116 : f32 to vector<32x128xf32>
    %332 = arith.maximumf %330, %331 : vector<32x128xf32>
    %333 = vector.extract_strided_slice %312 {offsets = [48, 0], sizes = [112, 128], strides = [1, 1]} : vector<224x128xf32> to vector<112x128xf32>
    %cst_117 = arith.constant dense<0.000000e+00> : vector<32x128xf32>
    %334 = tpu.matmul %313, %333, %cst_117 {dimension_numbers = #tpu.dot_dimension_numbers<[1], [0], [0], [1], [0, 0, 1, 1], [], []>} : vector<32x112xf32>, vector<112x128xf32>, vector<32x128xf32> -> vector<32x128xf32>
    %335 = vector.broadcast %314 : vector<32x1xf32> to vector<32x128xf32>
    %336 = arith.addf %334, %335 : vector<32x128xf32>
    %cst_118 = arith.constant 0.000000e+00 : f32
    %337 = vector.broadcast %cst_118 : f32 to vector<32x128xf32>
    %338 = arith.maximumf %336, %337 : vector<32x128xf32>
    %339 = vector.extract_strided_slice %312 {offsets = [64, 0], sizes = [112, 128], strides = [1, 1]} : vector<224x128xf32> to vector<112x128xf32>
    %cst_119 = arith.constant dense<0.000000e+00> : vector<32x128xf32>
    %340 = tpu.matmul %313, %339, %cst_119 {dimension_numbers = #tpu.dot_dimension_numbers<[1], [0], [0], [1], [0, 0, 1, 1], [], []>} : vector<32x112xf32>, vector<112x128xf32>, vector<32x128xf32> -> vector<32x128xf32>
    %341 = vector.broadcast %314 : vector<32x1xf32> to vector<32x128xf32>
    %342 = arith.addf %340, %341 : vector<32x128xf32>
    %cst_120 = arith.constant 0.000000e+00 : f32
    %343 = vector.broadcast %cst_120 : f32 to vector<32x128xf32>
    %344 = arith.maximumf %342, %343 : vector<32x128xf32>
    %345 = vector.extract_strided_slice %312 {offsets = [80, 0], sizes = [112, 128], strides = [1, 1]} : vector<224x128xf32> to vector<112x128xf32>
    %cst_121 = arith.constant dense<0.000000e+00> : vector<32x128xf32>
    %346 = tpu.matmul %313, %345, %cst_121 {dimension_numbers = #tpu.dot_dimension_numbers<[1], [0], [0], [1], [0, 0, 1, 1], [], []>} : vector<32x112xf32>, vector<112x128xf32>, vector<32x128xf32> -> vector<32x128xf32>
    %347 = vector.broadcast %314 : vector<32x1xf32> to vector<32x128xf32>
    %348 = arith.addf %346, %347 : vector<32x128xf32>
    %cst_122 = arith.constant 0.000000e+00 : f32
    %349 = vector.broadcast %cst_122 : f32 to vector<32x128xf32>
    %350 = arith.maximumf %348, %349 : vector<32x128xf32>
    %351 = vector.extract_strided_slice %312 {offsets = [96, 0], sizes = [112, 128], strides = [1, 1]} : vector<224x128xf32> to vector<112x128xf32>
    %cst_123 = arith.constant dense<0.000000e+00> : vector<32x128xf32>
    %352 = tpu.matmul %313, %351, %cst_123 {dimension_numbers = #tpu.dot_dimension_numbers<[1], [0], [0], [1], [0, 0, 1, 1], [], []>} : vector<32x112xf32>, vector<112x128xf32>, vector<32x128xf32> -> vector<32x128xf32>
    %353 = vector.broadcast %314 : vector<32x1xf32> to vector<32x128xf32>
    %354 = arith.addf %352, %353 : vector<32x128xf32>
    %cst_124 = arith.constant 0.000000e+00 : f32
    %355 = vector.broadcast %cst_124 : f32 to vector<32x128xf32>
    %356 = arith.maximumf %354, %355 : vector<32x128xf32>
    %357 = vector.extract_strided_slice %312 {offsets = [112, 0], sizes = [112, 128], strides = [1, 1]} : vector<224x128xf32> to vector<112x128xf32>
    %cst_125 = arith.constant dense<0.000000e+00> : vector<32x128xf32>
    %358 = tpu.matmul %313, %357, %cst_125 {dimension_numbers = #tpu.dot_dimension_numbers<[1], [0], [0], [1], [0, 0, 1, 1], [], []>} : vector<32x112xf32>, vector<112x128xf32>, vector<32x128xf32> -> vector<32x128xf32>
    %359 = vector.broadcast %314 : vector<32x1xf32> to vector<32x128xf32>
    %360 = arith.addf %358, %359 : vector<32x128xf32>
    %cst_126 = arith.constant 0.000000e+00 : f32
    %361 = vector.broadcast %cst_126 : f32 to vector<32x128xf32>
    %362 = arith.maximumf %360, %361 : vector<32x128xf32>
    %363 = tpu.concatenate %320, %326, %332, %338, %344, %350, %356, %362 in 0 : vector<32x128xf32>, vector<32x128xf32>, vector<32x128xf32>, vector<32x128xf32>, vector<32x128xf32>, vector<32x128xf32>, vector<32x128xf32>, vector<32x128xf32> -> vector<256x128xf32>
    %364 = vector.shape_cast %363 : vector<256x128xf32> to vector<4x64x128xf32>
    %365 = vector.extract_strided_slice %364 {offsets = [0, 0, 0], sizes = [4, 32, 128], strides = [1, 1, 1]} : vector<4x64x128xf32> to vector<4x32x128xf32>
    %366 = vector.extract_strided_slice %364 {offsets = [0, 32, 0], sizes = [4, 32, 128], strides = [1, 1, 1]} : vector<4x64x128xf32> to vector<4x32x128xf32>
    %367 = arith.maximumf %365, %366 : vector<4x32x128xf32>
    %368 = vector.shape_cast %367 : vector<4x32x128xf32> to vector<128x128xf32>
    %cst_127 = arith.constant 0.000000e+00 : f32
    %369 = vector.broadcast %cst_127 : f32 to vector<128x128xf32>
    %370 = tpu.concatenate %369, %368, %369 in 0 : vector<128x128xf32>, vector<128x128xf32>, vector<128x128xf32> -> vector<384x128xf32>
    %c0_128 = arith.constant 0 : index
    %c0_129 = arith.constant 0 : index
    %371 = vector.load %arg8[%c0_128, %c0_129] : memref<64x288xf32, #tpu.memory_space<vmem>>, vector<64x288xf32>
    %c0_130 = arith.constant 0 : index
    %c0_131 = arith.constant 0 : index
    %372 = vector.load %arg9[%c0_130, %c0_131] : memref<64x1xf32, #tpu.memory_space<vmem>>, vector<64x1xf32>
    %373 = vector.extract_strided_slice %370 {offsets = [0, 0], sizes = [288, 128], strides = [1, 1]} : vector<384x128xf32> to vector<288x128xf32>
    %cst_132 = arith.constant dense<0.000000e+00> : vector<64x128xf32>
    %374 = tpu.matmul %371, %373, %cst_132 {dimension_numbers = #tpu.dot_dimension_numbers<[1], [0], [0], [1], [0, 0, 1, 1], [], []>} : vector<64x288xf32>, vector<288x128xf32>, vector<64x128xf32> -> vector<64x128xf32>
    %375 = vector.broadcast %372 : vector<64x1xf32> to vector<64x128xf32>
    %376 = arith.addf %374, %375 : vector<64x128xf32>
    %cst_133 = arith.constant 0.000000e+00 : f32
    %377 = vector.broadcast %cst_133 : f32 to vector<64x128xf32>
    %378 = arith.maximumf %376, %377 : vector<64x128xf32>
    %379 = vector.extract_strided_slice %370 {offsets = [32, 0], sizes = [288, 128], strides = [1, 1]} : vector<384x128xf32> to vector<288x128xf32>
    %cst_134 = arith.constant dense<0.000000e+00> : vector<64x128xf32>
    %380 = tpu.matmul %371, %379, %cst_134 {dimension_numbers = #tpu.dot_dimension_numbers<[1], [0], [0], [1], [0, 0, 1, 1], [], []>} : vector<64x288xf32>, vector<288x128xf32>, vector<64x128xf32> -> vector<64x128xf32>
    %381 = vector.broadcast %372 : vector<64x1xf32> to vector<64x128xf32>
    %382 = arith.addf %380, %381 : vector<64x128xf32>
    %cst_135 = arith.constant 0.000000e+00 : f32
    %383 = vector.broadcast %cst_135 : f32 to vector<64x128xf32>
    %384 = arith.maximumf %382, %383 : vector<64x128xf32>
    %385 = arith.addf %378, %384 : vector<64x128xf32>
    %386 = vector.extract_strided_slice %370 {offsets = [64, 0], sizes = [288, 128], strides = [1, 1]} : vector<384x128xf32> to vector<288x128xf32>
    %cst_136 = arith.constant dense<0.000000e+00> : vector<64x128xf32>
    %387 = tpu.matmul %371, %386, %cst_136 {dimension_numbers = #tpu.dot_dimension_numbers<[1], [0], [0], [1], [0, 0, 1, 1], [], []>} : vector<64x288xf32>, vector<288x128xf32>, vector<64x128xf32> -> vector<64x128xf32>
    %388 = vector.broadcast %372 : vector<64x1xf32> to vector<64x128xf32>
    %389 = arith.addf %387, %388 : vector<64x128xf32>
    %cst_137 = arith.constant 0.000000e+00 : f32
    %390 = vector.broadcast %cst_137 : f32 to vector<64x128xf32>
    %391 = arith.maximumf %389, %390 : vector<64x128xf32>
    %392 = arith.addf %385, %391 : vector<64x128xf32>
    %393 = vector.extract_strided_slice %370 {offsets = [96, 0], sizes = [288, 128], strides = [1, 1]} : vector<384x128xf32> to vector<288x128xf32>
    %cst_138 = arith.constant dense<0.000000e+00> : vector<64x128xf32>
    %394 = tpu.matmul %371, %393, %cst_138 {dimension_numbers = #tpu.dot_dimension_numbers<[1], [0], [0], [1], [0, 0, 1, 1], [], []>} : vector<64x288xf32>, vector<288x128xf32>, vector<64x128xf32> -> vector<64x128xf32>
    %395 = vector.broadcast %372 : vector<64x1xf32> to vector<64x128xf32>
    %396 = arith.addf %394, %395 : vector<64x128xf32>
    %cst_139 = arith.constant 0.000000e+00 : f32
    %397 = vector.broadcast %cst_139 : f32 to vector<64x128xf32>
    %398 = arith.maximumf %396, %397 : vector<64x128xf32>
    %399 = arith.addf %392, %398 : vector<64x128xf32>
    %cst_140 = arith.constant 2.500000e-01 : f32
    %400 = vector.broadcast %cst_140 : f32 to vector<64x128xf32>
    %401 = arith.mulf %399, %400 : vector<64x128xf32>
    %c0_141 = arith.constant 0 : index
    %c0_142 = arith.constant 0 : index
    %402 = vector.load %arg10[%c0_141, %c0_142] : memref<32x64xf32, #tpu.memory_space<vmem>>, vector<32x64xf32>
    %cst_143 = arith.constant dense<0.000000e+00> : vector<32x128xf32>
    %403 = tpu.matmul %402, %401, %cst_143 {dimension_numbers = #tpu.dot_dimension_numbers<[1], [0], [0], [1], [0, 0, 1, 1], [], []>} : vector<32x64xf32>, vector<64x128xf32>, vector<32x128xf32> -> vector<32x128xf32>
    %c0_144 = arith.constant 0 : index
    %c0_145 = arith.constant 0 : index
    %404 = vector.load %arg11[%c0_144, %c0_145] : memref<32x1xf32, #tpu.memory_space<vmem>>, vector<32x1xf32>
    %405 = vector.broadcast %404 : vector<32x1xf32> to vector<32x128xf32>
    %406 = arith.addf %403, %405 : vector<32x128xf32>
    %cst_146 = arith.constant 0.000000e+00 : f32
    %407 = vector.broadcast %cst_146 : f32 to vector<32x128xf32>
    %408 = arith.maximumf %406, %407 : vector<32x128xf32>
    %c0_147 = arith.constant 0 : index
    %c0_148 = arith.constant 0 : index
    %409 = vector.load %arg12[%c0_147, %c0_148] : memref<3x32xf32, #tpu.memory_space<vmem>>, vector<3x32xf32>
    %cst_149 = arith.constant dense<0.000000e+00> : vector<3x128xf32>
    %410 = tpu.matmul %409, %408, %cst_149 {dimension_numbers = #tpu.dot_dimension_numbers<[1], [0], [0], [1], [0, 0, 1, 1], [], []>} : vector<3x32xf32>, vector<32x128xf32>, vector<3x128xf32> -> vector<3x128xf32>
    %c0_150 = arith.constant 0 : index
    %c0_151 = arith.constant 0 : index
    %411 = vector.load %arg13[%c0_150, %c0_151] : memref<3x1xf32, #tpu.memory_space<vmem>>, vector<3x1xf32>
    %412 = vector.broadcast %411 : vector<3x1xf32> to vector<3x128xf32>
    %413 = arith.addf %410, %412 : vector<3x128xf32>
    %c0_152 = arith.constant 0 : index
    %c0_153 = arith.constant 0 : index
    %414 = vector.load %arg14[%c0_152, %c0_153] : memref<3x128xf32, #tpu.memory_space<vmem>>, vector<3x128xf32>
    tpu.vector_store %arg14[%c0_152, %c0_153], %413 {strides = array<i32>} : memref<3x128xf32, #tpu.memory_space<vmem>>, vector<3x128xf32>,
    return
  }
  func.func @transform_0(%arg0: i32) -> (i32, i32) {
    %c0_i32 = arith.constant 0 : i32
    %c0_i32_0 = arith.constant 0 : i32
    return %c0_i32, %arg0 : i32, i32
  }
  func.func @transform_1(%arg0: i32) -> (i32, i32) {
    %c0_i32 = arith.constant 0 : i32
    %c0_i32_0 = arith.constant 0 : i32
    %c0_i32_1 = arith.constant 0 : i32
    return %c0_i32, %c0_i32_0 : i32, i32
  }
  func.func @transform_2(%arg0: i32) -> (i32, i32) {
    %c0_i32 = arith.constant 0 : i32
    %c0_i32_0 = arith.constant 0 : i32
    %c0_i32_1 = arith.constant 0 : i32
    return %c0_i32, %c0_i32_0 : i32, i32
  }
  func.func @transform_3(%arg0: i32) -> (i32, i32) {
    %c0_i32 = arith.constant 0 : i32
    %c0_i32_0 = arith.constant 0 : i32
    %c0_i32_1 = arith.constant 0 : i32
    return %c0_i32, %c0_i32_0 : i32, i32
  }
  func.func @transform_4(%arg0: i32) -> (i32, i32) {
    %c0_i32 = arith.constant 0 : i32
    %c0_i32_0 = arith.constant 0 : i32
    %c0_i32_1 = arith.constant 0 : i32
    return %c0_i32, %c0_i32_0 : i32, i32
  }
  func.func @transform_5(%arg0: i32) -> (i32, i32) {
    %c0_i32 = arith.constant 0 : i32
    %c0_i32_0 = arith.constant 0 : i32
    %c0_i32_1 = arith.constant 0 : i32
    return %c0_i32, %c0_i32_0 : i32, i32
  }
  func.func @transform_6(%arg0: i32) -> (i32, i32) {
    %c0_i32 = arith.constant 0 : i32
    %c0_i32_0 = arith.constant 0 : i32
    %c0_i32_1 = arith.constant 0 : i32
    return %c0_i32, %c0_i32_0 : i32, i32
  }
  func.func @transform_7(%arg0: i32) -> (i32, i32) {
    %c0_i32 = arith.constant 0 : i32
    %c0_i32_0 = arith.constant 0 : i32
    %c0_i32_1 = arith.constant 0 : i32
    return %c0_i32, %c0_i32_0 : i32, i32
  }
  func.func @transform_8(%arg0: i32) -> (i32, i32) {
    %c0_i32 = arith.constant 0 : i32
    %c0_i32_0 = arith.constant 0 : i32
    %c0_i32_1 = arith.constant 0 : i32
    return %c0_i32, %c0_i32_0 : i32, i32
  }
  func.func @transform_9(%arg0: i32) -> (i32, i32) {
    %c0_i32 = arith.constant 0 : i32
    %c0_i32_0 = arith.constant 0 : i32
    %c0_i32_1 = arith.constant 0 : i32
    return %c0_i32, %c0_i32_0 : i32, i32
  }
  func.func @transform_10(%arg0: i32) -> (i32, i32) {
    %c0_i32 = arith.constant 0 : i32
    %c0_i32_0 = arith.constant 0 : i32
    %c0_i32_1 = arith.constant 0 : i32
    return %c0_i32, %c0_i32_0 : i32, i32
  }
  func.func @transform_11(%arg0: i32) -> (i32, i32) {
    %c0_i32 = arith.constant 0 : i32
    %c0_i32_0 = arith.constant 0 : i32
    %c0_i32_1 = arith.constant 0 : i32
    return %c0_i32, %c0_i32_0 : i32, i32
  }
  func.func @transform_12(%arg0: i32) -> (i32, i32) {
    %c0_i32 = arith.constant 0 : i32
    %c0_i32_0 = arith.constant 0 : i32
    %c0_i32_1 = arith.constant 0 : i32
    return %c0_i32, %c0_i32_0 : i32, i32
  }
  func.func @transform_13(%arg0: i32) -> (i32, i32) {
    %c0_i32 = arith.constant 0 : i32
    %c0_i32_0 = arith.constant 0 : i32
    return %c0_i32, %arg0 : i32, i32
  }
}

</mosaic_0001>

<llo_original>
// kernel: simple1dcnn_forward.1
$region0: #{simple1dcnn_forward.1}
  #allocation0 [shape = 'u32[]', space=smem, size = 0x4, offset = 0x4, fixed_abs, tag = 'smem constant byte address 0x4 - core index']
  #allocation1 [shape = 'u32[144,128]{1,0:T(1,128)}', space=vmem, size = 0x12000, scoped, tag = 'internal scratch']
  %s0 = inlined_call_operand.vmem [shape: f32[512,256], index: 0, kind: input, shape index: {}]
  %s1 = inlined_call_operand.vmem [shape: f32[8,48], index: 1, kind: input, shape index: {}]
  %s2 = inlined_call_operand.vmem [shape: f32[8,1], index: 2, kind: input, shape index: {}]
  %s3 = inlined_call_operand.vmem [shape: f32[16,40], index: 3, kind: input, shape index: {}]
  %s4 = inlined_call_operand.vmem [shape: f32[16,1], index: 4, kind: input, shape index: {}]
  %s5 = inlined_call_operand.vmem [shape: f32[32,112], index: 5, kind: input, shape index: {}]
  %s6 = inlined_call_operand.vmem [shape: f32[32,1], index: 6, kind: input, shape index: {}]
  %s7 = inlined_call_operand.vmem [shape: f32[64,288], index: 7, kind: input, shape index: {}]
  %s8 = inlined_call_operand.vmem [shape: f32[64,1], index: 8, kind: input, shape index: {}]
  %s9 = inlined_call_operand.vmem [shape: f32[32,64], index: 9, kind: input, shape index: {}]
  %s10 = inlined_call_operand.vmem [shape: f32[32,1], index: 10, kind: input, shape index: {}]
  %s11 = inlined_call_operand.vmem [shape: f32[3,32], index: 11, kind: input, shape index: {}]
  %s12 = inlined_call_operand.vmem [shape: f32[3,1], index: 12, kind: input, shape index: {}]
  %s13 = inlined_call_operand.hbm [shape: f32[3,256], index: 13, kind: output, shape index: {}]
  %s14 = sld [smem:[#allocation0]]
  $region123: #{simple1dcnn_forward.1} parent=0
    _
  %s16 = ssub.s32 1, %s14
  %s17 = scalar_select 0, %s16, %s14
  $region1: #{simple1dcnn_forward.1} parent=0
    #allocation2 [shape = 'u8[524288]{0}', space=vmem, size = 0x80000, scoped, tag = 'input window, operand 0']
    #allocation3 [shape = 'u8[4096]{0}', space=vmem, size = 0x1000, scoped, tag = 'output window, operand 0']
    #allocation4 [shape = 's32[2]{0}', space=sflag, size = 0x8, scoped, tag = 'scoped memory for simple1dcnn_forward.1']
    %18 = vsyncpa [#allocation4], 0
    %s19 = scalar_lea.sflag [#allocation4], 1
    %20 = vsyncpa %s19, 0
    loop: start=0, step=1, limit=4
    $region2: #{simple1dcnn_forward.1} parent=1 // loop_pre_header
      _
    $region3: #{simple1dcnn_forward.1} parent=1 // loop_header
      %s22 = sphi 0, %s26
      %p23 = scmp.ge.s32.totalorder %s22, 4
      %s32 = sphi 0, %s34
      %s35 = sphi 0, %s32
      %s36 = sphi 0, %s35
      %s52 = sphi 0, %s36
      %s56 = sphi 0, %s56
      %s58 = sphi 0, %s56
      %s59 = sphi 0, %s58
      %s73 = sphi 0, %s59
      %s77 = sphi 0, %s77
      %s79 = sphi 0, %s77
      %s80 = sphi 0, %s79
      %s94 = sphi 0, %s80
      %s98 = sphi 0, %s98
      %s100 = sphi 0, %s98
      %s101 = sphi 0, %s100
      %s115 = sphi 0, %s101
      %s119 = sphi 0, %s119
      %s121 = sphi 0, %s119
      %s122 = sphi 0, %s121
      %s136 = sphi 0, %s122
      %s140 = sphi 0, %s140
      %s142 = sphi 0, %s140
      %s143 = sphi 0, %s142
      %s157 = sphi 0, %s143
      %s161 = sphi 0, %s161
      %s163 = sphi 0, %s161
      %s164 = sphi 0, %s163
      %s178 = sphi 0, %s164
      %s182 = sphi 0, %s182
      %s184 = sphi 0, %s182
      %s185 = sphi 0, %s184
      %s199 = sphi 0, %s185
      %s203 = sphi 0, %s203
      %s205 = sphi 0, %s203
      %s206 = sphi 0, %s205
      %s220 = sphi 0, %s206
      %s224 = sphi 0, %s224
      %s226 = sphi 0, %s224
      %s227 = sphi 0, %s226
      %s241 = sphi 0, %s227
      %s245 = sphi 0, %s245
      %s247 = sphi 0, %s245
      %s248 = sphi 0, %s247
      %s262 = sphi 0, %s248
      %s266 = sphi 0, %s266
      %s268 = sphi 0, %s266
      %s269 = sphi 0, %s268
      %s283 = sphi 0, %s269
      %s287 = sphi 0, %s287
      %s289 = sphi 0, %s287
      %s290 = sphi 0, %s289
      %s304 = sphi 0, %s290
      %s310 = sphi 0, %s312
      %s313 = sphi 0, %s310
      %s314 = sphi 0, %s313
      %s330 = sphi 0, %s314
    $region4: #{simple1dcnn_forward.1} parent=1 // loop_header_branch
      %25 = sbr.rel (%p23) target = $region8
    $region5: #{simple1dcnn_forward.1} parent=1 // loop_body
      %s27 = ssub.s32 %s22, 1
      %s28 = ssub.s32 %s22, 2
      %s29 = sadd.s32 %s22, 1
      %s30 = ssub.s32 %s22, %s29
      %p31 = scmp.eq.s32.totalorder %s30, 0
      %s33 = sadd.s32 %s32, 1
      %s34 = scalar_select %p31, %s32, %s33
      %p37 = pneg %p31
      %p38 = scmp.eq.s32.totalorder %s22, 1
      %p39 = por %p37, %p38
      %p40 = scmp.ne.s32.totalorder %s32, %s35
      %p41 = scmp.eq.s32.totalorder %s22, 0
      %p42 = por %p40, %p41
      %p43 = scmp.ne.s32.totalorder %s32, %s35
      %p44 = scmp.eq.s32.totalorder %s27, 1
      %p45 = por %p43, %p44
      %p46 = scmp.ne.s32.totalorder %s35, %s36
      %p47 = scmp.eq.s32.totalorder %s27, 0
      %p48 = por %p46, %p47
      %p49 = scmp.ne.s32.totalorder %s35, %s36
      %p50 = scmp.eq.s32.totalorder %s28, 1
      %p51 = por %p49, %p50
      %p53 = scmp.ne.s32.totalorder %s36, %s52
      %p54 = scmp.eq.s32.totalorder %s28, 0
      %p55 = por %p53, %p54
      %s57 = sadd.s32 %s56, 1
      %p60 = scmp.eq.s32.totalorder %s22, 1
      %p61 = scmp.ne.s32.totalorder %s56, %s58
      %p62 = scmp.eq.s32.totalorder %s22, 0
      %p63 = por %p61, %p62
      %p64 = scmp.ne.s32.totalorder %s56, %s58
      %p65 = scmp.eq.s32.totalorder %s27, 1
      %p66 = por %p64, %p65
      %p67 = scmp.ne.s32.totalorder %s58, %s59
      %p68 = scmp.eq.s32.totalorder %s27, 0
      %p69 = por %p67, %p68
      %p70 = scmp.ne.s32.totalorder %s58, %s59
      %p71 = scmp.eq.s32.totalorder %s28, 1
      %p72 = por %p70, %p71
      %p74 = scmp.ne.s32.totalorder %s59, %s73
      %p75 = scmp.eq.s32.totalorder %s28, 0
      %p76 = por %p74, %p75
      %s78 = sadd.s32 %s77, 1
      %p81 = scmp.eq.s32.totalorder %s22, 1
      %p82 = scmp.ne.s32.totalorder %s77, %s79
      %p83 = scmp.eq.s32.totalorder %s22, 0
      %p84 = por %p82, %p83
      %p85 = scmp.ne.s32.totalorder %s77, %s79
      %p86 = scmp.eq.s32.totalorder %s27, 1
      %p87 = por %p85, %p86
      %p88 = scmp.ne.s32.totalorder %s79, %s80
      %p89 = scmp.eq.s32.totalorder %s27, 0
      %p90 = por %p88, %p89
      %p91 = scmp.ne.s32.totalorder %s79, %s80
      %p92 = scmp.eq.s32.totalorder %s28, 1
      %p93 = por %p91, %p92
      %p95 = scmp.ne.s32.totalorder %s80, %s94
      %p96 = scmp.eq.s32.totalorder %s28, 0
      %p97 = por %p95, %p96
      %s99 = sadd.s32 %s98, 1
      %p102 = scmp.eq.s32.totalorder %s22, 1
      %p103 = scmp.ne.s32.totalorder %s98, %s100
      %p104 = scmp.eq.s32.totalorder %s22, 0
      %p105 = por %p103, %p104
      %p106 = scmp.ne.s32.totalorder %s98, %s100
      %p107 = scmp.eq.s32.totalorder %s27, 1
      %p108 = por %p106, %p107
      %p109 = scmp.ne.s32.totalorder %s100, %s101
      %p110 = scmp.eq.s32.totalorder %s27, 0
      %p111 = por %p109, %p110
      %p112 = scmp.ne.s32.totalorder %s100, %s101
      %p113 = scmp.eq.s32.totalorder %s28, 1
      %p114 = por %p112, %p113
      %p116 = scmp.ne.s32.totalorder %s101, %s115
      %p117 = scmp.eq.s32.totalorder %s28, 0
      %p118 = por %p116, %p117
      %s120 = sadd.s32 %s119, 1
      %p123 = scmp.eq.s32.totalorder %s22, 1
      %p124 = scmp.ne.s32.totalorder %s119, %s121
      %p125 = scmp.eq.s32.totalorder %s22, 0
      %p126 = por %p124, %p125
      %p127 = scmp.ne.s32.totalorder %s119, %s121
      %p128 = scmp.eq.s32.totalorder %s27, 1
      %p129 = por %p127, %p128
      %p130 = scmp.ne.s32.totalorder %s121, %s122
      %p131 = scmp.eq.s32.totalorder %s27, 0
      %p132 = por %p130, %p131
      %p133 = scmp.ne.s32.totalorder %s121, %s122
      %p134 = scmp.eq.s32.totalorder %s28, 1
      %p135 = por %p133, %p134
      %p137 = scmp.ne.s32.totalorder %s122, %s136
      %p138 = scmp.eq.s32.totalorder %s28, 0
      %p139 = por %p137, %p138
      %s141 = sadd.s32 %s140, 1
      %p144 = scmp.eq.s32.totalorder %s22, 1
      %p145 = scmp.ne.s32.totalorder %s140, %s142
      %p146 = scmp.eq.s32.totalorder %s22, 0
      %p147 = por %p145, %p146
      %p148 = scmp.ne.s32.totalorder %s140, %s142
      %p149 = scmp.eq.s32.totalorder %s27, 1
      %p150 = por %p148, %p149
      %p151 = scmp.ne.s32.totalorder %s142, %s143
      %p152 = scmp.eq.s32.totalorder %s27, 0
      %p153 = por %p151, %p152
      %p154 = scmp.ne.s32.totalorder %s142, %s143
      %p155 = scmp.eq.s32.totalorder %s28, 1
      %p156 = por %p154, %p155
      %p158 = scmp.ne.s32.totalorder %s143, %s157
      %p159 = scmp.eq.s32.totalorder %s28, 0
      %p160 = por %p158, %p159
      %s162 = sadd.s32 %s161, 1
      %p165 = scmp.eq.s32.totalorder %s22, 1
      %p166 = scmp.ne.s32.totalorder %s161, %s163
      %p167 = scmp.eq.s32.totalorder %s22, 0
      %p168 = por %p166, %p167
      %p169 = scmp.ne.s32.totalorder %s161, %s163
      %p170 = scmp.eq.s32.totalorder %s27, 1
      %p171 = por %p169, %p170
      %p172 = scmp.ne.s32.totalorder %s163, %s164
      %p173 = scmp.eq.s32.totalorder %s27, 0
      %p174 = por %p172, %p173
      %p175 = scmp.ne.s32.totalorder %s163, %s164
      %p176 = scmp.eq.s32.totalorder %s28, 1
      %p177 = por %p175, %p176
      %p179 = scmp.ne.s32.totalorder %s164, %s178
      %p180 = scmp.eq.s32.totalorder %s28, 0
      %p181 = por %p179, %p180
      %s183 = sadd.s32 %s182, 1
      %p186 = scmp.eq.s32.totalorder %s22, 1
      %p187 = scmp.ne.s32.totalorder %s182, %s184
      %p188 = scmp.eq.s32.totalorder %s22, 0
      %p189 = por %p187, %p188
      %p190 = scmp.ne.s32.totalorder %s182, %s184
      %p191 = scmp.eq.s32.totalorder %s27, 1
      %p192 = por %p190, %p191
      %p193 = scmp.ne.s32.totalorder %s184, %s185
      %p194 = scmp.eq.s32.totalorder %s27, 0
      %p195 = por %p193, %p194
      %p196 = scmp.ne.s32.totalorder %s184, %s185
      %p197 = scmp.eq.s32.totalorder %s28, 1
      %p198 = por %p196, %p197
      %p200 = scmp.ne.s32.totalorder %s185, %s199
      %p201 = scmp.eq.s32.totalorder %s28, 0
      %p202 = por %p200, %p201
      %s204 = sadd.s32 %s203, 1
      %p207 = scmp.eq.s32.totalorder %s22, 1
      %p208 = scmp.ne.s32.totalorder %s203, %s205
      %p209 = scmp.eq.s32.totalorder %s22, 0
      %p210 = por %p208, %p209
      %p211 = scmp.ne.s32.totalorder %s203, %s205
      %p212 = scmp.eq.s32.totalorder %s27, 1
      %p213 = por %p211, %p212
      %p214 = scmp.ne.s32.totalorder %s205, %s206
      %p215 = scmp.eq.s32.totalorder %s27, 0
      %p216 = por %p214, %p215
      %p217 = scmp.ne.s32.totalorder %s205, %s206
      %p218 = scmp.eq.s32.totalorder %s28, 1
      %p219 = por %p217, %p218
      %p221 = scmp.ne.s32.totalorder %s206, %s220
      %p222 = scmp.eq.s32.totalorder %s28, 0
      %p223 = por %p221, %p222
      %s225 = sadd.s32 %s224, 1
      %p228 = scmp.eq.s32.totalorder %s22, 1
      %p229 = scmp.ne.s32.totalorder %s224, %s226
      %p230 = scmp.eq.s32.totalorder %s22, 0
      %p231 = por %p229, %p230
      %p232 = scmp.ne.s32.totalorder %s224, %s226
      %p233 = scmp.eq.s32.totalorder %s27, 1
      %p234 = por %p232, %p233
      %p235 = scmp.ne.s32.totalorder %s226, %s227
      %p236 = scmp.eq.s32.totalorder %s27, 0
      %p237 = por %p235, %p236
      %p238 = scmp.ne.s32.totalorder %s226, %s227
      %p239 = scmp.eq.s32.totalorder %s28, 1
      %p240 = por %p238, %p239
      %p242 = scmp.ne.s32.totalorder %s227, %s241
      %p243 = scmp.eq.s32.totalorder %s28, 0
      %p244 = por %p242, %p243
      %s246 = sadd.s32 %s245, 1
      %p249 = scmp.eq.s32.totalorder %s22, 1
      %p250 = scmp.ne.s32.totalorder %s245, %s247
      %p251 = scmp.eq.s32.totalorder %s22, 0
      %p252 = por %p250, %p251
      %p253 = scmp.ne.s32.totalorder %s245, %s247
      %p254 = scmp.eq.s32.totalorder %s27, 1
      %p255 = por %p253, %p254
      %p256 = scmp.ne.s32.totalorder %s247, %s248
      %p257 = scmp.eq.s32.totalorder %s27, 0
      %p258 = por %p256, %p257
      %p259 = scmp.ne.s32.totalorder %s247, %s248
      %p260 = scmp.eq.s32.totalorder %s28, 1
      %p261 = por %p259, %p260
      %p263 = scmp.ne.s32.totalorder %s248, %s262
      %p264 = scmp.eq.s32.totalorder %s28, 0
      %p265 = por %p263, %p264
      %s267 = sadd.s32 %s266, 1
      %p270 = scmp.eq.s32.totalorder %s22, 1
      %p271 = scmp.ne.s32.totalorder %s266, %s268
      %p272 = scmp.eq.s32.totalorder %s22, 0
      %p273 = por %p271, %p272
      %p274 = scmp.ne.s32.totalorder %s266, %s268
      %p275 = scmp.eq.s32.totalorder %s27, 1
      %p276 = por %p274, %p275
      %p277 = scmp.ne.s32.totalorder %s268, %s269
      %p278 = scmp.eq.s32.totalorder %s27, 0
      %p279 = por %p277, %p278
      %p280 = scmp.ne.s32.totalorder %s268, %s269
      %p281 = scmp.eq.s32.totalorder %s28, 1
      %p282 = por %p280, %p281
      %p284 = scmp.ne.s32.totalorder %s269, %s283
      %p285 = scmp.eq.s32.totalorder %s28, 0
      %p286 = por %p284, %p285
      %s288 = sadd.s32 %s287, 1
      %p291 = scmp.eq.s32.totalorder %s22, 1
      %p292 = scmp.ne.s32.totalorder %s287, %s289
      %p293 = scmp.eq.s32.totalorder %s22, 0
      %p294 = por %p292, %p293
      %p295 = scmp.ne.s32.totalorder %s287, %s289
      %p296 = scmp.eq.s32.totalorder %s27, 1
      %p297 = por %p295, %p296
      %p298 = scmp.ne.s32.totalorder %s289, %s290
      %p299 = scmp.eq.s32.totalorder %s27, 0
      %p300 = por %p298, %p299
      %p301 = scmp.ne.s32.totalorder %s289, %s290
      %p302 = scmp.eq.s32.totalorder %s28, 1
      %p303 = por %p301, %p302
      %p305 = scmp.ne.s32.totalorder %s290, %s304
      %p306 = scmp.eq.s32.totalorder %s28, 0
      %p307 = por %p305, %p306
      %s308 = ssub.s32 %s22, %s29
      %p309 = scmp.eq.s32.totalorder %s308, 0
      %s311 = sadd.s32 %s310, 1
      %s312 = scalar_select %p309, %s310, %s311
      %p315 = pneg %p309
      %p316 = scmp.eq.s32.totalorder %s22, 1
      %p317 = por %p315, %p316
      %p318 = scmp.ne.s32.totalorder %s310, %s313
      %p319 = scmp.eq.s32.totalorder %s22, 0
      %p320 = por %p318, %p319
      %p321 = scmp.ne.s32.totalorder %s310, %s313
      %p322 = scmp.eq.s32.totalorder %s27, 1
      %p323 = por %p321, %p322
      %p324 = scmp.ne.s32.totalorder %s313, %s314
      %p325 = scmp.eq.s32.totalorder %s27, 0
      %p326 = por %p324, %p325
      %p327 = scmp.ne.s32.totalorder %s313, %s314
      %p328 = scmp.eq.s32.totalorder %s28, 1
      %p329 = por %p327, %p328
      %p331 = scmp.ne.s32.totalorder %s314, %s330
      %p332 = scmp.eq.s32.totalorder %s28, 0
      %p333 = por %p331, %p332
      %p334 = scmp.le.s32.totalorder 1, %s22
      %p335 = scmp.lt.s32.totalorder %s22, 3
      %p336 = pnand %p334, %p335
      %p337 = pneg %p336
      // Predicated region
      $region9: #{simple1dcnn_forward.1} parent=5 // pred_check
        _
      $region10: #{simple1dcnn_forward.1} parent=5 // pred_check_branch
        %339 = sbr.rel (%p336) target = $region12
      $region11: #{simple1dcnn_forward.1} parent=5 // pred_region
        %s340 = ssub.s32 %s22, 1
        // Predicated region
        $region13: #{simple1dcnn_forward.1} parent=11 // pred_check
          %p341 = pneg %p69
        $region14: #{simple1dcnn_forward.1} parent=11 // pred_check_branch
          %343 = sbr.rel (%p341) target = $region16
        $region15: #{simple1dcnn_forward.1} parent=11 // pred_region
          _
        $region16: #{simple1dcnn_forward.1} parent=11 // pred_fallthru
          _
        // Predicated region
        $region17: #{simple1dcnn_forward.1} parent=11 // pred_check
          %p344 = pneg %p90
        $region18: #{simple1dcnn_forward.1} parent=11 // pred_check_branch
          %346 = sbr.rel (%p344) target = $region20
        $region19: #{simple1dcnn_forward.1} parent=11 // pred_region
          _
        $region20: #{simple1dcnn_forward.1} parent=11 // pred_fallthru
          _
        // Predicated region
        $region21: #{simple1dcnn_forward.1} parent=11 // pred_check
          %p347 = pneg %p111
        $region22: #{simple1dcnn_forward.1} parent=11 // pred_check_branch
          %349 = sbr.rel (%p347) target = $region24
        $region23: #{simple1dcnn_forward.1} parent=11 // pred_region
          _
        $region24: #{simple1dcnn_forward.1} parent=11 // pred_fallthru
          _
        // Predicated region
        $region25: #{simple1dcnn_forward.1} parent=11 // pred_check
          %p350 = pneg %p132
        $region26: #{simple1dcnn_forward.1} parent=11 // pred_check_branch
          %352 = sbr.rel (%p350) target = $region28
        $region27: #{simple1dcnn_forward.1} parent=11 // pred_region
          _
        $region28: #{simple1dcnn_forward.1} parent=11 // pred_fallthru
          _
        // Predicated region
        $region29: #{simple1dcnn_forward.1} parent=11 // pred_check
          %p353 = pneg %p153
        $region30: #{simple1dcnn_forward.1} parent=11 // pred_check_branch
          %355 = sbr.rel (%p353) target = $region32
        $region31: #{simple1dcnn_forward.1} parent=11 // pred_region
          _
        $region32: #{simple1dcnn_forward.1} parent=11 // pred_fallthru
          _
        // Predicated region
        $region33: #{simple1dcnn_forward.1} parent=11 // pred_check
          %p356 = pneg %p174
        $region34: #{simple1dcnn_forward.1} parent=11 // pred_check_branch
          %358 = sbr.rel (%p356) target = $region36
        $region35: #{simple1dcnn_forward.1} parent=11 // pred_region
          _
        $region36: #{simple1dcnn_forward.1} parent=11 // pred_fallthru
          _
        // Predicated region
        $region37: #{simple1dcnn_forward.1} parent=11 // pred_check
          %p359 = pneg %p195
        $region38: #{simple1dcnn_forward.1} parent=11 // pred_check_branch
          %361 = sbr.rel (%p359) target = $region40
        $region39: #{simple1dcnn_forward.1} parent=11 // pred_region
          _
        $region40: #{simple1dcnn_forward.1} parent=11 // pred_fallthru
          _
        // Predicated region
        $region41: #{simple1dcnn_forward.1} parent=11 // pred_check
          %p362 = pneg %p216
        $region42: #{simple1dcnn_forward.1} parent=11 // pred_check_branch
          %364 = sbr.rel (%p362) target = $region44
        $region43: #{simple1dcnn_forward.1} parent=11 // pred_region
          _
        $region44: #{simple1dcnn_forward.1} parent=11 // pred_fallthru
          _
        // Predicated region
        $region45: #{simple1dcnn_forward.1} parent=11 // pred_check
          %p365 = pneg %p237
        $region46: #{simple1dcnn_forward.1} parent=11 // pred_check_branch
          %367 = sbr.rel (%p365) target = $region48
        $region47: #{simple1dcnn_forward.1} parent=11 // pred_region
          _
        $region48: #{simple1dcnn_forward.1} parent=11 // pred_fallthru
          _
        // Predicated region
        $region49: #{simple1dcnn_forward.1} parent=11 // pred_check
          %p368 = pneg %p258
        $region50: #{simple1dcnn_forward.1} parent=11 // pred_check_branch
          %370 = sbr.rel (%p368) target = $region52
        $region51: #{simple1dcnn_forward.1} parent=11 // pred_region
          _
        $region52: #{simple1dcnn_forward.1} parent=11 // pred_fallthru
          _
        // Predicated region
        $region53: #{simple1dcnn_forward.1} parent=11 // pred_check
          %p371 = pneg %p279
        $region54: #{simple1dcnn_forward.1} parent=11 // pred_check_branch
          %373 = sbr.rel (%p371) target = $region56
        $region55: #{simple1dcnn_forward.1} parent=11 // pred_region
          _
        $region56: #{simple1dcnn_forward.1} parent=11 // pred_fallthru
          _
        // Predicated region
        $region57: #{simple1dcnn_forward.1} parent=11 // pred_check
          %p374 = pneg %p300
        $region58: #{simple1dcnn_forward.1} parent=11 // pred_check_branch
          %376 = sbr.rel (%p374) target = $region60
        $region59: #{simple1dcnn_forward.1} parent=11 // pred_region
          _
        $region60: #{simple1dcnn_forward.1} parent=11 // pred_fallthru
          _
      $region12: #{simple1dcnn_forward.1} parent=5 // pred_fallthru
        _
      %p377 = scmp.lt.s32.totalorder %s22, 2
      // Predicated region
      $region61: #{simple1dcnn_forward.1} parent=5 // pred_check
        %p378 = pneg %p377
      $region62: #{simple1dcnn_forward.1} parent=5 // pred_check_branch
        %380 = sbr.rel (%p378) target = $region64
      $region63: #{simple1dcnn_forward.1} parent=5 // pred_region
        // Predicated region
        $region65: #{simple1dcnn_forward.1} parent=63 // pred_check
          %p381 = pneg %p42
        $region66: #{simple1dcnn_forward.1} parent=63 // pred_check_branch
          %383 = sbr.rel (%p381) target = $region68
        $region67: #{simple1dcnn_forward.1} parent=63 // pred_region
          %s384 = sand.u32 %s32, 1
          %s385 = sand.u32 %s32, 1
          %s386 = smul.addr %s385, 512
          %s387 = scalar_lea.vmem [#allocation2], %s386
          %s388 = smul.addr %s22, 8
          %s389 = scalar_lea.vmem %s0, %s388
          // Predicated region
          $region69: #{simple1dcnn_forward.1} parent=67 // pred_check
            _
          $region70: #{simple1dcnn_forward.1} parent=67 // pred_check_branch
            %391 = sbr.rel (0) target = $region72
          $region71: #{simple1dcnn_forward.1} parent=67 // pred_region
            // Predicated region
            $region73: #{simple1dcnn_forward.1} parent=71 // pred_check
              _
            $region74: #{simple1dcnn_forward.1} parent=71 // pred_check_branch
              %393 = sbr.rel (0) target = $region76
            $region75: #{simple1dcnn_forward.1} parent=71 // pred_region
              // Predicated region
              $region88: #{simple1dcnn_forward.1} parent=75 // pred_check
                _
              $region89: #{simple1dcnn_forward.1} parent=75 // pred_check_branch
                %535 = sbr.rel (0) target = $region91
              $region90: #{simple1dcnn_forward.1} parent=75 // pred_region
                loop: start=0, step=1, limit=1
                $region92: #{simple1dcnn_forward.1} parent=90 // loop_pre_header
                  _
                $region93: #{simple1dcnn_forward.1} parent=90 // loop_header
                  %s537 = sphi 0, %s541
                  %p538 = scmp.ge.s32.totalorder %s537, 1
                  %s542 = sphi %s389, %s389
                  %s543 = sphi %s387, %s387
                $region94: #{simple1dcnn_forward.1} parent=90 // loop_header_branch
                  %540 = sbr.rel (%p538) target = $region98
                $region95: #{simple1dcnn_forward.1} parent=90 // loop_body
                  %v544 = vld [vmem:[%s542] sm:$0xff]
                  %545 = vst [vmem:[%s543] sm:$0xff] %v544
                  %v546 = vld [vmem:[%s542 + $0x10] sm:$0xff]
                  %547 = vst [vmem:[%s543 + $0x8] sm:$0xff] %v546
                  %v548 = vld [vmem:[%s542 + $0x20] sm:$0xff]
                  %549 = vst [vmem:[%s543 + $0x10] sm:$0xff] %v548
                  %v550 = vld [vmem:[%s542 + $0x30] sm:$0xff]
                  %551 = vst [vmem:[%s543 + $0x18] sm:$0xff] %v550
                  %v552 = vld [vmem:[%s542 + $0x40] sm:$0xff]
                  %553 = vst [vmem:[%s543 + $0x20] sm:$0xff] %v552
                  %v554 = vld [vmem:[%s542 + $0x50] sm:$0xff]
                  %555 = vst [vmem:[%s543 + $0x28] sm:$0xff] %v554
                  %v556 = vld [vmem:[%s542 + $0x60] sm:$0xff]
                  %557 = vst [vmem:[%s543 + $0x30] sm:$0xff] %v556
                  %v558 = vld [vmem:[%s542 + $0x70] sm:$0xff]
                  %559 = vst [vmem:[%s543 + $0x38] sm:$0xff] %v558
                  %v560 = vld [vmem:[%s542 + $0x80] sm:$0xff]
                  %561 = vst [vmem:[%s543 + $0x40] sm:$0xff] %v560
                  %v562 = vld [vmem:[%s542 + $0x90] sm:$0xff]
                  %563 = vst [vmem:[%s543 + $0x48] sm:$0xff] %v562
                  %v564 = vld [vmem:[%s542 + $0xa0] sm:$0xff]
                  %565 = vst [vmem:[%s543 + $0x50] sm:$0xff] %v564
                  %v566 = vld [vmem:[%s542 + $0xb0] sm:$0xff]
                  %567 = vst [vmem:[%s543 + $0x58] sm:$0xff] %v566
                  %v568 = vld [vmem:[%s542 + $0xc0] sm:$0xff]
                  %569 = vst [vmem:[%s543 + $0x60] sm:$0xff] %v568
                  %v570 = vld [vmem:[%s542 + $0xd0] sm:$0xff]
                  %571 = vst [vmem:[%s543 + $0x68] sm:$0xff] %v570
                  %v572 = vld [vmem:[%s542 + $0xe0] sm:$0xff]
                  %573 = vst [vmem:[%s543 + $0x70] sm:$0xff] %v572
                  %v574 = vld [vmem:[%s542 + $0xf0] sm:$0xff]
                  %575 = vst [vmem:[%s543 + $0x78] sm:$0xff] %v574
                  %v576 = vld [vmem:[%s542 + $0x100] sm:$0xff]
                  %577 = vst [vmem:[%s543 + $0x80] sm:$0xff] %v576
                  %v578 = vld [vmem:[%s542 + $0x110] sm:$0xff]
                  %579 = vst [vmem:[%s543 + $0x88] sm:$0xff] %v578
                  %v580 = vld [vmem:[%s542 + $0x120] sm:$0xff]
                  %581 = vst [vmem:[%s543 + $0x90] sm:$0xff] %v580
                  %v582 = vld [vmem:[%s542 + $0x130] sm:$0xff]
                  %583 = vst [vmem:[%s543 + $0x98] sm:$0xff] %v582
                  %v584 = vld [vmem:[%s542 + $0x140] sm:$0xff]
                  %585 = vst [vmem:[%s543 + $0xa0] sm:$0xff] %v584
                  %v586 = vld [vmem:[%s542 + $0x150] sm:$0xff]
                  %587 = vst [vmem:[%s543 + $0xa8] sm:$0xff] %v586
                  %v588 = vld [vmem:[%s542 + $0x160] sm:$0xff]
                  %589 = vst [vmem:[%s543 + $0xb0] sm:$0xff] %v588
                  %v590 = vld [vmem:[%s542 + $0x170] sm:$0xff]
                  %591 = vst [vmem:[%s543 + $0xb8] sm:$0xff] %v590
                  %v592 = vld [vmem:[%s542 + $0x180] sm:$0xff]
                  %593 = vst [vmem:[%s543 + $0xc0] sm:$0xff] %v592
                  %v594 = vld [vmem:[%s542 + $0x190] sm:$0xff]
                  %595 = vst [vmem:[%s543 + $0xc8] sm:$0xff] %v594
                  %v596 = vld [vmem:[%s542 + $0x1a0] sm:$0xff]
                  %597 = vst [vmem:[%s543 + $0xd0] sm:$0xff] %v596
                  %v598 = vld [vmem:[%s542 + $0x1b0] sm:$0xff]
                  %599 = vst [vmem:[%s543 + $0xd8] sm:$0xff] %v598
                  %v600 = vld [vmem:[%s542 + $0x1c0] sm:$0xff]
                  %601 = vst [vmem:[%s543 + $0xe0] sm:$0xff] %v600
                  %v602 = vld [vmem:[%s542 + $0x1d0] sm:$0xff]
                  %603 = vst [vmem:[%s543 + $0xe8] sm:$0xff] %v602
                  %v604 = vld [vmem:[%s542 + $0x1e0] sm:$0xff]
                  %605 = vst [vmem:[%s543 + $0xf0] sm:$0xff] %v604
                  %v606 = vld [vmem:[%s542 + $0x1f0] sm:$0xff]
                  %607 = vst [vmem:[%s543 + $0xf8] sm:$0xff] %v606
                  %v608 = vld [vmem:[%s542 + $0x200] sm:$0xff]
                  %609 = vst [vmem:[%s543 + $0x100] sm:$0xff] %v608
                  %v610 = vld [vmem:[%s542 + $0x210] sm:$0xff]
                  %611 = vst [vmem:[%s543 + $0x108] sm:$0xff] %v610
                  %v612 = vld [vmem:[%s542 + $0x220] sm:$0xff]
                  %613 = vst [vmem:[%s543 + $0x110] sm:$0xff] %v612
                  %v614 = vld [vmem:[%s542 + $0x230] sm:$0xff]
                  %615 = vst [vmem:[%s543 + $0x118] sm:$0xff] %v614
                  %v616 = vld [vmem:[%s542 + $0x240] sm:$0xff]
                  %617 = vst [vmem:[%s543 + $0x120] sm:$0xff] %v616
                  %v618 = vld [vmem:[%s542 + $0x250] sm:$0xff]
                  %619 = vst [vmem:[%s543 + $0x128] sm:$0xff] %v618
                  %v620 = vld [vmem:[%s542 + $0x260] sm:$0xff]
                  %621 = vst [vmem:[%s543 + $0x130] sm:$0xff] %v620
                  %v622 = vld [vmem:[%s542 + $0x270] sm:$0xff]
                  %623 = vst [vmem:[%s543 + $0x138] sm:$0xff] %v622
                  %v624 = vld [vmem:[%s542 + $0x280] sm:$0xff]
                  %625 = vst [vmem:[%s543 + $0x140] sm:$0xff] %v624
                  %v626 = vld [vmem:[%s542 + $0x290] sm:$0xff]
                  %627 = vst [vmem:[%s543 + $0x148] sm:$0xff] %v626
                  %v628 = vld [vmem:[%s542 + $0x2a0] sm:$0xff]
                  %629 = vst [vmem:[%s543 + $0x150] sm:$0xff] %v628
                  %v630 = vld [vmem:[%s542 + $0x2b0] sm:$0xff]
                  %631 = vst [vmem:[%s543 + $0x158] sm:$0xff] %v630
                  %v632 = vld [vmem:[%s542 + $0x2c0] sm:$0xff]
                  %633 = vst [vmem:[%s543 + $0x160] sm:$0xff] %v632
                  %v634 = vld [vmem:[%s542 + $0x2d0] sm:$0xff]
                  %635 = vst [vmem:[%s543 + $0x168] sm:$0xff] %v634
                  %v636 = vld [vmem:[%s542 + $0x2e0] sm:$0xff]
                  %637 = vst [vmem:[%s543 + $0x170] sm:$0xff] %v636
                  %v638 = vld [vmem:[%s542 + $0x2f0] sm:$0xff]
                  %639 = vst [vmem:[%s543 + $0x178] sm:$0xff] %v638
                  %v640 = vld [vmem:[%s542 + $0x300] sm:$0xff]
                  %641 = vst [vmem:[%s543 + $0x180] sm:$0xff] %v640
                  %v642 = vld [vmem:[%s542 + $0x310] sm:$0xff]
                  %643 = vst [vmem:[%s543 + $0x188] sm:$0xff] %v642
                  %v644 = vld [vmem:[%s542 + $0x320] sm:$0xff]
                  %645 = vst [vmem:[%s543 + $0x190] sm:$0xff] %v644
                  %v646 = vld [vmem:[%s542 + $0x330] sm:$0xff]
                  %647 = vst [vmem:[%s543 + $0x198] sm:$0xff] %v646
                  %v648 = vld [vmem:[%s542 + $0x340] sm:$0xff]
                  %649 = vst [vmem:[%s543 + $0x1a0] sm:$0xff] %v648
                  %v650 = vld [vmem:[%s542 + $0x350] sm:$0xff]
                  %651 = vst [vmem:[%s543 + $0x1a8] sm:$0xff] %v650
                  %v652 = vld [vmem:[%s542 + $0x360] sm:$0xff]
                  %653 = vst [vmem:[%s543 + $0x1b0] sm:$0xff] %v652
                  %v654 = vld [vmem:[%s542 + $0x370] sm:$0xff]
                  %655 = vst [vmem:[%s543 + $0x1b8] sm:$0xff] %v654
                  %v656 = vld [vmem:[%s542 + $0x380] sm:$0xff]
                  %657 = vst [vmem:[%s543 + $0x1c0] sm:$0xff] %v656
                  %v658 = vld [vmem:[%s542 + $0x390] sm:$0xff]
                  %659 = vst [vmem:[%s543 + $0x1c8] sm:$0xff] %v658
                  %v660 = vld [vmem:[%s542 + $0x3a0] sm:$0xff]
                  %661 = vst [vmem:[%s543 + $0x1d0] sm:$0xff] %v660
                  %v662 = vld [vmem:[%s542 + $0x3b0] sm:$0xff]
                  %663 = vst [vmem:[%s543 + $0x1d8] sm:$0xff] %v662
                  %v664 = vld [vmem:[%s542 + $0x3c0] sm:$0xff]
                  %665 = vst [vmem:[%s543 + $0x1e0] sm:$0xff] %v664
                  %v666 = vld [vmem:[%s542 + $0x3d0] sm:$0xff]
                  %667 = vst [vmem:[%s543 + $0x1e8] sm:$0xff] %v666
                  %v668 = vld [vmem:[%s542 + $0x3e0] sm:$0xff]
                  %669 = vst [vmem:[%s543 + $0x1f0] sm:$0xff] %v668
                  %v670 = vld [vmem:[%s542 + $0x3f0] sm:$0xff]
                  %671 = vst [vmem:[%s543 + $0x1f8] sm:$0xff] %v670
                $region96: #{simple1dcnn_forward.1} parent=90 // loop_footer
                  %s541 = sadd.s32 1, %s537
                $region97: #{simple1dcnn_forward.1} parent=90 // loop_footer_branch
                  %536 = sbr.rel target = $region93
                $region98: #{simple1dcnn_forward.1} parent=90 // loop_exit
                  _
              $region91: #{simple1dcnn_forward.1} parent=75 // pred_fallthru
                _
              // Predicated region
              $region99: #{simple1dcnn_forward.1} parent=75 // pred_check
                _
              $region100: #{simple1dcnn_forward.1} parent=75 // pred_check_branch
                %673 = sbr.rel target = $region102
              $region101: #{simple1dcnn_forward.1} parent=75 // pred_region
                _
              $region102: #{simple1dcnn_forward.1} parent=75 // pred_fallthru
                _
            $region76: #{simple1dcnn_forward.1} parent=71 // pred_fallthru
              _
            // Predicated region
            $region77: #{simple1dcnn_forward.1} parent=71 // pred_check
              _
            $region78: #{simple1dcnn_forward.1} parent=71 // pred_check_branch
              %395 = sbr.rel target = $region80
            $region79: #{simple1dcnn_forward.1} parent=71 // pred_region
              %s397 = ssub.s32 256, 1
              loop: start=0, step=1, limit=1
              $region81: #{simple1dcnn_forward.1} parent=79 // loop_pre_header
                _
              $region82: #{simple1dcnn_forward.1} parent=79 // loop_header
                %s399 = sphi 0, %s403
                %p400 = scmp.ge.s32.totalorder %s399, 1
                %s404 = sphi %s389, %s389
                %s405 = sphi %s387, %s387
              $region83: #{simple1dcnn_forward.1} parent=79 // loop_header_branch
                %402 = sbr.rel (%p400) target = $region87
              $region84: #{simple1dcnn_forward.1} parent=79 // loop_body
                %v406 = vld [vmem:[%s404] sm:%s397]
                %407 = vst [vmem:[%s405] sm:%s397] %v406
                %v408 = vld [vmem:[%s404 + $0x10] sm:%s397]
                %409 = vst [vmem:[%s405 + $0x8] sm:%s397] %v408
                %v410 = vld [vmem:[%s404 + $0x20] sm:%s397]
                %411 = vst [vmem:[%s405 + $0x10] sm:%s397] %v410
                %v412 = vld [vmem:[%s404 + $0x30] sm:%s397]
                %413 = vst [vmem:[%s405 + $0x18] sm:%s397] %v412
                %v414 = vld [vmem:[%s404 + $0x40] sm:%s397]
                %415 = vst [vmem:[%s405 + $0x20] sm:%s397] %v414
                %v416 = vld [vmem:[%s404 + $0x50] sm:%s397]
                %417 = vst [vmem:[%s405 + $0x28] sm:%s397] %v416
                %v418 = vld [vmem:[%s404 + $0x60] sm:%s397]
                %419 = vst [vmem:[%s405 + $0x30] sm:%s397] %v418
                %v420 = vld [vmem:[%s404 + $0x70] sm:%s397]
                %421 = vst [vmem:[%s405 + $0x38] sm:%s397] %v420
                %v422 = vld [vmem:[%s404 + $0x80] sm:%s397]
                %423 = vst [vmem:[%s405 + $0x40] sm:%s397] %v422
                %v424 = vld [vmem:[%s404 + $0x90] sm:%s397]
                %425 = vst [vmem:[%s405 + $0x48] sm:%s397] %v424
                %v426 = vld [vmem:[%s404 + $0xa0] sm:%s397]
                %427 = vst [vmem:[%s405 + $0x50] sm:%s397] %v426
                %v428 = vld [vmem:[%s404 + $0xb0] sm:%s397]
                %429 = vst [vmem:[%s405 + $0x58] sm:%s397] %v428
                %v430 = vld [vmem:[%s404 + $0xc0] sm:%s397]
                %431 = vst [vmem:[%s405 + $0x60] sm:%s397] %v430
                %v432 = vld [vmem:[%s404 + $0xd0] sm:%s397]
                %433 = vst [vmem:[%s405 + $0x68] sm:%s397] %v432
                %v434 = vld [vmem:[%s404 + $0xe0] sm:%s397]
                %435 = vst [vmem:[%s405 + $0x70] sm:%s397] %v434
                %v436 = vld [vmem:[%s404 + $0xf0] sm:%s397]
                %437 = vst [vmem:[%s405 + $0x78] sm:%s397] %v436
                %v438 = vld [vmem:[%s404 + $0x100] sm:%s397]
                %439 = vst [vmem:[%s405 + $0x80] sm:%s397] %v438
                %v440 = vld [vmem:[%s404 + $0x110] sm:%s397]
                %441 = vst [vmem:[%s405 + $0x88] sm:%s397] %v440
                %v442 = vld [vmem:[%s404 + $0x120] sm:%s397]
                %443 = vst [vmem:[%s405 + $0x90] sm:%s397] %v442
                %v444 = vld [vmem:[%s404 + $0x130] sm:%s397]
                %445 = vst [vmem:[%s405 + $0x98] sm:%s397] %v444
                %v446 = vld [vmem:[%s404 + $0x140] sm:%s397]
                %447 = vst [vmem:[%s405 + $0xa0] sm:%s397] %v446
                %v448 = vld [vmem:[%s404 + $0x150] sm:%s397]
                %449 = vst [vmem:[%s405 + $0xa8] sm:%s397] %v448
                %v450 = vld [vmem:[%s404 + $0x160] sm:%s397]
                %451 = vst [vmem:[%s405 + $0xb0] sm:%s397] %v450
                %v452 = vld [vmem:[%s404 + $0x170] sm:%s397]
                %453 = vst [vmem:[%s405 + $0xb8] sm:%s397] %v452
                %v454 = vld [vmem:[%s404 + $0x180] sm:%s397]
                %455 = vst [vmem:[%s405 + $0xc0] sm:%s397] %v454
                %v456 = vld [vmem:[%s404 + $0x190] sm:%s397]
                %457 = vst [vmem:[%s405 + $0xc8] sm:%s397] %v456
                %v458 = vld [vmem:[%s404 + $0x1a0] sm:%s397]
                %459 = vst [vmem:[%s405 + $0xd0] sm:%s397] %v458
                %v460 = vld [vmem:[%s404 + $0x1b0] sm:%s397]
                %461 = vst [vmem:[%s405 + $0xd8] sm:%s397] %v460
                %v462 = vld [vmem:[%s404 + $0x1c0] sm:%s397]
                %463 = vst [vmem:[%s405 + $0xe0] sm:%s397] %v462
                %v464 = vld [vmem:[%s404 + $0x1d0] sm:%s397]
                %465 = vst [vmem:[%s405 + $0xe8] sm:%s397] %v464
                %v466 = vld [vmem:[%s404 + $0x1e0] sm:%s397]
                %467 = vst [vmem:[%s405 + $0xf0] sm:%s397] %v466
                %v468 = vld [vmem:[%s404 + $0x1f0] sm:%s397]
                %469 = vst [vmem:[%s405 + $0xf8] sm:%s397] %v468
                %v470 = vld [vmem:[%s404 + $0x200] sm:%s397]
                %471 = vst [vmem:[%s405 + $0x100] sm:%s397] %v470
                %v472 = vld [vmem:[%s404 + $0x210] sm:%s397]
                %473 = vst [vmem:[%s405 + $0x108] sm:%s397] %v472
                %v474 = vld [vmem:[%s404 + $0x220] sm:%s397]
                %475 = vst [vmem:[%s405 + $0x110] sm:%s397] %v474
                %v476 = vld [vmem:[%s404 + $0x230] sm:%s397]
                %477 = vst [vmem:[%s405 + $0x118] sm:%s397] %v476
                %v478 = vld [vmem:[%s404 + $0x240] sm:%s397]
                %479 = vst [vmem:[%s405 + $0x120] sm:%s397] %v478
                %v480 = vld [vmem:[%s404 + $0x250] sm:%s397]
                %481 = vst [vmem:[%s405 + $0x128] sm:%s397] %v480
                %v482 = vld [vmem:[%s404 + $0x260] sm:%s397]
                %483 = vst [vmem:[%s405 + $0x130] sm:%s397] %v482
                %v484 = vld [vmem:[%s404 + $0x270] sm:%s397]
                %485 = vst [vmem:[%s405 + $0x138] sm:%s397] %v484
                %v486 = vld [vmem:[%s404 + $0x280] sm:%s397]
                %487 = vst [vmem:[%s405 + $0x140] sm:%s397] %v486
                %v488 = vld [vmem:[%s404 + $0x290] sm:%s397]
                %489 = vst [vmem:[%s405 + $0x148] sm:%s397] %v488
                %v490 = vld [vmem:[%s404 + $0x2a0] sm:%s397]
                %491 = vst [vmem:[%s405 + $0x150] sm:%s397] %v490
                %v492 = vld [vmem:[%s404 + $0x2b0] sm:%s397]
                %493 = vst [vmem:[%s405 + $0x158] sm:%s397] %v492
                %v494 = vld [vmem:[%s404 + $0x2c0] sm:%s397]
                %495 = vst [vmem:[%s405 + $0x160] sm:%s397] %v494
                %v496 = vld [vmem:[%s404 + $0x2d0] sm:%s397]
                %497 = vst [vmem:[%s405 + $0x168] sm:%s397] %v496
                %v498 = vld [vmem:[%s404 + $0x2e0] sm:%s397]
                %499 = vst [vmem:[%s405 + $0x170] sm:%s397] %v498
                %v500 = vld [vmem:[%s404 + $0x2f0] sm:%s397]
                %501 = vst [vmem:[%s405 + $0x178] sm:%s397] %v500
                %v502 = vld [vmem:[%s404 + $0x300] sm:%s397]
                %503 = vst [vmem:[%s405 + $0x180] sm:%s397] %v502
                %v504 = vld [vmem:[%s404 + $0x310] sm:%s397]
                %505 = vst [vmem:[%s405 + $0x188] sm:%s397] %v504
                %v506 = vld [vmem:[%s404 + $0x320] sm:%s397]
                %507 = vst [vmem:[%s405 + $0x190] sm:%s397] %v506
                %v508 = vld [vmem:[%s404 + $0x330] sm:%s397]
                %509 = vst [vmem:[%s405 + $0x198] sm:%s397] %v508
                %v510 = vld [vmem:[%s404 + $0x340] sm:%s397]
                %511 = vst [vmem:[%s405 + $0x1a0] sm:%s397] %v510
                %v512 = vld [vmem:[%s404 + $0x350] sm:%s397]
                %513 = vst [vmem:[%s405 + $0x1a8] sm:%s397] %v512
                %v514 = vld [vmem:[%s404 + $0x360] sm:%s397]
                %515 = vst [vmem:[%s405 + $0x1b0] sm:%s397] %v514
                %v516 = vld [vmem:[%s404 + $0x370] sm:%s397]
                %517 = vst [vmem:[%s405 + $0x1b8] sm:%s397] %v516
                %v518 = vld [vmem:[%s404 + $0x380] sm:%s397]
                %519 = vst [vmem:[%s405 + $0x1c0] sm:%s397] %v518
                %v520 = vld [vmem:[%s404 + $0x390] sm:%s397]
                %521 = vst [vmem:[%s405 + $0x1c8] sm:%s397] %v520
                %v522 = vld [vmem:[%s404 + $0x3a0] sm:%s397]
                %523 = vst [vmem:[%s405 + $0x1d0] sm:%s397] %v522
                %v524 = vld [vmem:[%s404 + $0x3b0] sm:%s397]
                %525 = vst [vmem:[%s405 + $0x1d8] sm:%s397] %v524
                %v526 = vld [vmem:[%s404 + $0x3c0] sm:%s397]
                %527 = vst [vmem:[%s405 + $0x1e0] sm:%s397] %v526
                %v528 = vld [vmem:[%s404 + $0x3d0] sm:%s397]
                %529 = vst [vmem:[%s405 + $0x1e8] sm:%s397] %v528
                %v530 = vld [vmem:[%s404 + $0x3e0] sm:%s397]
                %531 = vst [vmem:[%s405 + $0x1f0] sm:%s397] %v530
                %v532 = vld [vmem:[%s404 + $0x3f0] sm:%s397]
                %533 = vst [vmem:[%s405 + $0x1f8] sm:%s397] %v532
              $region85: #{simple1dcnn_forward.1} parent=79 // loop_footer
                %s403 = sadd.s32 1, %s399
              $region86: #{simple1dcnn_forward.1} parent=79 // loop_footer_branch
                %398 = sbr.rel target = $region82
              $region87: #{simple1dcnn_forward.1} parent=79 // loop_exit
                _
            $region80: #{simple1dcnn_forward.1} parent=71 // pred_fallthru
              _
          $region72: #{simple1dcnn_forward.1} parent=67 // pred_fallthru
            _
          %674 = vnop
        $region68: #{simple1dcnn_forward.1} parent=63 // pred_fallthru
          _
      $region64: #{simple1dcnn_forward.1} parent=5 // pred_fallthru
        _
      %p675 = scmp.le.s32.totalorder 1, %s22
      %p676 = scmp.lt.s32.totalorder %s22, 3
      %p677 = pnand %p675, %p676
      %p678 = pneg %p677
      // Predicated region
      $region103: #{simple1dcnn_forward.1} parent=5 // pred_check
        _
      $region104: #{simple1dcnn_forward.1} parent=5 // pred_check_branch
        %680 = sbr.rel (%p677) target = $region106
      $region105: #{simple1dcnn_forward.1} parent=5 // pred_region
        %s681 = ssub.s32 %s22, 1
        %s682 = sand.u32 %s35, 1
        %s683 = sand.u32 %s35, 1
        %s684 = smul.addr %s683, 512
        %s685 = scalar_lea.vmem [#allocation2], %s684
        // Predicated region
        $region107: #{simple1dcnn_forward.1} parent=105 // pred_check
          %p686 = pneg %p48
        $region108: #{simple1dcnn_forward.1} parent=105 // pred_check_branch
          %688 = sbr.rel (%p686) target = $region110
        $region109: #{simple1dcnn_forward.1} parent=105 // pred_region
          _
        $region110: #{simple1dcnn_forward.1} parent=105 // pred_fallthru
          _
        %s689 = sand.u32 %s35, 1
        %s690 = sand.u32 %s35, 1
        %s691 = smul.addr %s690, 512
        %s692 = scalar_lea.vmem [#allocation2], %s691
        %p693 = pneg %p48
        %p694 = pneg %p45
        %p695 = pneg %p69
        %p696 = pneg %p66
        %p697 = pneg %p90
        %p698 = pneg %p87
        %p699 = pneg %p111
        %p700 = pneg %p108
        %p701 = pneg %p132
        %p702 = pneg %p129
        %p703 = pneg %p153
        %p704 = pneg %p150
        %p705 = pneg %p174
        %p706 = pneg %p171
        %p707 = pneg %p195
        %p708 = pneg %p192
        %p709 = pneg %p216
        %p710 = pneg %p213
        %p711 = pneg %p237
        %p712 = pneg %p234
        %p713 = pneg %p258
        %p714 = pneg %p255
        %p715 = pneg %p279
        %p716 = pneg %p276
        %p717 = pneg %p300
        %p718 = pneg %p297
        %p719 = pneg %p326
        %p720 = pneg %p323
        %s721 = sand.u32 %s313, 1
        %s722 = scalar_lea.sflag [#allocation4], %s721
        %s723 = sand.u32 %s313, 1
        %s724 = smul.addr %s723, 4
        %s725 = scalar_lea.vmem [#allocation3], %s724
        %v726 = vld [vmem:[%s685] sm:$0xff]
        %v727 = vld [vmem:[%s685 + $0x8] sm:$0xff]
        %v728 = vld [vmem:[%s685 + $0x10] sm:$0xff]
        %v729 = vld [vmem:[%s685 + $0x18] sm:$0xff]
        %v730 = vld [vmem:[%s685 + $0x20] sm:$0xff]
        %v731 = vld [vmem:[%s685 + $0x28] sm:$0xff]
        %v732 = vld [vmem:[%s685 + $0x30] sm:$0xff]
        %v733 = vld [vmem:[%s685 + $0x38] sm:$0xff]
        %v734 = vld [vmem:[%s685 + $0x40] sm:$0xff]
        %v735 = vld [vmem:[%s685 + $0x48] sm:$0xff]
        %v736 = vld [vmem:[%s685 + $0x50] sm:$0xff]
        %v737 = vld [vmem:[%s685 + $0x58] sm:$0xff]
        %v738 = vld [vmem:[%s685 + $0x60] sm:$0xff]
        %v739 = vld [vmem:[%s685 + $0x68] sm:$0xff]
        %v740 = vld [vmem:[%s685 + $0x70] sm:$0xff]
        %v741 = vld [vmem:[%s685 + $0x78] sm:$0xff]
        %v742 = vld [vmem:[%s685 + $0x80] sm:$0xff]
        %v743 = vld [vmem:[%s685 + $0x88] sm:$0xff]
        %v744 = vld [vmem:[%s685 + $0x90] sm:$0xff]
        %v745 = vld [vmem:[%s685 + $0x98] sm:$0xff]
        %v746 = vld [vmem:[%s685 + $0xa0] sm:$0xff]
        %v747 = vld [vmem:[%s685 + $0xa8] sm:$0xff]
        %v748 = vld [vmem:[%s685 + $0xb0] sm:$0xff]
        %v749 = vld [vmem:[%s685 + $0xb8] sm:$0xff]
        %v750 = vld [vmem:[%s685 + $0xc0] sm:$0xff]
        %v751 = vld [vmem:[%s685 + $0xc8] sm:$0xff]
        %v752 = vld [vmem:[%s685 + $0xd0] sm:$0xff]
        %v753 = vld [vmem:[%s685 + $0xd8] sm:$0xff]
        %v754 = vld [vmem:[%s685 + $0xe0] sm:$0xff]
        %v755 = vld [vmem:[%s685 + $0xe8] sm:$0xff]
        %v756 = vld [vmem:[%s685 + $0xf0] sm:$0xff]
        %v757 = vld [vmem:[%s685 + $0xf8] sm:$0xff]
        %v758 = vld [vmem:[%s685 + $0x100] sm:$0xff]
        %v759 = vld [vmem:[%s685 + $0x108] sm:$0xff]
        %v760 = vld [vmem:[%s685 + $0x110] sm:$0xff]
        %v761 = vld [vmem:[%s685 + $0x118] sm:$0xff]
        %v762 = vld [vmem:[%s685 + $0x120] sm:$0xff]
        %v763 = vld [vmem:[%s685 + $0x128] sm:$0xff]
        %v764 = vld [vmem:[%s685 + $0x130] sm:$0xff]
        %v765 = vld [vmem:[%s685 + $0x138] sm:$0xff]
        %v766 = vld [vmem:[%s685 + $0x140] sm:$0xff]
        %v767 = vld [vmem:[%s685 + $0x148] sm:$0xff]
        %v768 = vld [vmem:[%s685 + $0x150] sm:$0xff]
        %v769 = vld [vmem:[%s685 + $0x158] sm:$0xff]
        %v770 = vld [vmem:[%s685 + $0x160] sm:$0xff]
        %v771 = vld [vmem:[%s685 + $0x168] sm:$0xff]
        %v772 = vld [vmem:[%s685 + $0x170] sm:$0xff]
        %v773 = vld [vmem:[%s685 + $0x178] sm:$0xff]
        %v774 = vld [vmem:[%s685 + $0x180] sm:$0xff]
        %v775 = vld [vmem:[%s685 + $0x188] sm:$0xff]
        %v776 = vld [vmem:[%s685 + $0x190] sm:$0xff]
        %v777 = vld [vmem:[%s685 + $0x198] sm:$0xff]
        %v778 = vld [vmem:[%s685 + $0x1a0] sm:$0xff]
        %v779 = vld [vmem:[%s685 + $0x1a8] sm:$0xff]
        %v780 = vld [vmem:[%s685 + $0x1b0] sm:$0xff]
        %v781 = vld [vmem:[%s685 + $0x1b8] sm:$0xff]
        %v782 = vld [vmem:[%s685 + $0x1c0] sm:$0xff]
        %v783 = vld [vmem:[%s685 + $0x1c8] sm:$0xff]
        %v784 = vld [vmem:[%s685 + $0x1d0] sm:$0xff]
        %v785 = vld [vmem:[%s685 + $0x1d8] sm:$0xff]
        %v786 = vld [vmem:[%s685 + $0x1e0] sm:$0xff]
        %v787 = vld [vmem:[%s685 + $0x1e8] sm:$0xff]
        %v788 = vld [vmem:[%s685 + $0x1f0] sm:$0xff]
        %v789 = vld [vmem:[%s685 + $0x1f8] sm:$0xff]
        %v790 = vld [vmem:[%s1] sm:$0xff]
        %v791 = vld [vmem:[%s2] sm:$0xff]
        %793 = vset.pattern.permute.xlu0 0
        %794 = vperm.xlu0 %793, %v791
        %v795 = vpop.permute.xlu0 %794
        %vm797 = vcmask 392192
        %v799 = vsel %vm797, %v790, 0
        %801 = vmatprep.subr.mxu0 0.0
        %802 = vmatpush1.msra.mxu0 0.0
        %803 = vmatprep.subr.mxu0 0.0
        %804 = vmatpush1.msra.mxu0 0.0
        %805 = vmatprep.subr.mxu0 0.0
        %806 = vmatpush1.msra.mxu0 0.0
        %807 = vmatprep.subr.mxu0 0.0
        %808 = vmatpush1.msra.mxu0 0.0
        %809 = vmatprep.subr.mxu0 0.0
        %810 = vmatpush1.msra.mxu0 0.0
        %811 = vmatprep.subr.mxu0 0.0
        %812 = vmatpush1.msra.mxu0 0.0
        %813 = vmatprep.subr.mxu0 0.0
        %814 = vmatpush1.msra.mxu0 0.0
        %815 = vmatprep.subr.mxu0 0.0
        %816 = vmatpush1.msra.mxu0 0.0
        %817 = vmatprep.subr.mxu0 0.0
        %818 = vmatpush1.msra.mxu0 0.0
        %819 = vmatprep.subr.mxu0 0.0
        %820 = vmatpush1.msra.mxu0 0.0
        %821 = vmatprep.subr.mxu0 0.0
        %822 = vmatpush1.msra.mxu0 %v729
        %823 = vmatprep.subr.mxu0 0.0
        %824 = vmatpush1.msra.mxu0 %v728
        %825 = vmatprep.subr.mxu0 0.0
        %826 = vmatpush1.msra.mxu0 %v727
        %827 = vmatprep.subr.mxu0 0.0
        %828 = vmatpush1.msra.mxu0 %v726
        %829 = vmatprep.subr.mxu0 0.0
        %830 = vmatpush1.msra.mxu0 0.0
        %831 = vmatprep.subr.mxu0 0.0
        %832 = vmatpush1.msra.mxu0 0.0
        %833 = vmatprep.subr.mxu0 0.0
        %834 = vmatpush2.msra.mxu0 0.0
        %835 = vmatprep.subr.mxu0 0.0
        %836 = vmatpush2.msra.mxu0 0.0
        %837 = vmatprep.subr.mxu0 0.0
        %838 = vmatpush2.msra.mxu0 0.0
        %839 = vmatprep.subr.mxu0 0.0
        %840 = vmatpush2.msra.mxu0 0.0
        %841 = vmatprep.subr.mxu0 0.0
        %842 = vmatpush2.msra.mxu0 0.0
        %843 = vmatprep.subr.mxu0 0.0
        %844 = vmatpush2.msra.mxu0 0.0
        %845 = vmatprep.subr.mxu0 0.0
        %846 = vmatpush2.msra.mxu0 0.0
        %847 = vmatprep.subr.mxu0 0.0
        %848 = vmatpush2.msra.mxu0 0.0
        %849 = vmatprep.subr.mxu0 0.0
        %850 = vmatpush2.msra.mxu0 0.0
        %851 = vmatprep.subr.mxu0 0.0
        %852 = vmatpush2.msra.mxu0 0.0
        %853 = vmatprep.subr.mxu0 0.0
        %854 = vmatpush2.msra.mxu0 0.0
        %855 = vmatprep.subr.mxu0 0.0
        %856 = vmatpush2.msra.mxu0 0.0
        %857 = vmatprep.subr.mxu0 0.0
        %858 = vmatpush2.msra.mxu0 0.0
        %859 = vmatprep.subr.mxu0 0.0
        %860 = vmatpush2.msra.mxu0 0.0
        %861 = vmatprep.subr.mxu0 0.0
        %862 = vmatpush2.msra.mxu0 0.0
        %863 = vmatprep.subr.mxu0 0.0
        %864 = vmatpush2.msra.mxu0 0.0
        %865 = vmatprep.mubr.f32.mxu0 0.0
        %866 = vmatmul.mubr.f32.gmra.mxu0 %v799
        %v867 = vpop.f32.mrf.mxu0
        %v868 = vadd.f32 %v795, %v867
        %v869 = vpop.f32.mrf.mxu0
        %870 = vdwg.mxu0
        %v871 = vmax.f32 %v868, 0.0
        %872 = vmatprep.subr.mxu0 0.0
        %873 = vmatpush1.msra.mxu0 0.0
        %874 = vmatprep.subr.mxu0 0.0
        %875 = vmatpush1.msra.mxu0 0.0
        %876 = vmatprep.subr.mxu0 0.0
        %877 = vmatpush1.msra.mxu0 0.0
        %878 = vmatprep.subr.mxu0 0.0
        %879 = vmatpush1.msra.mxu0 0.0
        %880 = vmatprep.subr.mxu0 0.0
        %881 = vmatpush1.msra.mxu0 0.0
        %882 = vmatprep.subr.mxu0 0.0
        %883 = vmatpush1.msra.mxu0 0.0
        %884 = vmatprep.subr.mxu0 0.0
        %885 = vmatpush1.msra.mxu0 0.0
        %886 = vmatprep.subr.mxu0 0.0
        %887 = vmatpush1.msra.mxu0 0.0
        %888 = vmatprep.subr.mxu0 0.0
        %889 = vmatpush1.msra.mxu0 0.0
        %890 = vmatprep.subr.mxu0 0.0
        %891 = vmatpush1.msra.mxu0 0.0
        %892 = vmatprep.subr.mxu0 0.0
        %893 = vmatpush1.msra.mxu0 %v731
        %894 = vmatprep.subr.mxu0 0.0
        %895 = vmatpush1.msra.mxu0 %v730
        %896 = vmatprep.subr.mxu0 0.0
        %897 = vmatpush1.msra.mxu0 %v729
        %898 = vmatprep.subr.mxu0 0.0
        %899 = vmatpush1.msra.mxu0 %v728
        %900 = vmatprep.subr.mxu0 0.0
        %901 = vmatpush1.msra.mxu0 %v727
        %902 = vmatprep.subr.mxu0 0.0
        %903 = vmatpush1.msra.mxu0 %v726
        %904 = vmatprep.subr.mxu0 0.0
        %905 = vmatpush2.msra.mxu0 0.0
        %906 = vmatprep.subr.mxu0 0.0
        %907 = vmatpush2.msra.mxu0 0.0
        %908 = vmatprep.subr.mxu0 0.0
        %909 = vmatpush2.msra.mxu0 0.0
        %910 = vmatprep.subr.mxu0 0.0
        %911 = vmatpush2.msra.mxu0 0.0
        %912 = vmatprep.subr.mxu0 0.0
        %913 = vmatpush2.msra.mxu0 0.0
        %914 = vmatprep.subr.mxu0 0.0
        %915 = vmatpush2.msra.mxu0 0.0
        %916 = vmatprep.subr.mxu0 0.0
        %917 = vmatpush2.msra.mxu0 0.0
        %918 = vmatprep.subr.mxu0 0.0
        %919 = vmatpush2.msra.mxu0 0.0
        %920 = vmatprep.subr.mxu0 0.0
        %921 = vmatpush2.msra.mxu0 0.0
        %922 = vmatprep.subr.mxu0 0.0
        %923 = vmatpush2.msra.mxu0 0.0
        %924 = vmatprep.subr.mxu0 0.0
        %925 = vmatpush2.msra.mxu0 0.0
        %926 = vmatprep.subr.mxu0 0.0
        %927 = vmatpush2.msra.mxu0 0.0
        %928 = vmatprep.subr.mxu0 0.0
        %929 = vmatpush2.msra.mxu0 0.0
        %930 = vmatprep.subr.mxu0 0.0
        %931 = vmatpush2.msra.mxu0 0.0
        %932 = vmatprep.subr.mxu0 0.0
        %933 = vmatpush2.msra.mxu0 0.0
        %934 = vmatprep.subr.mxu0 0.0
        %935 = vmatpush2.msra.mxu0 0.0
        %936 = vmatprep.mubr.f32.mxu0 0.0
        %937 = vmatmul.mubr.f32.gmra.mxu0 %v799
        %v938 = vpop.f32.mrf.mxu0
        %v939 = vadd.f32 %v795, %v938
        %v940 = vpop.f32.mrf.mxu0
        %941 = vdwg.mxu0
        %v942 = vmax.f32 %v939, 0.0
        %943 = vmatprep.subr.mxu0 0.0
        %944 = vmatpush1.msra.mxu0 0.0
        %945 = vmatprep.subr.mxu0 0.0
        %946 = vmatpush1.msra.mxu0 0.0
        %947 = vmatprep.subr.mxu0 0.0
        %948 = vmatpush1.msra.mxu0 0.0
        %949 = vmatprep.subr.mxu0 0.0
        %950 = vmatpush1.msra.mxu0 0.0
        %951 = vmatprep.subr.mxu0 0.0
        %952 = vmatpush1.msra.mxu0 0.0
        %953 = vmatprep.subr.mxu0 0.0
        %954 = vmatpush1.msra.mxu0 0.0
        %955 = vmatprep.subr.mxu0 0.0
        %956 = vmatpush1.msra.mxu0 0.0
        %957 = vmatprep.subr.mxu0 0.0
        %958 = vmatpush1.msra.mxu0 0.0
        %959 = vmatprep.subr.mxu0 0.0
        %960 = vmatpush1.msra.mxu0 0.0
        %961 = vmatprep.subr.mxu0 0.0
        %962 = vmatpush1.msra.mxu0 0.0
        %963 = vmatprep.subr.mxu0 0.0
        %964 = vmatpush1.msra.mxu0 %v733
        %965 = vmatprep.subr.mxu0 0.0
        %966 = vmatpush1.msra.mxu0 %v732
        %967 = vmatprep.subr.mxu0 0.0
        %968 = vmatpush1.msra.mxu0 %v731
        %969 = vmatprep.subr.mxu0 0.0
        %970 = vmatpush1.msra.mxu0 %v730
        %971 = vmatprep.subr.mxu0 0.0
        %972 = vmatpush1.msra.mxu0 %v729
        %973 = vmatprep.subr.mxu0 0.0
        %974 = vmatpush1.msra.mxu0 %v728
        %975 = vmatprep.subr.mxu0 0.0
        %976 = vmatpush2.msra.mxu0 0.0
        %977 = vmatprep.subr.mxu0 0.0
        %978 = vmatpush2.msra.mxu0 0.0
        %979 = vmatprep.subr.mxu0 0.0
        %980 = vmatpush2.msra.mxu0 0.0
        %981 = vmatprep.subr.mxu0 0.0
        %982 = vmatpush2.msra.mxu0 0.0
        %983 = vmatprep.subr.mxu0 0.0
        %984 = vmatpush2.msra.mxu0 0.0
        %985 = vmatprep.subr.mxu0 0.0
        %986 = vmatpush2.msra.mxu0 0.0
        %987 = vmatprep.subr.mxu0 0.0
        %988 = vmatpush2.msra.mxu0 0.0
        %989 = vmatprep.subr.mxu0 0.0
        %990 = vmatpush2.msra.mxu0 0.0
        %991 = vmatprep.subr.mxu0 0.0
        %992 = vmatpush2.msra.mxu0 0.0
        %993 = vmatprep.subr.mxu0 0.0
        %994 = vmatpush2.msra.mxu0 0.0
        %995 = vmatprep.subr.mxu0 0.0
        %996 = vmatpush2.msra.mxu0 0.0
        %997 = vmatprep.subr.mxu0 0.0
        %998 = vmatpush2.msra.mxu0 0.0
        %999 = vmatprep.subr.mxu0 0.0
        %1000 = vmatpush2.msra.mxu0 0.0
        %1001 = vmatprep.subr.mxu0 0.0
        %1002 = vmatpush2.msra.mxu0 0.0
        %1003 = vmatprep.subr.mxu0 0.0
        %1004 = vmatpush2.msra.mxu0 0.0
        %1005 = vmatprep.subr.mxu0 0.0
        %1006 = vmatpush2.msra.mxu0 0.0
        %1007 = vmatprep.mubr.f32.mxu0 0.0
        %1008 = vmatmul.mubr.f32.gmra.mxu0 %v799
        %v1009 = vpop.f32.mrf.mxu0
        %v1010 = vadd.f32 %v795, %v1009
        %v1011 = vpop.f32.mrf.mxu0
        %1012 = vdwg.mxu0
        %v1013 = vmax.f32 %v1010, 0.0
        %1014 = vmatprep.subr.mxu0 0.0
        %1015 = vmatpush1.msra.mxu0 0.0
        %1016 = vmatprep.subr.mxu0 0.0
        %1017 = vmatpush1.msra.mxu0 0.0
        %1018 = vmatprep.subr.mxu0 0.0
        %1019 = vmatpush1.msra.mxu0 0.0
        %1020 = vmatprep.subr.mxu0 0.0
        %1021 = vmatpush1.msra.mxu0 0.0
        %1022 = vmatprep.subr.mxu0 0.0
        %1023 = vmatpush1.msra.mxu0 0.0
        %1024 = vmatprep.subr.mxu0 0.0
        %1025 = vmatpush1.msra.mxu0 0.0
        %1026 = vmatprep.subr.mxu0 0.0
        %1027 = vmatpush1.msra.mxu0 0.0
        %1028 = vmatprep.subr.mxu0 0.0
        %1029 = vmatpush1.msra.mxu0 0.0
        %1030 = vmatprep.subr.mxu0 0.0
        %1031 = vmatpush1.msra.mxu0 0.0
        %1032 = vmatprep.subr.mxu0 0.0
        %1033 = vmatpush1.msra.mxu0 0.0
        %1034 = vmatprep.subr.mxu0 0.0
        %1035 = vmatpush1.msra.mxu0 %v735
        %1036 = vmatprep.subr.mxu0 0.0
        %1037 = vmatpush1.msra.mxu0 %v734
        %1038 = vmatprep.subr.mxu0 0.0
        %1039 = vmatpush1.msra.mxu0 %v733
        %1040 = vmatprep.subr.mxu0 0.0
        %1041 = vmatpush1.msra.mxu0 %v732
        %1042 = vmatprep.subr.mxu0 0.0
        %1043 = vmatpush1.msra.mxu0 %v731
        %1044 = vmatprep.subr.mxu0 0.0
        %1045 = vmatpush1.msra.mxu0 %v730
        %1046 = vmatprep.subr.mxu0 0.0
        %1047 = vmatpush2.msra.mxu0 0.0
        %1048 = vmatprep.subr.mxu0 0.0
        %1049 = vmatpush2.msra.mxu0 0.0
        %1050 = vmatprep.subr.mxu0 0.0
        %1051 = vmatpush2.msra.mxu0 0.0
        %1052 = vmatprep.subr.mxu0 0.0
        %1053 = vmatpush2.msra.mxu0 0.0
        %1054 = vmatprep.subr.mxu0 0.0
        %1055 = vmatpush2.msra.mxu0 0.0
        %1056 = vmatprep.subr.mxu0 0.0
        %1057 = vmatpush2.msra.mxu0 0.0
        %1058 = vmatprep.subr.mxu0 0.0
        %1059 = vmatpush2.msra.mxu0 0.0
        %1060 = vmatprep.subr.mxu0 0.0
        %1061 = vmatpush2.msra.mxu0 0.0
        %1062 = vmatprep.subr.mxu0 0.0
        %1063 = vmatpush2.msra.mxu0 0.0
        %1064 = vmatprep.subr.mxu0 0.0
        %1065 = vmatpush2.msra.mxu0 0.0
        %1066 = vmatprep.subr.mxu0 0.0
        %1067 = vmatpush2.msra.mxu0 0.0
        %1068 = vmatprep.subr.mxu0 0.0
        %1069 = vmatpush2.msra.mxu0 0.0
        %1070 = vmatprep.subr.mxu0 0.0
        %1071 = vmatpush2.msra.mxu0 0.0
        %1072 = vmatprep.subr.mxu0 0.0
        %1073 = vmatpush2.msra.mxu0 0.0
        %1074 = vmatprep.subr.mxu0 0.0
        %1075 = vmatpush2.msra.mxu0 0.0
        %1076 = vmatprep.subr.mxu0 0.0
        %1077 = vmatpush2.msra.mxu0 0.0
        %1078 = vmatprep.mubr.f32.mxu0 0.0
        %1079 = vmatmul.mubr.f32.gmra.mxu0 %v799
        %v1080 = vpop.f32.mrf.mxu0
        %v1081 = vadd.f32 %v795, %v1080
        %v1082 = vpop.f32.mrf.mxu0
        %1083 = vdwg.mxu0
        %v1084 = vmax.f32 %v1081, 0.0
        %1085 = vmatprep.subr.mxu0 0.0
        %1086 = vmatpush1.msra.mxu0 0.0
        %1087 = vmatprep.subr.mxu0 0.0
        %1088 = vmatpush1.msra.mxu0 0.0
        %1089 = vmatprep.subr.mxu0 0.0
        %1090 = vmatpush1.msra.mxu0 0.0
        %1091 = vmatprep.subr.mxu0 0.0
        %1092 = vmatpush1.msra.mxu0 0.0
        %1093 = vmatprep.subr.mxu0 0.0
        %1094 = vmatpush1.msra.mxu0 0.0
        %1095 = vmatprep.subr.mxu0 0.0
        %1096 = vmatpush1.msra.mxu0 0.0
        %1097 = vmatprep.subr.mxu0 0.0
        %1098 = vmatpush1.msra.mxu0 0.0
        %1099 = vmatprep.subr.mxu0 0.0
        %1100 = vmatpush1.msra.mxu0 0.0
        %1101 = vmatprep.subr.mxu0 0.0
        %1102 = vmatpush1.msra.mxu0 0.0
        %1103 = vmatprep.subr.mxu0 0.0
        %1104 = vmatpush1.msra.mxu0 0.0
        %1105 = vmatprep.subr.mxu0 0.0
        %1106 = vmatpush1.msra.mxu0 %v737
        %1107 = vmatprep.subr.mxu0 0.0
        %1108 = vmatpush1.msra.mxu0 %v736
        %1109 = vmatprep.subr.mxu0 0.0
        %1110 = vmatpush1.msra.mxu0 %v735
        %1111 = vmatprep.subr.mxu0 0.0
        %1112 = vmatpush1.msra.mxu0 %v734
        %1113 = vmatprep.subr.mxu0 0.0
        %1114 = vmatpush1.msra.mxu0 %v733
        %1115 = vmatprep.subr.mxu0 0.0
        %1116 = vmatpush1.msra.mxu0 %v732
        %1117 = vmatprep.subr.mxu0 0.0
        %1118 = vmatpush2.msra.mxu0 0.0
        %1119 = vmatprep.subr.mxu0 0.0
        %1120 = vmatpush2.msra.mxu0 0.0
        %1121 = vmatprep.subr.mxu0 0.0
        %1122 = vmatpush2.msra.mxu0 0.0
        %1123 = vmatprep.subr.mxu0 0.0
        %1124 = vmatpush2.msra.mxu0 0.0
        %1125 = vmatprep.subr.mxu0 0.0
        %1126 = vmatpush2.msra.mxu0 0.0
        %1127 = vmatprep.subr.mxu0 0.0
        %1128 = vmatpush2.msra.mxu0 0.0
        %1129 = vmatprep.subr.mxu0 0.0
        %1130 = vmatpush2.msra.mxu0 0.0
        %1131 = vmatprep.subr.mxu0 0.0
        %1132 = vmatpush2.msra.mxu0 0.0
        %1133 = vmatprep.subr.mxu0 0.0
        %1134 = vmatpush2.msra.mxu0 0.0
        %1135 = vmatprep.subr.mxu0 0.0
        %1136 = vmatpush2.msra.mxu0 0.0
        %1137 = vmatprep.subr.mxu0 0.0
        %1138 = vmatpush2.msra.mxu0 0.0
        %1139 = vmatprep.subr.mxu0 0.0
        %1140 = vmatpush2.msra.mxu0 0.0
        %1141 = vmatprep.subr.mxu0 0.0
        %1142 = vmatpush2.msra.mxu0 0.0
        %1143 = vmatprep.subr.mxu0 0.0
        %1144 = vmatpush2.msra.mxu0 0.0
        %1145 = vmatprep.subr.mxu0 0.0
        %1146 = vmatpush2.msra.mxu0 0.0
        %1147 = vmatprep.subr.mxu0 0.0
        %1148 = vmatpush2.msra.mxu0 0.0
        %1149 = vmatprep.mubr.f32.mxu0 0.0
        %1150 = vmatmul.mubr.f32.gmra.mxu0 %v799
        %v1151 = vpop.f32.mrf.mxu0
        %v1152 = vadd.f32 %v795, %v1151
        %v1153 = vpop.f32.mrf.mxu0
        %1154 = vdwg.mxu0
        %v1155 = vmax.f32 %v1152, 0.0
        %1156 = vmatprep.subr.mxu0 0.0
        %1157 = vmatpush1.msra.mxu0 0.0
        %1158 = vmatprep.subr.mxu0 0.0
        %1159 = vmatpush1.msra.mxu0 0.0
        %1160 = vmatprep.subr.mxu0 0.0
        %1161 = vmatpush1.msra.mxu0 0.0
        %1162 = vmatprep.subr.mxu0 0.0
        %1163 = vmatpush1.msra.mxu0 0.0
        %1164 = vmatprep.subr.mxu0 0.0
        %1165 = vmatpush1.msra.mxu0 0.0
        %1166 = vmatprep.subr.mxu0 0.0
        %1167 = vmatpush1.msra.mxu0 0.0
        %1168 = vmatprep.subr.mxu0 0.0
        %1169 = vmatpush1.msra.mxu0 0.0
        %1170 = vmatprep.subr.mxu0 0.0
        %1171 = vmatpush1.msra.mxu0 0.0
        %1172 = vmatprep.subr.mxu0 0.0
        %1173 = vmatpush1.msra.mxu0 0.0
        %1174 = vmatprep.subr.mxu0 0.0
        %1175 = vmatpush1.msra.mxu0 0.0
        %1176 = vmatprep.subr.mxu0 0.0
        %1177 = vmatpush1.msra.mxu0 %v739
        %1178 = vmatprep.subr.mxu0 0.0
        %1179 = vmatpush1.msra.mxu0 %v738
        %1180 = vmatprep.subr.mxu0 0.0
        %1181 = vmatpush1.msra.mxu0 %v737
        %1182 = vmatprep.subr.mxu0 0.0
        %1183 = vmatpush1.msra.mxu0 %v736
        %1184 = vmatprep.subr.mxu0 0.0
        %1185 = vmatpush1.msra.mxu0 %v735
        %1186 = vmatprep.subr.mxu0 0.0
        %1187 = vmatpush1.msra.mxu0 %v734
        %1188 = vmatprep.subr.mxu0 0.0
        %1189 = vmatpush2.msra.mxu0 0.0
        %1190 = vmatprep.subr.mxu0 0.0
        %1191 = vmatpush2.msra.mxu0 0.0
        %1192 = vmatprep.subr.mxu0 0.0
        %1193 = vmatpush2.msra.mxu0 0.0
        %1194 = vmatprep.subr.mxu0 0.0
        %1195 = vmatpush2.msra.mxu0 0.0
        %1196 = vmatprep.subr.mxu0 0.0
        %1197 = vmatpush2.msra.mxu0 0.0
        %1198 = vmatprep.subr.mxu0 0.0
        %1199 = vmatpush2.msra.mxu0 0.0
        %1200 = vmatprep.subr.mxu0 0.0
        %1201 = vmatpush2.msra.mxu0 0.0
        %1202 = vmatprep.subr.mxu0 0.0
        %1203 = vmatpush2.msra.mxu0 0.0
        %1204 = vmatprep.subr.mxu0 0.0
        %1205 = vmatpush2.msra.mxu0 0.0
        %1206 = vmatprep.subr.mxu0 0.0
        %1207 = vmatpush2.msra.mxu0 0.0
        %1208 = vmatprep.subr.mxu0 0.0
        %1209 = vmatpush2.msra.mxu0 0.0
        %1210 = vmatprep.subr.mxu0 0.0
        %1211 = vmatpush2.msra.mxu0 0.0
        %1212 = vmatprep.subr.mxu0 0.0
        %1213 = vmatpush2.msra.mxu0 0.0
        %1214 = vmatprep.subr.mxu0 0.0
        %1215 = vmatpush2.msra.mxu0 0.0
        %1216 = vmatprep.subr.mxu0 0.0
        %1217 = vmatpush2.msra.mxu0 0.0
        %1218 = vmatprep.subr.mxu0 0.0
        %1219 = vmatpush2.msra.mxu0 0.0
        %1220 = vmatprep.mubr.f32.mxu0 0.0
        %1221 = vmatmul.mubr.f32.gmra.mxu0 %v799
        %v1222 = vpop.f32.mrf.mxu0
        %v1223 = vadd.f32 %v795, %v1222
        %v1224 = vpop.f32.mrf.mxu0
        %1225 = vdwg.mxu0
        %v1226 = vmax.f32 %v1223, 0.0
        %1227 = vmatprep.subr.mxu0 0.0
        %1228 = vmatpush1.msra.mxu0 0.0
        %1229 = vmatprep.subr.mxu0 0.0
        %1230 = vmatpush1.msra.mxu0 0.0
        %1231 = vmatprep.subr.mxu0 0.0
        %1232 = vmatpush1.msra.mxu0 0.0
        %1233 = vmatprep.subr.mxu0 0.0
        %1234 = vmatpush1.msra.mxu0 0.0
        %1235 = vmatprep.subr.mxu0 0.0
        %1236 = vmatpush1.msra.mxu0 0.0
        %1237 = vmatprep.subr.mxu0 0.0
        %1238 = vmatpush1.msra.mxu0 0.0
        %1239 = vmatprep.subr.mxu0 0.0
        %1240 = vmatpush1.msra.mxu0 0.0
        %1241 = vmatprep.subr.mxu0 0.0
        %1242 = vmatpush1.msra.mxu0 0.0
        %1243 = vmatprep.subr.mxu0 0.0
        %1244 = vmatpush1.msra.mxu0 0.0
        %1245 = vmatprep.subr.mxu0 0.0
        %1246 = vmatpush1.msra.mxu0 0.0
        %1247 = vmatprep.subr.mxu0 0.0
        %1248 = vmatpush1.msra.mxu0 %v741
        %1249 = vmatprep.subr.mxu0 0.0
        %1250 = vmatpush1.msra.mxu0 %v740
        %1251 = vmatprep.subr.mxu0 0.0
        %1252 = vmatpush1.msra.mxu0 %v739
        %1253 = vmatprep.subr.mxu0 0.0
        %1254 = vmatpush1.msra.mxu0 %v738
        %1255 = vmatprep.subr.mxu0 0.0
        %1256 = vmatpush1.msra.mxu0 %v737
        %1257 = vmatprep.subr.mxu0 0.0
        %1258 = vmatpush1.msra.mxu0 %v736
        %1259 = vmatprep.subr.mxu0 0.0
        %1260 = vmatpush2.msra.mxu0 0.0
        %1261 = vmatprep.subr.mxu0 0.0
        %1262 = vmatpush2.msra.mxu0 0.0
        %1263 = vmatprep.subr.mxu0 0.0
        %1264 = vmatpush2.msra.mxu0 0.0
        %1265 = vmatprep.subr.mxu0 0.0
        %1266 = vmatpush2.msra.mxu0 0.0
        %1267 = vmatprep.subr.mxu0 0.0
        %1268 = vmatpush2.msra.mxu0 0.0
        %1269 = vmatprep.subr.mxu0 0.0
        %1270 = vmatpush2.msra.mxu0 0.0
        %1271 = vmatprep.subr.mxu0 0.0
        %1272 = vmatpush2.msra.mxu0 0.0
        %1273 = vmatprep.subr.mxu0 0.0
        %1274 = vmatpush2.msra.mxu0 0.0
        %1275 = vmatprep.subr.mxu0 0.0
        %1276 = vmatpush2.msra.mxu0 0.0
        %1277 = vmatprep.subr.mxu0 0.0
        %1278 = vmatpush2.msra.mxu0 0.0
        %1279 = vmatprep.subr.mxu0 0.0
        %1280 = vmatpush2.msra.mxu0 0.0
        %1281 = vmatprep.subr.mxu0 0.0
        %1282 = vmatpush2.msra.mxu0 0.0
        %1283 = vmatprep.subr.mxu0 0.0
        %1284 = vmatpush2.msra.mxu0 0.0
        %1285 = vmatprep.subr.mxu0 0.0
        %1286 = vmatpush2.msra.mxu0 0.0
        %1287 = vmatprep.subr.mxu0 0.0
        %1288 = vmatpush2.msra.mxu0 0.0
        %1289 = vmatprep.subr.mxu0 0.0
        %1290 = vmatpush2.msra.mxu0 0.0
        %1291 = vmatprep.mubr.f32.mxu0 0.0
        %1292 = vmatmul.mubr.f32.gmra.mxu0 %v799
        %v1293 = vpop.f32.mrf.mxu0
        %v1294 = vadd.f32 %v795, %v1293
        %v1295 = vpop.f32.mrf.mxu0
        %1296 = vdwg.mxu0
        %v1297 = vmax.f32 %v1294, 0.0
        %1298 = vmatprep.subr.mxu0 0.0
        %1299 = vmatpush1.msra.mxu0 0.0
        %1300 = vmatprep.subr.mxu0 0.0
        %1301 = vmatpush1.msra.mxu0 0.0
        %1302 = vmatprep.subr.mxu0 0.0
        %1303 = vmatpush1.msra.mxu0 0.0
        %1304 = vmatprep.subr.mxu0 0.0
        %1305 = vmatpush1.msra.mxu0 0.0
        %1306 = vmatprep.subr.mxu0 0.0
        %1307 = vmatpush1.msra.mxu0 0.0
        %1308 = vmatprep.subr.mxu0 0.0
        %1309 = vmatpush1.msra.mxu0 0.0
        %1310 = vmatprep.subr.mxu0 0.0
        %1311 = vmatpush1.msra.mxu0 0.0
        %1312 = vmatprep.subr.mxu0 0.0
        %1313 = vmatpush1.msra.mxu0 0.0
        %1314 = vmatprep.subr.mxu0 0.0
        %1315 = vmatpush1.msra.mxu0 0.0
        %1316 = vmatprep.subr.mxu0 0.0
        %1317 = vmatpush1.msra.mxu0 0.0
        %1318 = vmatprep.subr.mxu0 0.0
        %1319 = vmatpush1.msra.mxu0 %v743
        %1320 = vmatprep.subr.mxu0 0.0
        %1321 = vmatpush1.msra.mxu0 %v742
        %1322 = vmatprep.subr.mxu0 0.0
        %1323 = vmatpush1.msra.mxu0 %v741
        %1324 = vmatprep.subr.mxu0 0.0
        %1325 = vmatpush1.msra.mxu0 %v740
        %1326 = vmatprep.subr.mxu0 0.0
        %1327 = vmatpush1.msra.mxu0 %v739
        %1328 = vmatprep.subr.mxu0 0.0
        %1329 = vmatpush1.msra.mxu0 %v738
        %1330 = vmatprep.subr.mxu0 0.0
        %1331 = vmatpush2.msra.mxu0 0.0
        %1332 = vmatprep.subr.mxu0 0.0
        %1333 = vmatpush2.msra.mxu0 0.0
        %1334 = vmatprep.subr.mxu0 0.0
        %1335 = vmatpush2.msra.mxu0 0.0
        %1336 = vmatprep.subr.mxu0 0.0
        %1337 = vmatpush2.msra.mxu0 0.0
        %1338 = vmatprep.subr.mxu0 0.0
        %1339 = vmatpush2.msra.mxu0 0.0
        %1340 = vmatprep.subr.mxu0 0.0
        %1341 = vmatpush2.msra.mxu0 0.0
        %1342 = vmatprep.subr.mxu0 0.0
        %1343 = vmatpush2.msra.mxu0 0.0
        %1344 = vmatprep.subr.mxu0 0.0
        %1345 = vmatpush2.msra.mxu0 0.0
        %1346 = vmatprep.subr.mxu0 0.0
        %1347 = vmatpush2.msra.mxu0 0.0
        %1348 = vmatprep.subr.mxu0 0.0
        %1349 = vmatpush2.msra.mxu0 0.0
        %1350 = vmatprep.subr.mxu0 0.0
        %1351 = vmatpush2.msra.mxu0 0.0
        %1352 = vmatprep.subr.mxu0 0.0
        %1353 = vmatpush2.msra.mxu0 0.0
        %1354 = vmatprep.subr.mxu0 0.0
        %1355 = vmatpush2.msra.mxu0 0.0
        %1356 = vmatprep.subr.mxu0 0.0
        %1357 = vmatpush2.msra.mxu0 0.0
        %1358 = vmatprep.subr.mxu0 0.0
        %1359 = vmatpush2.msra.mxu0 0.0
        %1360 = vmatprep.subr.mxu0 0.0
        %1361 = vmatpush2.msra.mxu0 0.0
        %1362 = vmatprep.mubr.f32.mxu0 0.0
        %1363 = vmatmul.mubr.f32.gmra.mxu0 %v799
        %v1364 = vpop.f32.mrf.mxu0
        %v1365 = vadd.f32 %v795, %v1364
        %v1366 = vpop.f32.mrf.mxu0
        %1367 = vdwg.mxu0
        %v1368 = vmax.f32 %v1365, 0.0
        %1369 = vmatprep.subr.mxu0 0.0
        %1370 = vmatpush1.msra.mxu0 0.0
        %1371 = vmatprep.subr.mxu0 0.0
        %1372 = vmatpush1.msra.mxu0 0.0
        %1373 = vmatprep.subr.mxu0 0.0
        %1374 = vmatpush1.msra.mxu0 0.0
        %1375 = vmatprep.subr.mxu0 0.0
        %1376 = vmatpush1.msra.mxu0 0.0
        %1377 = vmatprep.subr.mxu0 0.0
        %1378 = vmatpush1.msra.mxu0 0.0
        %1379 = vmatprep.subr.mxu0 0.0
        %1380 = vmatpush1.msra.mxu0 0.0
        %1381 = vmatprep.subr.mxu0 0.0
        %1382 = vmatpush1.msra.mxu0 0.0
        %1383 = vmatprep.subr.mxu0 0.0
        %1384 = vmatpush1.msra.mxu0 0.0
        %1385 = vmatprep.subr.mxu0 0.0
        %1386 = vmatpush1.msra.mxu0 0.0
        %1387 = vmatprep.subr.mxu0 0.0
        %1388 = vmatpush1.msra.mxu0 0.0
        %1389 = vmatprep.subr.mxu0 0.0
        %1390 = vmatpush1.msra.mxu0 %v745
        %1391 = vmatprep.subr.mxu0 0.0
        %1392 = vmatpush1.msra.mxu0 %v744
        %1393 = vmatprep.subr.mxu0 0.0
        %1394 = vmatpush1.msra.mxu0 %v743
        %1395 = vmatprep.subr.mxu0 0.0
        %1396 = vmatpush1.msra.mxu0 %v742
        %1397 = vmatprep.subr.mxu0 0.0
        %1398 = vmatpush1.msra.mxu0 %v741
        %1399 = vmatprep.subr.mxu0 0.0
        %1400 = vmatpush1.msra.mxu0 %v740
        %1401 = vmatprep.subr.mxu0 0.0
        %1402 = vmatpush2.msra.mxu0 0.0
        %1403 = vmatprep.subr.mxu0 0.0
        %1404 = vmatpush2.msra.mxu0 0.0
        %1405 = vmatprep.subr.mxu0 0.0
        %1406 = vmatpush2.msra.mxu0 0.0
        %1407 = vmatprep.subr.mxu0 0.0
        %1408 = vmatpush2.msra.mxu0 0.0
        %1409 = vmatprep.subr.mxu0 0.0
        %1410 = vmatpush2.msra.mxu0 0.0
        %1411 = vmatprep.subr.mxu0 0.0
        %1412 = vmatpush2.msra.mxu0 0.0
        %1413 = vmatprep.subr.mxu0 0.0
        %1414 = vmatpush2.msra.mxu0 0.0
        %1415 = vmatprep.subr.mxu0 0.0
        %1416 = vmatpush2.msra.mxu0 0.0
        %1417 = vmatprep.subr.mxu0 0.0
        %1418 = vmatpush2.msra.mxu0 0.0
        %1419 = vmatprep.subr.mxu0 0.0
        %1420 = vmatpush2.msra.mxu0 0.0
        %1421 = vmatprep.subr.mxu0 0.0
        %1422 = vmatpush2.msra.mxu0 0.0
        %1423 = vmatprep.subr.mxu0 0.0
        %1424 = vmatpush2.msra.mxu0 0.0
        %1425 = vmatprep.subr.mxu0 0.0
        %1426 = vmatpush2.msra.mxu0 0.0
        %1427 = vmatprep.subr.mxu0 0.0
        %1428 = vmatpush2.msra.mxu0 0.0
        %1429 = vmatprep.subr.mxu0 0.0
        %1430 = vmatpush2.msra.mxu0 0.0
        %1431 = vmatprep.subr.mxu0 0.0
        %1432 = vmatpush2.msra.mxu0 0.0
        %1433 = vmatprep.mubr.f32.mxu0 0.0
        %1434 = vmatmul.mubr.f32.gmra.mxu0 %v799
        %v1435 = vpop.f32.mrf.mxu0
        %v1436 = vadd.f32 %v795, %v1435
        %v1437 = vpop.f32.mrf.mxu0
        %1438 = vdwg.mxu0
        %v1439 = vmax.f32 %v1436, 0.0
        %1440 = vmatprep.subr.mxu0 0.0
        %1441 = vmatpush1.msra.mxu0 0.0
        %1442 = vmatprep.subr.mxu0 0.0
        %1443 = vmatpush1.msra.mxu0 0.0
        %1444 = vmatprep.subr.mxu0 0.0
        %1445 = vmatpush1.msra.mxu0 0.0
        %1446 = vmatprep.subr.mxu0 0.0
        %1447 = vmatpush1.msra.mxu0 0.0
        %1448 = vmatprep.subr.mxu0 0.0
        %1449 = vmatpush1.msra.mxu0 0.0
        %1450 = vmatprep.subr.mxu0 0.0
        %1451 = vmatpush1.msra.mxu0 0.0
        %1452 = vmatprep.subr.mxu0 0.0
        %1453 = vmatpush1.msra.mxu0 0.0
        %1454 = vmatprep.subr.mxu0 0.0
        %1455 = vmatpush1.msra.mxu0 0.0
        %1456 = vmatprep.subr.mxu0 0.0
        %1457 = vmatpush1.msra.mxu0 0.0
        %1458 = vmatprep.subr.mxu0 0.0
        %1459 = vmatpush1.msra.mxu0 0.0
        %1460 = vmatprep.subr.mxu0 0.0
        %1461 = vmatpush1.msra.mxu0 %v747
        %1462 = vmatprep.subr.mxu0 0.0
        %1463 = vmatpush1.msra.mxu0 %v746
        %1464 = vmatprep.subr.mxu0 0.0
        %1465 = vmatpush1.msra.mxu0 %v745
        %1466 = vmatprep.subr.mxu0 0.0
        %1467 = vmatpush1.msra.mxu0 %v744
        %1468 = vmatprep.subr.mxu0 0.0
        %1469 = vmatpush1.msra.mxu0 %v743
        %1470 = vmatprep.subr.mxu0 0.0
        %1471 = vmatpush1.msra.mxu0 %v742
        %1472 = vmatprep.subr.mxu0 0.0
        %1473 = vmatpush2.msra.mxu0 0.0
        %1474 = vmatprep.subr.mxu0 0.0
        %1475 = vmatpush2.msra.mxu0 0.0
        %1476 = vmatprep.subr.mxu0 0.0
        %1477 = vmatpush2.msra.mxu0 0.0
        %1478 = vmatprep.subr.mxu0 0.0
        %1479 = vmatpush2.msra.mxu0 0.0
        %1480 = vmatprep.subr.mxu0 0.0
        %1481 = vmatpush2.msra.mxu0 0.0
        %1482 = vmatprep.subr.mxu0 0.0
        %1483 = vmatpush2.msra.mxu0 0.0
        %1484 = vmatprep.subr.mxu0 0.0
        %1485 = vmatpush2.msra.mxu0 0.0
        %1486 = vmatprep.subr.mxu0 0.0
        %1487 = vmatpush2.msra.mxu0 0.0
        %1488 = vmatprep.subr.mxu0 0.0
        %1489 = vmatpush2.msra.mxu0 0.0
        %1490 = vmatprep.subr.mxu0 0.0
        %1491 = vmatpush2.msra.mxu0 0.0
        %1492 = vmatprep.subr.mxu0 0.0
        %1493 = vmatpush2.msra.mxu0 0.0
        %1494 = vmatprep.subr.mxu0 0.0
        %1495 = vmatpush2.msra.mxu0 0.0
        %1496 = vmatprep.subr.mxu0 0.0
        %1497 = vmatpush2.msra.mxu0 0.0
        %1498 = vmatprep.subr.mxu0 0.0
        %1499 = vmatpush2.msra.mxu0 0.0
        %1500 = vmatprep.subr.mxu0 0.0
        %1501 = vmatpush2.msra.mxu0 0.0
        %1502 = vmatprep.subr.mxu0 0.0
        %1503 = vmatpush2.msra.mxu0 0.0
        %1504 = vmatprep.mubr.f32.mxu0 0.0
        %1505 = vmatmul.mubr.f32.gmra.mxu0 %v799
        %v1506 = vpop.f32.mrf.mxu0
        %v1507 = vadd.f32 %v795, %v1506
        %v1508 = vpop.f32.mrf.mxu0
        %1509 = vdwg.mxu0
        %v1510 = vmax.f32 %v1507, 0.0
        %1511 = vmatprep.subr.mxu0 0.0
        %1512 = vmatpush1.msra.mxu0 0.0
        %1513 = vmatprep.subr.mxu0 0.0
        %1514 = vmatpush1.msra.mxu0 0.0
        %1515 = vmatprep.subr.mxu0 0.0
        %1516 = vmatpush1.msra.mxu0 0.0
        %1517 = vmatprep.subr.mxu0 0.0
        %1518 = vmatpush1.msra.mxu0 0.0
        %1519 = vmatprep.subr.mxu0 0.0
        %1520 = vmatpush1.msra.mxu0 0.0
        %1521 = vmatprep.subr.mxu0 0.0
        %1522 = vmatpush1.msra.mxu0 0.0
        %1523 = vmatprep.subr.mxu0 0.0
        %1524 = vmatpush1.msra.mxu0 0.0
        %1525 = vmatprep.subr.mxu0 0.0
        %1526 = vmatpush1.msra.mxu0 0.0
        %1527 = vmatprep.subr.mxu0 0.0
        %1528 = vmatpush1.msra.mxu0 0.0
        %1529 = vmatprep.subr.mxu0 0.0
        %1530 = vmatpush1.msra.mxu0 0.0
        %1531 = vmatprep.subr.mxu0 0.0
        %1532 = vmatpush1.msra.mxu0 %v749
        %1533 = vmatprep.subr.mxu0 0.0
        %1534 = vmatpush1.msra.mxu0 %v748
        %1535 = vmatprep.subr.mxu0 0.0
        %1536 = vmatpush1.msra.mxu0 %v747
        %1537 = vmatprep.subr.mxu0 0.0
        %1538 = vmatpush1.msra.mxu0 %v746
        %1539 = vmatprep.subr.mxu0 0.0
        %1540 = vmatpush1.msra.mxu0 %v745
        %1541 = vmatprep.subr.mxu0 0.0
        %1542 = vmatpush1.msra.mxu0 %v744
        %1543 = vmatprep.subr.mxu0 0.0
        %1544 = vmatpush2.msra.mxu0 0.0
        %1545 = vmatprep.subr.mxu0 0.0
        %1546 = vmatpush2.msra.mxu0 0.0
        %1547 = vmatprep.subr.mxu0 0.0
        %1548 = vmatpush2.msra.mxu0 0.0
        %1549 = vmatprep.subr.mxu0 0.0
        %1550 = vmatpush2.msra.mxu0 0.0
        %1551 = vmatprep.subr.mxu0 0.0
        %1552 = vmatpush2.msra.mxu0 0.0
        %1553 = vmatprep.subr.mxu0 0.0
        %1554 = vmatpush2.msra.mxu0 0.0
        %1555 = vmatprep.subr.mxu0 0.0
        %1556 = vmatpush2.msra.mxu0 0.0
        %1557 = vmatprep.subr.mxu0 0.0
        %1558 = vmatpush2.msra.mxu0 0.0
        %1559 = vmatprep.subr.mxu0 0.0
        %1560 = vmatpush2.msra.mxu0 0.0
        %1561 = vmatprep.subr.mxu0 0.0
        %1562 = vmatpush2.msra.mxu0 0.0
        %1563 = vmatprep.subr.mxu0 0.0
        %1564 = vmatpush2.msra.mxu0 0.0
        %1565 = vmatprep.subr.mxu0 0.0
        %1566 = vmatpush2.msra.mxu0 0.0
        %1567 = vmatprep.subr.mxu0 0.0
        %1568 = vmatpush2.msra.mxu0 0.0
        %1569 = vmatprep.subr.mxu0 0.0
        %1570 = vmatpush2.msra.mxu0 0.0
        %1571 = vmatprep.subr.mxu0 0.0
        %1572 = vmatpush2.msra.mxu0 0.0
        %1573 = vmatprep.subr.mxu0 0.0
        %1574 = vmatpush2.msra.mxu0 0.0
        %1575 = vmatprep.mubr.f32.mxu0 0.0
        %1576 = vmatmul.mubr.f32.gmra.mxu0 %v799
        %v1577 = vpop.f32.mrf.mxu0
        %v1578 = vadd.f32 %v795, %v1577
        %v1579 = vpop.f32.mrf.mxu0
        %1580 = vdwg.mxu0
        %v1581 = vmax.f32 %v1578, 0.0
        %1582 = vmatprep.subr.mxu0 0.0
        %1583 = vmatpush1.msra.mxu0 0.0
        %1584 = vmatprep.subr.mxu0 0.0
        %1585 = vmatpush1.msra.mxu0 0.0
        %1586 = vmatprep.subr.mxu0 0.0
        %1587 = vmatpush1.msra.mxu0 0.0
        %1588 = vmatprep.subr.mxu0 0.0
        %1589 = vmatpush1.msra.mxu0 0.0
        %1590 = vmatprep.subr.mxu0 0.0
        %1591 = vmatpush1.msra.mxu0 0.0
        %1592 = vmatprep.subr.mxu0 0.0
        %1593 = vmatpush1.msra.mxu0 0.0
        %1594 = vmatprep.subr.mxu0 0.0
        %1595 = vmatpush1.msra.mxu0 0.0
        %1596 = vmatprep.subr.mxu0 0.0
        %1597 = vmatpush1.msra.mxu0 0.0
        %1598 = vmatprep.subr.mxu0 0.0
        %1599 = vmatpush1.msra.mxu0 0.0
        %1600 = vmatprep.subr.mxu0 0.0
        %1601 = vmatpush1.msra.mxu0 0.0
        %1602 = vmatprep.subr.mxu0 0.0
        %1603 = vmatpush1.msra.mxu0 %v751
        %1604 = vmatprep.subr.mxu0 0.0
        %1605 = vmatpush1.msra.mxu0 %v750
        %1606 = vmatprep.subr.mxu0 0.0
        %1607 = vmatpush1.msra.mxu0 %v749
        %1608 = vmatprep.subr.mxu0 0.0
        %1609 = vmatpush1.msra.mxu0 %v748
        %1610 = vmatprep.subr.mxu0 0.0
        %1611 = vmatpush1.msra.mxu0 %v747
        %1612 = vmatprep.subr.mxu0 0.0
        %1613 = vmatpush1.msra.mxu0 %v746
        %1614 = vmatprep.subr.mxu0 0.0
        %1615 = vmatpush2.msra.mxu0 0.0
        %1616 = vmatprep.subr.mxu0 0.0
        %1617 = vmatpush2.msra.mxu0 0.0
        %1618 = vmatprep.subr.mxu0 0.0
        %1619 = vmatpush2.msra.mxu0 0.0
        %1620 = vmatprep.subr.mxu0 0.0
        %1621 = vmatpush2.msra.mxu0 0.0
        %1622 = vmatprep.subr.mxu0 0.0
        %1623 = vmatpush2.msra.mxu0 0.0
        %1624 = vmatprep.subr.mxu0 0.0
        %1625 = vmatpush2.msra.mxu0 0.0
        %1626 = vmatprep.subr.mxu0 0.0
        %1627 = vmatpush2.msra.mxu0 0.0
        %1628 = vmatprep.subr.mxu0 0.0
        %1629 = vmatpush2.msra.mxu0 0.0
        %1630 = vmatprep.subr.mxu0 0.0
        %1631 = vmatpush2.msra.mxu0 0.0
        %1632 = vmatprep.subr.mxu0 0.0
        %1633 = vmatpush2.msra.mxu0 0.0
        %1634 = vmatprep.subr.mxu0 0.0
        %1635 = vmatpush2.msra.mxu0 0.0
        %1636 = vmatprep.subr.mxu0 0.0
        %1637 = vmatpush2.msra.mxu0 0.0
        %1638 = vmatprep.subr.mxu0 0.0
        %1639 = vmatpush2.msra.mxu0 0.0
        %1640 = vmatprep.subr.mxu0 0.0
        %1641 = vmatpush2.msra.mxu0 0.0
        %1642 = vmatprep.subr.mxu0 0.0
        %1643 = vmatpush2.msra.mxu0 0.0
        %1644 = vmatprep.subr.mxu0 0.0
        %1645 = vmatpush2.msra.mxu0 0.0
        %1646 = vmatprep.mubr.f32.mxu0 0.0
        %1647 = vmatmul.mubr.f32.gmra.mxu0 %v799
        %v1648 = vpop.f32.mrf.mxu0
        %v1649 = vadd.f32 %v795, %v1648
        %v1650 = vpop.f32.mrf.mxu0
        %1651 = vdwg.mxu0
        %v1652 = vmax.f32 %v1649, 0.0
        %1653 = vmatprep.subr.mxu0 0.0
        %1654 = vmatpush1.msra.mxu0 0.0
        %1655 = vmatprep.subr.mxu0 0.0
        %1656 = vmatpush1.msra.mxu0 0.0
        %1657 = vmatprep.subr.mxu0 0.0
        %1658 = vmatpush1.msra.mxu0 0.0
        %1659 = vmatprep.subr.mxu0 0.0
        %1660 = vmatpush1.msra.mxu0 0.0
        %1661 = vmatprep.subr.mxu0 0.0
        %1662 = vmatpush1.msra.mxu0 0.0
        %1663 = vmatprep.subr.mxu0 0.0
        %1664 = vmatpush1.msra.mxu0 0.0
        %1665 = vmatprep.subr.mxu0 0.0
        %1666 = vmatpush1.msra.mxu0 0.0
        %1667 = vmatprep.subr.mxu0 0.0
        %1668 = vmatpush1.msra.mxu0 0.0
        %1669 = vmatprep.subr.mxu0 0.0
        %1670 = vmatpush1.msra.mxu0 0.0
        %1671 = vmatprep.subr.mxu0 0.0
        %1672 = vmatpush1.msra.mxu0 0.0
        %1673 = vmatprep.subr.mxu0 0.0
        %1674 = vmatpush1.msra.mxu0 %v753
        %1675 = vmatprep.subr.mxu0 0.0
        %1676 = vmatpush1.msra.mxu0 %v752
        %1677 = vmatprep.subr.mxu0 0.0
        %1678 = vmatpush1.msra.mxu0 %v751
        %1679 = vmatprep.subr.mxu0 0.0
        %1680 = vmatpush1.msra.mxu0 %v750
        %1681 = vmatprep.subr.mxu0 0.0
        %1682 = vmatpush1.msra.mxu0 %v749
        %1683 = vmatprep.subr.mxu0 0.0
        %1684 = vmatpush1.msra.mxu0 %v748
        %1685 = vmatprep.subr.mxu0 0.0
        %1686 = vmatpush2.msra.mxu0 0.0
        %1687 = vmatprep.subr.mxu0 0.0
        %1688 = vmatpush2.msra.mxu0 0.0
        %1689 = vmatprep.subr.mxu0 0.0
        %1690 = vmatpush2.msra.mxu0 0.0
        %1691 = vmatprep.subr.mxu0 0.0
        %1692 = vmatpush2.msra.mxu0 0.0
        %1693 = vmatprep.subr.mxu0 0.0
        %1694 = vmatpush2.msra.mxu0 0.0
        %1695 = vmatprep.subr.mxu0 0.0
        %1696 = vmatpush2.msra.mxu0 0.0
        %1697 = vmatprep.subr.mxu0 0.0
        %1698 = vmatpush2.msra.mxu0 0.0
        %1699 = vmatprep.subr.mxu0 0.0
        %1700 = vmatpush2.msra.mxu0 0.0
        %1701 = vmatprep.subr.mxu0 0.0
        %1702 = vmatpush2.msra.mxu0 0.0
        %1703 = vmatprep.subr.mxu0 0.0
        %1704 = vmatpush2.msra.mxu0 0.0
        %1705 = vmatprep.subr.mxu0 0.0
        %1706 = vmatpush2.msra.mxu0 0.0
        %1707 = vmatprep.subr.mxu0 0.0
        %1708 = vmatpush2.msra.mxu0 0.0
        %1709 = vmatprep.subr.mxu0 0.0
        %1710 = vmatpush2.msra.mxu0 0.0
        %1711 = vmatprep.subr.mxu0 0.0
        %1712 = vmatpush2.msra.mxu0 0.0
        %1713 = vmatprep.subr.mxu0 0.0
        %1714 = vmatpush2.msra.mxu0 0.0
        %1715 = vmatprep.subr.mxu0 0.0
        %1716 = vmatpush2.msra.mxu0 0.0
        %1717 = vmatprep.mubr.f32.mxu0 0.0
        %1718 = vmatmul.mubr.f32.gmra.mxu0 %v799
        %v1719 = vpop.f32.mrf.mxu0
        %v1720 = vadd.f32 %v795, %v1719
        %v1721 = vpop.f32.mrf.mxu0
        %1722 = vdwg.mxu0
        %v1723 = vmax.f32 %v1720, 0.0
        %1724 = vmatprep.subr.mxu0 0.0
        %1725 = vmatpush1.msra.mxu0 0.0
        %1726 = vmatprep.subr.mxu0 0.0
        %1727 = vmatpush1.msra.mxu0 0.0
        %1728 = vmatprep.subr.mxu0 0.0
        %1729 = vmatpush1.msra.mxu0 0.0
        %1730 = vmatprep.subr.mxu0 0.0
        %1731 = vmatpush1.msra.mxu0 0.0
        %1732 = vmatprep.subr.mxu0 0.0
        %1733 = vmatpush1.msra.mxu0 0.0
        %1734 = vmatprep.subr.mxu0 0.0
        %1735 = vmatpush1.msra.mxu0 0.0
        %1736 = vmatprep.subr.mxu0 0.0
        %1737 = vmatpush1.msra.mxu0 0.0
        %1738 = vmatprep.subr.mxu0 0.0
        %1739 = vmatpush1.msra.mxu0 0.0
        %1740 = vmatprep.subr.mxu0 0.0
        %1741 = vmatpush1.msra.mxu0 0.0
        %1742 = vmatprep.subr.mxu0 0.0
        %1743 = vmatpush1.msra.mxu0 0.0
        %1744 = vmatprep.subr.mxu0 0.0
        %1745 = vmatpush1.msra.mxu0 %v755
        %1746 = vmatprep.subr.mxu0 0.0
        %1747 = vmatpush1.msra.mxu0 %v754
        %1748 = vmatprep.subr.mxu0 0.0
        %1749 = vmatpush1.msra.mxu0 %v753
        %1750 = vmatprep.subr.mxu0 0.0
        %1751 = vmatpush1.msra.mxu0 %v752
        %1752 = vmatprep.subr.mxu0 0.0
        %1753 = vmatpush1.msra.mxu0 %v751
        %1754 = vmatprep.subr.mxu0 0.0
        %1755 = vmatpush1.msra.mxu0 %v750
        %1756 = vmatprep.subr.mxu0 0.0
        %1757 = vmatpush2.msra.mxu0 0.0
        %1758 = vmatprep.subr.mxu0 0.0
        %1759 = vmatpush2.msra.mxu0 0.0
        %1760 = vmatprep.subr.mxu0 0.0
        %1761 = vmatpush2.msra.mxu0 0.0
        %1762 = vmatprep.subr.mxu0 0.0
        %1763 = vmatpush2.msra.mxu0 0.0
        %1764 = vmatprep.subr.mxu0 0.0
        %1765 = vmatpush2.msra.mxu0 0.0
        %1766 = vmatprep.subr.mxu0 0.0
        %1767 = vmatpush2.msra.mxu0 0.0
        %1768 = vmatprep.subr.mxu0 0.0
        %1769 = vmatpush2.msra.mxu0 0.0
        %1770 = vmatprep.subr.mxu0 0.0
        %1771 = vmatpush2.msra.mxu0 0.0
        %1772 = vmatprep.subr.mxu0 0.0
        %1773 = vmatpush2.msra.mxu0 0.0
        %1774 = vmatprep.subr.mxu0 0.0
        %1775 = vmatpush2.msra.mxu0 0.0
        %1776 = vmatprep.subr.mxu0 0.0
        %1777 = vmatpush2.msra.mxu0 0.0
        %1778 = vmatprep.subr.mxu0 0.0
        %1779 = vmatpush2.msra.mxu0 0.0
        %1780 = vmatprep.subr.mxu0 0.0
        %1781 = vmatpush2.msra.mxu0 0.0
        %1782 = vmatprep.subr.mxu0 0.0
        %1783 = vmatpush2.msra.mxu0 0.0
        %1784 = vmatprep.subr.mxu0 0.0
        %1785 = vmatpush2.msra.mxu0 0.0
        %1786 = vmatprep.subr.mxu0 0.0
        %1787 = vmatpush2.msra.mxu0 0.0
        %1788 = vmatprep.mubr.f32.mxu0 0.0
        %1789 = vmatmul.mubr.f32.gmra.mxu0 %v799
        %v1790 = vpop.f32.mrf.mxu0
        %v1791 = vadd.f32 %v795, %v1790
        %v1792 = vpop.f32.mrf.mxu0
        %1793 = vdwg.mxu0
        %v1794 = vmax.f32 %v1791, 0.0
        %1795 = vmatprep.subr.mxu0 0.0
        %1796 = vmatpush1.msra.mxu0 0.0
        %1797 = vmatprep.subr.mxu0 0.0
        %1798 = vmatpush1.msra.mxu0 0.0
        %1799 = vmatprep.subr.mxu0 0.0
        %1800 = vmatpush1.msra.mxu0 0.0
        %1801 = vmatprep.subr.mxu0 0.0
        %1802 = vmatpush1.msra.mxu0 0.0
        %1803 = vmatprep.subr.mxu0 0.0
        %1804 = vmatpush1.msra.mxu0 0.0
        %1805 = vmatprep.subr.mxu0 0.0
        %1806 = vmatpush1.msra.mxu0 0.0
        %1807 = vmatprep.subr.mxu0 0.0
        %1808 = vmatpush1.msra.mxu0 0.0
        %1809 = vmatprep.subr.mxu0 0.0
        %1810 = vmatpush1.msra.mxu0 0.0
        %1811 = vmatprep.subr.mxu0 0.0
        %1812 = vmatpush1.msra.mxu0 0.0
        %1813 = vmatprep.subr.mxu0 0.0
        %1814 = vmatpush1.msra.mxu0 0.0
        %1815 = vmatprep.subr.mxu0 0.0
        %1816 = vmatpush1.msra.mxu0 %v757
        %1817 = vmatprep.subr.mxu0 0.0
        %1818 = vmatpush1.msra.mxu0 %v756
        %1819 = vmatprep.subr.mxu0 0.0
        %1820 = vmatpush1.msra.mxu0 %v755
        %1821 = vmatprep.subr.mxu0 0.0
        %1822 = vmatpush1.msra.mxu0 %v754
        %1823 = vmatprep.subr.mxu0 0.0
        %1824 = vmatpush1.msra.mxu0 %v753
        %1825 = vmatprep.subr.mxu0 0.0
        %1826 = vmatpush1.msra.mxu0 %v752
        %1827 = vmatprep.subr.mxu0 0.0
        %1828 = vmatpush2.msra.mxu0 0.0
        %1829 = vmatprep.subr.mxu0 0.0
        %1830 = vmatpush2.msra.mxu0 0.0
        %1831 = vmatprep.subr.mxu0 0.0
        %1832 = vmatpush2.msra.mxu0 0.0
        %1833 = vmatprep.subr.mxu0 0.0
        %1834 = vmatpush2.msra.mxu0 0.0
        %1835 = vmatprep.subr.mxu0 0.0
        %1836 = vmatpush2.msra.mxu0 0.0
        %1837 = vmatprep.subr.mxu0 0.0
        %1838 = vmatpush2.msra.mxu0 0.0
        %1839 = vmatprep.subr.mxu0 0.0
        %1840 = vmatpush2.msra.mxu0 0.0
        %1841 = vmatprep.subr.mxu0 0.0
        %1842 = vmatpush2.msra.mxu0 0.0
        %1843 = vmatprep.subr.mxu0 0.0
        %1844 = vmatpush2.msra.mxu0 0.0
        %1845 = vmatprep.subr.mxu0 0.0
        %1846 = vmatpush2.msra.mxu0 0.0
        %1847 = vmatprep.subr.mxu0 0.0
        %1848 = vmatpush2.msra.mxu0 0.0
        %1849 = vmatprep.subr.mxu0 0.0
        %1850 = vmatpush2.msra.mxu0 0.0
        %1851 = vmatprep.subr.mxu0 0.0
        %1852 = vmatpush2.msra.mxu0 0.0
        %1853 = vmatprep.subr.mxu0 0.0
        %1854 = vmatpush2.msra.mxu0 0.0
        %1855 = vmatprep.subr.mxu0 0.0
        %1856 = vmatpush2.msra.mxu0 0.0
        %1857 = vmatprep.subr.mxu0 0.0
        %1858 = vmatpush2.msra.mxu0 0.0
        %1859 = vmatprep.mubr.f32.mxu0 0.0
        %1860 = vmatmul.mubr.f32.gmra.mxu0 %v799
        %v1861 = vpop.f32.mrf.mxu0
        %v1862 = vadd.f32 %v795, %v1861
        %v1863 = vpop.f32.mrf.mxu0
        %1864 = vdwg.mxu0
        %v1865 = vmax.f32 %v1862, 0.0
        %1866 = vmatprep.subr.mxu0 0.0
        %1867 = vmatpush1.msra.mxu0 0.0
        %1868 = vmatprep.subr.mxu0 0.0
        %1869 = vmatpush1.msra.mxu0 0.0
        %1870 = vmatprep.subr.mxu0 0.0
        %1871 = vmatpush1.msra.mxu0 0.0
        %1872 = vmatprep.subr.mxu0 0.0
        %1873 = vmatpush1.msra.mxu0 0.0
        %1874 = vmatprep.subr.mxu0 0.0
        %1875 = vmatpush1.msra.mxu0 0.0
        %1876 = vmatprep.subr.mxu0 0.0
        %1877 = vmatpush1.msra.mxu0 0.0
        %1878 = vmatprep.subr.mxu0 0.0
        %1879 = vmatpush1.msra.mxu0 0.0
        %1880 = vmatprep.subr.mxu0 0.0
        %1881 = vmatpush1.msra.mxu0 0.0
        %1882 = vmatprep.subr.mxu0 0.0
        %1883 = vmatpush1.msra.mxu0 0.0
        %1884 = vmatprep.subr.mxu0 0.0
        %1885 = vmatpush1.msra.mxu0 0.0
        %1886 = vmatprep.subr.mxu0 0.0
        %1887 = vmatpush1.msra.mxu0 %v759
        %1888 = vmatprep.subr.mxu0 0.0
        %1889 = vmatpush1.msra.mxu0 %v758
        %1890 = vmatprep.subr.mxu0 0.0
        %1891 = vmatpush1.msra.mxu0 %v757
        %1892 = vmatprep.subr.mxu0 0.0
        %1893 = vmatpush1.msra.mxu0 %v756
        %1894 = vmatprep.subr.mxu0 0.0
        %1895 = vmatpush1.msra.mxu0 %v755
        %1896 = vmatprep.subr.mxu0 0.0
        %1897 = vmatpush1.msra.mxu0 %v754
        %1898 = vmatprep.subr.mxu0 0.0
        %1899 = vmatpush2.msra.mxu0 0.0
        %1900 = vmatprep.subr.mxu0 0.0
        %1901 = vmatpush2.msra.mxu0 0.0
        %1902 = vmatprep.subr.mxu0 0.0
        %1903 = vmatpush2.msra.mxu0 0.0
        %1904 = vmatprep.subr.mxu0 0.0
        %1905 = vmatpush2.msra.mxu0 0.0
        %1906 = vmatprep.subr.mxu0 0.0
        %1907 = vmatpush2.msra.mxu0 0.0
        %1908 = vmatprep.subr.mxu0 0.0
        %1909 = vmatpush2.msra.mxu0 0.0
        %1910 = vmatprep.subr.mxu0 0.0
        %1911 = vmatpush2.msra.mxu0 0.0
        %1912 = vmatprep.subr.mxu0 0.0
        %1913 = vmatpush2.msra.mxu0 0.0
        %1914 = vmatprep.subr.mxu0 0.0
        %1915 = vmatpush2.msra.mxu0 0.0
        %1916 = vmatprep.subr.mxu0 0.0
        %1917 = vmatpush2.msra.mxu0 0.0
        %1918 = vmatprep.subr.mxu0 0.0
        %1919 = vmatpush2.msra.mxu0 0.0
        %1920 = vmatprep.subr.mxu0 0.0
        %1921 = vmatpush2.msra.mxu0 0.0
        %1922 = vmatprep.subr.mxu0 0.0
        %1923 = vmatpush2.msra.mxu0 0.0
        %1924 = vmatprep.subr.mxu0 0.0
        %1925 = vmatpush2.msra.mxu0 0.0
        %1926 = vmatprep.subr.mxu0 0.0
        %1927 = vmatpush2.msra.mxu0 0.0
        %1928 = vmatprep.subr.mxu0 0.0
        %1929 = vmatpush2.msra.mxu0 0.0
        %1930 = vmatprep.mubr.f32.mxu0 0.0
        %1931 = vmatmul.mubr.f32.gmra.mxu0 %v799
        %v1932 = vpop.f32.mrf.mxu0
        %v1933 = vadd.f32 %v795, %v1932
        %v1934 = vpop.f32.mrf.mxu0
        %1935 = vdwg.mxu0
        %v1936 = vmax.f32 %v1933, 0.0
        %1937 = vmatprep.subr.mxu0 0.0
        %1938 = vmatpush1.msra.mxu0 0.0
        %1939 = vmatprep.subr.mxu0 0.0
        %1940 = vmatpush1.msra.mxu0 0.0
        %1941 = vmatprep.subr.mxu0 0.0
        %1942 = vmatpush1.msra.mxu0 0.0
        %1943 = vmatprep.subr.mxu0 0.0
        %1944 = vmatpush1.msra.mxu0 0.0
        %1945 = vmatprep.subr.mxu0 0.0
        %1946 = vmatpush1.msra.mxu0 0.0
        %1947 = vmatprep.subr.mxu0 0.0
        %1948 = vmatpush1.msra.mxu0 0.0
        %1949 = vmatprep.subr.mxu0 0.0
        %1950 = vmatpush1.msra.mxu0 0.0
        %1951 = vmatprep.subr.mxu0 0.0
        %1952 = vmatpush1.msra.mxu0 0.0
        %1953 = vmatprep.subr.mxu0 0.0
        %1954 = vmatpush1.msra.mxu0 0.0
        %1955 = vmatprep.subr.mxu0 0.0
        %1956 = vmatpush1.msra.mxu0 0.0
        %1957 = vmatprep.subr.mxu0 0.0
        %1958 = vmatpush1.msra.mxu0 %v761
        %1959 = vmatprep.subr.mxu0 0.0
        %1960 = vmatpush1.msra.mxu0 %v760
        %1961 = vmatprep.subr.mxu0 0.0
        %1962 = vmatpush1.msra.mxu0 %v759
        %1963 = vmatprep.subr.mxu0 0.0
        %1964 = vmatpush1.msra.mxu0 %v758
        %1965 = vmatprep.subr.mxu0 0.0
        %1966 = vmatpush1.msra.mxu0 %v757
        %1967 = vmatprep.subr.mxu0 0.0
        %1968 = vmatpush1.msra.mxu0 %v756
        %1969 = vmatprep.subr.mxu0 0.0
        %1970 = vmatpush2.msra.mxu0 0.0
        %1971 = vmatprep.subr.mxu0 0.0
        %1972 = vmatpush2.msra.mxu0 0.0
        %1973 = vmatprep.subr.mxu0 0.0
        %1974 = vmatpush2.msra.mxu0 0.0
        %1975 = vmatprep.subr.mxu0 0.0
        %1976 = vmatpush2.msra.mxu0 0.0
        %1977 = vmatprep.subr.mxu0 0.0
        %1978 = vmatpush2.msra.mxu0 0.0
        %1979 = vmatprep.subr.mxu0 0.0
        %1980 = vmatpush2.msra.mxu0 0.0
        %1981 = vmatprep.subr.mxu0 0.0
        %1982 = vmatpush2.msra.mxu0 0.0
        %1983 = vmatprep.subr.mxu0 0.0
        %1984 = vmatpush2.msra.mxu0 0.0
        %1985 = vmatprep.subr.mxu0 0.0
        %1986 = vmatpush2.msra.mxu0 0.0
        %1987 = vmatprep.subr.mxu0 0.0
        %1988 = vmatpush2.msra.mxu0 0.0
        %1989 = vmatprep.subr.mxu0 0.0
        %1990 = vmatpush2.msra.mxu0 0.0
        %1991 = vmatprep.subr.mxu0 0.0
        %1992 = vmatpush2.msra.mxu0 0.0
        %1993 = vmatprep.subr.mxu0 0.0
        %1994 = vmatpush2.msra.mxu0 0.0
        %1995 = vmatprep.subr.mxu0 0.0
        %1996 = vmatpush2.msra.mxu0 0.0
        %1997 = vmatprep.subr.mxu0 0.0
        %1998 = vmatpush2.msra.mxu0 0.0
        %1999 = vmatprep.subr.mxu0 0.0
        %2000 = vmatpush2.msra.mxu0 0.0
        %2001 = vmatprep.mubr.f32.mxu0 0.0
        %2002 = vmatmul.mubr.f32.gmra.mxu0 %v799
        %v2003 = vpop.f32.mrf.mxu0
        %v2004 = vadd.f32 %v795, %v2003
        %v2005 = vpop.f32.mrf.mxu0
        %2006 = vdwg.mxu0
        %v2007 = vmax.f32 %v2004, 0.0
        %2008 = vmatprep.subr.mxu0 0.0
        %2009 = vmatpush1.msra.mxu0 0.0
        %2010 = vmatprep.subr.mxu0 0.0
        %2011 = vmatpush1.msra.mxu0 0.0
        %2012 = vmatprep.subr.mxu0 0.0
        %2013 = vmatpush1.msra.mxu0 0.0
        %2014 = vmatprep.subr.mxu0 0.0
        %2015 = vmatpush1.msra.mxu0 0.0
        %2016 = vmatprep.subr.mxu0 0.0
        %2017 = vmatpush1.msra.mxu0 0.0
        %2018 = vmatprep.subr.mxu0 0.0
        %2019 = vmatpush1.msra.mxu0 0.0
        %2020 = vmatprep.subr.mxu0 0.0
        %2021 = vmatpush1.msra.mxu0 0.0
        %2022 = vmatprep.subr.mxu0 0.0
        %2023 = vmatpush1.msra.mxu0 0.0
        %2024 = vmatprep.subr.mxu0 0.0
        %2025 = vmatpush1.msra.mxu0 0.0
        %2026 = vmatprep.subr.mxu0 0.0
        %2027 = vmatpush1.msra.mxu0 0.0
        %2028 = vmatprep.subr.mxu0 0.0
        %2029 = vmatpush1.msra.mxu0 %v763
        %2030 = vmatprep.subr.mxu0 0.0
        %2031 = vmatpush1.msra.mxu0 %v762
        %2032 = vmatprep.subr.mxu0 0.0
        %2033 = vmatpush1.msra.mxu0 %v761
        %2034 = vmatprep.subr.mxu0 0.0
        %2035 = vmatpush1.msra.mxu0 %v760
        %2036 = vmatprep.subr.mxu0 0.0
        %2037 = vmatpush1.msra.mxu0 %v759
        %2038 = vmatprep.subr.mxu0 0.0
        %2039 = vmatpush1.msra.mxu0 %v758
        %2040 = vmatprep.subr.mxu0 0.0
        %2041 = vmatpush2.msra.mxu0 0.0
        %2042 = vmatprep.subr.mxu0 0.0
        %2043 = vmatpush2.msra.mxu0 0.0
        %2044 = vmatprep.subr.mxu0 0.0
        %2045 = vmatpush2.msra.mxu0 0.0
        %2046 = vmatprep.subr.mxu0 0.0
        %2047 = vmatpush2.msra.mxu0 0.0
        %2048 = vmatprep.subr.mxu0 0.0
        %2049 = vmatpush2.msra.mxu0 0.0
        %2050 = vmatprep.subr.mxu0 0.0
        %2051 = vmatpush2.msra.mxu0 0.0
        %2052 = vmatprep.subr.mxu0 0.0
        %2053 = vmatpush2.msra.mxu0 0.0
        %2054 = vmatprep.subr.mxu0 0.0
        %2055 = vmatpush2.msra.mxu0 0.0
        %2056 = vmatprep.subr.mxu0 0.0
        %2057 = vmatpush2.msra.mxu0 0.0
        %2058 = vmatprep.subr.mxu0 0.0
        %2059 = vmatpush2.msra.mxu0 0.0
        %2060 = vmatprep.subr.mxu0 0.0
        %2061 = vmatpush2.msra.mxu0 0.0
        %2062 = vmatprep.subr.mxu0 0.0
        %2063 = vmatpush2.msra.mxu0 0.0
        %2064 = vmatprep.subr.mxu0 0.0
        %2065 = vmatpush2.msra.mxu0 0.0
        %2066 = vmatprep.subr.mxu0 0.0
        %2067 = vmatpush2.msra.mxu0 0.0
        %2068 = vmatprep.subr.mxu0 0.0
        %2069 = vmatpush2.msra.mxu0 0.0
        %2070 = vmatprep.subr.mxu0 0.0
        %2071 = vmatpush2.msra.mxu0 0.0
        %2072 = vmatprep.mubr.f32.mxu0 0.0
        %2073 = vmatmul.mubr.f32.gmra.mxu0 %v799
        %v2074 = vpop.f32.mrf.mxu0
        %v2075 = vadd.f32 %v795, %v2074
        %v2076 = vpop.f32.mrf.mxu0
        %2077 = vdwg.mxu0
        %v2078 = vmax.f32 %v2075, 0.0
        %2079 = vmatprep.subr.mxu0 0.0
        %2080 = vmatpush1.msra.mxu0 0.0
        %2081 = vmatprep.subr.mxu0 0.0
        %2082 = vmatpush1.msra.mxu0 0.0
        %2083 = vmatprep.subr.mxu0 0.0
        %2084 = vmatpush1.msra.mxu0 0.0
        %2085 = vmatprep.subr.mxu0 0.0
        %2086 = vmatpush1.msra.mxu0 0.0
        %2087 = vmatprep.subr.mxu0 0.0
        %2088 = vmatpush1.msra.mxu0 0.0
        %2089 = vmatprep.subr.mxu0 0.0
        %2090 = vmatpush1.msra.mxu0 0.0
        %2091 = vmatprep.subr.mxu0 0.0
        %2092 = vmatpush1.msra.mxu0 0.0
        %2093 = vmatprep.subr.mxu0 0.0
        %2094 = vmatpush1.msra.mxu0 0.0
        %2095 = vmatprep.subr.mxu0 0.0
        %2096 = vmatpush1.msra.mxu0 0.0
        %2097 = vmatprep.subr.mxu0 0.0
        %2098 = vmatpush1.msra.mxu0 0.0
        %2099 = vmatprep.subr.mxu0 0.0
        %2100 = vmatpush1.msra.mxu0 %v765
        %2101 = vmatprep.subr.mxu0 0.0
        %2102 = vmatpush1.msra.mxu0 %v764
        %2103 = vmatprep.subr.mxu0 0.0
        %2104 = vmatpush1.msra.mxu0 %v763
        %2105 = vmatprep.subr.mxu0 0.0
        %2106 = vmatpush1.msra.mxu0 %v762
        %2107 = vmatprep.subr.mxu0 0.0
        %2108 = vmatpush1.msra.mxu0 %v761
        %2109 = vmatprep.subr.mxu0 0.0
        %2110 = vmatpush1.msra.mxu0 %v760
        %2111 = vmatprep.subr.mxu0 0.0
        %2112 = vmatpush2.msra.mxu0 0.0
        %2113 = vmatprep.subr.mxu0 0.0
        %2114 = vmatpush2.msra.mxu0 0.0
        %2115 = vmatprep.subr.mxu0 0.0
        %2116 = vmatpush2.msra.mxu0 0.0
        %2117 = vmatprep.subr.mxu0 0.0
        %2118 = vmatpush2.msra.mxu0 0.0
        %2119 = vmatprep.subr.mxu0 0.0
        %2120 = vmatpush2.msra.mxu0 0.0
        %2121 = vmatprep.subr.mxu0 0.0
        %2122 = vmatpush2.msra.mxu0 0.0
        %2123 = vmatprep.subr.mxu0 0.0
        %2124 = vmatpush2.msra.mxu0 0.0
        %2125 = vmatprep.subr.mxu0 0.0
        %2126 = vmatpush2.msra.mxu0 0.0
        %2127 = vmatprep.subr.mxu0 0.0
        %2128 = vmatpush2.msra.mxu0 0.0
        %2129 = vmatprep.subr.mxu0 0.0
        %2130 = vmatpush2.msra.mxu0 0.0
        %2131 = vmatprep.subr.mxu0 0.0
        %2132 = vmatpush2.msra.mxu0 0.0
        %2133 = vmatprep.subr.mxu0 0.0
        %2134 = vmatpush2.msra.mxu0 0.0
        %2135 = vmatprep.subr.mxu0 0.0
        %2136 = vmatpush2.msra.mxu0 0.0
        %2137 = vmatprep.subr.mxu0 0.0
        %2138 = vmatpush2.msra.mxu0 0.0
        %2139 = vmatprep.subr.mxu0 0.0
        %2140 = vmatpush2.msra.mxu0 0.0
        %2141 = vmatprep.subr.mxu0 0.0
        %2142 = vmatpush2.msra.mxu0 0.0
        %2143 = vmatprep.mubr.f32.mxu0 0.0
        %2144 = vmatmul.mubr.f32.gmra.mxu0 %v799
        %v2145 = vpop.f32.mrf.mxu0
        %v2146 = vadd.f32 %v795, %v2145
        %v2147 = vpop.f32.mrf.mxu0
        %2148 = vdwg.mxu0
        %v2149 = vmax.f32 %v2146, 0.0
        %2150 = vmatprep.subr.mxu0 0.0
        %2151 = vmatpush1.msra.mxu0 0.0
        %2152 = vmatprep.subr.mxu0 0.0
        %2153 = vmatpush1.msra.mxu0 0.0
        %2154 = vmatprep.subr.mxu0 0.0
        %2155 = vmatpush1.msra.mxu0 0.0
        %2156 = vmatprep.subr.mxu0 0.0
        %2157 = vmatpush1.msra.mxu0 0.0
        %2158 = vmatprep.subr.mxu0 0.0
        %2159 = vmatpush1.msra.mxu0 0.0
        %2160 = vmatprep.subr.mxu0 0.0
        %2161 = vmatpush1.msra.mxu0 0.0
        %2162 = vmatprep.subr.mxu0 0.0
        %2163 = vmatpush1.msra.mxu0 0.0
        %2164 = vmatprep.subr.mxu0 0.0
        %2165 = vmatpush1.msra.mxu0 0.0
        %2166 = vmatprep.subr.mxu0 0.0
        %2167 = vmatpush1.msra.mxu0 0.0
        %2168 = vmatprep.subr.mxu0 0.0
        %2169 = vmatpush1.msra.mxu0 0.0
        %2170 = vmatprep.subr.mxu0 0.0
        %2171 = vmatpush1.msra.mxu0 %v767
        %2172 = vmatprep.subr.mxu0 0.0
        %2173 = vmatpush1.msra.mxu0 %v766
        %2174 = vmatprep.subr.mxu0 0.0
        %2175 = vmatpush1.msra.mxu0 %v765
        %2176 = vmatprep.subr.mxu0 0.0
        %2177 = vmatpush1.msra.mxu0 %v764
        %2178 = vmatprep.subr.mxu0 0.0
        %2179 = vmatpush1.msra.mxu0 %v763
        %2180 = vmatprep.subr.mxu0 0.0
        %2181 = vmatpush1.msra.mxu0 %v762
        %2182 = vmatprep.subr.mxu0 0.0
        %2183 = vmatpush2.msra.mxu0 0.0
        %2184 = vmatprep.subr.mxu0 0.0
        %2185 = vmatpush2.msra.mxu0 0.0
        %2186 = vmatprep.subr.mxu0 0.0
        %2187 = vmatpush2.msra.mxu0 0.0
        %2188 = vmatprep.subr.mxu0 0.0
        %2189 = vmatpush2.msra.mxu0 0.0
        %2190 = vmatprep.subr.mxu0 0.0
        %2191 = vmatpush2.msra.mxu0 0.0
        %2192 = vmatprep.subr.mxu0 0.0
        %2193 = vmatpush2.msra.mxu0 0.0
        %2194 = vmatprep.subr.mxu0 0.0
        %2195 = vmatpush2.msra.mxu0 0.0
        %2196 = vmatprep.subr.mxu0 0.0
        %2197 = vmatpush2.msra.mxu0 0.0
        %2198 = vmatprep.subr.mxu0 0.0
        %2199 = vmatpush2.msra.mxu0 0.0
        %2200 = vmatprep.subr.mxu0 0.0
        %2201 = vmatpush2.msra.mxu0 0.0
        %2202 = vmatprep.subr.mxu0 0.0
        %2203 = vmatpush2.msra.mxu0 0.0
        %2204 = vmatprep.subr.mxu0 0.0
        %2205 = vmatpush2.msra.mxu0 0.0
        %2206 = vmatprep.subr.mxu0 0.0
        %2207 = vmatpush2.msra.mxu0 0.0
        %2208 = vmatprep.subr.mxu0 0.0
        %2209 = vmatpush2.msra.mxu0 0.0
        %2210 = vmatprep.subr.mxu0 0.0
        %2211 = vmatpush2.msra.mxu0 0.0
        %2212 = vmatprep.subr.mxu0 0.0
        %2213 = vmatpush2.msra.mxu0 0.0
        %2214 = vmatprep.mubr.f32.mxu0 0.0
        %2215 = vmatmul.mubr.f32.gmra.mxu0 %v799
        %v2216 = vpop.f32.mrf.mxu0
        %v2217 = vadd.f32 %v795, %v2216
        %v2218 = vpop.f32.mrf.mxu0
        %2219 = vdwg.mxu0
        %v2220 = vmax.f32 %v2217, 0.0
        %2221 = vmatprep.subr.mxu0 0.0
        %2222 = vmatpush1.msra.mxu0 0.0
        %2223 = vmatprep.subr.mxu0 0.0
        %2224 = vmatpush1.msra.mxu0 0.0
        %2225 = vmatprep.subr.mxu0 0.0
        %2226 = vmatpush1.msra.mxu0 0.0
        %2227 = vmatprep.subr.mxu0 0.0
        %2228 = vmatpush1.msra.mxu0 0.0
        %2229 = vmatprep.subr.mxu0 0.0
        %2230 = vmatpush1.msra.mxu0 0.0
        %2231 = vmatprep.subr.mxu0 0.0
        %2232 = vmatpush1.msra.mxu0 0.0
        %2233 = vmatprep.subr.mxu0 0.0
        %2234 = vmatpush1.msra.mxu0 0.0
        %2235 = vmatprep.subr.mxu0 0.0
        %2236 = vmatpush1.msra.mxu0 0.0
        %2237 = vmatprep.subr.mxu0 0.0
        %2238 = vmatpush1.msra.mxu0 0.0
        %2239 = vmatprep.subr.mxu0 0.0
        %2240 = vmatpush1.msra.mxu0 0.0
        %2241 = vmatprep.subr.mxu0 0.0
        %2242 = vmatpush1.msra.mxu0 %v769
        %2243 = vmatprep.subr.mxu0 0.0
        %2244 = vmatpush1.msra.mxu0 %v768
        %2245 = vmatprep.subr.mxu0 0.0
        %2246 = vmatpush1.msra.mxu0 %v767
        %2247 = vmatprep.subr.mxu0 0.0
        %2248 = vmatpush1.msra.mxu0 %v766
        %2249 = vmatprep.subr.mxu0 0.0
        %2250 = vmatpush1.msra.mxu0 %v765
        %2251 = vmatprep.subr.mxu0 0.0
        %2252 = vmatpush1.msra.mxu0 %v764
        %2253 = vmatprep.subr.mxu0 0.0
        %2254 = vmatpush2.msra.mxu0 0.0
        %2255 = vmatprep.subr.mxu0 0.0
        %2256 = vmatpush2.msra.mxu0 0.0
        %2257 = vmatprep.subr.mxu0 0.0
        %2258 = vmatpush2.msra.mxu0 0.0
        %2259 = vmatprep.subr.mxu0 0.0
        %2260 = vmatpush2.msra.mxu0 0.0
        %2261 = vmatprep.subr.mxu0 0.0
        %2262 = vmatpush2.msra.mxu0 0.0
        %2263 = vmatprep.subr.mxu0 0.0
        %2264 = vmatpush2.msra.mxu0 0.0
        %2265 = vmatprep.subr.mxu0 0.0
        %2266 = vmatpush2.msra.mxu0 0.0
        %2267 = vmatprep.subr.mxu0 0.0
        %2268 = vmatpush2.msra.mxu0 0.0
        %2269 = vmatprep.subr.mxu0 0.0
        %2270 = vmatpush2.msra.mxu0 0.0
        %2271 = vmatprep.subr.mxu0 0.0
        %2272 = vmatpush2.msra.mxu0 0.0
        %2273 = vmatprep.subr.mxu0 0.0
        %2274 = vmatpush2.msra.mxu0 0.0
        %2275 = vmatprep.subr.mxu0 0.0
        %2276 = vmatpush2.msra.mxu0 0.0
        %2277 = vmatprep.subr.mxu0 0.0
        %2278 = vmatpush2.msra.mxu0 0.0
        %2279 = vmatprep.subr.mxu0 0.0
        %2280 = vmatpush2.msra.mxu0 0.0
        %2281 = vmatprep.subr.mxu0 0.0
        %2282 = vmatpush2.msra.mxu0 0.0
        %2283 = vmatprep.subr.mxu0 0.0
        %2284 = vmatpush2.msra.mxu0 0.0
        %2285 = vmatprep.mubr.f32.mxu0 0.0
        %2286 = vmatmul.mubr.f32.gmra.mxu0 %v799
        %v2287 = vpop.f32.mrf.mxu0
        %v2288 = vadd.f32 %v795, %v2287
        %v2289 = vpop.f32.mrf.mxu0
        %2290 = vdwg.mxu0
        %v2291 = vmax.f32 %v2288, 0.0
        %2292 = vmatprep.subr.mxu0 0.0
        %2293 = vmatpush1.msra.mxu0 0.0
        %2294 = vmatprep.subr.mxu0 0.0
        %2295 = vmatpush1.msra.mxu0 0.0
        %2296 = vmatprep.subr.mxu0 0.0
        %2297 = vmatpush1.msra.mxu0 0.0
        %2298 = vmatprep.subr.mxu0 0.0
        %2299 = vmatpush1.msra.mxu0 0.0
        %2300 = vmatprep.subr.mxu0 0.0
        %2301 = vmatpush1.msra.mxu0 0.0
        %2302 = vmatprep.subr.mxu0 0.0
        %2303 = vmatpush1.msra.mxu0 0.0
        %2304 = vmatprep.subr.mxu0 0.0
        %2305 = vmatpush1.msra.mxu0 0.0
        %2306 = vmatprep.subr.mxu0 0.0
        %2307 = vmatpush1.msra.mxu0 0.0
        %2308 = vmatprep.subr.mxu0 0.0
        %2309 = vmatpush1.msra.mxu0 0.0
        %2310 = vmatprep.subr.mxu0 0.0
        %2311 = vmatpush1.msra.mxu0 0.0
        %2312 = vmatprep.subr.mxu0 0.0
        %2313 = vmatpush1.msra.mxu0 %v771
        %2314 = vmatprep.subr.mxu0 0.0
        %2315 = vmatpush1.msra.mxu0 %v770
        %2316 = vmatprep.subr.mxu0 0.0
        %2317 = vmatpush1.msra.mxu0 %v769
        %2318 = vmatprep.subr.mxu0 0.0
        %2319 = vmatpush1.msra.mxu0 %v768
        %2320 = vmatprep.subr.mxu0 0.0
        %2321 = vmatpush1.msra.mxu0 %v767
        %2322 = vmatprep.subr.mxu0 0.0
        %2323 = vmatpush1.msra.mxu0 %v766
        %2324 = vmatprep.subr.mxu0 0.0
        %2325 = vmatpush2.msra.mxu0 0.0
        %2326 = vmatprep.subr.mxu0 0.0
        %2327 = vmatpush2.msra.mxu0 0.0
        %2328 = vmatprep.subr.mxu0 0.0
        %2329 = vmatpush2.msra.mxu0 0.0
        %2330 = vmatprep.subr.mxu0 0.0
        %2331 = vmatpush2.msra.mxu0 0.0
        %2332 = vmatprep.subr.mxu0 0.0
        %2333 = vmatpush2.msra.mxu0 0.0
        %2334 = vmatprep.subr.mxu0 0.0
        %2335 = vmatpush2.msra.mxu0 0.0
        %2336 = vmatprep.subr.mxu0 0.0
        %2337 = vmatpush2.msra.mxu0 0.0
        %2338 = vmatprep.subr.mxu0 0.0
        %2339 = vmatpush2.msra.mxu0 0.0
        %2340 = vmatprep.subr.mxu0 0.0
        %2341 = vmatpush2.msra.mxu0 0.0
        %2342 = vmatprep.subr.mxu0 0.0
        %2343 = vmatpush2.msra.mxu0 0.0
        %2344 = vmatprep.subr.mxu0 0.0
        %2345 = vmatpush2.msra.mxu0 0.0
        %2346 = vmatprep.subr.mxu0 0.0
        %2347 = vmatpush2.msra.mxu0 0.0
        %2348 = vmatprep.subr.mxu0 0.0
        %2349 = vmatpush2.msra.mxu0 0.0
        %2350 = vmatprep.subr.mxu0 0.0
        %2351 = vmatpush2.msra.mxu0 0.0
        %2352 = vmatprep.subr.mxu0 0.0
        %2353 = vmatpush2.msra.mxu0 0.0
        %2354 = vmatprep.subr.mxu0 0.0
        %2355 = vmatpush2.msra.mxu0 0.0
        %2356 = vmatprep.mubr.f32.mxu0 0.0
        %2357 = vmatmul.mubr.f32.gmra.mxu0 %v799
        %v2358 = vpop.f32.mrf.mxu0
        %v2359 = vadd.f32 %v795, %v2358
        %v2360 = vpop.f32.mrf.mxu0
        %2361 = vdwg.mxu0
        %v2362 = vmax.f32 %v2359, 0.0
        %2363 = vmatprep.subr.mxu0 0.0
        %2364 = vmatpush1.msra.mxu0 0.0
        %2365 = vmatprep.subr.mxu0 0.0
        %2366 = vmatpush1.msra.mxu0 0.0
        %2367 = vmatprep.subr.mxu0 0.0
        %2368 = vmatpush1.msra.mxu0 0.0
        %2369 = vmatprep.subr.mxu0 0.0
        %2370 = vmatpush1.msra.mxu0 0.0
        %2371 = vmatprep.subr.mxu0 0.0
        %2372 = vmatpush1.msra.mxu0 0.0
        %2373 = vmatprep.subr.mxu0 0.0
        %2374 = vmatpush1.msra.mxu0 0.0
        %2375 = vmatprep.subr.mxu0 0.0
        %2376 = vmatpush1.msra.mxu0 0.0
        %2377 = vmatprep.subr.mxu0 0.0
        %2378 = vmatpush1.msra.mxu0 0.0
        %2379 = vmatprep.subr.mxu0 0.0
        %2380 = vmatpush1.msra.mxu0 0.0
        %2381 = vmatprep.subr.mxu0 0.0
        %2382 = vmatpush1.msra.mxu0 0.0
        %2383 = vmatprep.subr.mxu0 0.0
        %2384 = vmatpush1.msra.mxu0 %v773
        %2385 = vmatprep.subr.mxu0 0.0
        %2386 = vmatpush1.msra.mxu0 %v772
        %2387 = vmatprep.subr.mxu0 0.0
        %2388 = vmatpush1.msra.mxu0 %v771
        %2389 = vmatprep.subr.mxu0 0.0
        %2390 = vmatpush1.msra.mxu0 %v770
        %2391 = vmatprep.subr.mxu0 0.0
        %2392 = vmatpush1.msra.mxu0 %v769
        %2393 = vmatprep.subr.mxu0 0.0
        %2394 = vmatpush1.msra.mxu0 %v768
        %2395 = vmatprep.subr.mxu0 0.0
        %2396 = vmatpush2.msra.mxu0 0.0
        %2397 = vmatprep.subr.mxu0 0.0
        %2398 = vmatpush2.msra.mxu0 0.0
        %2399 = vmatprep.subr.mxu0 0.0
        %2400 = vmatpush2.msra.mxu0 0.0
        %2401 = vmatprep.subr.mxu0 0.0
        %2402 = vmatpush2.msra.mxu0 0.0
        %2403 = vmatprep.subr.mxu0 0.0
        %2404 = vmatpush2.msra.mxu0 0.0
        %2405 = vmatprep.subr.mxu0 0.0
        %2406 = vmatpush2.msra.mxu0 0.0
        %2407 = vmatprep.subr.mxu0 0.0
        %2408 = vmatpush2.msra.mxu0 0.0
        %2409 = vmatprep.subr.mxu0 0.0
        %2410 = vmatpush2.msra.mxu0 0.0
        %2411 = vmatprep.subr.mxu0 0.0
        %2412 = vmatpush2.msra.mxu0 0.0
        %2413 = vmatprep.subr.mxu0 0.0
        %2414 = vmatpush2.msra.mxu0 0.0
        %2415 = vmatprep.subr.mxu0 0.0
        %2416 = vmatpush2.msra.mxu0 0.0
        %2417 = vmatprep.subr.mxu0 0.0
        %2418 = vmatpush2.msra.mxu0 0.0
        %2419 = vmatprep.subr.mxu0 0.0
        %2420 = vmatpush2.msra.mxu0 0.0
        %2421 = vmatprep.subr.mxu0 0.0
        %2422 = vmatpush2.msra.mxu0 0.0
        %2423 = vmatprep.subr.mxu0 0.0
        %2424 = vmatpush2.msra.mxu0 0.0
        %2425 = vmatprep.subr.mxu0 0.0
        %2426 = vmatpush2.msra.mxu0 0.0
        %2427 = vmatprep.mubr.f32.mxu0 0.0
        %2428 = vmatmul.mubr.f32.gmra.mxu0 %v799
        %v2429 = vpop.f32.mrf.mxu0
        %v2430 = vadd.f32 %v795, %v2429
        %v2431 = vpop.f32.mrf.mxu0
        %2432 = vdwg.mxu0
        %v2433 = vmax.f32 %v2430, 0.0
        %2434 = vmatprep.subr.mxu0 0.0
        %2435 = vmatpush1.msra.mxu0 0.0
        %2436 = vmatprep.subr.mxu0 0.0
        %2437 = vmatpush1.msra.mxu0 0.0
        %2438 = vmatprep.subr.mxu0 0.0
        %2439 = vmatpush1.msra.mxu0 0.0
        %2440 = vmatprep.subr.mxu0 0.0
        %2441 = vmatpush1.msra.mxu0 0.0
        %2442 = vmatprep.subr.mxu0 0.0
        %2443 = vmatpush1.msra.mxu0 0.0
        %2444 = vmatprep.subr.mxu0 0.0
        %2445 = vmatpush1.msra.mxu0 0.0
        %2446 = vmatprep.subr.mxu0 0.0
        %2447 = vmatpush1.msra.mxu0 0.0
        %2448 = vmatprep.subr.mxu0 0.0
        %2449 = vmatpush1.msra.mxu0 0.0
        %2450 = vmatprep.subr.mxu0 0.0
        %2451 = vmatpush1.msra.mxu0 0.0
        %2452 = vmatprep.subr.mxu0 0.0
        %2453 = vmatpush1.msra.mxu0 0.0
        %2454 = vmatprep.subr.mxu0 0.0
        %2455 = vmatpush1.msra.mxu0 %v775
        %2456 = vmatprep.subr.mxu0 0.0
        %2457 = vmatpush1.msra.mxu0 %v774
        %2458 = vmatprep.subr.mxu0 0.0
        %2459 = vmatpush1.msra.mxu0 %v773
        %2460 = vmatprep.subr.mxu0 0.0
        %2461 = vmatpush1.msra.mxu0 %v772
        %2462 = vmatprep.subr.mxu0 0.0
        %2463 = vmatpush1.msra.mxu0 %v771
        %2464 = vmatprep.subr.mxu0 0.0
        %2465 = vmatpush1.msra.mxu0 %v770
        %2466 = vmatprep.subr.mxu0 0.0
        %2467 = vmatpush2.msra.mxu0 0.0
        %2468 = vmatprep.subr.mxu0 0.0
        %2469 = vmatpush2.msra.mxu0 0.0
        %2470 = vmatprep.subr.mxu0 0.0
        %2471 = vmatpush2.msra.mxu0 0.0
        %2472 = vmatprep.subr.mxu0 0.0
        %2473 = vmatpush2.msra.mxu0 0.0
        %2474 = vmatprep.subr.mxu0 0.0
        %2475 = vmatpush2.msra.mxu0 0.0
        %2476 = vmatprep.subr.mxu0 0.0
        %2477 = vmatpush2.msra.mxu0 0.0
        %2478 = vmatprep.subr.mxu0 0.0
        %2479 = vmatpush2.msra.mxu0 0.0
        %2480 = vmatprep.subr.mxu0 0.0
        %2481 = vmatpush2.msra.mxu0 0.0
        %2482 = vmatprep.subr.mxu0 0.0
        %2483 = vmatpush2.msra.mxu0 0.0
        %2484 = vmatprep.subr.mxu0 0.0
        %2485 = vmatpush2.msra.mxu0 0.0
        %2486 = vmatprep.subr.mxu0 0.0
        %2487 = vmatpush2.msra.mxu0 0.0
        %2488 = vmatprep.subr.mxu0 0.0
        %2489 = vmatpush2.msra.mxu0 0.0
        %2490 = vmatprep.subr.mxu0 0.0
        %2491 = vmatpush2.msra.mxu0 0.0
        %2492 = vmatprep.subr.mxu0 0.0
        %2493 = vmatpush2.msra.mxu0 0.0
        %2494 = vmatprep.subr.mxu0 0.0
        %2495 = vmatpush2.msra.mxu0 0.0
        %2496 = vmatprep.subr.mxu0 0.0
        %2497 = vmatpush2.msra.mxu0 0.0
        %2498 = vmatprep.mubr.f32.mxu0 0.0
        %2499 = vmatmul.mubr.f32.gmra.mxu0 %v799
        %v2500 = vpop.f32.mrf.mxu0
        %v2501 = vadd.f32 %v795, %v2500
        %v2502 = vpop.f32.mrf.mxu0
        %2503 = vdwg.mxu0
        %v2504 = vmax.f32 %v2501, 0.0
        %2505 = vmatprep.subr.mxu0 0.0
        %2506 = vmatpush1.msra.mxu0 0.0
        %2507 = vmatprep.subr.mxu0 0.0
        %2508 = vmatpush1.msra.mxu0 0.0
        %2509 = vmatprep.subr.mxu0 0.0
        %2510 = vmatpush1.msra.mxu0 0.0
        %2511 = vmatprep.subr.mxu0 0.0
        %2512 = vmatpush1.msra.mxu0 0.0
        %2513 = vmatprep.subr.mxu0 0.0
        %2514 = vmatpush1.msra.mxu0 0.0
        %2515 = vmatprep.subr.mxu0 0.0
        %2516 = vmatpush1.msra.mxu0 0.0
        %2517 = vmatprep.subr.mxu0 0.0
        %2518 = vmatpush1.msra.mxu0 0.0
        %2519 = vmatprep.subr.mxu0 0.0
        %2520 = vmatpush1.msra.mxu0 0.0
        %2521 = vmatprep.subr.mxu0 0.0
        %2522 = vmatpush1.msra.mxu0 0.0
        %2523 = vmatprep.subr.mxu0 0.0
        %2524 = vmatpush1.msra.mxu0 0.0
        %2525 = vmatprep.subr.mxu0 0.0
        %2526 = vmatpush1.msra.mxu0 %v777
        %2527 = vmatprep.subr.mxu0 0.0
        %2528 = vmatpush1.msra.mxu0 %v776
        %2529 = vmatprep.subr.mxu0 0.0
        %2530 = vmatpush1.msra.mxu0 %v775
        %2531 = vmatprep.subr.mxu0 0.0
        %2532 = vmatpush1.msra.mxu0 %v774
        %2533 = vmatprep.subr.mxu0 0.0
        %2534 = vmatpush1.msra.mxu0 %v773
        %2535 = vmatprep.subr.mxu0 0.0
        %2536 = vmatpush1.msra.mxu0 %v772
        %2537 = vmatprep.subr.mxu0 0.0
        %2538 = vmatpush2.msra.mxu0 0.0
        %2539 = vmatprep.subr.mxu0 0.0
        %2540 = vmatpush2.msra.mxu0 0.0
        %2541 = vmatprep.subr.mxu0 0.0
        %2542 = vmatpush2.msra.mxu0 0.0
        %2543 = vmatprep.subr.mxu0 0.0
        %2544 = vmatpush2.msra.mxu0 0.0
        %2545 = vmatprep.subr.mxu0 0.0
        %2546 = vmatpush2.msra.mxu0 0.0
        %2547 = vmatprep.subr.mxu0 0.0
        %2548 = vmatpush2.msra.mxu0 0.0
        %2549 = vmatprep.subr.mxu0 0.0
        %2550 = vmatpush2.msra.mxu0 0.0
        %2551 = vmatprep.subr.mxu0 0.0
        %2552 = vmatpush2.msra.mxu0 0.0
        %2553 = vmatprep.subr.mxu0 0.0
        %2554 = vmatpush2.msra.mxu0 0.0
        %2555 = vmatprep.subr.mxu0 0.0
        %2556 = vmatpush2.msra.mxu0 0.0
        %2557 = vmatprep.subr.mxu0 0.0
        %2558 = vmatpush2.msra.mxu0 0.0
        %2559 = vmatprep.subr.mxu0 0.0
        %2560 = vmatpush2.msra.mxu0 0.0
        %2561 = vmatprep.subr.mxu0 0.0
        %2562 = vmatpush2.msra.mxu0 0.0
        %2563 = vmatprep.subr.mxu0 0.0
        %2564 = vmatpush2.msra.mxu0 0.0
        %2565 = vmatprep.subr.mxu0 0.0
        %2566 = vmatpush2.msra.mxu0 0.0
        %2567 = vmatprep.subr.mxu0 0.0
        %2568 = vmatpush2.msra.mxu0 0.0
        %2569 = vmatprep.mubr.f32.mxu0 0.0
        %2570 = vmatmul.mubr.f32.gmra.mxu0 %v799
        %v2571 = vpop.f32.mrf.mxu0
        %v2572 = vadd.f32 %v795, %v2571
        %v2573 = vpop.f32.mrf.mxu0
        %2574 = vdwg.mxu0
        %v2575 = vmax.f32 %v2572, 0.0
        %2576 = vmatprep.subr.mxu0 0.0
        %2577 = vmatpush1.msra.mxu0 0.0
        %2578 = vmatprep.subr.mxu0 0.0
        %2579 = vmatpush1.msra.mxu0 0.0
        %2580 = vmatprep.subr.mxu0 0.0
        %2581 = vmatpush1.msra.mxu0 0.0
        %2582 = vmatprep.subr.mxu0 0.0
        %2583 = vmatpush1.msra.mxu0 0.0
        %2584 = vmatprep.subr.mxu0 0.0
        %2585 = vmatpush1.msra.mxu0 0.0
        %2586 = vmatprep.subr.mxu0 0.0
        %2587 = vmatpush1.msra.mxu0 0.0
        %2588 = vmatprep.subr.mxu0 0.0
        %2589 = vmatpush1.msra.mxu0 0.0
        %2590 = vmatprep.subr.mxu0 0.0
        %2591 = vmatpush1.msra.mxu0 0.0
        %2592 = vmatprep.subr.mxu0 0.0
        %2593 = vmatpush1.msra.mxu0 0.0
        %2594 = vmatprep.subr.mxu0 0.0
        %2595 = vmatpush1.msra.mxu0 0.0
        %2596 = vmatprep.subr.mxu0 0.0
        %2597 = vmatpush1.msra.mxu0 %v779
        %2598 = vmatprep.subr.mxu0 0.0
        %2599 = vmatpush1.msra.mxu0 %v778
        %2600 = vmatprep.subr.mxu0 0.0
        %2601 = vmatpush1.msra.mxu0 %v777
        %2602 = vmatprep.subr.mxu0 0.0
        %2603 = vmatpush1.msra.mxu0 %v776
        %2604 = vmatprep.subr.mxu0 0.0
        %2605 = vmatpush1.msra.mxu0 %v775
        %2606 = vmatprep.subr.mxu0 0.0
        %2607 = vmatpush1.msra.mxu0 %v774
        %2608 = vmatprep.subr.mxu0 0.0
        %2609 = vmatpush2.msra.mxu0 0.0
        %2610 = vmatprep.subr.mxu0 0.0
        %2611 = vmatpush2.msra.mxu0 0.0
        %2612 = vmatprep.subr.mxu0 0.0
        %2613 = vmatpush2.msra.mxu0 0.0
        %2614 = vmatprep.subr.mxu0 0.0
        %2615 = vmatpush2.msra.mxu0 0.0
        %2616 = vmatprep.subr.mxu0 0.0
        %2617 = vmatpush2.msra.mxu0 0.0
        %2618 = vmatprep.subr.mxu0 0.0
        %2619 = vmatpush2.msra.mxu0 0.0
        %2620 = vmatprep.subr.mxu0 0.0
        %2621 = vmatpush2.msra.mxu0 0.0
        %2622 = vmatprep.subr.mxu0 0.0
        %2623 = vmatpush2.msra.mxu0 0.0
        %2624 = vmatprep.subr.mxu0 0.0
        %2625 = vmatpush2.msra.mxu0 0.0
        %2626 = vmatprep.subr.mxu0 0.0
        %2627 = vmatpush2.msra.mxu0 0.0
        %2628 = vmatprep.subr.mxu0 0.0
        %2629 = vmatpush2.msra.mxu0 0.0
        %2630 = vmatprep.subr.mxu0 0.0
        %2631 = vmatpush2.msra.mxu0 0.0
        %2632 = vmatprep.subr.mxu0 0.0
        %2633 = vmatpush2.msra.mxu0 0.0
        %2634 = vmatprep.subr.mxu0 0.0
        %2635 = vmatpush2.msra.mxu0 0.0
        %2636 = vmatprep.subr.mxu0 0.0
        %2637 = vmatpush2.msra.mxu0 0.0
        %2638 = vmatprep.subr.mxu0 0.0
        %2639 = vmatpush2.msra.mxu0 0.0
        %2640 = vmatprep.mubr.f32.mxu0 0.0
        %2641 = vmatmul.mubr.f32.gmra.mxu0 %v799
        %v2642 = vpop.f32.mrf.mxu0
        %v2643 = vadd.f32 %v795, %v2642
        %v2644 = vpop.f32.mrf.mxu0
        %2645 = vdwg.mxu0
        %v2646 = vmax.f32 %v2643, 0.0
        %2647 = vmatprep.subr.mxu0 0.0
        %2648 = vmatpush1.msra.mxu0 0.0
        %2649 = vmatprep.subr.mxu0 0.0
        %2650 = vmatpush1.msra.mxu0 0.0
        %2651 = vmatprep.subr.mxu0 0.0
        %2652 = vmatpush1.msra.mxu0 0.0
        %2653 = vmatprep.subr.mxu0 0.0
        %2654 = vmatpush1.msra.mxu0 0.0
        %2655 = vmatprep.subr.mxu0 0.0
        %2656 = vmatpush1.msra.mxu0 0.0
        %2657 = vmatprep.subr.mxu0 0.0
        %2658 = vmatpush1.msra.mxu0 0.0
        %2659 = vmatprep.subr.mxu0 0.0
        %2660 = vmatpush1.msra.mxu0 0.0
        %2661 = vmatprep.subr.mxu0 0.0
        %2662 = vmatpush1.msra.mxu0 0.0
        %2663 = vmatprep.subr.mxu0 0.0
        %2664 = vmatpush1.msra.mxu0 0.0
        %2665 = vmatprep.subr.mxu0 0.0
        %2666 = vmatpush1.msra.mxu0 0.0
        %2667 = vmatprep.subr.mxu0 0.0
        %2668 = vmatpush1.msra.mxu0 %v781
        %2669 = vmatprep.subr.mxu0 0.0
        %2670 = vmatpush1.msra.mxu0 %v780
        %2671 = vmatprep.subr.mxu0 0.0
        %2672 = vmatpush1.msra.mxu0 %v779
        %2673 = vmatprep.subr.mxu0 0.0
        %2674 = vmatpush1.msra.mxu0 %v778
        %2675 = vmatprep.subr.mxu0 0.0
        %2676 = vmatpush1.msra.mxu0 %v777
        %2677 = vmatprep.subr.mxu0 0.0
        %2678 = vmatpush1.msra.mxu0 %v776
        %2679 = vmatprep.subr.mxu0 0.0
        %2680 = vmatpush2.msra.mxu0 0.0
        %2681 = vmatprep.subr.mxu0 0.0
        %2682 = vmatpush2.msra.mxu0 0.0
        %2683 = vmatprep.subr.mxu0 0.0
        %2684 = vmatpush2.msra.mxu0 0.0
        %2685 = vmatprep.subr.mxu0 0.0
        %2686 = vmatpush2.msra.mxu0 0.0
        %2687 = vmatprep.subr.mxu0 0.0
        %2688 = vmatpush2.msra.mxu0 0.0
        %2689 = vmatprep.subr.mxu0 0.0
        %2690 = vmatpush2.msra.mxu0 0.0
        %2691 = vmatprep.subr.mxu0 0.0
        %2692 = vmatpush2.msra.mxu0 0.0
        %2693 = vmatprep.subr.mxu0 0.0
        %2694 = vmatpush2.msra.mxu0 0.0
        %2695 = vmatprep.subr.mxu0 0.0
        %2696 = vmatpush2.msra.mxu0 0.0
        %2697 = vmatprep.subr.mxu0 0.0
        %2698 = vmatpush2.msra.mxu0 0.0
        %2699 = vmatprep.subr.mxu0 0.0
        %2700 = vmatpush2.msra.mxu0 0.0
        %2701 = vmatprep.subr.mxu0 0.0
        %2702 = vmatpush2.msra.mxu0 0.0
        %2703 = vmatprep.subr.mxu0 0.0
        %2704 = vmatpush2.msra.mxu0 0.0
        %2705 = vmatprep.subr.mxu0 0.0
        %2706 = vmatpush2.msra.mxu0 0.0
        %2707 = vmatprep.subr.mxu0 0.0
        %2708 = vmatpush2.msra.mxu0 0.0
        %2709 = vmatprep.subr.mxu0 0.0
        %2710 = vmatpush2.msra.mxu0 0.0
        %2711 = vmatprep.mubr.f32.mxu0 0.0
        %2712 = vmatmul.mubr.f32.gmra.mxu0 %v799
        %v2713 = vpop.f32.mrf.mxu0
        %v2714 = vadd.f32 %v795, %v2713
        %v2715 = vpop.f32.mrf.mxu0
        %2716 = vdwg.mxu0
        %v2717 = vmax.f32 %v2714, 0.0
        %2718 = vmatprep.subr.mxu0 0.0
        %2719 = vmatpush1.msra.mxu0 0.0
        %2720 = vmatprep.subr.mxu0 0.0
        %2721 = vmatpush1.msra.mxu0 0.0
        %2722 = vmatprep.subr.mxu0 0.0
        %2723 = vmatpush1.msra.mxu0 0.0
        %2724 = vmatprep.subr.mxu0 0.0
        %2725 = vmatpush1.msra.mxu0 0.0
        %2726 = vmatprep.subr.mxu0 0.0
        %2727 = vmatpush1.msra.mxu0 0.0
        %2728 = vmatprep.subr.mxu0 0.0
        %2729 = vmatpush1.msra.mxu0 0.0
        %2730 = vmatprep.subr.mxu0 0.0
        %2731 = vmatpush1.msra.mxu0 0.0
        %2732 = vmatprep.subr.mxu0 0.0
        %2733 = vmatpush1.msra.mxu0 0.0
        %2734 = vmatprep.subr.mxu0 0.0
        %2735 = vmatpush1.msra.mxu0 0.0
        %2736 = vmatprep.subr.mxu0 0.0
        %2737 = vmatpush1.msra.mxu0 0.0
        %2738 = vmatprep.subr.mxu0 0.0
        %2739 = vmatpush1.msra.mxu0 %v783
        %2740 = vmatprep.subr.mxu0 0.0
        %2741 = vmatpush1.msra.mxu0 %v782
        %2742 = vmatprep.subr.mxu0 0.0
        %2743 = vmatpush1.msra.mxu0 %v781
        %2744 = vmatprep.subr.mxu0 0.0
        %2745 = vmatpush1.msra.mxu0 %v780
        %2746 = vmatprep.subr.mxu0 0.0
        %2747 = vmatpush1.msra.mxu0 %v779
        %2748 = vmatprep.subr.mxu0 0.0
        %2749 = vmatpush1.msra.mxu0 %v778
        %2750 = vmatprep.subr.mxu0 0.0
        %2751 = vmatpush2.msra.mxu0 0.0
        %2752 = vmatprep.subr.mxu0 0.0
        %2753 = vmatpush2.msra.mxu0 0.0
        %2754 = vmatprep.subr.mxu0 0.0
        %2755 = vmatpush2.msra.mxu0 0.0
        %2756 = vmatprep.subr.mxu0 0.0
        %2757 = vmatpush2.msra.mxu0 0.0
        %2758 = vmatprep.subr.mxu0 0.0
        %2759 = vmatpush2.msra.mxu0 0.0
        %2760 = vmatprep.subr.mxu0 0.0
        %2761 = vmatpush2.msra.mxu0 0.0
        %2762 = vmatprep.subr.mxu0 0.0
        %2763 = vmatpush2.msra.mxu0 0.0
        %2764 = vmatprep.subr.mxu0 0.0
        %2765 = vmatpush2.msra.mxu0 0.0
        %2766 = vmatprep.subr.mxu0 0.0
        %2767 = vmatpush2.msra.mxu0 0.0
        %2768 = vmatprep.subr.mxu0 0.0
        %2769 = vmatpush2.msra.mxu0 0.0
        %2770 = vmatprep.subr.mxu0 0.0
        %2771 = vmatpush2.msra.mxu0 0.0
        %2772 = vmatprep.subr.mxu0 0.0
        %2773 = vmatpush2.msra.mxu0 0.0
        %2774 = vmatprep.subr.mxu0 0.0
        %2775 = vmatpush2.msra.mxu0 0.0
        %2776 = vmatprep.subr.mxu0 0.0
        %2777 = vmatpush2.msra.mxu0 0.0
        %2778 = vmatprep.subr.mxu0 0.0
        %2779 = vmatpush2.msra.mxu0 0.0
        %2780 = vmatprep.subr.mxu0 0.0
        %2781 = vmatpush2.msra.mxu0 0.0
        %2782 = vmatprep.mubr.f32.mxu0 0.0
        %2783 = vmatmul.mubr.f32.gmra.mxu0 %v799
        %v2784 = vpop.f32.mrf.mxu0
        %v2785 = vadd.f32 %v795, %v2784
        %v2786 = vpop.f32.mrf.mxu0
        %2787 = vdwg.mxu0
        %v2788 = vmax.f32 %v2785, 0.0
        %2789 = vmatprep.subr.mxu0 0.0
        %2790 = vmatpush1.msra.mxu0 0.0
        %2791 = vmatprep.subr.mxu0 0.0
        %2792 = vmatpush1.msra.mxu0 0.0
        %2793 = vmatprep.subr.mxu0 0.0
        %2794 = vmatpush1.msra.mxu0 0.0
        %2795 = vmatprep.subr.mxu0 0.0
        %2796 = vmatpush1.msra.mxu0 0.0
        %2797 = vmatprep.subr.mxu0 0.0
        %2798 = vmatpush1.msra.mxu0 0.0
        %2799 = vmatprep.subr.mxu0 0.0
        %2800 = vmatpush1.msra.mxu0 0.0
        %2801 = vmatprep.subr.mxu0 0.0
        %2802 = vmatpush1.msra.mxu0 0.0
        %2803 = vmatprep.subr.mxu0 0.0
        %2804 = vmatpush1.msra.mxu0 0.0
        %2805 = vmatprep.subr.mxu0 0.0
        %2806 = vmatpush1.msra.mxu0 0.0
        %2807 = vmatprep.subr.mxu0 0.0
        %2808 = vmatpush1.msra.mxu0 0.0
        %2809 = vmatprep.subr.mxu0 0.0
        %2810 = vmatpush1.msra.mxu0 %v785
        %2811 = vmatprep.subr.mxu0 0.0
        %2812 = vmatpush1.msra.mxu0 %v784
        %2813 = vmatprep.subr.mxu0 0.0
        %2814 = vmatpush1.msra.mxu0 %v783
        %2815 = vmatprep.subr.mxu0 0.0
        %2816 = vmatpush1.msra.mxu0 %v782
        %2817 = vmatprep.subr.mxu0 0.0
        %2818 = vmatpush1.msra.mxu0 %v781
        %2819 = vmatprep.subr.mxu0 0.0
        %2820 = vmatpush1.msra.mxu0 %v780
        %2821 = vmatprep.subr.mxu0 0.0
        %2822 = vmatpush2.msra.mxu0 0.0
        %2823 = vmatprep.subr.mxu0 0.0
        %2824 = vmatpush2.msra.mxu0 0.0
        %2825 = vmatprep.subr.mxu0 0.0
        %2826 = vmatpush2.msra.mxu0 0.0
        %2827 = vmatprep.subr.mxu0 0.0
        %2828 = vmatpush2.msra.mxu0 0.0
        %2829 = vmatprep.subr.mxu0 0.0
        %2830 = vmatpush2.msra.mxu0 0.0
        %2831 = vmatprep.subr.mxu0 0.0
        %2832 = vmatpush2.msra.mxu0 0.0
        %2833 = vmatprep.subr.mxu0 0.0
        %2834 = vmatpush2.msra.mxu0 0.0
        %2835 = vmatprep.subr.mxu0 0.0
        %2836 = vmatpush2.msra.mxu0 0.0
        %2837 = vmatprep.subr.mxu0 0.0
        %2838 = vmatpush2.msra.mxu0 0.0
        %2839 = vmatprep.subr.mxu0 0.0
        %2840 = vmatpush2.msra.mxu0 0.0
        %2841 = vmatprep.subr.mxu0 0.0
        %2842 = vmatpush2.msra.mxu0 0.0
        %2843 = vmatprep.subr.mxu0 0.0
        %2844 = vmatpush2.msra.mxu0 0.0
        %2845 = vmatprep.subr.mxu0 0.0
        %2846 = vmatpush2.msra.mxu0 0.0
        %2847 = vmatprep.subr.mxu0 0.0
        %2848 = vmatpush2.msra.mxu0 0.0
        %2849 = vmatprep.subr.mxu0 0.0
        %2850 = vmatpush2.msra.mxu0 0.0
        %2851 = vmatprep.subr.mxu0 0.0
        %2852 = vmatpush2.msra.mxu0 0.0
        %2853 = vmatprep.mubr.f32.mxu0 0.0
        %2854 = vmatmul.mubr.f32.gmra.mxu0 %v799
        %v2855 = vpop.f32.mrf.mxu0
        %v2856 = vadd.f32 %v795, %v2855
        %v2857 = vpop.f32.mrf.mxu0
        %2858 = vdwg.mxu0
        %v2859 = vmax.f32 %v2856, 0.0
        %2860 = vmatprep.subr.mxu0 0.0
        %2861 = vmatpush1.msra.mxu0 0.0
        %2862 = vmatprep.subr.mxu0 0.0
        %2863 = vmatpush1.msra.mxu0 0.0
        %2864 = vmatprep.subr.mxu0 0.0
        %2865 = vmatpush1.msra.mxu0 0.0
        %2866 = vmatprep.subr.mxu0 0.0
        %2867 = vmatpush1.msra.mxu0 0.0
        %2868 = vmatprep.subr.mxu0 0.0
        %2869 = vmatpush1.msra.mxu0 0.0
        %2870 = vmatprep.subr.mxu0 0.0
        %2871 = vmatpush1.msra.mxu0 0.0
        %2872 = vmatprep.subr.mxu0 0.0
        %2873 = vmatpush1.msra.mxu0 0.0
        %2874 = vmatprep.subr.mxu0 0.0
        %2875 = vmatpush1.msra.mxu0 0.0
        %2876 = vmatprep.subr.mxu0 0.0
        %2877 = vmatpush1.msra.mxu0 0.0
        %2878 = vmatprep.subr.mxu0 0.0
        %2879 = vmatpush1.msra.mxu0 0.0
        %2880 = vmatprep.subr.mxu0 0.0
        %2881 = vmatpush1.msra.mxu0 %v787
        %2882 = vmatprep.subr.mxu0 0.0
        %2883 = vmatpush1.msra.mxu0 %v786
        %2884 = vmatprep.subr.mxu0 0.0
        %2885 = vmatpush1.msra.mxu0 %v785
        %2886 = vmatprep.subr.mxu0 0.0
        %2887 = vmatpush1.msra.mxu0 %v784
        %2888 = vmatprep.subr.mxu0 0.0
        %2889 = vmatpush1.msra.mxu0 %v783
        %2890 = vmatprep.subr.mxu0 0.0
        %2891 = vmatpush1.msra.mxu0 %v782
        %2892 = vmatprep.subr.mxu0 0.0
        %2893 = vmatpush2.msra.mxu0 0.0
        %2894 = vmatprep.subr.mxu0 0.0
        %2895 = vmatpush2.msra.mxu0 0.0
        %2896 = vmatprep.subr.mxu0 0.0
        %2897 = vmatpush2.msra.mxu0 0.0
        %2898 = vmatprep.subr.mxu0 0.0
        %2899 = vmatpush2.msra.mxu0 0.0
        %2900 = vmatprep.subr.mxu0 0.0
        %2901 = vmatpush2.msra.mxu0 0.0
        %2902 = vmatprep.subr.mxu0 0.0
        %2903 = vmatpush2.msra.mxu0 0.0
        %2904 = vmatprep.subr.mxu0 0.0
        %2905 = vmatpush2.msra.mxu0 0.0
        %2906 = vmatprep.subr.mxu0 0.0
        %2907 = vmatpush2.msra.mxu0 0.0
        %2908 = vmatprep.subr.mxu0 0.0
        %2909 = vmatpush2.msra.mxu0 0.0
        %2910 = vmatprep.subr.mxu0 0.0
        %2911 = vmatpush2.msra.mxu0 0.0
        %2912 = vmatprep.subr.mxu0 0.0
        %2913 = vmatpush2.msra.mxu0 0.0
        %2914 = vmatprep.subr.mxu0 0.0
        %2915 = vmatpush2.msra.mxu0 0.0
        %2916 = vmatprep.subr.mxu0 0.0
        %2917 = vmatpush2.msra.mxu0 0.0
        %2918 = vmatprep.subr.mxu0 0.0
        %2919 = vmatpush2.msra.mxu0 0.0
        %2920 = vmatprep.subr.mxu0 0.0
        %2921 = vmatpush2.msra.mxu0 0.0
        %2922 = vmatprep.subr.mxu0 0.0
        %2923 = vmatpush2.msra.mxu0 0.0
        %2924 = vmatprep.mubr.f32.mxu0 0.0
        %2925 = vmatmul.mubr.f32.gmra.mxu0 %v799
        %v2926 = vpop.f32.mrf.mxu0
        %v2927 = vadd.f32 %v795, %v2926
        %v2928 = vpop.f32.mrf.mxu0
        %2929 = vdwg.mxu0
        %v2930 = vmax.f32 %v2927, 0.0
        %2931 = vmatprep.subr.mxu0 0.0
        %2932 = vmatpush1.msra.mxu0 0.0
        %2933 = vmatprep.subr.mxu0 0.0
        %2934 = vmatpush1.msra.mxu0 0.0
        %2935 = vmatprep.subr.mxu0 0.0
        %2936 = vmatpush1.msra.mxu0 0.0
        %2937 = vmatprep.subr.mxu0 0.0
        %2938 = vmatpush1.msra.mxu0 0.0
        %2939 = vmatprep.subr.mxu0 0.0
        %2940 = vmatpush1.msra.mxu0 0.0
        %2941 = vmatprep.subr.mxu0 0.0
        %2942 = vmatpush1.msra.mxu0 0.0
        %2943 = vmatprep.subr.mxu0 0.0
        %2944 = vmatpush1.msra.mxu0 0.0
        %2945 = vmatprep.subr.mxu0 0.0
        %2946 = vmatpush1.msra.mxu0 0.0
        %2947 = vmatprep.subr.mxu0 0.0
        %2948 = vmatpush1.msra.mxu0 0.0
        %2949 = vmatprep.subr.mxu0 0.0
        %2950 = vmatpush1.msra.mxu0 0.0
        %2951 = vmatprep.subr.mxu0 0.0
        %2952 = vmatpush1.msra.mxu0 %v789
        %2953 = vmatprep.subr.mxu0 0.0
        %2954 = vmatpush1.msra.mxu0 %v788
        %2955 = vmatprep.subr.mxu0 0.0
        %2956 = vmatpush1.msra.mxu0 %v787
        %2957 = vmatprep.subr.mxu0 0.0
        %2958 = vmatpush1.msra.mxu0 %v786
        %2959 = vmatprep.subr.mxu0 0.0
        %2960 = vmatpush1.msra.mxu0 %v785
        %2961 = vmatprep.subr.mxu0 0.0
        %2962 = vmatpush1.msra.mxu0 %v784
        %2963 = vmatprep.subr.mxu0 0.0
        %2964 = vmatpush2.msra.mxu0 0.0
        %2965 = vmatprep.subr.mxu0 0.0
        %2966 = vmatpush2.msra.mxu0 0.0
        %2967 = vmatprep.subr.mxu0 0.0
        %2968 = vmatpush2.msra.mxu0 0.0
        %2969 = vmatprep.subr.mxu0 0.0
        %2970 = vmatpush2.msra.mxu0 0.0
        %2971 = vmatprep.subr.mxu0 0.0
        %2972 = vmatpush2.msra.mxu0 0.0
        %2973 = vmatprep.subr.mxu0 0.0
        %2974 = vmatpush2.msra.mxu0 0.0
        %2975 = vmatprep.subr.mxu0 0.0
        %2976 = vmatpush2.msra.mxu0 0.0
        %2977 = vmatprep.subr.mxu0 0.0
        %2978 = vmatpush2.msra.mxu0 0.0
        %2979 = vmatprep.subr.mxu0 0.0
        %2980 = vmatpush2.msra.mxu0 0.0
        %2981 = vmatprep.subr.mxu0 0.0
        %2982 = vmatpush2.msra.mxu0 0.0
        %2983 = vmatprep.subr.mxu0 0.0
        %2984 = vmatpush2.msra.mxu0 0.0
        %2985 = vmatprep.subr.mxu0 0.0
        %2986 = vmatpush2.msra.mxu0 0.0
        %2987 = vmatprep.subr.mxu0 0.0
        %2988 = vmatpush2.msra.mxu0 0.0
        %2989 = vmatprep.subr.mxu0 0.0
        %2990 = vmatpush2.msra.mxu0 0.0
        %2991 = vmatprep.subr.mxu0 0.0
        %2992 = vmatpush2.msra.mxu0 0.0
        %2993 = vmatprep.subr.mxu0 0.0
        %2994 = vmatpush2.msra.mxu0 0.0
        %2995 = vmatprep.mubr.f32.mxu0 0.0
        %2996 = vmatmul.mubr.f32.gmra.mxu0 %v799
        %v2997 = vpop.f32.mrf.mxu0
        %v2998 = vadd.f32 %v795, %v2997
        %v2999 = vpop.f32.mrf.mxu0
        %3000 = vdwg.mxu0
        %v3001 = vmax.f32 %v2998, 0.0
        %3002 = vmatprep.subr.mxu0 0.0
        %3003 = vmatpush1.msra.mxu0 0.0
        %3004 = vmatprep.subr.mxu0 0.0
        %3005 = vmatpush1.msra.mxu0 0.0
        %3006 = vmatprep.subr.mxu0 0.0
        %3007 = vmatpush1.msra.mxu0 0.0
        %3008 = vmatprep.subr.mxu0 0.0
        %3009 = vmatpush1.msra.mxu0 0.0
        %3010 = vmatprep.subr.mxu0 0.0
        %3011 = vmatpush1.msra.mxu0 0.0
        %3012 = vmatprep.subr.mxu0 0.0
        %3013 = vmatpush1.msra.mxu0 0.0
        %3014 = vmatprep.subr.mxu0 0.0
        %3015 = vmatpush1.msra.mxu0 0.0
        %3016 = vmatprep.subr.mxu0 0.0
        %3017 = vmatpush1.msra.mxu0 0.0
        %3018 = vmatprep.subr.mxu0 0.0
        %3019 = vmatpush1.msra.mxu0 0.0
        %3020 = vmatprep.subr.mxu0 0.0
        %3021 = vmatpush1.msra.mxu0 0.0
        %3022 = vmatprep.subr.mxu0 0.0
        %3023 = vmatpush1.msra.mxu0 0.0
        %3024 = vmatprep.subr.mxu0 0.0
        %3025 = vmatpush1.msra.mxu0 0.0
        %3026 = vmatprep.subr.mxu0 0.0
        %3027 = vmatpush1.msra.mxu0 %v789
        %3028 = vmatprep.subr.mxu0 0.0
        %3029 = vmatpush1.msra.mxu0 %v788
        %3030 = vmatprep.subr.mxu0 0.0
        %3031 = vmatpush1.msra.mxu0 %v787
        %3032 = vmatprep.subr.mxu0 0.0
        %3033 = vmatpush1.msra.mxu0 %v786
        %3034 = vmatprep.subr.mxu0 0.0
        %3035 = vmatpush2.msra.mxu0 0.0
        %3036 = vmatprep.subr.mxu0 0.0
        %3037 = vmatpush2.msra.mxu0 0.0
        %3038 = vmatprep.subr.mxu0 0.0
        %3039 = vmatpush2.msra.mxu0 0.0
        %3040 = vmatprep.subr.mxu0 0.0
        %3041 = vmatpush2.msra.mxu0 0.0
        %3042 = vmatprep.subr.mxu0 0.0
        %3043 = vmatpush2.msra.mxu0 0.0
        %3044 = vmatprep.subr.mxu0 0.0
        %3045 = vmatpush2.msra.mxu0 0.0
        %3046 = vmatprep.subr.mxu0 0.0
        %3047 = vmatpush2.msra.mxu0 0.0
        %3048 = vmatprep.subr.mxu0 0.0
        %3049 = vmatpush2.msra.mxu0 0.0
        %3050 = vmatprep.subr.mxu0 0.0
        %3051 = vmatpush2.msra.mxu0 0.0
        %3052 = vmatprep.subr.mxu0 0.0
        %3053 = vmatpush2.msra.mxu0 0.0
        %3054 = vmatprep.subr.mxu0 0.0
        %3055 = vmatpush2.msra.mxu0 0.0
        %3056 = vmatprep.subr.mxu0 0.0
        %3057 = vmatpush2.msra.mxu0 0.0
        %3058 = vmatprep.subr.mxu0 0.0
        %3059 = vmatpush2.msra.mxu0 0.0
        %3060 = vmatprep.subr.mxu0 0.0
        %3061 = vmatpush2.msra.mxu0 0.0
        %3062 = vmatprep.subr.mxu0 0.0
        %3063 = vmatpush2.msra.mxu0 0.0
        %3064 = vmatprep.subr.mxu0 0.0
        %3065 = vmatpush2.msra.mxu0 0.0
        %3066 = vmatprep.mubr.f32.mxu0 0.0
        %3067 = vmatmul.mubr.f32.gmra.mxu0 %v799
        %v3068 = vpop.f32.mrf.mxu0
        %v3069 = vadd.f32 %v795, %v3068
        %v3070 = vpop.f32.mrf.mxu0
        %3071 = vdwg.mxu0
        %v3072 = vmax.f32 %v3069, 0.0
        %v3073 = vmax.f32 %v871, %v942
        %v3074 = vmax.f32 %v1013, %v1084
        %v3075 = vmax.f32 %v1155, %v1226
        %v3076 = vmax.f32 %v1297, %v1368
        %v3077 = vmax.f32 %v1439, %v1510
        %v3078 = vmax.f32 %v1581, %v1652
        %v3079 = vmax.f32 %v1723, %v1794
        %v3080 = vmax.f32 %v1865, %v1936
        %v3081 = vmax.f32 %v2007, %v2078
        %v3082 = vmax.f32 %v2149, %v2220
        %v3083 = vmax.f32 %v2291, %v2362
        %v3084 = vmax.f32 %v2433, %v2504
        %v3085 = vmax.f32 %v2575, %v2646
        %v3086 = vmax.f32 %v2717, %v2788
        %v3087 = vmax.f32 %v2859, %v2930
        %v3088 = vmax.f32 %v3001, %v3072
        %v3089 = vld [vmem:[%s3] sm:$0xff]
        %v3090 = vld [vmem:[%s3 + $0x8] sm:$0xff]
        %v3091 = vld [vmem:[%s4] sm:$0xff]
        %v3092 = vld [vmem:[%s4 + $0x8] sm:$0xff]
        %3094 = vset.pattern.permute.xlu0 0
        %3095 = vperm.xlu0 %3094, %v3091
        %v3096 = vpop.permute.xlu0 %3095
        %3099 = vset.pattern.permute.xlu0 0
        %3100 = vperm.xlu0 %3099, %v3092
        %v3101 = vpop.permute.xlu0 %3100
        %vm3103 = vcmask 326656
        %v3105 = vsel %vm3103, %v3089, 0
        %v3108 = vsel %vm3103, %v3090, 0
        %3110 = vmatprep.subr.mxu0 0.0
        %3111 = vmatpush1.msra.mxu0 0.0
        %3112 = vmatprep.subr.mxu0 0.0
        %3113 = vmatpush1.msra.mxu0 0.0
        %3114 = vmatprep.subr.mxu0 0.0
        %3115 = vmatpush1.msra.mxu0 0.0
        %3116 = vmatprep.subr.mxu0 0.0
        %3117 = vmatpush1.msra.mxu0 0.0
        %3118 = vmatprep.subr.mxu0 0.0
        %3119 = vmatpush1.msra.mxu0 0.0
        %3120 = vmatprep.subr.mxu0 0.0
        %3121 = vmatpush1.msra.mxu0 0.0
        %3122 = vmatprep.subr.mxu0 0.0
        %3123 = vmatpush1.msra.mxu0 0.0
        %3124 = vmatprep.subr.mxu0 0.0
        %3125 = vmatpush1.msra.mxu0 0.0
        %3126 = vmatprep.subr.mxu0 0.0
        %3127 = vmatpush1.msra.mxu0 0.0
        %3128 = vmatprep.subr.mxu0 0.0
        %3129 = vmatpush1.msra.mxu0 0.0
        %3130 = vmatprep.subr.mxu0 0.0
        %3131 = vmatpush1.msra.mxu0 0.0
        %3132 = vmatprep.subr.mxu0 0.0
        %3133 = vmatpush1.msra.mxu0 %v3075
        %3134 = vmatprep.subr.mxu0 0.0
        %3135 = vmatpush1.msra.mxu0 %v3074
        %3136 = vmatprep.subr.mxu0 0.0
        %3137 = vmatpush1.msra.mxu0 %v3073
        %3138 = vmatprep.subr.mxu0 0.0
        %3139 = vmatpush1.msra.mxu0 0.0
        %3140 = vmatprep.subr.mxu0 0.0
        %3141 = vmatpush1.msra.mxu0 0.0
        %3142 = vmatprep.subr.mxu0 0.0
        %3143 = vmatpush2.msra.mxu0 0.0
        %3144 = vmatprep.subr.mxu0 0.0
        %3145 = vmatpush2.msra.mxu0 0.0
        %3146 = vmatprep.subr.mxu0 0.0
        %3147 = vmatpush2.msra.mxu0 0.0
        %3148 = vmatprep.subr.mxu0 0.0
        %3149 = vmatpush2.msra.mxu0 0.0
        %3150 = vmatprep.subr.mxu0 0.0
        %3151 = vmatpush2.msra.mxu0 0.0
        %3152 = vmatprep.subr.mxu0 0.0
        %3153 = vmatpush2.msra.mxu0 0.0
        %3154 = vmatprep.subr.mxu0 0.0
        %3155 = vmatpush2.msra.mxu0 0.0
        %3156 = vmatprep.subr.mxu0 0.0
        %3157 = vmatpush2.msra.mxu0 0.0
        %3158 = vmatprep.subr.mxu0 0.0
        %3159 = vmatpush2.msra.mxu0 0.0
        %3160 = vmatprep.subr.mxu0 0.0
        %3161 = vmatpush2.msra.mxu0 0.0
        %3162 = vmatprep.subr.mxu0 0.0
        %3163 = vmatpush2.msra.mxu0 0.0
        %3164 = vmatprep.subr.mxu0 0.0
        %3165 = vmatpush2.msra.mxu0 0.0
        %3166 = vmatprep.subr.mxu0 0.0
        %3167 = vmatpush2.msra.mxu0 0.0
        %3168 = vmatprep.subr.mxu0 0.0
        %3169 = vmatpush2.msra.mxu0 0.0
        %3170 = vmatprep.subr.mxu0 0.0
        %3171 = vmatpush2.msra.mxu0 0.0
        %3172 = vmatprep.subr.mxu0 0.0
        %3173 = vmatpush2.msra.mxu0 0.0
        %3174 = vmatprep.mubr.f32.mxu0 0.0
        %3175 = vmatmul.mubr.f32.gmra.mxu0 %v3105
        %v3176 = vpop.f32.mrf.mxu0
        %v3177 = vadd.f32 %v3096, %v3176
        %v3178 = vpop.f32.mrf.mxu0
        %3179 = vmatprep.mubr.f32.mxu0 0.0
        %3180 = vmatmul.mubr.f32.gmra.mxu0 %v3108
        %v3181 = vpop.f32.mrf.mxu0
        %v3182 = vadd.f32 %v3101, %v3181
        %v3183 = vpop.f32.mrf.mxu0
        %3184 = vdwg.mxu0
        %v3185 = vmax.f32 %v3177, 0.0
        %v3186 = vmax.f32 %v3182, 0.0
        %3187 = vmatprep.subr.mxu0 0.0
        %3188 = vmatpush1.msra.mxu0 0.0
        %3189 = vmatprep.subr.mxu0 0.0
        %3190 = vmatpush1.msra.mxu0 0.0
        %3191 = vmatprep.subr.mxu0 0.0
        %3192 = vmatpush1.msra.mxu0 0.0
        %3193 = vmatprep.subr.mxu0 0.0
        %3194 = vmatpush1.msra.mxu0 0.0
        %3195 = vmatprep.subr.mxu0 0.0
        %3196 = vmatpush1.msra.mxu0 0.0
        %3197 = vmatprep.subr.mxu0 0.0
        %3198 = vmatpush1.msra.mxu0 0.0
        %3199 = vmatprep.subr.mxu0 0.0
        %3200 = vmatpush1.msra.mxu0 0.0
        %3201 = vmatprep.subr.mxu0 0.0
        %3202 = vmatpush1.msra.mxu0 0.0
        %3203 = vmatprep.subr.mxu0 0.0
        %3204 = vmatpush1.msra.mxu0 0.0
        %3205 = vmatprep.subr.mxu0 0.0
        %3206 = vmatpush1.msra.mxu0 0.0
        %3207 = vmatprep.subr.mxu0 0.0
        %3208 = vmatpush1.msra.mxu0 0.0
        %3209 = vmatprep.subr.mxu0 0.0
        %3210 = vmatpush1.msra.mxu0 %v3076
        %3211 = vmatprep.subr.mxu0 0.0
        %3212 = vmatpush1.msra.mxu0 %v3075
        %3213 = vmatprep.subr.mxu0 0.0
        %3214 = vmatpush1.msra.mxu0 %v3074
        %3215 = vmatprep.subr.mxu0 0.0
        %3216 = vmatpush1.msra.mxu0 %v3073
        %3217 = vmatprep.subr.mxu0 0.0
        %3218 = vmatpush1.msra.mxu0 0.0
        %3219 = vmatprep.subr.mxu0 0.0
        %3220 = vmatpush2.msra.mxu0 0.0
        %3221 = vmatprep.subr.mxu0 0.0
        %3222 = vmatpush2.msra.mxu0 0.0
        %3223 = vmatprep.subr.mxu0 0.0
        %3224 = vmatpush2.msra.mxu0 0.0
        %3225 = vmatprep.subr.mxu0 0.0
        %3226 = vmatpush2.msra.mxu0 0.0
        %3227 = vmatprep.subr.mxu0 0.0
        %3228 = vmatpush2.msra.mxu0 0.0
        %3229 = vmatprep.subr.mxu0 0.0
        %3230 = vmatpush2.msra.mxu0 0.0
        %3231 = vmatprep.subr.mxu0 0.0
        %3232 = vmatpush2.msra.mxu0 0.0
        %3233 = vmatprep.subr.mxu0 0.0
        %3234 = vmatpush2.msra.mxu0 0.0
        %3235 = vmatprep.subr.mxu0 0.0
        %3236 = vmatpush2.msra.mxu0 0.0
        %3237 = vmatprep.subr.mxu0 0.0
        %3238 = vmatpush2.msra.mxu0 0.0
        %3239 = vmatprep.subr.mxu0 0.0
        %3240 = vmatpush2.msra.mxu0 0.0
        %3241 = vmatprep.subr.mxu0 0.0
        %3242 = vmatpush2.msra.mxu0 0.0
        %3243 = vmatprep.subr.mxu0 0.0
        %3244 = vmatpush2.msra.mxu0 0.0
        %3245 = vmatprep.subr.mxu0 0.0
        %3246 = vmatpush2.msra.mxu0 0.0
        %3247 = vmatprep.subr.mxu0 0.0
        %3248 = vmatpush2.msra.mxu0 0.0
        %3249 = vmatprep.subr.mxu0 0.0
        %3250 = vmatpush2.msra.mxu0 0.0
        %3251 = vmatprep.mubr.f32.mxu0 0.0
        %3252 = vmatmul.mubr.f32.gmra.mxu0 %v3105
        %v3253 = vpop.f32.mrf.mxu0
        %v3254 = vadd.f32 %v3096, %v3253
        %v3255 = vpop.f32.mrf.mxu0
        %3256 = vmatprep.mubr.f32.mxu0 0.0
        %3257 = vmatmul.mubr.f32.gmra.mxu0 %v3108
        %v3258 = vpop.f32.mrf.mxu0
        %v3259 = vadd.f32 %v3101, %v3258
        %v3260 = vpop.f32.mrf.mxu0
        %3261 = vdwg.mxu0
        %v3262 = vmax.f32 %v3254, 0.0
        %v3263 = vmax.f32 %v3259, 0.0
        %3264 = vmatprep.subr.mxu0 0.0
        %3265 = vmatpush1.msra.mxu0 0.0
        %3266 = vmatprep.subr.mxu0 0.0
        %3267 = vmatpush1.msra.mxu0 0.0
        %3268 = vmatprep.subr.mxu0 0.0
        %3269 = vmatpush1.msra.mxu0 0.0
        %3270 = vmatprep.subr.mxu0 0.0
        %3271 = vmatpush1.msra.mxu0 0.0
        %3272 = vmatprep.subr.mxu0 0.0
        %3273 = vmatpush1.msra.mxu0 0.0
        %3274 = vmatprep.subr.mxu0 0.0
        %3275 = vmatpush1.msra.mxu0 0.0
        %3276 = vmatprep.subr.mxu0 0.0
        %3277 = vmatpush1.msra.mxu0 0.0
        %3278 = vmatprep.subr.mxu0 0.0
        %3279 = vmatpush1.msra.mxu0 0.0
        %3280 = vmatprep.subr.mxu0 0.0
        %3281 = vmatpush1.msra.mxu0 0.0
        %3282 = vmatprep.subr.mxu0 0.0
        %3283 = vmatpush1.msra.mxu0 0.0
        %3284 = vmatprep.subr.mxu0 0.0
        %3285 = vmatpush1.msra.mxu0 0.0
        %3286 = vmatprep.subr.mxu0 0.0
        %3287 = vmatpush1.msra.mxu0 %v3077
        %3288 = vmatprep.subr.mxu0 0.0
        %3289 = vmatpush1.msra.mxu0 %v3076
        %3290 = vmatprep.subr.mxu0 0.0
        %3291 = vmatpush1.msra.mxu0 %v3075
        %3292 = vmatprep.subr.mxu0 0.0
        %3293 = vmatpush1.msra.mxu0 %v3074
        %3294 = vmatprep.subr.mxu0 0.0
        %3295 = vmatpush1.msra.mxu0 %v3073
        %3296 = vmatprep.subr.mxu0 0.0
        %3297 = vmatpush2.msra.mxu0 0.0
        %3298 = vmatprep.subr.mxu0 0.0
        %3299 = vmatpush2.msra.mxu0 0.0
        %3300 = vmatprep.subr.mxu0 0.0
        %3301 = vmatpush2.msra.mxu0 0.0
        %3302 = vmatprep.subr.mxu0 0.0
        %3303 = vmatpush2.msra.mxu0 0.0
        %3304 = vmatprep.subr.mxu0 0.0
        %3305 = vmatpush2.msra.mxu0 0.0
        %3306 = vmatprep.subr.mxu0 0.0
        %3307 = vmatpush2.msra.mxu0 0.0
        %3308 = vmatprep.subr.mxu0 0.0
        %3309 = vmatpush2.msra.mxu0 0.0
        %3310 = vmatprep.subr.mxu0 0.0
        %3311 = vmatpush2.msra.mxu0 0.0
        %3312 = vmatprep.subr.mxu0 0.0
        %3313 = vmatpush2.msra.mxu0 0.0
        %3314 = vmatprep.subr.mxu0 0.0
        %3315 = vmatpush2.msra.mxu0 0.0
        %3316 = vmatprep.subr.mxu0 0.0
        %3317 = vmatpush2.msra.mxu0 0.0
        %3318 = vmatprep.subr.mxu0 0.0
        %3319 = vmatpush2.msra.mxu0 0.0
        %3320 = vmatprep.subr.mxu0 0.0
        %3321 = vmatpush2.msra.mxu0 0.0
        %3322 = vmatprep.subr.mxu0 0.0
        %3323 = vmatpush2.msra.mxu0 0.0
        %3324 = vmatprep.subr.mxu0 0.0
        %3325 = vmatpush2.msra.mxu0 0.0
        %3326 = vmatprep.subr.mxu0 0.0
        %3327 = vmatpush2.msra.mxu0 0.0
        %3328 = vmatprep.mubr.f32.mxu0 0.0
        %3329 = vmatmul.mubr.f32.gmra.mxu0 %v3105
        %v3330 = vpop.f32.mrf.mxu0
        %v3331 = vadd.f32 %v3096, %v3330
        %v3332 = vpop.f32.mrf.mxu0
        %3333 = vmatprep.mubr.f32.mxu0 0.0
        %3334 = vmatmul.mubr.f32.gmra.mxu0 %v3108
        %v3335 = vpop.f32.mrf.mxu0
        %v3336 = vadd.f32 %v3101, %v3335
        %v3337 = vpop.f32.mrf.mxu0
        %3338 = vdwg.mxu0
        %v3339 = vmax.f32 %v3331, 0.0
        %v3340 = vmax.f32 %v3336, 0.0
        %3341 = vmatprep.subr.mxu0 0.0
        %3342 = vmatpush1.msra.mxu0 0.0
        %3343 = vmatprep.subr.mxu0 0.0
        %3344 = vmatpush1.msra.mxu0 0.0
        %3345 = vmatprep.subr.mxu0 0.0
        %3346 = vmatpush1.msra.mxu0 0.0
        %3347 = vmatprep.subr.mxu0 0.0
        %3348 = vmatpush1.msra.mxu0 0.0
        %3349 = vmatprep.subr.mxu0 0.0
        %3350 = vmatpush1.msra.mxu0 0.0
        %3351 = vmatprep.subr.mxu0 0.0
        %3352 = vmatpush1.msra.mxu0 0.0
        %3353 = vmatprep.subr.mxu0 0.0
        %3354 = vmatpush1.msra.mxu0 0.0
        %3355 = vmatprep.subr.mxu0 0.0
        %3356 = vmatpush1.msra.mxu0 0.0
        %3357 = vmatprep.subr.mxu0 0.0
        %3358 = vmatpush1.msra.mxu0 0.0
        %3359 = vmatprep.subr.mxu0 0.0
        %3360 = vmatpush1.msra.mxu0 0.0
        %3361 = vmatprep.subr.mxu0 0.0
        %3362 = vmatpush1.msra.mxu0 0.0
        %3363 = vmatprep.subr.mxu0 0.0
        %3364 = vmatpush1.msra.mxu0 %v3078
        %3365 = vmatprep.subr.mxu0 0.0
        %3366 = vmatpush1.msra.mxu0 %v3077
        %3367 = vmatprep.subr.mxu0 0.0
        %3368 = vmatpush1.msra.mxu0 %v3076
        %3369 = vmatprep.subr.mxu0 0.0
        %3370 = vmatpush1.msra.mxu0 %v3075
        %3371 = vmatprep.subr.mxu0 0.0
        %3372 = vmatpush1.msra.mxu0 %v3074
        %3373 = vmatprep.subr.mxu0 0.0
        %3374 = vmatpush2.msra.mxu0 0.0
        %3375 = vmatprep.subr.mxu0 0.0
        %3376 = vmatpush2.msra.mxu0 0.0
        %3377 = vmatprep.subr.mxu0 0.0
        %3378 = vmatpush2.msra.mxu0 0.0
        %3379 = vmatprep.subr.mxu0 0.0
        %3380 = vmatpush2.msra.mxu0 0.0
        %3381 = vmatprep.subr.mxu0 0.0
        %3382 = vmatpush2.msra.mxu0 0.0
        %3383 = vmatprep.subr.mxu0 0.0
        %3384 = vmatpush2.msra.mxu0 0.0
        %3385 = vmatprep.subr.mxu0 0.0
        %3386 = vmatpush2.msra.mxu0 0.0
        %3387 = vmatprep.subr.mxu0 0.0
        %3388 = vmatpush2.msra.mxu0 0.0
        %3389 = vmatprep.subr.mxu0 0.0
        %3390 = vmatpush2.msra.mxu0 0.0
        %3391 = vmatprep.subr.mxu0 0.0
        %3392 = vmatpush2.msra.mxu0 0.0
        %3393 = vmatprep.subr.mxu0 0.0
        %3394 = vmatpush2.msra.mxu0 0.0
        %3395 = vmatprep.subr.mxu0 0.0
        %3396 = vmatpush2.msra.mxu0 0.0
        %3397 = vmatprep.subr.mxu0 0.0
        %3398 = vmatpush2.msra.mxu0 0.0
        %3399 = vmatprep.subr.mxu0 0.0
        %3400 = vmatpush2.msra.mxu0 0.0
        %3401 = vmatprep.subr.mxu0 0.0
        %3402 = vmatpush2.msra.mxu0 0.0
        %3403 = vmatprep.subr.mxu0 0.0
        %3404 = vmatpush2.msra.mxu0 0.0
        %3405 = vmatprep.mubr.f32.mxu0 0.0
        %3406 = vmatmul.mubr.f32.gmra.mxu0 %v3105
        %v3407 = vpop.f32.mrf.mxu0
        %v3408 = vadd.f32 %v3096, %v3407
        %v3409 = vpop.f32.mrf.mxu0
        %3410 = vmatprep.mubr.f32.mxu0 0.0
        %3411 = vmatmul.mubr.f32.gmra.mxu0 %v3108
        %v3412 = vpop.f32.mrf.mxu0
        %v3413 = vadd.f32 %v3101, %v3412
        %v3414 = vpop.f32.mrf.mxu0
        %3415 = vdwg.mxu0
        %v3416 = vmax.f32 %v3408, 0.0
        %v3417 = vmax.f32 %v3413, 0.0
        %3418 = vmatprep.subr.mxu0 0.0
        %3419 = vmatpush1.msra.mxu0 0.0
        %3420 = vmatprep.subr.mxu0 0.0
        %3421 = vmatpush1.msra.mxu0 0.0
        %3422 = vmatprep.subr.mxu0 0.0
        %3423 = vmatpush1.msra.mxu0 0.0
        %3424 = vmatprep.subr.mxu0 0.0
        %3425 = vmatpush1.msra.mxu0 0.0
        %3426 = vmatprep.subr.mxu0 0.0
        %3427 = vmatpush1.msra.mxu0 0.0
        %3428 = vmatprep.subr.mxu0 0.0
        %3429 = vmatpush1.msra.mxu0 0.0
        %3430 = vmatprep.subr.mxu0 0.0
        %3431 = vmatpush1.msra.mxu0 0.0
        %3432 = vmatprep.subr.mxu0 0.0
        %3433 = vmatpush1.msra.mxu0 0.0
        %3434 = vmatprep.subr.mxu0 0.0
        %3435 = vmatpush1.msra.mxu0 0.0
        %3436 = vmatprep.subr.mxu0 0.0
        %3437 = vmatpush1.msra.mxu0 0.0
        %3438 = vmatprep.subr.mxu0 0.0
        %3439 = vmatpush1.msra.mxu0 0.0
        %3440 = vmatprep.subr.mxu0 0.0
        %3441 = vmatpush1.msra.mxu0 %v3079
        %3442 = vmatprep.subr.mxu0 0.0
        %3443 = vmatpush1.msra.mxu0 %v3078
        %3444 = vmatprep.subr.mxu0 0.0
        %3445 = vmatpush1.msra.mxu0 %v3077
        %3446 = vmatprep.subr.mxu0 0.0
        %3447 = vmatpush1.msra.mxu0 %v3076
        %3448 = vmatprep.subr.mxu0 0.0
        %3449 = vmatpush1.msra.mxu0 %v3075
        %3450 = vmatprep.subr.mxu0 0.0
        %3451 = vmatpush2.msra.mxu0 0.0
        %3452 = vmatprep.subr.mxu0 0.0
        %3453 = vmatpush2.msra.mxu0 0.0
        %3454 = vmatprep.subr.mxu0 0.0
        %3455 = vmatpush2.msra.mxu0 0.0
        %3456 = vmatprep.subr.mxu0 0.0
        %3457 = vmatpush2.msra.mxu0 0.0
        %3458 = vmatprep.subr.mxu0 0.0
        %3459 = vmatpush2.msra.mxu0 0.0
        %3460 = vmatprep.subr.mxu0 0.0
        %3461 = vmatpush2.msra.mxu0 0.0
        %3462 = vmatprep.subr.mxu0 0.0
        %3463 = vmatpush2.msra.mxu0 0.0
        %3464 = vmatprep.subr.mxu0 0.0
        %3465 = vmatpush2.msra.mxu0 0.0
        %3466 = vmatprep.subr.mxu0 0.0
        %3467 = vmatpush2.msra.mxu0 0.0
        %3468 = vmatprep.subr.mxu0 0.0
        %3469 = vmatpush2.msra.mxu0 0.0
        %3470 = vmatprep.subr.mxu0 0.0
        %3471 = vmatpush2.msra.mxu0 0.0
        %3472 = vmatprep.subr.mxu0 0.0
        %3473 = vmatpush2.msra.mxu0 0.0
        %3474 = vmatprep.subr.mxu0 0.0
        %3475 = vmatpush2.msra.mxu0 0.0
        %3476 = vmatprep.subr.mxu0 0.0
        %3477 = vmatpush2.msra.mxu0 0.0
        %3478 = vmatprep.subr.mxu0 0.0
        %3479 = vmatpush2.msra.mxu0 0.0
        %3480 = vmatprep.subr.mxu0 0.0
        %3481 = vmatpush2.msra.mxu0 0.0
        %3482 = vmatprep.mubr.f32.mxu0 0.0
        %3483 = vmatmul.mubr.f32.gmra.mxu0 %v3105
        %v3484 = vpop.f32.mrf.mxu0
        %v3485 = vadd.f32 %v3096, %v3484
        %v3486 = vpop.f32.mrf.mxu0
        %3487 = vmatprep.mubr.f32.mxu0 0.0
        %3488 = vmatmul.mubr.f32.gmra.mxu0 %v3108
        %v3489 = vpop.f32.mrf.mxu0
        %v3490 = vadd.f32 %v3101, %v3489
        %v3491 = vpop.f32.mrf.mxu0
        %3492 = vdwg.mxu0
        %v3493 = vmax.f32 %v3485, 0.0
        %v3494 = vmax.f32 %v3490, 0.0
        %3495 = vmatprep.subr.mxu0 0.0
        %3496 = vmatpush1.msra.mxu0 0.0
        %3497 = vmatprep.subr.mxu0 0.0
        %3498 = vmatpush1.msra.mxu0 0.0
        %3499 = vmatprep.subr.mxu0 0.0
        %3500 = vmatpush1.msra.mxu0 0.0
        %3501 = vmatprep.subr.mxu0 0.0
        %3502 = vmatpush1.msra.mxu0 0.0
        %3503 = vmatprep.subr.mxu0 0.0
        %3504 = vmatpush1.msra.mxu0 0.0
        %3505 = vmatprep.subr.mxu0 0.0
        %3506 = vmatpush1.msra.mxu0 0.0
        %3507 = vmatprep.subr.mxu0 0.0
        %3508 = vmatpush1.msra.mxu0 0.0
        %3509 = vmatprep.subr.mxu0 0.0
        %3510 = vmatpush1.msra.mxu0 0.0
        %3511 = vmatprep.subr.mxu0 0.0
        %3512 = vmatpush1.msra.mxu0 0.0
        %3513 = vmatprep.subr.mxu0 0.0
        %3514 = vmatpush1.msra.mxu0 0.0
        %3515 = vmatprep.subr.mxu0 0.0
        %3516 = vmatpush1.msra.mxu0 0.0
        %3517 = vmatprep.subr.mxu0 0.0
        %3518 = vmatpush1.msra.mxu0 %v3080
        %3519 = vmatprep.subr.mxu0 0.0
        %3520 = vmatpush1.msra.mxu0 %v3079
        %3521 = vmatprep.subr.mxu0 0.0
        %3522 = vmatpush1.msra.mxu0 %v3078
        %3523 = vmatprep.subr.mxu0 0.0
        %3524 = vmatpush1.msra.mxu0 %v3077
        %3525 = vmatprep.subr.mxu0 0.0
        %3526 = vmatpush1.msra.mxu0 %v3076
        %3527 = vmatprep.subr.mxu0 0.0
        %3528 = vmatpush2.msra.mxu0 0.0
        %3529 = vmatprep.subr.mxu0 0.0
        %3530 = vmatpush2.msra.mxu0 0.0
        %3531 = vmatprep.subr.mxu0 0.0
        %3532 = vmatpush2.msra.mxu0 0.0
        %3533 = vmatprep.subr.mxu0 0.0
        %3534 = vmatpush2.msra.mxu0 0.0
        %3535 = vmatprep.subr.mxu0 0.0
        %3536 = vmatpush2.msra.mxu0 0.0
        %3537 = vmatprep.subr.mxu0 0.0
        %3538 = vmatpush2.msra.mxu0 0.0
        %3539 = vmatprep.subr.mxu0 0.0
        %3540 = vmatpush2.msra.mxu0 0.0
        %3541 = vmatprep.subr.mxu0 0.0
        %3542 = vmatpush2.msra.mxu0 0.0
        %3543 = vmatprep.subr.mxu0 0.0
        %3544 = vmatpush2.msra.mxu0 0.0
        %3545 = vmatprep.subr.mxu0 0.0
        %3546 = vmatpush2.msra.mxu0 0.0
        %3547 = vmatprep.subr.mxu0 0.0
        %3548 = vmatpush2.msra.mxu0 0.0
        %3549 = vmatprep.subr.mxu0 0.0
        %3550 = vmatpush2.msra.mxu0 0.0
        %3551 = vmatprep.subr.mxu0 0.0
        %3552 = vmatpush2.msra.mxu0 0.0
        %3553 = vmatprep.subr.mxu0 0.0
        %3554 = vmatpush2.msra.mxu0 0.0
        %3555 = vmatprep.subr.mxu0 0.0
        %3556 = vmatpush2.msra.mxu0 0.0
        %3557 = vmatprep.subr.mxu0 0.0
        %3558 = vmatpush2.msra.mxu0 0.0
        %3559 = vmatprep.mubr.f32.mxu0 0.0
        %3560 = vmatmul.mubr.f32.gmra.mxu0 %v3105
        %v3561 = vpop.f32.mrf.mxu0
        %v3562 = vadd.f32 %v3096, %v3561
        %v3563 = vpop.f32.mrf.mxu0
        %3564 = vmatprep.mubr.f32.mxu0 0.0
        %3565 = vmatmul.mubr.f32.gmra.mxu0 %v3108
        %v3566 = vpop.f32.mrf.mxu0
        %v3567 = vadd.f32 %v3101, %v3566
        %v3568 = vpop.f32.mrf.mxu0
        %3569 = vdwg.mxu0
        %v3570 = vmax.f32 %v3562, 0.0
        %v3571 = vmax.f32 %v3567, 0.0
        %3572 = vmatprep.subr.mxu0 0.0
        %3573 = vmatpush1.msra.mxu0 0.0
        %3574 = vmatprep.subr.mxu0 0.0
        %3575 = vmatpush1.msra.mxu0 0.0
        %3576 = vmatprep.subr.mxu0 0.0
        %3577 = vmatpush1.msra.mxu0 0.0
        %3578 = vmatprep.subr.mxu0 0.0
        %3579 = vmatpush1.msra.mxu0 0.0
        %3580 = vmatprep.subr.mxu0 0.0
        %3581 = vmatpush1.msra.mxu0 0.0
        %3582 = vmatprep.subr.mxu0 0.0
        %3583 = vmatpush1.msra.mxu0 0.0
        %3584 = vmatprep.subr.mxu0 0.0
        %3585 = vmatpush1.msra.mxu0 0.0
        %3586 = vmatprep.subr.mxu0 0.0
        %3587 = vmatpush1.msra.mxu0 0.0
        %3588 = vmatprep.subr.mxu0 0.0
        %3589 = vmatpush1.msra.mxu0 0.0
        %3590 = vmatprep.subr.mxu0 0.0
        %3591 = vmatpush1.msra.mxu0 0.0
        %3592 = vmatprep.subr.mxu0 0.0
        %3593 = vmatpush1.msra.mxu0 0.0
        %3594 = vmatprep.subr.mxu0 0.0
        %3595 = vmatpush1.msra.mxu0 %v3081
        %3596 = vmatprep.subr.mxu0 0.0
        %3597 = vmatpush1.msra.mxu0 %v3080
        %3598 = vmatprep.subr.mxu0 0.0
        %3599 = vmatpush1.msra.mxu0 %v3079
        %3600 = vmatprep.subr.mxu0 0.0
        %3601 = vmatpush1.msra.mxu0 %v3078
        %3602 = vmatprep.subr.mxu0 0.0
        %3603 = vmatpush1.msra.mxu0 %v3077
        %3604 = vmatprep.subr.mxu0 0.0
        %3605 = vmatpush2.msra.mxu0 0.0
        %3606 = vmatprep.subr.mxu0 0.0
        %3607 = vmatpush2.msra.mxu0 0.0
        %3608 = vmatprep.subr.mxu0 0.0
        %3609 = vmatpush2.msra.mxu0 0.0
        %3610 = vmatprep.subr.mxu0 0.0
        %3611 = vmatpush2.msra.mxu0 0.0
        %3612 = vmatprep.subr.mxu0 0.0
        %3613 = vmatpush2.msra.mxu0 0.0
        %3614 = vmatprep.subr.mxu0 0.0
        %3615 = vmatpush2.msra.mxu0 0.0
        %3616 = vmatprep.subr.mxu0 0.0
        %3617 = vmatpush2.msra.mxu0 0.0
        %3618 = vmatprep.subr.mxu0 0.0
        %3619 = vmatpush2.msra.mxu0 0.0
        %3620 = vmatprep.subr.mxu0 0.0
        %3621 = vmatpush2.msra.mxu0 0.0
        %3622 = vmatprep.subr.mxu0 0.0
        %3623 = vmatpush2.msra.mxu0 0.0
        %3624 = vmatprep.subr.mxu0 0.0
        %3625 = vmatpush2.msra.mxu0 0.0
        %3626 = vmatprep.subr.mxu0 0.0
        %3627 = vmatpush2.msra.mxu0 0.0
        %3628 = vmatprep.subr.mxu0 0.0
        %3629 = vmatpush2.msra.mxu0 0.0
        %3630 = vmatprep.subr.mxu0 0.0
        %3631 = vmatpush2.msra.mxu0 0.0
        %3632 = vmatprep.subr.mxu0 0.0
        %3633 = vmatpush2.msra.mxu0 0.0
        %3634 = vmatprep.subr.mxu0 0.0
        %3635 = vmatpush2.msra.mxu0 0.0
        %3636 = vmatprep.mubr.f32.mxu0 0.0
        %3637 = vmatmul.mubr.f32.gmra.mxu0 %v3105
        %v3638 = vpop.f32.mrf.mxu0
        %v3639 = vadd.f32 %v3096, %v3638
        %v3640 = vpop.f32.mrf.mxu0
        %3641 = vmatprep.mubr.f32.mxu0 0.0
        %3642 = vmatmul.mubr.f32.gmra.mxu0 %v3108
        %v3643 = vpop.f32.mrf.mxu0
        %v3644 = vadd.f32 %v3101, %v3643
        %v3645 = vpop.f32.mrf.mxu0
        %3646 = vdwg.mxu0
        %v3647 = vmax.f32 %v3639, 0.0
        %v3648 = vmax.f32 %v3644, 0.0
        %3649 = vmatprep.subr.mxu0 0.0
        %3650 = vmatpush1.msra.mxu0 0.0
        %3651 = vmatprep.subr.mxu0 0.0
        %3652 = vmatpush1.msra.mxu0 0.0
        %3653 = vmatprep.subr.mxu0 0.0
        %3654 = vmatpush1.msra.mxu0 0.0
        %3655 = vmatprep.subr.mxu0 0.0
        %3656 = vmatpush1.msra.mxu0 0.0
        %3657 = vmatprep.subr.mxu0 0.0
        %3658 = vmatpush1.msra.mxu0 0.0
        %3659 = vmatprep.subr.mxu0 0.0
        %3660 = vmatpush1.msra.mxu0 0.0
        %3661 = vmatprep.subr.mxu0 0.0
        %3662 = vmatpush1.msra.mxu0 0.0
        %3663 = vmatprep.subr.mxu0 0.0
        %3664 = vmatpush1.msra.mxu0 0.0
        %3665 = vmatprep.subr.mxu0 0.0
        %3666 = vmatpush1.msra.mxu0 0.0
        %3667 = vmatprep.subr.mxu0 0.0
        %3668 = vmatpush1.msra.mxu0 0.0
        %3669 = vmatprep.subr.mxu0 0.0
        %3670 = vmatpush1.msra.mxu0 0.0
        %3671 = vmatprep.subr.mxu0 0.0
        %3672 = vmatpush1.msra.mxu0 %v3082
        %3673 = vmatprep.subr.mxu0 0.0
        %3674 = vmatpush1.msra.mxu0 %v3081
        %3675 = vmatprep.subr.mxu0 0.0
        %3676 = vmatpush1.msra.mxu0 %v3080
        %3677 = vmatprep.subr.mxu0 0.0
        %3678 = vmatpush1.msra.mxu0 %v3079
        %3679 = vmatprep.subr.mxu0 0.0
        %3680 = vmatpush1.msra.mxu0 %v3078
        %3681 = vmatprep.subr.mxu0 0.0
        %3682 = vmatpush2.msra.mxu0 0.0
        %3683 = vmatprep.subr.mxu0 0.0
        %3684 = vmatpush2.msra.mxu0 0.0
        %3685 = vmatprep.subr.mxu0 0.0
        %3686 = vmatpush2.msra.mxu0 0.0
        %3687 = vmatprep.subr.mxu0 0.0
        %3688 = vmatpush2.msra.mxu0 0.0
        %3689 = vmatprep.subr.mxu0 0.0
        %3690 = vmatpush2.msra.mxu0 0.0
        %3691 = vmatprep.subr.mxu0 0.0
        %3692 = vmatpush2.msra.mxu0 0.0
        %3693 = vmatprep.subr.mxu0 0.0
        %3694 = vmatpush2.msra.mxu0 0.0
        %3695 = vmatprep.subr.mxu0 0.0
        %3696 = vmatpush2.msra.mxu0 0.0
        %3697 = vmatprep.subr.mxu0 0.0
        %3698 = vmatpush2.msra.mxu0 0.0
        %3699 = vmatprep.subr.mxu0 0.0
        %3700 = vmatpush2.msra.mxu0 0.0
        %3701 = vmatprep.subr.mxu0 0.0
        %3702 = vmatpush2.msra.mxu0 0.0
        %3703 = vmatprep.subr.mxu0 0.0
        %3704 = vmatpush2.msra.mxu0 0.0
        %3705 = vmatprep.subr.mxu0 0.0
        %3706 = vmatpush2.msra.mxu0 0.0
        %3707 = vmatprep.subr.mxu0 0.0
        %3708 = vmatpush2.msra.mxu0 0.0
        %3709 = vmatprep.subr.mxu0 0.0
        %3710 = vmatpush2.msra.mxu0 0.0
        %3711 = vmatprep.subr.mxu0 0.0
        %3712 = vmatpush2.msra.mxu0 0.0
        %3713 = vmatprep.mubr.f32.mxu0 0.0
        %3714 = vmatmul.mubr.f32.gmra.mxu0 %v3105
        %v3715 = vpop.f32.mrf.mxu0
        %v3716 = vadd.f32 %v3096, %v3715
        %v3717 = vpop.f32.mrf.mxu0
        %3718 = vmatprep.mubr.f32.mxu0 0.0
        %3719 = vmatmul.mubr.f32.gmra.mxu0 %v3108
        %v3720 = vpop.f32.mrf.mxu0
        %v3721 = vadd.f32 %v3101, %v3720
        %v3722 = vpop.f32.mrf.mxu0
        %3723 = vdwg.mxu0
        %v3724 = vmax.f32 %v3716, 0.0
        %v3725 = vmax.f32 %v3721, 0.0
        %3726 = vmatprep.subr.mxu0 0.0
        %3727 = vmatpush1.msra.mxu0 0.0
        %3728 = vmatprep.subr.mxu0 0.0
        %3729 = vmatpush1.msra.mxu0 0.0
        %3730 = vmatprep.subr.mxu0 0.0
        %3731 = vmatpush1.msra.mxu0 0.0
        %3732 = vmatprep.subr.mxu0 0.0
        %3733 = vmatpush1.msra.mxu0 0.0
        %3734 = vmatprep.subr.mxu0 0.0
        %3735 = vmatpush1.msra.mxu0 0.0
        %3736 = vmatprep.subr.mxu0 0.0
        %3737 = vmatpush1.msra.mxu0 0.0
        %3738 = vmatprep.subr.mxu0 0.0
        %3739 = vmatpush1.msra.mxu0 0.0
        %3740 = vmatprep.subr.mxu0 0.0
        %3741 = vmatpush1.msra.mxu0 0.0
        %3742 = vmatprep.subr.mxu0 0.0
        %3743 = vmatpush1.msra.mxu0 0.0
        %3744 = vmatprep.subr.mxu0 0.0
        %3745 = vmatpush1.msra.mxu0 0.0
        %3746 = vmatprep.subr.mxu0 0.0
        %3747 = vmatpush1.msra.mxu0 0.0
        %3748 = vmatprep.subr.mxu0 0.0
        %3749 = vmatpush1.msra.mxu0 %v3083
        %3750 = vmatprep.subr.mxu0 0.0
        %3751 = vmatpush1.msra.mxu0 %v3082
        %3752 = vmatprep.subr.mxu0 0.0
        %3753 = vmatpush1.msra.mxu0 %v3081
        %3754 = vmatprep.subr.mxu0 0.0
        %3755 = vmatpush1.msra.mxu0 %v3080
        %3756 = vmatprep.subr.mxu0 0.0
        %3757 = vmatpush1.msra.mxu0 %v3079
        %3758 = vmatprep.subr.mxu0 0.0
        %3759 = vmatpush2.msra.mxu0 0.0
        %3760 = vmatprep.subr.mxu0 0.0
        %3761 = vmatpush2.msra.mxu0 0.0
        %3762 = vmatprep.subr.mxu0 0.0
        %3763 = vmatpush2.msra.mxu0 0.0
        %3764 = vmatprep.subr.mxu0 0.0
        %3765 = vmatpush2.msra.mxu0 0.0
        %3766 = vmatprep.subr.mxu0 0.0
        %3767 = vmatpush2.msra.mxu0 0.0
        %3768 = vmatprep.subr.mxu0 0.0
        %3769 = vmatpush2.msra.mxu0 0.0
        %3770 = vmatprep.subr.mxu0 0.0
        %3771 = vmatpush2.msra.mxu0 0.0
        %3772 = vmatprep.subr.mxu0 0.0
        %3773 = vmatpush2.msra.mxu0 0.0
        %3774 = vmatprep.subr.mxu0 0.0
        %3775 = vmatpush2.msra.mxu0 0.0
        %3776 = vmatprep.subr.mxu0 0.0
        %3777 = vmatpush2.msra.mxu0 0.0
        %3778 = vmatprep.subr.mxu0 0.0
        %3779 = vmatpush2.msra.mxu0 0.0
        %3780 = vmatprep.subr.mxu0 0.0
        %3781 = vmatpush2.msra.mxu0 0.0
        %3782 = vmatprep.subr.mxu0 0.0
        %3783 = vmatpush2.msra.mxu0 0.0
        %3784 = vmatprep.subr.mxu0 0.0
        %3785 = vmatpush2.msra.mxu0 0.0
        %3786 = vmatprep.subr.mxu0 0.0
        %3787 = vmatpush2.msra.mxu0 0.0
        %3788 = vmatprep.subr.mxu0 0.0
        %3789 = vmatpush2.msra.mxu0 0.0
        %3790 = vmatprep.mubr.f32.mxu0 0.0
        %3791 = vmatmul.mubr.f32.gmra.mxu0 %v3105
        %v3792 = vpop.f32.mrf.mxu0
        %v3793 = vadd.f32 %v3096, %v3792
        %v3794 = vpop.f32.mrf.mxu0
        %3795 = vmatprep.mubr.f32.mxu0 0.0
        %3796 = vmatmul.mubr.f32.gmra.mxu0 %v3108
        %v3797 = vpop.f32.mrf.mxu0
        %v3798 = vadd.f32 %v3101, %v3797
        %v3799 = vpop.f32.mrf.mxu0
        %3800 = vdwg.mxu0
        %v3801 = vmax.f32 %v3793, 0.0
        %v3802 = vmax.f32 %v3798, 0.0
        %3803 = vmatprep.subr.mxu0 0.0
        %3804 = vmatpush1.msra.mxu0 0.0
        %3805 = vmatprep.subr.mxu0 0.0
        %3806 = vmatpush1.msra.mxu0 0.0
        %3807 = vmatprep.subr.mxu0 0.0
        %3808 = vmatpush1.msra.mxu0 0.0
        %3809 = vmatprep.subr.mxu0 0.0
        %3810 = vmatpush1.msra.mxu0 0.0
        %3811 = vmatprep.subr.mxu0 0.0
        %3812 = vmatpush1.msra.mxu0 0.0
        %3813 = vmatprep.subr.mxu0 0.0
        %3814 = vmatpush1.msra.mxu0 0.0
        %3815 = vmatprep.subr.mxu0 0.0
        %3816 = vmatpush1.msra.mxu0 0.0
        %3817 = vmatprep.subr.mxu0 0.0
        %3818 = vmatpush1.msra.mxu0 0.0
        %3819 = vmatprep.subr.mxu0 0.0
        %3820 = vmatpush1.msra.mxu0 0.0
        %3821 = vmatprep.subr.mxu0 0.0
        %3822 = vmatpush1.msra.mxu0 0.0
        %3823 = vmatprep.subr.mxu0 0.0
        %3824 = vmatpush1.msra.mxu0 0.0
        %3825 = vmatprep.subr.mxu0 0.0
        %3826 = vmatpush1.msra.mxu0 %v3084
        %3827 = vmatprep.subr.mxu0 0.0
        %3828 = vmatpush1.msra.mxu0 %v3083
        %3829 = vmatprep.subr.mxu0 0.0
        %3830 = vmatpush1.msra.mxu0 %v3082
        %3831 = vmatprep.subr.mxu0 0.0
        %3832 = vmatpush1.msra.mxu0 %v3081
        %3833 = vmatprep.subr.mxu0 0.0
        %3834 = vmatpush1.msra.mxu0 %v3080
        %3835 = vmatprep.subr.mxu0 0.0
        %3836 = vmatpush2.msra.mxu0 0.0
        %3837 = vmatprep.subr.mxu0 0.0
        %3838 = vmatpush2.msra.mxu0 0.0
        %3839 = vmatprep.subr.mxu0 0.0
        %3840 = vmatpush2.msra.mxu0 0.0
        %3841 = vmatprep.subr.mxu0 0.0
        %3842 = vmatpush2.msra.mxu0 0.0
        %3843 = vmatprep.subr.mxu0 0.0
        %3844 = vmatpush2.msra.mxu0 0.0
        %3845 = vmatprep.subr.mxu0 0.0
        %3846 = vmatpush2.msra.mxu0 0.0
        %3847 = vmatprep.subr.mxu0 0.0
        %3848 = vmatpush2.msra.mxu0 0.0
        %3849 = vmatprep.subr.mxu0 0.0
        %3850 = vmatpush2.msra.mxu0 0.0
        %3851 = vmatprep.subr.mxu0 0.0
        %3852 = vmatpush2.msra.mxu0 0.0
        %3853 = vmatprep.subr.mxu0 0.0
        %3854 = vmatpush2.msra.mxu0 0.0
        %3855 = vmatprep.subr.mxu0 0.0
        %3856 = vmatpush2.msra.mxu0 0.0
        %3857 = vmatprep.subr.mxu0 0.0
        %3858 = vmatpush2.msra.mxu0 0.0
        %3859 = vmatprep.subr.mxu0 0.0
        %3860 = vmatpush2.msra.mxu0 0.0
        %3861 = vmatprep.subr.mxu0 0.0
        %3862 = vmatpush2.msra.mxu0 0.0
        %3863 = vmatprep.subr.mxu0 0.0
        %3864 = vmatpush2.msra.mxu0 0.0
        %3865 = vmatprep.subr.mxu0 0.0
        %3866 = vmatpush2.msra.mxu0 0.0
        %3867 = vmatprep.mubr.f32.mxu0 0.0
        %3868 = vmatmul.mubr.f32.gmra.mxu0 %v3105
        %v3869 = vpop.f32.mrf.mxu0
        %v3870 = vadd.f32 %v3096, %v3869
        %v3871 = vpop.f32.mrf.mxu0
        %3872 = vmatprep.mubr.f32.mxu0 0.0
        %3873 = vmatmul.mubr.f32.gmra.mxu0 %v3108
        %v3874 = vpop.f32.mrf.mxu0
        %v3875 = vadd.f32 %v3101, %v3874
        %v3876 = vpop.f32.mrf.mxu0
        %3877 = vdwg.mxu0
        %v3878 = vmax.f32 %v3870, 0.0
        %v3879 = vmax.f32 %v3875, 0.0
        %3880 = vmatprep.subr.mxu0 0.0
        %3881 = vmatpush1.msra.mxu0 0.0
        %3882 = vmatprep.subr.mxu0 0.0
        %3883 = vmatpush1.msra.mxu0 0.0
        %3884 = vmatprep.subr.mxu0 0.0
        %3885 = vmatpush1.msra.mxu0 0.0
        %3886 = vmatprep.subr.mxu0 0.0
        %3887 = vmatpush1.msra.mxu0 0.0
        %3888 = vmatprep.subr.mxu0 0.0
        %3889 = vmatpush1.msra.mxu0 0.0
        %3890 = vmatprep.subr.mxu0 0.0
        %3891 = vmatpush1.msra.mxu0 0.0
        %3892 = vmatprep.subr.mxu0 0.0
        %3893 = vmatpush1.msra.mxu0 0.0
        %3894 = vmatprep.subr.mxu0 0.0
        %3895 = vmatpush1.msra.mxu0 0.0
        %3896 = vmatprep.subr.mxu0 0.0
        %3897 = vmatpush1.msra.mxu0 0.0
        %3898 = vmatprep.subr.mxu0 0.0
        %3899 = vmatpush1.msra.mxu0 0.0
        %3900 = vmatprep.subr.mxu0 0.0
        %3901 = vmatpush1.msra.mxu0 0.0
        %3902 = vmatprep.subr.mxu0 0.0
        %3903 = vmatpush1.msra.mxu0 %v3085
        %3904 = vmatprep.subr.mxu0 0.0
        %3905 = vmatpush1.msra.mxu0 %v3084
        %3906 = vmatprep.subr.mxu0 0.0
        %3907 = vmatpush1.msra.mxu0 %v3083
        %3908 = vmatprep.subr.mxu0 0.0
        %3909 = vmatpush1.msra.mxu0 %v3082
        %3910 = vmatprep.subr.mxu0 0.0
        %3911 = vmatpush1.msra.mxu0 %v3081
        %3912 = vmatprep.subr.mxu0 0.0
        %3913 = vmatpush2.msra.mxu0 0.0
        %3914 = vmatprep.subr.mxu0 0.0
        %3915 = vmatpush2.msra.mxu0 0.0
        %3916 = vmatprep.subr.mxu0 0.0
        %3917 = vmatpush2.msra.mxu0 0.0
        %3918 = vmatprep.subr.mxu0 0.0
        %3919 = vmatpush2.msra.mxu0 0.0
        %3920 = vmatprep.subr.mxu0 0.0
        %3921 = vmatpush2.msra.mxu0 0.0
        %3922 = vmatprep.subr.mxu0 0.0
        %3923 = vmatpush2.msra.mxu0 0.0
        %3924 = vmatprep.subr.mxu0 0.0
        %3925 = vmatpush2.msra.mxu0 0.0
        %3926 = vmatprep.subr.mxu0 0.0
        %3927 = vmatpush2.msra.mxu0 0.0
        %3928 = vmatprep.subr.mxu0 0.0
        %3929 = vmatpush2.msra.mxu0 0.0
        %3930 = vmatprep.subr.mxu0 0.0
        %3931 = vmatpush2.msra.mxu0 0.0
        %3932 = vmatprep.subr.mxu0 0.0
        %3933 = vmatpush2.msra.mxu0 0.0
        %3934 = vmatprep.subr.mxu0 0.0
        %3935 = vmatpush2.msra.mxu0 0.0
        %3936 = vmatprep.subr.mxu0 0.0
        %3937 = vmatpush2.msra.mxu0 0.0
        %3938 = vmatprep.subr.mxu0 0.0
        %3939 = vmatpush2.msra.mxu0 0.0
        %3940 = vmatprep.subr.mxu0 0.0
        %3941 = vmatpush2.msra.mxu0 0.0
        %3942 = vmatprep.subr.mxu0 0.0
        %3943 = vmatpush2.msra.mxu0 0.0
        %3944 = vmatprep.mubr.f32.mxu0 0.0
        %3945 = vmatmul.mubr.f32.gmra.mxu0 %v3105
        %v3946 = vpop.f32.mrf.mxu0
        %v3947 = vadd.f32 %v3096, %v3946
        %v3948 = vpop.f32.mrf.mxu0
        %3949 = vmatprep.mubr.f32.mxu0 0.0
        %3950 = vmatmul.mubr.f32.gmra.mxu0 %v3108
        %v3951 = vpop.f32.mrf.mxu0
        %v3952 = vadd.f32 %v3101, %v3951
        %v3953 = vpop.f32.mrf.mxu0
        %3954 = vdwg.mxu0
        %v3955 = vmax.f32 %v3947, 0.0
        %v3956 = vmax.f32 %v3952, 0.0
        %3957 = vmatprep.subr.mxu0 0.0
        %3958 = vmatpush1.msra.mxu0 0.0
        %3959 = vmatprep.subr.mxu0 0.0
        %3960 = vmatpush1.msra.mxu0 0.0
        %3961 = vmatprep.subr.mxu0 0.0
        %3962 = vmatpush1.msra.mxu0 0.0
        %3963 = vmatprep.subr.mxu0 0.0
        %3964 = vmatpush1.msra.mxu0 0.0
        %3965 = vmatprep.subr.mxu0 0.0
        %3966 = vmatpush1.msra.mxu0 0.0
        %3967 = vmatprep.subr.mxu0 0.0
        %3968 = vmatpush1.msra.mxu0 0.0
        %3969 = vmatprep.subr.mxu0 0.0
        %3970 = vmatpush1.msra.mxu0 0.0
        %3971 = vmatprep.subr.mxu0 0.0
        %3972 = vmatpush1.msra.mxu0 0.0
        %3973 = vmatprep.subr.mxu0 0.0
        %3974 = vmatpush1.msra.mxu0 0.0
        %3975 = vmatprep.subr.mxu0 0.0
        %3976 = vmatpush1.msra.mxu0 0.0
        %3977 = vmatprep.subr.mxu0 0.0
        %3978 = vmatpush1.msra.mxu0 0.0
        %3979 = vmatprep.subr.mxu0 0.0
        %3980 = vmatpush1.msra.mxu0 %v3086
        %3981 = vmatprep.subr.mxu0 0.0
        %3982 = vmatpush1.msra.mxu0 %v3085
        %3983 = vmatprep.subr.mxu0 0.0
        %3984 = vmatpush1.msra.mxu0 %v3084
        %3985 = vmatprep.subr.mxu0 0.0
        %3986 = vmatpush1.msra.mxu0 %v3083
        %3987 = vmatprep.subr.mxu0 0.0
        %3988 = vmatpush1.msra.mxu0 %v3082
        %3989 = vmatprep.subr.mxu0 0.0
        %3990 = vmatpush2.msra.mxu0 0.0
        %3991 = vmatprep.subr.mxu0 0.0
        %3992 = vmatpush2.msra.mxu0 0.0
        %3993 = vmatprep.subr.mxu0 0.0
        %3994 = vmatpush2.msra.mxu0 0.0
        %3995 = vmatprep.subr.mxu0 0.0
        %3996 = vmatpush2.msra.mxu0 0.0
        %3997 = vmatprep.subr.mxu0 0.0
        %3998 = vmatpush2.msra.mxu0 0.0
        %3999 = vmatprep.subr.mxu0 0.0
        %4000 = vmatpush2.msra.mxu0 0.0
        %4001 = vmatprep.subr.mxu0 0.0
        %4002 = vmatpush2.msra.mxu0 0.0
        %4003 = vmatprep.subr.mxu0 0.0
        %4004 = vmatpush2.msra.mxu0 0.0
        %4005 = vmatprep.subr.mxu0 0.0
        %4006 = vmatpush2.msra.mxu0 0.0
        %4007 = vmatprep.subr.mxu0 0.0
        %4008 = vmatpush2.msra.mxu0 0.0
        %4009 = vmatprep.subr.mxu0 0.0
        %4010 = vmatpush2.msra.mxu0 0.0
        %4011 = vmatprep.subr.mxu0 0.0
        %4012 = vmatpush2.msra.mxu0 0.0
        %4013 = vmatprep.subr.mxu0 0.0
        %4014 = vmatpush2.msra.mxu0 0.0
        %4015 = vmatprep.subr.mxu0 0.0
        %4016 = vmatpush2.msra.mxu0 0.0
        %4017 = vmatprep.subr.mxu0 0.0
        %4018 = vmatpush2.msra.mxu0 0.0
        %4019 = vmatprep.subr.mxu0 0.0
        %4020 = vmatpush2.msra.mxu0 0.0
        %4021 = vmatprep.mubr.f32.mxu0 0.0
        %4022 = vmatmul.mubr.f32.gmra.mxu0 %v3105
        %v4023 = vpop.f32.mrf.mxu0
        %v4024 = vadd.f32 %v3096, %v4023
        %v4025 = vpop.f32.mrf.mxu0
        %4026 = vmatprep.mubr.f32.mxu0 0.0
        %4027 = vmatmul.mubr.f32.gmra.mxu0 %v3108
        %v4028 = vpop.f32.mrf.mxu0
        %v4029 = vadd.f32 %v3101, %v4028
        %v4030 = vpop.f32.mrf.mxu0
        %4031 = vdwg.mxu0
        %v4032 = vmax.f32 %v4024, 0.0
        %v4033 = vmax.f32 %v4029, 0.0
        %4034 = vmatprep.subr.mxu0 0.0
        %4035 = vmatpush1.msra.mxu0 0.0
        %4036 = vmatprep.subr.mxu0 0.0
        %4037 = vmatpush1.msra.mxu0 0.0
        %4038 = vmatprep.subr.mxu0 0.0
        %4039 = vmatpush1.msra.mxu0 0.0
        %4040 = vmatprep.subr.mxu0 0.0
        %4041 = vmatpush1.msra.mxu0 0.0
        %4042 = vmatprep.subr.mxu0 0.0
        %4043 = vmatpush1.msra.mxu0 0.0
        %4044 = vmatprep.subr.mxu0 0.0
        %4045 = vmatpush1.msra.mxu0 0.0
        %4046 = vmatprep.subr.mxu0 0.0
        %4047 = vmatpush1.msra.mxu0 0.0
        %4048 = vmatprep.subr.mxu0 0.0
        %4049 = vmatpush1.msra.mxu0 0.0
        %4050 = vmatprep.subr.mxu0 0.0
        %4051 = vmatpush1.msra.mxu0 0.0
        %4052 = vmatprep.subr.mxu0 0.0
        %4053 = vmatpush1.msra.mxu0 0.0
        %4054 = vmatprep.subr.mxu0 0.0
        %4055 = vmatpush1.msra.mxu0 0.0
        %4056 = vmatprep.subr.mxu0 0.0
        %4057 = vmatpush1.msra.mxu0 %v3087
        %4058 = vmatprep.subr.mxu0 0.0
        %4059 = vmatpush1.msra.mxu0 %v3086
        %4060 = vmatprep.subr.mxu0 0.0
        %4061 = vmatpush1.msra.mxu0 %v3085
        %4062 = vmatprep.subr.mxu0 0.0
        %4063 = vmatpush1.msra.mxu0 %v3084
        %4064 = vmatprep.subr.mxu0 0.0
        %4065 = vmatpush1.msra.mxu0 %v3083
        %4066 = vmatprep.subr.mxu0 0.0
        %4067 = vmatpush2.msra.mxu0 0.0
        %4068 = vmatprep.subr.mxu0 0.0
        %4069 = vmatpush2.msra.mxu0 0.0
        %4070 = vmatprep.subr.mxu0 0.0
        %4071 = vmatpush2.msra.mxu0 0.0
        %4072 = vmatprep.subr.mxu0 0.0
        %4073 = vmatpush2.msra.mxu0 0.0
        %4074 = vmatprep.subr.mxu0 0.0
        %4075 = vmatpush2.msra.mxu0 0.0
        %4076 = vmatprep.subr.mxu0 0.0
        %4077 = vmatpush2.msra.mxu0 0.0
        %4078 = vmatprep.subr.mxu0 0.0
        %4079 = vmatpush2.msra.mxu0 0.0
        %4080 = vmatprep.subr.mxu0 0.0
        %4081 = vmatpush2.msra.mxu0 0.0
        %4082 = vmatprep.subr.mxu0 0.0
        %4083 = vmatpush2.msra.mxu0 0.0
        %4084 = vmatprep.subr.mxu0 0.0
        %4085 = vmatpush2.msra.mxu0 0.0
        %4086 = vmatprep.subr.mxu0 0.0
        %4087 = vmatpush2.msra.mxu0 0.0
        %4088 = vmatprep.subr.mxu0 0.0
        %4089 = vmatpush2.msra.mxu0 0.0
        %4090 = vmatprep.subr.mxu0 0.0
        %4091 = vmatpush2.msra.mxu0 0.0
        %4092 = vmatprep.subr.mxu0 0.0
        %4093 = vmatpush2.msra.mxu0 0.0
        %4094 = vmatprep.subr.mxu0 0.0
        %4095 = vmatpush2.msra.mxu0 0.0
        %4096 = vmatprep.subr.mxu0 0.0
        %4097 = vmatpush2.msra.mxu0 0.0
        %4098 = vmatprep.mubr.f32.mxu0 0.0
        %4099 = vmatmul.mubr.f32.gmra.mxu0 %v3105
        %v4100 = vpop.f32.mrf.mxu0
        %v4101 = vadd.f32 %v3096, %v4100
        %v4102 = vpop.f32.mrf.mxu0
        %4103 = vmatprep.mubr.f32.mxu0 0.0
        %4104 = vmatmul.mubr.f32.gmra.mxu0 %v3108
        %v4105 = vpop.f32.mrf.mxu0
        %v4106 = vadd.f32 %v3101, %v4105
        %v4107 = vpop.f32.mrf.mxu0
        %4108 = vdwg.mxu0
        %v4109 = vmax.f32 %v4101, 0.0
        %v4110 = vmax.f32 %v4106, 0.0
        %4111 = vmatprep.subr.mxu0 0.0
        %4112 = vmatpush1.msra.mxu0 0.0
        %4113 = vmatprep.subr.mxu0 0.0
        %4114 = vmatpush1.msra.mxu0 0.0
        %4115 = vmatprep.subr.mxu0 0.0
        %4116 = vmatpush1.msra.mxu0 0.0
        %4117 = vmatprep.subr.mxu0 0.0
        %4118 = vmatpush1.msra.mxu0 0.0
        %4119 = vmatprep.subr.mxu0 0.0
        %4120 = vmatpush1.msra.mxu0 0.0
        %4121 = vmatprep.subr.mxu0 0.0
        %4122 = vmatpush1.msra.mxu0 0.0
        %4123 = vmatprep.subr.mxu0 0.0
        %4124 = vmatpush1.msra.mxu0 0.0
        %4125 = vmatprep.subr.mxu0 0.0
        %4126 = vmatpush1.msra.mxu0 0.0
        %4127 = vmatprep.subr.mxu0 0.0
        %4128 = vmatpush1.msra.mxu0 0.0
        %4129 = vmatprep.subr.mxu0 0.0
        %4130 = vmatpush1.msra.mxu0 0.0
        %4131 = vmatprep.subr.mxu0 0.0
        %4132 = vmatpush1.msra.mxu0 0.0
        %4133 = vmatprep.subr.mxu0 0.0
        %4134 = vmatpush1.msra.mxu0 %v3088
        %4135 = vmatprep.subr.mxu0 0.0
        %4136 = vmatpush1.msra.mxu0 %v3087
        %4137 = vmatprep.subr.mxu0 0.0
        %4138 = vmatpush1.msra.mxu0 %v3086
        %4139 = vmatprep.subr.mxu0 0.0
        %4140 = vmatpush1.msra.mxu0 %v3085
        %4141 = vmatprep.subr.mxu0 0.0
        %4142 = vmatpush1.msra.mxu0 %v3084
        %4143 = vmatprep.subr.mxu0 0.0
        %4144 = vmatpush2.msra.mxu0 0.0
        %4145 = vmatprep.subr.mxu0 0.0
        %4146 = vmatpush2.msra.mxu0 0.0
        %4147 = vmatprep.subr.mxu0 0.0
        %4148 = vmatpush2.msra.mxu0 0.0
        %4149 = vmatprep.subr.mxu0 0.0
        %4150 = vmatpush2.msra.mxu0 0.0
        %4151 = vmatprep.subr.mxu0 0.0
        %4152 = vmatpush2.msra.mxu0 0.0
        %4153 = vmatprep.subr.mxu0 0.0
        %4154 = vmatpush2.msra.mxu0 0.0
        %4155 = vmatprep.subr.mxu0 0.0
        %4156 = vmatpush2.msra.mxu0 0.0
        %4157 = vmatprep.subr.mxu0 0.0
        %4158 = vmatpush2.msra.mxu0 0.0
        %4159 = vmatprep.subr.mxu0 0.0
        %4160 = vmatpush2.msra.mxu0 0.0
        %4161 = vmatprep.subr.mxu0 0.0
        %4162 = vmatpush2.msra.mxu0 0.0
        %4163 = vmatprep.subr.mxu0 0.0
        %4164 = vmatpush2.msra.mxu0 0.0
        %4165 = vmatprep.subr.mxu0 0.0
        %4166 = vmatpush2.msra.mxu0 0.0
        %4167 = vmatprep.subr.mxu0 0.0
        %4168 = vmatpush2.msra.mxu0 0.0
        %4169 = vmatprep.subr.mxu0 0.0
        %4170 = vmatpush2.msra.mxu0 0.0
        %4171 = vmatprep.subr.mxu0 0.0
        %4172 = vmatpush2.msra.mxu0 0.0
        %4173 = vmatprep.subr.mxu0 0.0
        %4174 = vmatpush2.msra.mxu0 0.0
        %4175 = vmatprep.mubr.f32.mxu0 0.0
        %4176 = vmatmul.mubr.f32.gmra.mxu0 %v3105
        %v4177 = vpop.f32.mrf.mxu0
        %v4178 = vadd.f32 %v3096, %v4177
        %v4179 = vpop.f32.mrf.mxu0
        %4180 = vmatprep.mubr.f32.mxu0 0.0
        %4181 = vmatmul.mubr.f32.gmra.mxu0 %v3108
        %v4182 = vpop.f32.mrf.mxu0
        %v4183 = vadd.f32 %v3101, %v4182
        %v4184 = vpop.f32.mrf.mxu0
        %4185 = vdwg.mxu0
        %v4186 = vmax.f32 %v4178, 0.0
        %v4187 = vmax.f32 %v4183, 0.0
        %4188 = vmatprep.subr.mxu0 0.0
        %4189 = vmatpush1.msra.mxu0 0.0
        %4190 = vmatprep.subr.mxu0 0.0
        %4191 = vmatpush1.msra.mxu0 0.0
        %4192 = vmatprep.subr.mxu0 0.0
        %4193 = vmatpush1.msra.mxu0 0.0
        %4194 = vmatprep.subr.mxu0 0.0
        %4195 = vmatpush1.msra.mxu0 0.0
        %4196 = vmatprep.subr.mxu0 0.0
        %4197 = vmatpush1.msra.mxu0 0.0
        %4198 = vmatprep.subr.mxu0 0.0
        %4199 = vmatpush1.msra.mxu0 0.0
        %4200 = vmatprep.subr.mxu0 0.0
        %4201 = vmatpush1.msra.mxu0 0.0
        %4202 = vmatprep.subr.mxu0 0.0
        %4203 = vmatpush1.msra.mxu0 0.0
        %4204 = vmatprep.subr.mxu0 0.0
        %4205 = vmatpush1.msra.mxu0 0.0
        %4206 = vmatprep.subr.mxu0 0.0
        %4207 = vmatpush1.msra.mxu0 0.0
        %4208 = vmatprep.subr.mxu0 0.0
        %4209 = vmatpush1.msra.mxu0 0.0
        %4210 = vmatprep.subr.mxu0 0.0
        %4211 = vmatpush1.msra.mxu0 0.0
        %4212 = vmatprep.subr.mxu0 0.0
        %4213 = vmatpush1.msra.mxu0 %v3088
        %4214 = vmatprep.subr.mxu0 0.0
        %4215 = vmatpush1.msra.mxu0 %v3087
        %4216 = vmatprep.subr.mxu0 0.0
        %4217 = vmatpush1.msra.mxu0 %v3086
        %4218 = vmatprep.subr.mxu0 0.0
        %4219 = vmatpush1.msra.mxu0 %v3085
        %4220 = vmatprep.subr.mxu0 0.0
        %4221 = vmatpush2.msra.mxu0 0.0
        %4222 = vmatprep.subr.mxu0 0.0
        %4223 = vmatpush2.msra.mxu0 0.0
        %4224 = vmatprep.subr.mxu0 0.0
        %4225 = vmatpush2.msra.mxu0 0.0
        %4226 = vmatprep.subr.mxu0 0.0
        %4227 = vmatpush2.msra.mxu0 0.0
        %4228 = vmatprep.subr.mxu0 0.0
        %4229 = vmatpush2.msra.mxu0 0.0
        %4230 = vmatprep.subr.mxu0 0.0
        %4231 = vmatpush2.msra.mxu0 0.0
        %4232 = vmatprep.subr.mxu0 0.0
        %4233 = vmatpush2.msra.mxu0 0.0
        %4234 = vmatprep.subr.mxu0 0.0
        %4235 = vmatpush2.msra.mxu0 0.0
        %4236 = vmatprep.subr.mxu0 0.0
        %4237 = vmatpush2.msra.mxu0 0.0
        %4238 = vmatprep.subr.mxu0 0.0
        %4239 = vmatpush2.msra.mxu0 0.0
        %4240 = vmatprep.subr.mxu0 0.0
        %4241 = vmatpush2.msra.mxu0 0.0
        %4242 = vmatprep.subr.mxu0 0.0
        %4243 = vmatpush2.msra.mxu0 0.0
        %4244 = vmatprep.subr.mxu0 0.0
        %4245 = vmatpush2.msra.mxu0 0.0
        %4246 = vmatprep.subr.mxu0 0.0
        %4247 = vmatpush2.msra.mxu0 0.0
        %4248 = vmatprep.subr.mxu0 0.0
        %4249 = vmatpush2.msra.mxu0 0.0
        %4250 = vmatprep.subr.mxu0 0.0
        %4251 = vmatpush2.msra.mxu0 0.0
        %4252 = vmatprep.mubr.f32.mxu0 0.0
        %4253 = vmatmul.mubr.f32.gmra.mxu0 %v3105
        %v4254 = vpop.f32.mrf.mxu0
        %v4255 = vadd.f32 %v3096, %v4254
        %v4256 = vpop.f32.mrf.mxu0
        %4257 = vmatprep.mubr.f32.mxu0 0.0
        %4258 = vmatmul.mubr.f32.gmra.mxu0 %v3108
        %v4259 = vpop.f32.mrf.mxu0
        %v4260 = vadd.f32 %v3101, %v4259
        %v4261 = vpop.f32.mrf.mxu0
        %4262 = vdwg.mxu0
        %v4263 = vmax.f32 %v4255, 0.0
        %v4264 = vmax.f32 %v4260, 0.0
        %4265 = vmatprep.subr.mxu0 0.0
        %4266 = vmatpush1.msra.mxu0 0.0
        %4267 = vmatprep.subr.mxu0 0.0
        %4268 = vmatpush1.msra.mxu0 0.0
        %4269 = vmatprep.subr.mxu0 0.0
        %4270 = vmatpush1.msra.mxu0 0.0
        %4271 = vmatprep.subr.mxu0 0.0
        %4272 = vmatpush1.msra.mxu0 0.0
        %4273 = vmatprep.subr.mxu0 0.0
        %4274 = vmatpush1.msra.mxu0 0.0
        %4275 = vmatprep.subr.mxu0 0.0
        %4276 = vmatpush1.msra.mxu0 0.0
        %4277 = vmatprep.subr.mxu0 0.0
        %4278 = vmatpush1.msra.mxu0 0.0
        %4279 = vmatprep.subr.mxu0 0.0
        %4280 = vmatpush1.msra.mxu0 0.0
        %4281 = vmatprep.subr.mxu0 0.0
        %4282 = vmatpush1.msra.mxu0 0.0
        %4283 = vmatprep.subr.mxu0 0.0
        %4284 = vmatpush1.msra.mxu0 0.0
        %4285 = vmatprep.subr.mxu0 0.0
        %4286 = vmatpush1.msra.mxu0 0.0
        %4287 = vmatprep.subr.mxu0 0.0
        %4288 = vmatpush1.msra.mxu0 0.0
        %4289 = vmatprep.subr.mxu0 0.0
        %4290 = vmatpush1.msra.mxu0 0.0
        %4291 = vmatprep.subr.mxu0 0.0
        %4292 = vmatpush1.msra.mxu0 %v3088
        %4293 = vmatprep.subr.mxu0 0.0
        %4294 = vmatpush1.msra.mxu0 %v3087
        %4295 = vmatprep.subr.mxu0 0.0
        %4296 = vmatpush1.msra.mxu0 %v3086
        %4297 = vmatprep.subr.mxu0 0.0
        %4298 = vmatpush2.msra.mxu0 0.0
        %4299 = vmatprep.subr.mxu0 0.0
        %4300 = vmatpush2.msra.mxu0 0.0
        %4301 = vmatprep.subr.mxu0 0.0
        %4302 = vmatpush2.msra.mxu0 0.0
        %4303 = vmatprep.subr.mxu0 0.0
        %4304 = vmatpush2.msra.mxu0 0.0
        %4305 = vmatprep.subr.mxu0 0.0
        %4306 = vmatpush2.msra.mxu0 0.0
        %4307 = vmatprep.subr.mxu0 0.0
        %4308 = vmatpush2.msra.mxu0 0.0
        %4309 = vmatprep.subr.mxu0 0.0
        %4310 = vmatpush2.msra.mxu0 0.0
        %4311 = vmatprep.subr.mxu0 0.0
        %4312 = vmatpush2.msra.mxu0 0.0
        %4313 = vmatprep.subr.mxu0 0.0
        %4314 = vmatpush2.msra.mxu0 0.0
        %4315 = vmatprep.subr.mxu0 0.0
        %4316 = vmatpush2.msra.mxu0 0.0
        %4317 = vmatprep.subr.mxu0 0.0
        %4318 = vmatpush2.msra.mxu0 0.0
        %4319 = vmatprep.subr.mxu0 0.0
        %4320 = vmatpush2.msra.mxu0 0.0
        %4321 = vmatprep.subr.mxu0 0.0
        %4322 = vmatpush2.msra.mxu0 0.0
        %4323 = vmatprep.subr.mxu0 0.0
        %4324 = vmatpush2.msra.mxu0 0.0
        %4325 = vmatprep.subr.mxu0 0.0
        %4326 = vmatpush2.msra.mxu0 0.0
        %4327 = vmatprep.subr.mxu0 0.0
        %4328 = vmatpush2.msra.mxu0 0.0
        %4329 = vmatprep.mubr.f32.mxu0 0.0
        %4330 = vmatmul.mubr.f32.gmra.mxu0 %v3105
        %v4331 = vpop.f32.mrf.mxu0
        %v4332 = vadd.f32 %v3096, %v4331
        %v4333 = vpop.f32.mrf.mxu0
        %4334 = vmatprep.mubr.f32.mxu0 0.0
        %4335 = vmatmul.mubr.f32.gmra.mxu0 %v3108
        %v4336 = vpop.f32.mrf.mxu0
        %v4337 = vadd.f32 %v3101, %v4336
        %v4338 = vpop.f32.mrf.mxu0
        %4339 = vdwg.mxu0
        %v4340 = vmax.f32 %v4332, 0.0
        %v4341 = vmax.f32 %v4337, 0.0
        %v4342 = vmax.f32 %v3185, %v3262
        %v4343 = vmax.f32 %v3186, %v3263
        %v4344 = vmax.f32 %v3339, %v3416
        %v4345 = vmax.f32 %v3340, %v3417
        %v4346 = vmax.f32 %v3493, %v3570
        %v4347 = vmax.f32 %v3494, %v3571
        %v4348 = vmax.f32 %v3647, %v3724
        %v4349 = vmax.f32 %v3648, %v3725
        %v4350 = vmax.f32 %v3801, %v3878
        %v4351 = vmax.f32 %v3802, %v3879
        %v4352 = vmax.f32 %v3955, %v4032
        %v4353 = vmax.f32 %v3956, %v4033
        %v4354 = vmax.f32 %v4109, %v4186
        %v4355 = vmax.f32 %v4110, %v4187
        %v4356 = vmax.f32 %v4263, %v4340
        %v4357 = vmax.f32 %v4264, %v4341
        %v4358 = vld [vmem:[%s5] sm:$0xff]
        %v4359 = vld [vmem:[%s5 + $0x8] sm:$0xff]
        %v4360 = vld [vmem:[%s5 + $0x10] sm:$0xff]
        %v4361 = vld [vmem:[%s5 + $0x18] sm:$0xff]
        %v4362 = vld [vmem:[%s6] sm:$0xff]
        %v4363 = vld [vmem:[%s6 + $0x8] sm:$0xff]
        %v4364 = vld [vmem:[%s6 + $0x10] sm:$0xff]
        %v4365 = vld [vmem:[%s6 + $0x18] sm:$0xff]
        %4367 = vset.pattern.permute.xlu0 0
        %4368 = vperm.xlu0 %4367, %v4362
        %v4369 = vpop.permute.xlu0 %4368
        %4372 = vset.pattern.permute.xlu0 0
        %4373 = vperm.xlu0 %4372, %v4363
        %v4374 = vpop.permute.xlu0 %4373
        %4377 = vset.pattern.permute.xlu0 0
        %4378 = vperm.xlu0 %4377, %v4364
        %v4379 = vpop.permute.xlu0 %4378
        %4382 = vset.pattern.permute.xlu0 0
        %4383 = vperm.xlu0 %4382, %v4365
        %v4384 = vpop.permute.xlu0 %4383
        %vm4386 = vcmask 916480
        %v4388 = vsel %vm4386, %v4358, 0
        %v4391 = vsel %vm4386, %v4359, 0
        %v4394 = vsel %vm4386, %v4360, 0
        %v4397 = vsel %vm4386, %v4361, 0
        %4399 = vmatprep.subr.mxu0 0.0
        %4400 = vmatpush1.msra.mxu0 0.0
        %4401 = vmatprep.subr.mxu0 0.0
        %4402 = vmatpush1.msra.mxu0 0.0
        %4403 = vmatprep.subr.mxu0 0.0
        %4404 = vmatpush1.msra.mxu0 %v4349
        %4405 = vmatprep.subr.mxu0 0.0
        %4406 = vmatpush1.msra.mxu0 %v4348
        %4407 = vmatprep.subr.mxu0 0.0
        %4408 = vmatpush1.msra.mxu0 %v4347
        %4409 = vmatprep.subr.mxu0 0.0
        %4410 = vmatpush1.msra.mxu0 %v4346
        %4411 = vmatprep.subr.mxu0 0.0
        %4412 = vmatpush1.msra.mxu0 %v4345
        %4413 = vmatprep.subr.mxu0 0.0
        %4414 = vmatpush1.msra.mxu0 %v4344
        %4415 = vmatprep.subr.mxu0 0.0
        %4416 = vmatpush1.msra.mxu0 %v4343
        %4417 = vmatprep.subr.mxu0 0.0
        %4418 = vmatpush1.msra.mxu0 %v4342
        %4419 = vmatprep.subr.mxu0 0.0
        %4420 = vmatpush1.msra.mxu0 0.0
        %4421 = vmatprep.subr.mxu0 0.0
        %4422 = vmatpush1.msra.mxu0 0.0
        %4423 = vmatprep.subr.mxu0 0.0
        %4424 = vmatpush1.msra.mxu0 0.0
        %4425 = vmatprep.subr.mxu0 0.0
        %4426 = vmatpush1.msra.mxu0 0.0
        %4427 = vmatprep.subr.mxu0 0.0
        %4428 = vmatpush1.msra.mxu0 0.0
        %4429 = vmatprep.subr.mxu0 0.0
        %4430 = vmatpush1.msra.mxu0 0.0
        %4431 = vmatprep.subr.mxu0 0.0
        %4432 = vmatpush2.msra.mxu0 0.0
        %4433 = vmatprep.subr.mxu0 0.0
        %4434 = vmatpush2.msra.mxu0 0.0
        %4435 = vmatprep.subr.mxu0 0.0
        %4436 = vmatpush2.msra.mxu0 0.0
        %4437 = vmatprep.subr.mxu0 0.0
        %4438 = vmatpush2.msra.mxu0 0.0
        %4439 = vmatprep.subr.mxu0 0.0
        %4440 = vmatpush2.msra.mxu0 0.0
        %4441 = vmatprep.subr.mxu0 0.0
        %4442 = vmatpush2.msra.mxu0 0.0
        %4443 = vmatprep.subr.mxu0 0.0
        %4444 = vmatpush2.msra.mxu0 0.0
        %4445 = vmatprep.subr.mxu0 0.0
        %4446 = vmatpush2.msra.mxu0 0.0
        %4447 = vmatprep.subr.mxu0 0.0
        %4448 = vmatpush2.msra.mxu0 0.0
        %4449 = vmatprep.subr.mxu0 0.0
        %4450 = vmatpush2.msra.mxu0 0.0
        %4451 = vmatprep.subr.mxu0 0.0
        %4452 = vmatpush2.msra.mxu0 0.0
        %4453 = vmatprep.subr.mxu0 0.0
        %4454 = vmatpush2.msra.mxu0 0.0
        %4455 = vmatprep.subr.mxu0 0.0
        %4456 = vmatpush2.msra.mxu0 0.0
        %4457 = vmatprep.subr.mxu0 0.0
        %4458 = vmatpush2.msra.mxu0 0.0
        %4459 = vmatprep.subr.mxu0 0.0
        %4460 = vmatpush2.msra.mxu0 0.0
        %4461 = vmatprep.subr.mxu0 0.0
        %4462 = vmatpush2.msra.mxu0 0.0
        %4463 = vmatprep.mubr.f32.mxu0 0.0
        %4464 = vmatmul.mubr.f32.gmra.mxu0 %v4388
        %v4465 = vpop.f32.mrf.mxu0
        %v4466 = vadd.f32 %v4369, %v4465
        %v4467 = vpop.f32.mrf.mxu0
        %4468 = vmatprep.mubr.f32.mxu0 0.0
        %4469 = vmatmul.mubr.f32.gmra.mxu0 %v4391
        %v4470 = vpop.f32.mrf.mxu0
        %v4471 = vadd.f32 %v4374, %v4470
        %v4472 = vpop.f32.mrf.mxu0
        %4473 = vmatprep.mubr.f32.mxu0 0.0
        %4474 = vmatmul.mubr.f32.gmra.mxu0 %v4394
        %v4475 = vpop.f32.mrf.mxu0
        %v4476 = vadd.f32 %v4379, %v4475
        %v4477 = vpop.f32.mrf.mxu0
        %4478 = vmatprep.mubr.f32.mxu0 0.0
        %4479 = vmatmul.mubr.f32.gmra.mxu0 %v4397
        %v4480 = vpop.f32.mrf.mxu0
        %v4481 = vadd.f32 %v4384, %v4480
        %v4482 = vpop.f32.mrf.mxu0
        %4483 = vdwg.mxu0
        %v4484 = vmax.f32 %v4466, 0.0
        %v4485 = vmax.f32 %v4471, 0.0
        %v4486 = vmax.f32 %v4476, 0.0
        %v4487 = vmax.f32 %v4481, 0.0
        %4488 = vmatprep.subr.mxu0 0.0
        %4489 = vmatpush1.msra.mxu0 0.0
        %4490 = vmatprep.subr.mxu0 0.0
        %4491 = vmatpush1.msra.mxu0 0.0
        %4492 = vmatprep.subr.mxu0 0.0
        %4493 = vmatpush1.msra.mxu0 %v4351
        %4494 = vmatprep.subr.mxu0 0.0
        %4495 = vmatpush1.msra.mxu0 %v4350
        %4496 = vmatprep.subr.mxu0 0.0
        %4497 = vmatpush1.msra.mxu0 %v4349
        %4498 = vmatprep.subr.mxu0 0.0
        %4499 = vmatpush1.msra.mxu0 %v4348
        %4500 = vmatprep.subr.mxu0 0.0
        %4501 = vmatpush1.msra.mxu0 %v4347
        %4502 = vmatprep.subr.mxu0 0.0
        %4503 = vmatpush1.msra.mxu0 %v4346
        %4504 = vmatprep.subr.mxu0 0.0
        %4505 = vmatpush1.msra.mxu0 %v4345
        %4506 = vmatprep.subr.mxu0 0.0
        %4507 = vmatpush1.msra.mxu0 %v4344
        %4508 = vmatprep.subr.mxu0 0.0
        %4509 = vmatpush1.msra.mxu0 %v4343
        %4510 = vmatprep.subr.mxu0 0.0
        %4511 = vmatpush1.msra.mxu0 %v4342
        %4512 = vmatprep.subr.mxu0 0.0
        %4513 = vmatpush1.msra.mxu0 0.0
        %4514 = vmatprep.subr.mxu0 0.0
        %4515 = vmatpush1.msra.mxu0 0.0
        %4516 = vmatprep.subr.mxu0 0.0
        %4517 = vmatpush1.msra.mxu0 0.0
        %4518 = vmatprep.subr.mxu0 0.0
        %4519 = vmatpush1.msra.mxu0 0.0
        %4520 = vmatprep.subr.mxu0 0.0
        %4521 = vmatpush2.msra.mxu0 0.0
        %4522 = vmatprep.subr.mxu0 0.0
        %4523 = vmatpush2.msra.mxu0 0.0
        %4524 = vmatprep.subr.mxu0 0.0
        %4525 = vmatpush2.msra.mxu0 0.0
        %4526 = vmatprep.subr.mxu0 0.0
        %4527 = vmatpush2.msra.mxu0 0.0
        %4528 = vmatprep.subr.mxu0 0.0
        %4529 = vmatpush2.msra.mxu0 0.0
        %4530 = vmatprep.subr.mxu0 0.0
        %4531 = vmatpush2.msra.mxu0 0.0
        %4532 = vmatprep.subr.mxu0 0.0
        %4533 = vmatpush2.msra.mxu0 0.0
        %4534 = vmatprep.subr.mxu0 0.0
        %4535 = vmatpush2.msra.mxu0 0.0
        %4536 = vmatprep.subr.mxu0 0.0
        %4537 = vmatpush2.msra.mxu0 0.0
        %4538 = vmatprep.subr.mxu0 0.0
        %4539 = vmatpush2.msra.mxu0 0.0
        %4540 = vmatprep.subr.mxu0 0.0
        %4541 = vmatpush2.msra.mxu0 0.0
        %4542 = vmatprep.subr.mxu0 0.0
        %4543 = vmatpush2.msra.mxu0 0.0
        %4544 = vmatprep.subr.mxu0 0.0
        %4545 = vmatpush2.msra.mxu0 0.0
        %4546 = vmatprep.subr.mxu0 0.0
        %4547 = vmatpush2.msra.mxu0 0.0
        %4548 = vmatprep.subr.mxu0 0.0
        %4549 = vmatpush2.msra.mxu0 0.0
        %4550 = vmatprep.subr.mxu0 0.0
        %4551 = vmatpush2.msra.mxu0 0.0
        %4552 = vmatprep.mubr.f32.mxu0 0.0
        %4553 = vmatmul.mubr.f32.gmra.mxu0 %v4388
        %v4554 = vpop.f32.mrf.mxu0
        %v4555 = vadd.f32 %v4369, %v4554
        %v4556 = vpop.f32.mrf.mxu0
        %4557 = vmatprep.mubr.f32.mxu0 0.0
        %4558 = vmatmul.mubr.f32.gmra.mxu0 %v4391
        %v4559 = vpop.f32.mrf.mxu0
        %v4560 = vadd.f32 %v4374, %v4559
        %v4561 = vpop.f32.mrf.mxu0
        %4562 = vmatprep.mubr.f32.mxu0 0.0
        %4563 = vmatmul.mubr.f32.gmra.mxu0 %v4394
        %v4564 = vpop.f32.mrf.mxu0
        %v4565 = vadd.f32 %v4379, %v4564
        %v4566 = vpop.f32.mrf.mxu0
        %4567 = vmatprep.mubr.f32.mxu0 0.0
        %4568 = vmatmul.mubr.f32.gmra.mxu0 %v4397
        %v4569 = vpop.f32.mrf.mxu0
        %v4570 = vadd.f32 %v4384, %v4569
        %v4571 = vpop.f32.mrf.mxu0
        %4572 = vdwg.mxu0
        %v4573 = vmax.f32 %v4555, 0.0
        %v4574 = vmax.f32 %v4560, 0.0
        %v4575 = vmax.f32 %v4565, 0.0
        %v4576 = vmax.f32 %v4570, 0.0
        %4577 = vmatprep.subr.mxu0 0.0
        %4578 = vmatpush1.msra.mxu0 0.0
        %4579 = vmatprep.subr.mxu0 0.0
        %4580 = vmatpush1.msra.mxu0 0.0
        %4581 = vmatprep.subr.mxu0 0.0
        %4582 = vmatpush1.msra.mxu0 %v4353
        %4583 = vmatprep.subr.mxu0 0.0
        %4584 = vmatpush1.msra.mxu0 %v4352
        %4585 = vmatprep.subr.mxu0 0.0
        %4586 = vmatpush1.msra.mxu0 %v4351
        %4587 = vmatprep.subr.mxu0 0.0
        %4588 = vmatpush1.msra.mxu0 %v4350
        %4589 = vmatprep.subr.mxu0 0.0
        %4590 = vmatpush1.msra.mxu0 %v4349
        %4591 = vmatprep.subr.mxu0 0.0
        %4592 = vmatpush1.msra.mxu0 %v4348
        %4593 = vmatprep.subr.mxu0 0.0
        %4594 = vmatpush1.msra.mxu0 %v4347
        %4595 = vmatprep.subr.mxu0 0.0
        %4596 = vmatpush1.msra.mxu0 %v4346
        %4597 = vmatprep.subr.mxu0 0.0
        %4598 = vmatpush1.msra.mxu0 %v4345
        %4599 = vmatprep.subr.mxu0 0.0
        %4600 = vmatpush1.msra.mxu0 %v4344
        %4601 = vmatprep.subr.mxu0 0.0
        %4602 = vmatpush1.msra.mxu0 %v4343
        %4603 = vmatprep.subr.mxu0 0.0
        %4604 = vmatpush1.msra.mxu0 %v4342
        %4605 = vmatprep.subr.mxu0 0.0
        %4606 = vmatpush1.msra.mxu0 0.0
        %4607 = vmatprep.subr.mxu0 0.0
        %4608 = vmatpush1.msra.mxu0 0.0
        %4609 = vmatprep.subr.mxu0 0.0
        %4610 = vmatpush2.msra.mxu0 0.0
        %4611 = vmatprep.subr.mxu0 0.0
        %4612 = vmatpush2.msra.mxu0 0.0
        %4613 = vmatprep.subr.mxu0 0.0
        %4614 = vmatpush2.msra.mxu0 0.0
        %4615 = vmatprep.subr.mxu0 0.0
        %4616 = vmatpush2.msra.mxu0 0.0
        %4617 = vmatprep.subr.mxu0 0.0
        %4618 = vmatpush2.msra.mxu0 0.0
        %4619 = vmatprep.subr.mxu0 0.0
        %4620 = vmatpush2.msra.mxu0 0.0
        %4621 = vmatprep.subr.mxu0 0.0
        %4622 = vmatpush2.msra.mxu0 0.0
        %4623 = vmatprep.subr.mxu0 0.0
        %4624 = vmatpush2.msra.mxu0 0.0
        %4625 = vmatprep.subr.mxu0 0.0
        %4626 = vmatpush2.msra.mxu0 0.0
        %4627 = vmatprep.subr.mxu0 0.0
        %4628 = vmatpush2.msra.mxu0 0.0
        %4629 = vmatprep.subr.mxu0 0.0
        %4630 = vmatpush2.msra.mxu0 0.0
        %4631 = vmatprep.subr.mxu0 0.0
        %4632 = vmatpush2.msra.mxu0 0.0
        %4633 = vmatprep.subr.mxu0 0.0
        %4634 = vmatpush2.msra.mxu0 0.0
        %4635 = vmatprep.subr.mxu0 0.0
        %4636 = vmatpush2.msra.mxu0 0.0
        %4637 = vmatprep.subr.mxu0 0.0
        %4638 = vmatpush2.msra.mxu0 0.0
        %4639 = vmatprep.subr.mxu0 0.0
        %4640 = vmatpush2.msra.mxu0 0.0
        %4641 = vmatprep.mubr.f32.mxu0 0.0
        %4642 = vmatmul.mubr.f32.gmra.mxu0 %v4388
        %v4643 = vpop.f32.mrf.mxu0
        %v4644 = vadd.f32 %v4369, %v4643
        %v4645 = vpop.f32.mrf.mxu0
        %4646 = vmatprep.mubr.f32.mxu0 0.0
        %4647 = vmatmul.mubr.f32.gmra.mxu0 %v4391
        %v4648 = vpop.f32.mrf.mxu0
        %v4649 = vadd.f32 %v4374, %v4648
        %v4650 = vpop.f32.mrf.mxu0
        %4651 = vmatprep.mubr.f32.mxu0 0.0
        %4652 = vmatmul.mubr.f32.gmra.mxu0 %v4394
        %v4653 = vpop.f32.mrf.mxu0
        %v4654 = vadd.f32 %v4379, %v4653
        %v4655 = vpop.f32.mrf.mxu0
        %4656 = vmatprep.mubr.f32.mxu0 0.0
        %4657 = vmatmul.mubr.f32.gmra.mxu0 %v4397
        %v4658 = vpop.f32.mrf.mxu0
        %v4659 = vadd.f32 %v4384, %v4658
        %v4660 = vpop.f32.mrf.mxu0
        %4661 = vdwg.mxu0
        %v4662 = vmax.f32 %v4644, 0.0
        %v4663 = vmax.f32 %v4649, 0.0
        %v4664 = vmax.f32 %v4654, 0.0
        %v4665 = vmax.f32 %v4659, 0.0
        %4666 = vmatprep.subr.mxu0 0.0
        %4667 = vmatpush1.msra.mxu0 0.0
        %4668 = vmatprep.subr.mxu0 0.0
        %4669 = vmatpush1.msra.mxu0 0.0
        %4670 = vmatprep.subr.mxu0 0.0
        %4671 = vmatpush1.msra.mxu0 %v4355
        %4672 = vmatprep.subr.mxu0 0.0
        %4673 = vmatpush1.msra.mxu0 %v4354
        %4674 = vmatprep.subr.mxu0 0.0
        %4675 = vmatpush1.msra.mxu0 %v4353
        %4676 = vmatprep.subr.mxu0 0.0
        %4677 = vmatpush1.msra.mxu0 %v4352
        %4678 = vmatprep.subr.mxu0 0.0
        %4679 = vmatpush1.msra.mxu0 %v4351
        %4680 = vmatprep.subr.mxu0 0.0
        %4681 = vmatpush1.msra.mxu0 %v4350
        %4682 = vmatprep.subr.mxu0 0.0
        %4683 = vmatpush1.msra.mxu0 %v4349
        %4684 = vmatprep.subr.mxu0 0.0
        %4685 = vmatpush1.msra.mxu0 %v4348
        %4686 = vmatprep.subr.mxu0 0.0
        %4687 = vmatpush1.msra.mxu0 %v4347
        %4688 = vmatprep.subr.mxu0 0.0
        %4689 = vmatpush1.msra.mxu0 %v4346
        %4690 = vmatprep.subr.mxu0 0.0
        %4691 = vmatpush1.msra.mxu0 %v4345
        %4692 = vmatprep.subr.mxu0 0.0
        %4693 = vmatpush1.msra.mxu0 %v4344
        %4694 = vmatprep.subr.mxu0 0.0
        %4695 = vmatpush1.msra.mxu0 %v4343
        %4696 = vmatprep.subr.mxu0 0.0
        %4697 = vmatpush1.msra.mxu0 %v4342
        %4698 = vmatprep.subr.mxu0 0.0
        %4699 = vmatpush2.msra.mxu0 0.0
        %4700 = vmatprep.subr.mxu0 0.0
        %4701 = vmatpush2.msra.mxu0 0.0
        %4702 = vmatprep.subr.mxu0 0.0
        %4703 = vmatpush2.msra.mxu0 0.0
        %4704 = vmatprep.subr.mxu0 0.0
        %4705 = vmatpush2.msra.mxu0 0.0
        %4706 = vmatprep.subr.mxu0 0.0
        %4707 = vmatpush2.msra.mxu0 0.0
        %4708 = vmatprep.subr.mxu0 0.0
        %4709 = vmatpush2.msra.mxu0 0.0
        %4710 = vmatprep.subr.mxu0 0.0
        %4711 = vmatpush2.msra.mxu0 0.0
        %4712 = vmatprep.subr.mxu0 0.0
        %4713 = vmatpush2.msra.mxu0 0.0
        %4714 = vmatprep.subr.mxu0 0.0
        %4715 = vmatpush2.msra.mxu0 0.0
        %4716 = vmatprep.subr.mxu0 0.0
        %4717 = vmatpush2.msra.mxu0 0.0
        %4718 = vmatprep.subr.mxu0 0.0
        %4719 = vmatpush2.msra.mxu0 0.0
        %4720 = vmatprep.subr.mxu0 0.0
        %4721 = vmatpush2.msra.mxu0 0.0
        %4722 = vmatprep.subr.mxu0 0.0
        %4723 = vmatpush2.msra.mxu0 0.0
        %4724 = vmatprep.subr.mxu0 0.0
        %4725 = vmatpush2.msra.mxu0 0.0
        %4726 = vmatprep.subr.mxu0 0.0
        %4727 = vmatpush2.msra.mxu0 0.0
        %4728 = vmatprep.subr.mxu0 0.0
        %4729 = vmatpush2.msra.mxu0 0.0
        %4730 = vmatprep.mubr.f32.mxu0 0.0
        %4731 = vmatmul.mubr.f32.gmra.mxu0 %v4388
        %v4732 = vpop.f32.mrf.mxu0
        %v4733 = vadd.f32 %v4369, %v4732
        %v4734 = vpop.f32.mrf.mxu0
        %4735 = vmatprep.mubr.f32.mxu0 0.0
        %4736 = vmatmul.mubr.f32.gmra.mxu0 %v4391
        %v4737 = vpop.f32.mrf.mxu0
        %v4738 = vadd.f32 %v4374, %v4737
        %v4739 = vpop.f32.mrf.mxu0
        %4740 = vmatprep.mubr.f32.mxu0 0.0
        %4741 = vmatmul.mubr.f32.gmra.mxu0 %v4394
        %v4742 = vpop.f32.mrf.mxu0
        %v4743 = vadd.f32 %v4379, %v4742
        %v4744 = vpop.f32.mrf.mxu0
        %4745 = vmatprep.mubr.f32.mxu0 0.0
        %4746 = vmatmul.mubr.f32.gmra.mxu0 %v4397
        %v4747 = vpop.f32.mrf.mxu0
        %v4748 = vadd.f32 %v4384, %v4747
        %v4749 = vpop.f32.mrf.mxu0
        %4750 = vdwg.mxu0
        %v4751 = vmax.f32 %v4733, 0.0
        %v4752 = vmax.f32 %v4738, 0.0
        %v4753 = vmax.f32 %v4743, 0.0
        %v4754 = vmax.f32 %v4748, 0.0
        %4755 = vmatprep.subr.mxu0 0.0
        %4756 = vmatpush1.msra.mxu0 0.0
        %4757 = vmatprep.subr.mxu0 0.0
        %4758 = vmatpush1.msra.mxu0 0.0
        %4759 = vmatprep.subr.mxu0 0.0
        %4760 = vmatpush1.msra.mxu0 %v4357
        %4761 = vmatprep.subr.mxu0 0.0
        %4762 = vmatpush1.msra.mxu0 %v4356
        %4763 = vmatprep.subr.mxu0 0.0
        %4764 = vmatpush1.msra.mxu0 %v4355
        %4765 = vmatprep.subr.mxu0 0.0
        %4766 = vmatpush1.msra.mxu0 %v4354
        %4767 = vmatprep.subr.mxu0 0.0
        %4768 = vmatpush1.msra.mxu0 %v4353
        %4769 = vmatprep.subr.mxu0 0.0
        %4770 = vmatpush1.msra.mxu0 %v4352
        %4771 = vmatprep.subr.mxu0 0.0
        %4772 = vmatpush1.msra.mxu0 %v4351
        %4773 = vmatprep.subr.mxu0 0.0
        %4774 = vmatpush1.msra.mxu0 %v4350
        %4775 = vmatprep.subr.mxu0 0.0
        %4776 = vmatpush1.msra.mxu0 %v4349
        %4777 = vmatprep.subr.mxu0 0.0
        %4778 = vmatpush1.msra.mxu0 %v4348
        %4779 = vmatprep.subr.mxu0 0.0
        %4780 = vmatpush1.msra.mxu0 %v4347
        %4781 = vmatprep.subr.mxu0 0.0
        %4782 = vmatpush1.msra.mxu0 %v4346
        %4783 = vmatprep.subr.mxu0 0.0
        %4784 = vmatpush1.msra.mxu0 %v4345
        %4785 = vmatprep.subr.mxu0 0.0
        %4786 = vmatpush1.msra.mxu0 %v4344
        %4787 = vmatprep.subr.mxu0 0.0
        %4788 = vmatpush2.msra.mxu0 0.0
        %4789 = vmatprep.subr.mxu0 0.0
        %4790 = vmatpush2.msra.mxu0 0.0
        %4791 = vmatprep.subr.mxu0 0.0
        %4792 = vmatpush2.msra.mxu0 0.0
        %4793 = vmatprep.subr.mxu0 0.0
        %4794 = vmatpush2.msra.mxu0 0.0
        %4795 = vmatprep.subr.mxu0 0.0
        %4796 = vmatpush2.msra.mxu0 0.0
        %4797 = vmatprep.subr.mxu0 0.0
        %4798 = vmatpush2.msra.mxu0 0.0
        %4799 = vmatprep.subr.mxu0 0.0
        %4800 = vmatpush2.msra.mxu0 0.0
        %4801 = vmatprep.subr.mxu0 0.0
        %4802 = vmatpush2.msra.mxu0 0.0
        %4803 = vmatprep.subr.mxu0 0.0
        %4804 = vmatpush2.msra.mxu0 0.0
        %4805 = vmatprep.subr.mxu0 0.0
        %4806 = vmatpush2.msra.mxu0 0.0
        %4807 = vmatprep.subr.mxu0 0.0
        %4808 = vmatpush2.msra.mxu0 0.0
        %4809 = vmatprep.subr.mxu0 0.0
        %4810 = vmatpush2.msra.mxu0 0.0
        %4811 = vmatprep.subr.mxu0 0.0
        %4812 = vmatpush2.msra.mxu0 0.0
        %4813 = vmatprep.subr.mxu0 0.0
        %4814 = vmatpush2.msra.mxu0 0.0
        %4815 = vmatprep.subr.mxu0 0.0
        %4816 = vmatpush2.msra.mxu0 0.0
        %4817 = vmatprep.subr.mxu0 0.0
        %4818 = vmatpush2.msra.mxu0 0.0
        %4819 = vmatprep.mubr.f32.mxu0 0.0
        %4820 = vmatmul.mubr.f32.gmra.mxu0 %v4388
        %v4821 = vpop.f32.mrf.mxu0
        %v4822 = vadd.f32 %v4369, %v4821
        %v4823 = vpop.f32.mrf.mxu0
        %4824 = vmatprep.mubr.f32.mxu0 0.0
        %4825 = vmatmul.mubr.f32.gmra.mxu0 %v4391
        %v4826 = vpop.f32.mrf.mxu0
        %v4827 = vadd.f32 %v4374, %v4826
        %v4828 = vpop.f32.mrf.mxu0
        %4829 = vmatprep.mubr.f32.mxu0 0.0
        %4830 = vmatmul.mubr.f32.gmra.mxu0 %v4394
        %v4831 = vpop.f32.mrf.mxu0
        %v4832 = vadd.f32 %v4379, %v4831
        %v4833 = vpop.f32.mrf.mxu0
        %4834 = vmatprep.mubr.f32.mxu0 0.0
        %4835 = vmatmul.mubr.f32.gmra.mxu0 %v4397
        %v4836 = vpop.f32.mrf.mxu0
        %v4837 = vadd.f32 %v4384, %v4836
        %v4838 = vpop.f32.mrf.mxu0
        %4839 = vdwg.mxu0
        %v4840 = vmax.f32 %v4822, 0.0
        %v4841 = vmax.f32 %v4827, 0.0
        %v4842 = vmax.f32 %v4832, 0.0
        %v4843 = vmax.f32 %v4837, 0.0
        %4844 = vmatprep.subr.mxu0 0.0
        %4845 = vmatpush1.msra.mxu0 0.0
        %4846 = vmatprep.subr.mxu0 0.0
        %4847 = vmatpush1.msra.mxu0 0.0
        %4848 = vmatprep.subr.mxu0 0.0
        %4849 = vmatpush1.msra.mxu0 0.0
        %4850 = vmatprep.subr.mxu0 0.0
        %4851 = vmatpush1.msra.mxu0 0.0
        %4852 = vmatprep.subr.mxu0 0.0
        %4853 = vmatpush1.msra.mxu0 %v4357
        %4854 = vmatprep.subr.mxu0 0.0
        %4855 = vmatpush1.msra.mxu0 %v4356
        %4856 = vmatprep.subr.mxu0 0.0
        %4857 = vmatpush1.msra.mxu0 %v4355
        %4858 = vmatprep.subr.mxu0 0.0
        %4859 = vmatpush1.msra.mxu0 %v4354
        %4860 = vmatprep.subr.mxu0 0.0
        %4861 = vmatpush1.msra.mxu0 %v4353
        %4862 = vmatprep.subr.mxu0 0.0
        %4863 = vmatpush1.msra.mxu0 %v4352
        %4864 = vmatprep.subr.mxu0 0.0
        %4865 = vmatpush1.msra.mxu0 %v4351
        %4866 = vmatprep.subr.mxu0 0.0
        %4867 = vmatpush1.msra.mxu0 %v4350
        %4868 = vmatprep.subr.mxu0 0.0
        %4869 = vmatpush1.msra.mxu0 %v4349
        %4870 = vmatprep.subr.mxu0 0.0
        %4871 = vmatpush1.msra.mxu0 %v4348
        %4872 = vmatprep.subr.mxu0 0.0
        %4873 = vmatpush1.msra.mxu0 %v4347
        %4874 = vmatprep.subr.mxu0 0.0
        %4875 = vmatpush1.msra.mxu0 %v4346
        %4876 = vmatprep.subr.mxu0 0.0
        %4877 = vmatpush2.msra.mxu0 0.0
        %4878 = vmatprep.subr.mxu0 0.0
        %4879 = vmatpush2.msra.mxu0 0.0
        %4880 = vmatprep.subr.mxu0 0.0
        %4881 = vmatpush2.msra.mxu0 0.0
        %4882 = vmatprep.subr.mxu0 0.0
        %4883 = vmatpush2.msra.mxu0 0.0
        %4884 = vmatprep.subr.mxu0 0.0
        %4885 = vmatpush2.msra.mxu0 0.0
        %4886 = vmatprep.subr.mxu0 0.0
        %4887 = vmatpush2.msra.mxu0 0.0
        %4888 = vmatprep.subr.mxu0 0.0
        %4889 = vmatpush2.msra.mxu0 0.0
        %4890 = vmatprep.subr.mxu0 0.0
        %4891 = vmatpush2.msra.mxu0 0.0
        %4892 = vmatprep.subr.mxu0 0.0
        %4893 = vmatpush2.msra.mxu0 0.0
        %4894 = vmatprep.subr.mxu0 0.0
        %4895 = vmatpush2.msra.mxu0 0.0
        %4896 = vmatprep.subr.mxu0 0.0
        %4897 = vmatpush2.msra.mxu0 0.0
        %4898 = vmatprep.subr.mxu0 0.0
        %4899 = vmatpush2.msra.mxu0 0.0
        %4900 = vmatprep.subr.mxu0 0.0
        %4901 = vmatpush2.msra.mxu0 0.0
        %4902 = vmatprep.subr.mxu0 0.0
        %4903 = vmatpush2.msra.mxu0 0.0
        %4904 = vmatprep.subr.mxu0 0.0
        %4905 = vmatpush2.msra.mxu0 0.0
        %4906 = vmatprep.subr.mxu0 0.0
        %4907 = vmatpush2.msra.mxu0 0.0
        %4908 = vmatprep.mubr.f32.mxu0 0.0
        %4909 = vmatmul.mubr.f32.gmra.mxu0 %v4388
        %v4910 = vpop.f32.mrf.mxu0
        %v4911 = vadd.f32 %v4369, %v4910
        %v4912 = vpop.f32.mrf.mxu0
        %4913 = vmatprep.mubr.f32.mxu0 0.0
        %4914 = vmatmul.mubr.f32.gmra.mxu0 %v4391
        %v4915 = vpop.f32.mrf.mxu0
        %v4916 = vadd.f32 %v4374, %v4915
        %v4917 = vpop.f32.mrf.mxu0
        %4918 = vmatprep.mubr.f32.mxu0 0.0
        %4919 = vmatmul.mubr.f32.gmra.mxu0 %v4394
        %v4920 = vpop.f32.mrf.mxu0
        %v4921 = vadd.f32 %v4379, %v4920
        %v4922 = vpop.f32.mrf.mxu0
        %4923 = vmatprep.mubr.f32.mxu0 0.0
        %4924 = vmatmul.mubr.f32.gmra.mxu0 %v4397
        %v4925 = vpop.f32.mrf.mxu0
        %v4926 = vadd.f32 %v4384, %v4925
        %v4927 = vpop.f32.mrf.mxu0
        %4928 = vdwg.mxu0
        %v4929 = vmax.f32 %v4911, 0.0
        %v4930 = vmax.f32 %v4916, 0.0
        %v4931 = vmax.f32 %v4921, 0.0
        %v4932 = vmax.f32 %v4926, 0.0
        %4933 = vmatprep.subr.mxu0 0.0
        %4934 = vmatpush1.msra.mxu0 0.0
        %4935 = vmatprep.subr.mxu0 0.0
        %4936 = vmatpush1.msra.mxu0 0.0
        %4937 = vmatprep.subr.mxu0 0.0
        %4938 = vmatpush1.msra.mxu0 0.0
        %4939 = vmatprep.subr.mxu0 0.0
        %4940 = vmatpush1.msra.mxu0 0.0
        %4941 = vmatprep.subr.mxu0 0.0
        %4942 = vmatpush1.msra.mxu0 0.0
        %4943 = vmatprep.subr.mxu0 0.0
        %4944 = vmatpush1.msra.mxu0 0.0
        %4945 = vmatprep.subr.mxu0 0.0
        %4946 = vmatpush1.msra.mxu0 %v4357
        %4947 = vmatprep.subr.mxu0 0.0
        %4948 = vmatpush1.msra.mxu0 %v4356
        %4949 = vmatprep.subr.mxu0 0.0
        %4950 = vmatpush1.msra.mxu0 %v4355
        %4951 = vmatprep.subr.mxu0 0.0
        %4952 = vmatpush1.msra.mxu0 %v4354
        %4953 = vmatprep.subr.mxu0 0.0
        %4954 = vmatpush1.msra.mxu0 %v4353
        %4955 = vmatprep.subr.mxu0 0.0
        %4956 = vmatpush1.msra.mxu0 %v4352
        %4957 = vmatprep.subr.mxu0 0.0
        %4958 = vmatpush1.msra.mxu0 %v4351
        %4959 = vmatprep.subr.mxu0 0.0
        %4960 = vmatpush1.msra.mxu0 %v4350
        %4961 = vmatprep.subr.mxu0 0.0
        %4962 = vmatpush1.msra.mxu0 %v4349
        %4963 = vmatprep.subr.mxu0 0.0
        %4964 = vmatpush1.msra.mxu0 %v4348
        %4965 = vmatprep.subr.mxu0 0.0
        %4966 = vmatpush2.msra.mxu0 0.0
        %4967 = vmatprep.subr.mxu0 0.0
        %4968 = vmatpush2.msra.mxu0 0.0
        %4969 = vmatprep.subr.mxu0 0.0
        %4970 = vmatpush2.msra.mxu0 0.0
        %4971 = vmatprep.subr.mxu0 0.0
        %4972 = vmatpush2.msra.mxu0 0.0
        %4973 = vmatprep.subr.mxu0 0.0
        %4974 = vmatpush2.msra.mxu0 0.0
        %4975 = vmatprep.subr.mxu0 0.0
        %4976 = vmatpush2.msra.mxu0 0.0
        %4977 = vmatprep.subr.mxu0 0.0
        %4978 = vmatpush2.msra.mxu0 0.0
        %4979 = vmatprep.subr.mxu0 0.0
        %4980 = vmatpush2.msra.mxu0 0.0
        %4981 = vmatprep.subr.mxu0 0.0
        %4982 = vmatpush2.msra.mxu0 0.0
        %4983 = vmatprep.subr.mxu0 0.0
        %4984 = vmatpush2.msra.mxu0 0.0
        %4985 = vmatprep.subr.mxu0 0.0
        %4986 = vmatpush2.msra.mxu0 0.0
        %4987 = vmatprep.subr.mxu0 0.0
        %4988 = vmatpush2.msra.mxu0 0.0
        %4989 = vmatprep.subr.mxu0 0.0
        %4990 = vmatpush2.msra.mxu0 0.0
        %4991 = vmatprep.subr.mxu0 0.0
        %4992 = vmatpush2.msra.mxu0 0.0
        %4993 = vmatprep.subr.mxu0 0.0
        %4994 = vmatpush2.msra.mxu0 0.0
        %4995 = vmatprep.subr.mxu0 0.0
        %4996 = vmatpush2.msra.mxu0 0.0
        %4997 = vmatprep.mubr.f32.mxu0 0.0
        %4998 = vmatmul.mubr.f32.gmra.mxu0 %v4388
        %v4999 = vpop.f32.mrf.mxu0
        %v5000 = vadd.f32 %v4369, %v4999
        %v5001 = vpop.f32.mrf.mxu0
        %5002 = vmatprep.mubr.f32.mxu0 0.0
        %5003 = vmatmul.mubr.f32.gmra.mxu0 %v4391
        %v5004 = vpop.f32.mrf.mxu0
        %v5005 = vadd.f32 %v4374, %v5004
        %v5006 = vpop.f32.mrf.mxu0
        %5007 = vmatprep.mubr.f32.mxu0 0.0
        %5008 = vmatmul.mubr.f32.gmra.mxu0 %v4394
        %v5009 = vpop.f32.mrf.mxu0
        %v5010 = vadd.f32 %v4379, %v5009
        %v5011 = vpop.f32.mrf.mxu0
        %5012 = vmatprep.mubr.f32.mxu0 0.0
        %5013 = vmatmul.mubr.f32.gmra.mxu0 %v4397
        %v5014 = vpop.f32.mrf.mxu0
        %v5015 = vadd.f32 %v4384, %v5014
        %v5016 = vpop.f32.mrf.mxu0
        %5017 = vdwg.mxu0
        %v5018 = vmax.f32 %v5000, 0.0
        %v5019 = vmax.f32 %v5005, 0.0
        %v5020 = vmax.f32 %v5010, 0.0
        %v5021 = vmax.f32 %v5015, 0.0
        %5022 = vmatprep.subr.mxu0 0.0
        %5023 = vmatpush1.msra.mxu0 0.0
        %5024 = vmatprep.subr.mxu0 0.0
        %5025 = vmatpush1.msra.mxu0 0.0
        %5026 = vmatprep.subr.mxu0 0.0
        %5027 = vmatpush1.msra.mxu0 0.0
        %5028 = vmatprep.subr.mxu0 0.0
        %5029 = vmatpush1.msra.mxu0 0.0
        %5030 = vmatprep.subr.mxu0 0.0
        %5031 = vmatpush1.msra.mxu0 0.0
        %5032 = vmatprep.subr.mxu0 0.0
        %5033 = vmatpush1.msra.mxu0 0.0
        %5034 = vmatprep.subr.mxu0 0.0
        %5035 = vmatpush1.msra.mxu0 0.0
        %5036 = vmatprep.subr.mxu0 0.0
        %5037 = vmatpush1.msra.mxu0 0.0
        %5038 = vmatprep.subr.mxu0 0.0
        %5039 = vmatpush1.msra.mxu0 %v4357
        %5040 = vmatprep.subr.mxu0 0.0
        %5041 = vmatpush1.msra.mxu0 %v4356
        %5042 = vmatprep.subr.mxu0 0.0
        %5043 = vmatpush1.msra.mxu0 %v4355
        %5044 = vmatprep.subr.mxu0 0.0
        %5045 = vmatpush1.msra.mxu0 %v4354
        %5046 = vmatprep.subr.mxu0 0.0
        %5047 = vmatpush1.msra.mxu0 %v4353
        %5048 = vmatprep.subr.mxu0 0.0
        %5049 = vmatpush1.msra.mxu0 %v4352
        %5050 = vmatprep.subr.mxu0 0.0
        %5051 = vmatpush1.msra.mxu0 %v4351
        %5052 = vmatprep.subr.mxu0 0.0
        %5053 = vmatpush1.msra.mxu0 %v4350
        %5054 = vmatprep.subr.mxu0 0.0
        %5055 = vmatpush2.msra.mxu0 0.0
        %5056 = vmatprep.subr.mxu0 0.0
        %5057 = vmatpush2.msra.mxu0 0.0
        %5058 = vmatprep.subr.mxu0 0.0
        %5059 = vmatpush2.msra.mxu0 0.0
        %5060 = vmatprep.subr.mxu0 0.0
        %5061 = vmatpush2.msra.mxu0 0.0
        %5062 = vmatprep.subr.mxu0 0.0
        %5063 = vmatpush2.msra.mxu0 0.0
        %5064 = vmatprep.subr.mxu0 0.0
        %5065 = vmatpush2.msra.mxu0 0.0
        %5066 = vmatprep.subr.mxu0 0.0
        %5067 = vmatpush2.msra.mxu0 0.0
        %5068 = vmatprep.subr.mxu0 0.0
        %5069 = vmatpush2.msra.mxu0 0.0
        %5070 = vmatprep.subr.mxu0 0.0
        %5071 = vmatpush2.msra.mxu0 0.0
        %5072 = vmatprep.subr.mxu0 0.0
        %5073 = vmatpush2.msra.mxu0 0.0
        %5074 = vmatprep.subr.mxu0 0.0
        %5075 = vmatpush2.msra.mxu0 0.0
        %5076 = vmatprep.subr.mxu0 0.0
        %5077 = vmatpush2.msra.mxu0 0.0
        %5078 = vmatprep.subr.mxu0 0.0
        %5079 = vmatpush2.msra.mxu0 0.0
        %5080 = vmatprep.subr.mxu0 0.0
        %5081 = vmatpush2.msra.mxu0 0.0
        %5082 = vmatprep.subr.mxu0 0.0
        %5083 = vmatpush2.msra.mxu0 0.0
        %5084 = vmatprep.subr.mxu0 0.0
        %5085 = vmatpush2.msra.mxu0 0.0
        %5086 = vmatprep.mubr.f32.mxu0 0.0
        %5087 = vmatmul.mubr.f32.gmra.mxu0 %v4388
        %v5088 = vpop.f32.mrf.mxu0
        %v5089 = vadd.f32 %v4369, %v5088
        %v5090 = vpop.f32.mrf.mxu0
        %5091 = vmatprep.mubr.f32.mxu0 0.0
        %5092 = vmatmul.mubr.f32.gmra.mxu0 %v4391
        %v5093 = vpop.f32.mrf.mxu0
        %v5094 = vadd.f32 %v4374, %v5093
        %v5095 = vpop.f32.mrf.mxu0
        %5096 = vmatprep.mubr.f32.mxu0 0.0
        %5097 = vmatmul.mubr.f32.gmra.mxu0 %v4394
        %v5098 = vpop.f32.mrf.mxu0
        %v5099 = vadd.f32 %v4379, %v5098
        %v5100 = vpop.f32.mrf.mxu0
        %5101 = vmatprep.mubr.f32.mxu0 0.0
        %5102 = vmatmul.mubr.f32.gmra.mxu0 %v4397
        %v5103 = vpop.f32.mrf.mxu0
        %v5104 = vadd.f32 %v4384, %v5103
        %v5105 = vpop.f32.mrf.mxu0
        %5106 = vdwg.mxu0
        %v5107 = vmax.f32 %v5089, 0.0
        %v5108 = vmax.f32 %v5094, 0.0
        %v5109 = vmax.f32 %v5099, 0.0
        %v5110 = vmax.f32 %v5104, 0.0
        %v5111 = vmax.f32 %v4484, %v4573
        %v5112 = vmax.f32 %v4485, %v4574
        %v5113 = vmax.f32 %v4486, %v4575
        %v5114 = vmax.f32 %v4487, %v4576
        %v5115 = vmax.f32 %v4662, %v4751
        %v5116 = vmax.f32 %v4663, %v4752
        %v5117 = vmax.f32 %v4664, %v4753
        %v5118 = vmax.f32 %v4665, %v4754
        %v5119 = vmax.f32 %v4840, %v4929
        %v5120 = vmax.f32 %v4841, %v4930
        %v5121 = vmax.f32 %v4842, %v4931
        %v5122 = vmax.f32 %v4843, %v4932
        %v5123 = vmax.f32 %v5018, %v5107
        %v5124 = vmax.f32 %v5019, %v5108
        %v5125 = vmax.f32 %v5020, %v5109
        %v5126 = vmax.f32 %v5021, %v5110
        %v5127 = vld [vmem:[%s7] sm:$0xff]
        %v5128 = vld [vmem:[%s7 + $0x8] sm:$0xff]
        %v5129 = vld [vmem:[%s7 + $0x10] sm:$0xff]
        %v5130 = vld [vmem:[%s7 + $0x18] sm:$0xff]
        %v5131 = vld [vmem:[%s7 + $0x20] sm:$0xff]
        %v5132 = vld [vmem:[%s7 + $0x28] sm:$0xff]
        %v5133 = vld [vmem:[%s7 + $0x30] sm:$0xff]
        %v5134 = vld [vmem:[%s7 + $0x38] sm:$0xff]
        %v5135 = vld [vmem:[%s7 + $0x40] sm:$0xff]
        %v5136 = vld [vmem:[%s7 + $0x48] sm:$0xff]
        %v5137 = vld [vmem:[%s7 + $0x50] sm:$0xff]
        %v5138 = vld [vmem:[%s7 + $0x58] sm:$0xff]
        %v5139 = vld [vmem:[%s7 + $0x60] sm:$0xff]
        %v5140 = vld [vmem:[%s7 + $0x68] sm:$0xff]
        %v5141 = vld [vmem:[%s7 + $0x70] sm:$0xff]
        %v5142 = vld [vmem:[%s7 + $0x78] sm:$0xff]
        %v5143 = vld [vmem:[%s7 + $0x80] sm:$0xff]
        %v5144 = vld [vmem:[%s7 + $0x88] sm:$0xff]
        %v5145 = vld [vmem:[%s7 + $0x90] sm:$0xff]
        %v5146 = vld [vmem:[%s7 + $0x98] sm:$0xff]
        %v5147 = vld [vmem:[%s7 + $0xa0] sm:$0xff]
        %v5148 = vld [vmem:[%s7 + $0xa8] sm:$0xff]
        %v5149 = vld [vmem:[%s7 + $0xb0] sm:$0xff]
        %v5150 = vld [vmem:[%s7 + $0xb8] sm:$0xff]
        %v5151 = vld [vmem:[%s8] sm:$0xff]
        %v5152 = vld [vmem:[%s8 + $0x8] sm:$0xff]
        %v5153 = vld [vmem:[%s8 + $0x10] sm:$0xff]
        %v5154 = vld [vmem:[%s8 + $0x18] sm:$0xff]
        %v5155 = vld [vmem:[%s8 + $0x20] sm:$0xff]
        %v5156 = vld [vmem:[%s8 + $0x28] sm:$0xff]
        %v5157 = vld [vmem:[%s8 + $0x30] sm:$0xff]
        %v5158 = vld [vmem:[%s8 + $0x38] sm:$0xff]
        %5160 = vset.pattern.permute.xlu0 0
        %5161 = vperm.xlu0 %5160, %v5151
        %v5162 = vpop.permute.xlu0 %5161
        %5165 = vset.pattern.permute.xlu0 0
        %5166 = vperm.xlu0 %5165, %v5152
        %v5167 = vpop.permute.xlu0 %5166
        %5170 = vset.pattern.permute.xlu0 0
        %5171 = vperm.xlu0 %5170, %v5153
        %v5172 = vpop.permute.xlu0 %5171
        %5175 = vset.pattern.permute.xlu0 0
        %5176 = vperm.xlu0 %5175, %v5154
        %v5177 = vpop.permute.xlu0 %5176
        %5180 = vset.pattern.permute.xlu0 0
        %5181 = vperm.xlu0 %5180, %v5155
        %v5182 = vpop.permute.xlu0 %5181
        %5185 = vset.pattern.permute.xlu0 0
        %5186 = vperm.xlu0 %5185, %v5156
        %v5187 = vpop.permute.xlu0 %5186
        %5190 = vset.pattern.permute.xlu0 0
        %5191 = vperm.xlu0 %5190, %v5157
        %v5192 = vpop.permute.xlu0 %5191
        %5195 = vset.pattern.permute.xlu0 0
        %5196 = vperm.xlu0 %5195, %v5158
        %v5197 = vpop.permute.xlu0 %5196
        %vm5199 = vcmask 261120
        %v5201 = vsel %vm5199, %v5129, 0
        %v5204 = vsel %vm5199, %v5132, 0
        %v5207 = vsel %vm5199, %v5135, 0
        %v5210 = vsel %vm5199, %v5138, 0
        %v5213 = vsel %vm5199, %v5141, 0
        %v5216 = vsel %vm5199, %v5144, 0
        %v5219 = vsel %vm5199, %v5147, 0
        %v5222 = vsel %vm5199, %v5150, 0
        %5224 = vmatprep.subr.mxu0 0.0
        %5225 = vmatpush1.msra.mxu0 0.0
        %5226 = vmatprep.subr.mxu0 0.0
        %5227 = vmatpush1.msra.mxu0 0.0
        %5228 = vmatprep.subr.mxu0 0.0
        %5229 = vmatpush1.msra.mxu0 0.0
        %5230 = vmatprep.subr.mxu0 0.0
        %5231 = vmatpush1.msra.mxu0 0.0
        %5232 = vmatprep.subr.mxu0 0.0
        %5233 = vmatpush1.msra.mxu0 0.0
        %5234 = vmatprep.subr.mxu0 0.0
        %5235 = vmatpush1.msra.mxu0 0.0
        %5236 = vmatprep.subr.mxu0 0.0
        %5237 = vmatpush1.msra.mxu0 0.0
        %5238 = vmatprep.subr.mxu0 0.0
        %5239 = vmatpush1.msra.mxu0 0.0
        %5240 = vmatprep.subr.mxu0 0.0
        %5241 = vmatpush1.msra.mxu0 0.0
        %5242 = vmatprep.subr.mxu0 0.0
        %5243 = vmatpush1.msra.mxu0 0.0
        %5244 = vmatprep.subr.mxu0 0.0
        %5245 = vmatpush1.msra.mxu0 0.0
        %5246 = vmatprep.subr.mxu0 0.0
        %5247 = vmatpush1.msra.mxu0 0.0
        %5248 = vmatprep.subr.mxu0 0.0
        %5249 = vmatpush1.msra.mxu0 0.0
        %5250 = vmatprep.subr.mxu0 0.0
        %5251 = vmatpush1.msra.mxu0 0.0
        %5252 = vmatprep.subr.mxu0 0.0
        %5253 = vmatpush1.msra.mxu0 0.0
        %5254 = vmatprep.subr.mxu0 0.0
        %5255 = vmatpush1.msra.mxu0 0.0
        %5256 = vmatprep.subr.mxu0 0.0
        %5257 = vmatpush2.msra.mxu0 %v5126
        %5258 = vmatprep.subr.mxu0 0.0
        %5259 = vmatpush2.msra.mxu0 %v5125
        %5260 = vmatprep.subr.mxu0 0.0
        %5261 = vmatpush2.msra.mxu0 %v5124
        %5262 = vmatprep.subr.mxu0 0.0
        %5263 = vmatpush2.msra.mxu0 %v5123
        %5264 = vmatprep.subr.mxu0 0.0
        %5265 = vmatpush2.msra.mxu0 %v5122
        %5266 = vmatprep.subr.mxu0 0.0
        %5267 = vmatpush2.msra.mxu0 %v5121
        %5268 = vmatprep.subr.mxu0 0.0
        %5269 = vmatpush2.msra.mxu0 %v5120
        %5270 = vmatprep.subr.mxu0 0.0
        %5271 = vmatpush2.msra.mxu0 %v5119
        %5272 = vmatprep.subr.mxu0 0.0
        %5273 = vmatpush2.msra.mxu0 %v5118
        %5274 = vmatprep.subr.mxu0 0.0
        %5275 = vmatpush2.msra.mxu0 %v5117
        %5276 = vmatprep.subr.mxu0 0.0
        %5277 = vmatpush2.msra.mxu0 %v5116
        %5278 = vmatprep.subr.mxu0 0.0
        %5279 = vmatpush2.msra.mxu0 %v5115
        %5280 = vmatprep.subr.mxu0 0.0
        %5281 = vmatpush2.msra.mxu0 %v5114
        %5282 = vmatprep.subr.mxu0 0.0
        %5283 = vmatpush2.msra.mxu0 %v5113
        %5284 = vmatprep.subr.mxu0 0.0
        %5285 = vmatpush2.msra.mxu0 %v5112
        %5286 = vmatprep.subr.mxu0 0.0
        %5287 = vmatpush2.msra.mxu0 %v5111
        %5288 = vmatprep.mubr.f32.mxu0 %v5128
        %5289 = vmatmul.mubr.f32.gmra.mxu0 %v5127
        %v5290 = vpop.f32.mrf.mxu0
        %v5291 = vadd.f32 %v5162, %v5290
        %v5292 = vpop.f32.mrf.mxu0
        %5293 = vmatprep.mubr.f32.mxu0 %v5131
        %5294 = vmatmul.mubr.f32.gmra.mxu0 %v5130
        %v5295 = vpop.f32.mrf.mxu0
        %v5296 = vadd.f32 %v5167, %v5295
        %v5297 = vpop.f32.mrf.mxu0
        %5298 = vmatprep.mubr.f32.mxu0 %v5134
        %5299 = vmatmul.mubr.f32.gmra.mxu0 %v5133
        %v5300 = vpop.f32.mrf.mxu0
        %v5301 = vadd.f32 %v5172, %v5300
        %v5302 = vpop.f32.mrf.mxu0
        %5303 = vmatprep.mubr.f32.mxu0 %v5137
        %5304 = vmatmul.mubr.f32.gmra.mxu0 %v5136
        %v5305 = vpop.f32.mrf.mxu0
        %v5306 = vadd.f32 %v5177, %v5305
        %v5307 = vpop.f32.mrf.mxu0
        %5308 = vmatprep.mubr.f32.mxu0 %v5140
        %5309 = vmatmul.mubr.f32.gmra.mxu0 %v5139
        %v5310 = vpop.f32.mrf.mxu0
        %v5311 = vadd.f32 %v5182, %v5310
        %v5312 = vpop.f32.mrf.mxu0
        %5313 = vmatprep.mubr.f32.mxu0 %v5143
        %5314 = vmatmul.mubr.f32.gmra.mxu0 %v5142
        %v5315 = vpop.f32.mrf.mxu0
        %v5316 = vadd.f32 %v5187, %v5315
        %v5317 = vpop.f32.mrf.mxu0
        %5318 = vmatprep.mubr.f32.mxu0 %v5146
        %5319 = vmatmul.mubr.f32.gmra.mxu0 %v5145
        %v5320 = vpop.f32.mrf.mxu0
        %v5321 = vadd.f32 %v5192, %v5320
        %v5322 = vpop.f32.mrf.mxu0
        %5323 = vmatprep.mubr.f32.mxu0 %v5149
        %5324 = vmatmul.mubr.f32.gmra.mxu0 %v5148
        %v5325 = vpop.f32.mrf.mxu0
        %v5326 = vadd.f32 %v5197, %v5325
        %v5327 = vpop.f32.mrf.mxu0
        %5328 = vdwg.mxu0
        %5329 = vmatprep.subr.mxu0 0.0
        %5330 = vmatpush1.msra.mxu0 0.0
        %5331 = vmatprep.subr.mxu0 0.0
        %5332 = vmatpush1.msra.mxu0 0.0
        %5333 = vmatprep.subr.mxu0 0.0
        %5334 = vmatpush1.msra.mxu0 0.0
        %5335 = vmatprep.subr.mxu0 0.0
        %5336 = vmatpush1.msra.mxu0 0.0
        %5337 = vmatprep.subr.mxu0 0.0
        %5338 = vmatpush1.msra.mxu0 0.0
        %5339 = vmatprep.subr.mxu0 0.0
        %5340 = vmatpush1.msra.mxu0 0.0
        %5341 = vmatprep.subr.mxu0 0.0
        %5342 = vmatpush1.msra.mxu0 0.0
        %5343 = vmatprep.subr.mxu0 0.0
        %5344 = vmatpush1.msra.mxu0 0.0
        %5345 = vmatprep.subr.mxu0 0.0
        %5346 = vmatpush1.msra.mxu0 0.0
        %5347 = vmatprep.subr.mxu0 0.0
        %5348 = vmatpush1.msra.mxu0 0.0
        %5349 = vmatprep.subr.mxu0 0.0
        %5350 = vmatpush1.msra.mxu0 0.0
        %5351 = vmatprep.subr.mxu0 0.0
        %5352 = vmatpush1.msra.mxu0 0.0
        %5353 = vmatprep.subr.mxu0 0.0
        %5354 = vmatpush1.msra.mxu0 0.0
        %5355 = vmatprep.subr.mxu0 0.0
        %5356 = vmatpush1.msra.mxu0 0.0
        %5357 = vmatprep.subr.mxu0 0.0
        %5358 = vmatpush1.msra.mxu0 0.0
        %5359 = vmatprep.subr.mxu0 0.0
        %5360 = vmatpush1.msra.mxu0 0.0
        %5361 = vmatprep.subr.mxu0 0.0
        %5362 = vmatpush2.msra.mxu0 0.0
        %5363 = vmatprep.subr.mxu0 0.0
        %5364 = vmatpush2.msra.mxu0 0.0
        %5365 = vmatprep.subr.mxu0 0.0
        %5366 = vmatpush2.msra.mxu0 0.0
        %5367 = vmatprep.subr.mxu0 0.0
        %5368 = vmatpush2.msra.mxu0 0.0
        %5369 = vmatprep.subr.mxu0 0.0
        %5370 = vmatpush2.msra.mxu0 0.0
        %5371 = vmatprep.subr.mxu0 0.0
        %5372 = vmatpush2.msra.mxu0 0.0
        %5373 = vmatprep.subr.mxu0 0.0
        %5374 = vmatpush2.msra.mxu0 0.0
        %5375 = vmatprep.subr.mxu0 0.0
        %5376 = vmatpush2.msra.mxu0 0.0
        %5377 = vmatprep.subr.mxu0 0.0
        %5378 = vmatpush2.msra.mxu0 0.0
        %5379 = vmatprep.subr.mxu0 0.0
        %5380 = vmatpush2.msra.mxu0 0.0
        %5381 = vmatprep.subr.mxu0 0.0
        %5382 = vmatpush2.msra.mxu0 0.0
        %5383 = vmatprep.subr.mxu0 0.0
        %5384 = vmatpush2.msra.mxu0 0.0
        %5385 = vmatprep.subr.mxu0 0.0
        %5386 = vmatpush2.msra.mxu0 0.0
        %5387 = vmatprep.subr.mxu0 0.0
        %5388 = vmatpush2.msra.mxu0 0.0
        %5389 = vmatprep.subr.mxu0 0.0
        %5390 = vmatpush2.msra.mxu0 0.0
        %5391 = vmatprep.subr.mxu0 0.0
        %5392 = vmatpush2.msra.mxu0 0.0
        %5393 = vmatprep.mubr.f32.mxu0 0.0
        %5394 = vmatmul.mubr.f32.gmra.mxu0 %v5201
        %v5395 = vpop.f32.mrf.mxu0
        %v5396 = vadd.f32 %v5291, %v5395
        %v5397 = vpop.f32.mrf.mxu0
        %5398 = vmatprep.mubr.f32.mxu0 0.0
        %5399 = vmatmul.mubr.f32.gmra.mxu0 %v5204
        %v5400 = vpop.f32.mrf.mxu0
        %v5401 = vadd.f32 %v5296, %v5400
        %v5402 = vpop.f32.mrf.mxu0
        %5403 = vmatprep.mubr.f32.mxu0 0.0
        %5404 = vmatmul.mubr.f32.gmra.mxu0 %v5207
        %v5405 = vpop.f32.mrf.mxu0
        %v5406 = vadd.f32 %v5301, %v5405
        %v5407 = vpop.f32.mrf.mxu0
        %5408 = vmatprep.mubr.f32.mxu0 0.0
        %5409 = vmatmul.mubr.f32.gmra.mxu0 %v5210
        %v5410 = vpop.f32.mrf.mxu0
        %v5411 = vadd.f32 %v5306, %v5410
        %v5412 = vpop.f32.mrf.mxu0
        %5413 = vmatprep.mubr.f32.mxu0 0.0
        %5414 = vmatmul.mubr.f32.gmra.mxu0 %v5213
        %v5415 = vpop.f32.mrf.mxu0
        %v5416 = vadd.f32 %v5311, %v5415
        %v5417 = vpop.f32.mrf.mxu0
        %5418 = vmatprep.mubr.f32.mxu0 0.0
        %5419 = vmatmul.mubr.f32.gmra.mxu0 %v5216
        %v5420 = vpop.f32.mrf.mxu0
        %v5421 = vadd.f32 %v5316, %v5420
        %v5422 = vpop.f32.mrf.mxu0
        %5423 = vmatprep.mubr.f32.mxu0 0.0
        %5424 = vmatmul.mubr.f32.gmra.mxu0 %v5219
        %v5425 = vpop.f32.mrf.mxu0
        %v5426 = vadd.f32 %v5321, %v5425
        %v5427 = vpop.f32.mrf.mxu0
        %5428 = vmatprep.mubr.f32.mxu0 0.0
        %5429 = vmatmul.mubr.f32.gmra.mxu0 %v5222
        %v5430 = vpop.f32.mrf.mxu0
        %v5431 = vadd.f32 %v5326, %v5430
        %v5432 = vpop.f32.mrf.mxu0
        %5433 = vdwg.mxu0
        %v5434 = vmax.f32 %v5396, 0.0
        %v5435 = vmax.f32 %v5401, 0.0
        %v5436 = vmax.f32 %v5406, 0.0
        %v5437 = vmax.f32 %v5411, 0.0
        %v5438 = vmax.f32 %v5416, 0.0
        %v5439 = vmax.f32 %v5421, 0.0
        %v5440 = vmax.f32 %v5426, 0.0
        %v5441 = vmax.f32 %v5431, 0.0
        %5442 = vmatprep.subr.mxu0 0.0
        %5443 = vmatpush1.msra.mxu0 %v5114
        %5444 = vmatprep.subr.mxu0 0.0
        %5445 = vmatpush1.msra.mxu0 %v5113
        %5446 = vmatprep.subr.mxu0 0.0
        %5447 = vmatpush1.msra.mxu0 %v5112
        %5448 = vmatprep.subr.mxu0 0.0
        %5449 = vmatpush1.msra.mxu0 %v5111
        %5450 = vmatprep.subr.mxu0 0.0
        %5451 = vmatpush1.msra.mxu0 0.0
        %5452 = vmatprep.subr.mxu0 0.0
        %5453 = vmatpush1.msra.mxu0 0.0
        %5454 = vmatprep.subr.mxu0 0.0
        %5455 = vmatpush1.msra.mxu0 0.0
        %5456 = vmatprep.subr.mxu0 0.0
        %5457 = vmatpush1.msra.mxu0 0.0
        %5458 = vmatprep.subr.mxu0 0.0
        %5459 = vmatpush1.msra.mxu0 0.0
        %5460 = vmatprep.subr.mxu0 0.0
        %5461 = vmatpush1.msra.mxu0 0.0
        %5462 = vmatprep.subr.mxu0 0.0
        %5463 = vmatpush1.msra.mxu0 0.0
        %5464 = vmatprep.subr.mxu0 0.0
        %5465 = vmatpush1.msra.mxu0 0.0
        %5466 = vmatprep.subr.mxu0 0.0
        %5467 = vmatpush1.msra.mxu0 0.0
        %5468 = vmatprep.subr.mxu0 0.0
        %5469 = vmatpush1.msra.mxu0 0.0
        %5470 = vmatprep.subr.mxu0 0.0
        %5471 = vmatpush1.msra.mxu0 0.0
        %5472 = vmatprep.subr.mxu0 0.0
        %5473 = vmatpush1.msra.mxu0 0.0
        %5474 = vmatprep.subr.mxu0 0.0
        %5475 = vmatpush2.msra.mxu0 0.0
        %5476 = vmatprep.subr.mxu0 0.0
        %5477 = vmatpush2.msra.mxu0 0.0
        %5478 = vmatprep.subr.mxu0 0.0
        %5479 = vmatpush2.msra.mxu0 0.0
        %5480 = vmatprep.subr.mxu0 0.0
        %5481 = vmatpush2.msra.mxu0 0.0
        %5482 = vmatprep.subr.mxu0 0.0
        %5483 = vmatpush2.msra.mxu0 %v5126
        %5484 = vmatprep.subr.mxu0 0.0
        %5485 = vmatpush2.msra.mxu0 %v5125
        %5486 = vmatprep.subr.mxu0 0.0
        %5487 = vmatpush2.msra.mxu0 %v5124
        %5488 = vmatprep.subr.mxu0 0.0
        %5489 = vmatpush2.msra.mxu0 %v5123
        %5490 = vmatprep.subr.mxu0 0.0
        %5491 = vmatpush2.msra.mxu0 %v5122
        %5492 = vmatprep.subr.mxu0 0.0
        %5493 = vmatpush2.msra.mxu0 %v5121
        %5494 = vmatprep.subr.mxu0 0.0
        %5495 = vmatpush2.msra.mxu0 %v5120
        %5496 = vmatprep.subr.mxu0 0.0
        %5497 = vmatpush2.msra.mxu0 %v5119
        %5498 = vmatprep.subr.mxu0 0.0
        %5499 = vmatpush2.msra.mxu0 %v5118
        %5500 = vmatprep.subr.mxu0 0.0
        %5501 = vmatpush2.msra.mxu0 %v5117
        %5502 = vmatprep.subr.mxu0 0.0
        %5503 = vmatpush2.msra.mxu0 %v5116
        %5504 = vmatprep.subr.mxu0 0.0
        %5505 = vmatpush2.msra.mxu0 %v5115
        %5506 = vmatprep.mubr.f32.mxu0 %v5128
        %5507 = vmatmul.mubr.f32.gmra.mxu0 %v5127
        %v5508 = vpop.f32.mrf.mxu0
        %v5509 = vadd.f32 %v5162, %v5508
        %v5510 = vpop.f32.mrf.mxu0
        %5511 = vmatprep.mubr.f32.mxu0 %v5131
        %5512 = vmatmul.mubr.f32.gmra.mxu0 %v5130
        %v5513 = vpop.f32.mrf.mxu0
        %v5514 = vadd.f32 %v5167, %v5513
        %v5515 = vpop.f32.mrf.mxu0
        %5516 = vmatprep.mubr.f32.mxu0 %v5134
        %5517 = vmatmul.mubr.f32.gmra.mxu0 %v5133
        %v5518 = vpop.f32.mrf.mxu0
        %v5519 = vadd.f32 %v5172, %v5518
        %v5520 = vpop.f32.mrf.mxu0
        %5521 = vmatprep.mubr.f32.mxu0 %v5137
        %5522 = vmatmul.mubr.f32.gmra.mxu0 %v5136
        %v5523 = vpop.f32.mrf.mxu0
        %v5524 = vadd.f32 %v5177, %v5523
        %v5525 = vpop.f32.mrf.mxu0
        %5526 = vmatprep.mubr.f32.mxu0 %v5140
        %5527 = vmatmul.mubr.f32.gmra.mxu0 %v5139
        %v5528 = vpop.f32.mrf.mxu0
        %v5529 = vadd.f32 %v5182, %v5528
        %v5530 = vpop.f32.mrf.mxu0
        %5531 = vmatprep.mubr.f32.mxu0 %v5143
        %5532 = vmatmul.mubr.f32.gmra.mxu0 %v5142
        %v5533 = vpop.f32.mrf.mxu0
        %v5534 = vadd.f32 %v5187, %v5533
        %v5535 = vpop.f32.mrf.mxu0
        %5536 = vmatprep.mubr.f32.mxu0 %v5146
        %5537 = vmatmul.mubr.f32.gmra.mxu0 %v5145
        %v5538 = vpop.f32.mrf.mxu0
        %v5539 = vadd.f32 %v5192, %v5538
        %v5540 = vpop.f32.mrf.mxu0
        %5541 = vmatprep.mubr.f32.mxu0 %v5149
        %5542 = vmatmul.mubr.f32.gmra.mxu0 %v5148
        %v5543 = vpop.f32.mrf.mxu0
        %v5544 = vadd.f32 %v5197, %v5543
        %v5545 = vpop.f32.mrf.mxu0
        %5546 = vdwg.mxu0
        %5547 = vmatprep.subr.mxu0 0.0
        %5548 = vmatpush1.msra.mxu0 0.0
        %5549 = vmatprep.subr.mxu0 0.0
        %5550 = vmatpush1.msra.mxu0 0.0
        %5551 = vmatprep.subr.mxu0 0.0
        %5552 = vmatpush1.msra.mxu0 0.0
        %5553 = vmatprep.subr.mxu0 0.0
        %5554 = vmatpush1.msra.mxu0 0.0
        %5555 = vmatprep.subr.mxu0 0.0
        %5556 = vmatpush1.msra.mxu0 0.0
        %5557 = vmatprep.subr.mxu0 0.0
        %5558 = vmatpush1.msra.mxu0 0.0
        %5559 = vmatprep.subr.mxu0 0.0
        %5560 = vmatpush1.msra.mxu0 0.0
        %5561 = vmatprep.subr.mxu0 0.0
        %5562 = vmatpush1.msra.mxu0 0.0
        %5563 = vmatprep.subr.mxu0 0.0
        %5564 = vmatpush1.msra.mxu0 0.0
        %5565 = vmatprep.subr.mxu0 0.0
        %5566 = vmatpush1.msra.mxu0 0.0
        %5567 = vmatprep.subr.mxu0 0.0
        %5568 = vmatpush1.msra.mxu0 0.0
        %5569 = vmatprep.subr.mxu0 0.0
        %5570 = vmatpush1.msra.mxu0 0.0
        %5571 = vmatprep.subr.mxu0 0.0
        %5572 = vmatpush1.msra.mxu0 0.0
        %5573 = vmatprep.subr.mxu0 0.0
        %5574 = vmatpush1.msra.mxu0 0.0
        %5575 = vmatprep.subr.mxu0 0.0
        %5576 = vmatpush1.msra.mxu0 0.0
        %5577 = vmatprep.subr.mxu0 0.0
        %5578 = vmatpush1.msra.mxu0 0.0
        %5579 = vmatprep.subr.mxu0 0.0
        %5580 = vmatpush2.msra.mxu0 0.0
        %5581 = vmatprep.subr.mxu0 0.0
        %5582 = vmatpush2.msra.mxu0 0.0
        %5583 = vmatprep.subr.mxu0 0.0
        %5584 = vmatpush2.msra.mxu0 0.0
        %5585 = vmatprep.subr.mxu0 0.0
        %5586 = vmatpush2.msra.mxu0 0.0
        %5587 = vmatprep.subr.mxu0 0.0
        %5588 = vmatpush2.msra.mxu0 0.0
        %5589 = vmatprep.subr.mxu0 0.0
        %5590 = vmatpush2.msra.mxu0 0.0
        %5591 = vmatprep.subr.mxu0 0.0
        %5592 = vmatpush2.msra.mxu0 0.0
        %5593 = vmatprep.subr.mxu0 0.0
        %5594 = vmatpush2.msra.mxu0 0.0
        %5595 = vmatprep.subr.mxu0 0.0
        %5596 = vmatpush2.msra.mxu0 0.0
        %5597 = vmatprep.subr.mxu0 0.0
        %5598 = vmatpush2.msra.mxu0 0.0
        %5599 = vmatprep.subr.mxu0 0.0
        %5600 = vmatpush2.msra.mxu0 0.0
        %5601 = vmatprep.subr.mxu0 0.0
        %5602 = vmatpush2.msra.mxu0 0.0
        %5603 = vmatprep.subr.mxu0 0.0
        %5604 = vmatpush2.msra.mxu0 0.0
        %5605 = vmatprep.subr.mxu0 0.0
        %5606 = vmatpush2.msra.mxu0 0.0
        %5607 = vmatprep.subr.mxu0 0.0
        %5608 = vmatpush2.msra.mxu0 0.0
        %5609 = vmatprep.subr.mxu0 0.0
        %5610 = vmatpush2.msra.mxu0 0.0
        %5611 = vmatprep.mubr.f32.mxu0 0.0
        %5612 = vmatmul.mubr.f32.gmra.mxu0 %v5201
        %v5613 = vpop.f32.mrf.mxu0
        %v5614 = vadd.f32 %v5509, %v5613
        %v5615 = vpop.f32.mrf.mxu0
        %5616 = vmatprep.mubr.f32.mxu0 0.0
        %5617 = vmatmul.mubr.f32.gmra.mxu0 %v5204
        %v5618 = vpop.f32.mrf.mxu0
        %v5619 = vadd.f32 %v5514, %v5618
        %v5620 = vpop.f32.mrf.mxu0
        %5621 = vmatprep.mubr.f32.mxu0 0.0
        %5622 = vmatmul.mubr.f32.gmra.mxu0 %v5207
        %v5623 = vpop.f32.mrf.mxu0
        %v5624 = vadd.f32 %v5519, %v5623
        %v5625 = vpop.f32.mrf.mxu0
        %5626 = vmatprep.mubr.f32.mxu0 0.0
        %5627 = vmatmul.mubr.f32.gmra.mxu0 %v5210
        %v5628 = vpop.f32.mrf.mxu0
        %v5629 = vadd.f32 %v5524, %v5628
        %v5630 = vpop.f32.mrf.mxu0
        %5631 = vmatprep.mubr.f32.mxu0 0.0
        %5632 = vmatmul.mubr.f32.gmra.mxu0 %v5213
        %v5633 = vpop.f32.mrf.mxu0
        %v5634 = vadd.f32 %v5529, %v5633
        %v5635 = vpop.f32.mrf.mxu0
        %5636 = vmatprep.mubr.f32.mxu0 0.0
        %5637 = vmatmul.mubr.f32.gmra.mxu0 %v5216
        %v5638 = vpop.f32.mrf.mxu0
        %v5639 = vadd.f32 %v5534, %v5638
        %v5640 = vpop.f32.mrf.mxu0
        %5641 = vmatprep.mubr.f32.mxu0 0.0
        %5642 = vmatmul.mubr.f32.gmra.mxu0 %v5219
        %v5643 = vpop.f32.mrf.mxu0
        %v5644 = vadd.f32 %v5539, %v5643
        %v5645 = vpop.f32.mrf.mxu0
        %5646 = vmatprep.mubr.f32.mxu0 0.0
        %5647 = vmatmul.mubr.f32.gmra.mxu0 %v5222
        %v5648 = vpop.f32.mrf.mxu0
        %v5649 = vadd.f32 %v5544, %v5648
        %v5650 = vpop.f32.mrf.mxu0
        %5651 = vdwg.mxu0
        %v5652 = vmax.f32 %v5614, 0.0
        %v5653 = vmax.f32 %v5619, 0.0
        %v5654 = vmax.f32 %v5624, 0.0
        %v5655 = vmax.f32 %v5629, 0.0
        %v5656 = vmax.f32 %v5634, 0.0
        %v5657 = vmax.f32 %v5639, 0.0
        %v5658 = vmax.f32 %v5644, 0.0
        %v5659 = vmax.f32 %v5649, 0.0
        %v5660 = vadd.f32 %v5434, %v5652
        %v5661 = vadd.f32 %v5435, %v5653
        %v5662 = vadd.f32 %v5436, %v5654
        %v5663 = vadd.f32 %v5437, %v5655
        %v5664 = vadd.f32 %v5438, %v5656
        %v5665 = vadd.f32 %v5439, %v5657
        %v5666 = vadd.f32 %v5440, %v5658
        %v5667 = vadd.f32 %v5441, %v5659
        %5668 = vmatprep.subr.mxu0 0.0
        %5669 = vmatpush1.msra.mxu0 %v5118
        %5670 = vmatprep.subr.mxu0 0.0
        %5671 = vmatpush1.msra.mxu0 %v5117
        %5672 = vmatprep.subr.mxu0 0.0
        %5673 = vmatpush1.msra.mxu0 %v5116
        %5674 = vmatprep.subr.mxu0 0.0
        %5675 = vmatpush1.msra.mxu0 %v5115
        %5676 = vmatprep.subr.mxu0 0.0
        %5677 = vmatpush1.msra.mxu0 %v5114
        %5678 = vmatprep.subr.mxu0 0.0
        %5679 = vmatpush1.msra.mxu0 %v5113
        %5680 = vmatprep.subr.mxu0 0.0
        %5681 = vmatpush1.msra.mxu0 %v5112
        %5682 = vmatprep.subr.mxu0 0.0
        %5683 = vmatpush1.msra.mxu0 %v5111
        %5684 = vmatprep.subr.mxu0 0.0
        %5685 = vmatpush1.msra.mxu0 0.0
        %5686 = vmatprep.subr.mxu0 0.0
        %5687 = vmatpush1.msra.mxu0 0.0
        %5688 = vmatprep.subr.mxu0 0.0
        %5689 = vmatpush1.msra.mxu0 0.0
        %5690 = vmatprep.subr.mxu0 0.0
        %5691 = vmatpush1.msra.mxu0 0.0
        %5692 = vmatprep.subr.mxu0 0.0
        %5693 = vmatpush1.msra.mxu0 0.0
        %5694 = vmatprep.subr.mxu0 0.0
        %5695 = vmatpush1.msra.mxu0 0.0
        %5696 = vmatprep.subr.mxu0 0.0
        %5697 = vmatpush1.msra.mxu0 0.0
        %5698 = vmatprep.subr.mxu0 0.0
        %5699 = vmatpush1.msra.mxu0 0.0
        %5700 = vmatprep.subr.mxu0 0.0
        %5701 = vmatpush2.msra.mxu0 0.0
        %5702 = vmatprep.subr.mxu0 0.0
        %5703 = vmatpush2.msra.mxu0 0.0
        %5704 = vmatprep.subr.mxu0 0.0
        %5705 = vmatpush2.msra.mxu0 0.0
        %5706 = vmatprep.subr.mxu0 0.0
        %5707 = vmatpush2.msra.mxu0 0.0
        %5708 = vmatprep.subr.mxu0 0.0
        %5709 = vmatpush2.msra.mxu0 0.0
        %5710 = vmatprep.subr.mxu0 0.0
        %5711 = vmatpush2.msra.mxu0 0.0
        %5712 = vmatprep.subr.mxu0 0.0
        %5713 = vmatpush2.msra.mxu0 0.0
        %5714 = vmatprep.subr.mxu0 0.0
        %5715 = vmatpush2.msra.mxu0 0.0
        %5716 = vmatprep.subr.mxu0 0.0
        %5717 = vmatpush2.msra.mxu0 %v5126
        %5718 = vmatprep.subr.mxu0 0.0
        %5719 = vmatpush2.msra.mxu0 %v5125
        %5720 = vmatprep.subr.mxu0 0.0
        %5721 = vmatpush2.msra.mxu0 %v5124
        %5722 = vmatprep.subr.mxu0 0.0
        %5723 = vmatpush2.msra.mxu0 %v5123
        %5724 = vmatprep.subr.mxu0 0.0
        %5725 = vmatpush2.msra.mxu0 %v5122
        %5726 = vmatprep.subr.mxu0 0.0
        %5727 = vmatpush2.msra.mxu0 %v5121
        %5728 = vmatprep.subr.mxu0 0.0
        %5729 = vmatpush2.msra.mxu0 %v5120
        %5730 = vmatprep.subr.mxu0 0.0
        %5731 = vmatpush2.msra.mxu0 %v5119
        %5732 = vmatprep.mubr.f32.mxu0 %v5128
        %5733 = vmatmul.mubr.f32.gmra.mxu0 %v5127
        %v5734 = vpop.f32.mrf.mxu0
        %v5735 = vadd.f32 %v5162, %v5734
        %v5736 = vpop.f32.mrf.mxu0
        %5737 = vmatprep.mubr.f32.mxu0 %v5131
        %5738 = vmatmul.mubr.f32.gmra.mxu0 %v5130
        %v5739 = vpop.f32.mrf.mxu0
        %v5740 = vadd.f32 %v5167, %v5739
        %v5741 = vpop.f32.mrf.mxu0
        %5742 = vmatprep.mubr.f32.mxu0 %v5134
        %5743 = vmatmul.mubr.f32.gmra.mxu0 %v5133
        %v5744 = vpop.f32.mrf.mxu0
        %v5745 = vadd.f32 %v5172, %v5744
        %v5746 = vpop.f32.mrf.mxu0
        %5747 = vmatprep.mubr.f32.mxu0 %v5137
        %5748 = vmatmul.mubr.f32.gmra.mxu0 %v5136
        %v5749 = vpop.f32.mrf.mxu0
        %v5750 = vadd.f32 %v5177, %v5749
        %v5751 = vpop.f32.mrf.mxu0
        %5752 = vmatprep.mubr.f32.mxu0 %v5140
        %5753 = vmatmul.mubr.f32.gmra.mxu0 %v5139
        %v5754 = vpop.f32.mrf.mxu0
        %v5755 = vadd.f32 %v5182, %v5754
        %v5756 = vpop.f32.mrf.mxu0
        %5757 = vmatprep.mubr.f32.mxu0 %v5143
        %5758 = vmatmul.mubr.f32.gmra.mxu0 %v5142
        %v5759 = vpop.f32.mrf.mxu0
        %v5760 = vadd.f32 %v5187, %v5759
        %v5761 = vpop.f32.mrf.mxu0
        %5762 = vmatprep.mubr.f32.mxu0 %v5146
        %5763 = vmatmul.mubr.f32.gmra.mxu0 %v5145
        %v5764 = vpop.f32.mrf.mxu0
        %v5765 = vadd.f32 %v5192, %v5764
        %v5766 = vpop.f32.mrf.mxu0
        %5767 = vmatprep.mubr.f32.mxu0 %v5149
        %5768 = vmatmul.mubr.f32.gmra.mxu0 %v5148
        %v5769 = vpop.f32.mrf.mxu0
        %v5770 = vadd.f32 %v5197, %v5769
        %v5771 = vpop.f32.mrf.mxu0
        %5772 = vdwg.mxu0
        %5773 = vmatprep.subr.mxu0 0.0
        %5774 = vmatpush1.msra.mxu0 0.0
        %5775 = vmatprep.subr.mxu0 0.0
        %5776 = vmatpush1.msra.mxu0 0.0
        %5777 = vmatprep.subr.mxu0 0.0
        %5778 = vmatpush1.msra.mxu0 0.0
        %5779 = vmatprep.subr.mxu0 0.0
        %5780 = vmatpush1.msra.mxu0 0.0
        %5781 = vmatprep.subr.mxu0 0.0
        %5782 = vmatpush1.msra.mxu0 0.0
        %5783 = vmatprep.subr.mxu0 0.0
        %5784 = vmatpush1.msra.mxu0 0.0
        %5785 = vmatprep.subr.mxu0 0.0
        %5786 = vmatpush1.msra.mxu0 0.0
        %5787 = vmatprep.subr.mxu0 0.0
        %5788 = vmatpush1.msra.mxu0 0.0
        %5789 = vmatprep.subr.mxu0 0.0
        %5790 = vmatpush1.msra.mxu0 0.0
        %5791 = vmatprep.subr.mxu0 0.0
        %5792 = vmatpush1.msra.mxu0 0.0
        %5793 = vmatprep.subr.mxu0 0.0
        %5794 = vmatpush1.msra.mxu0 0.0
        %5795 = vmatprep.subr.mxu0 0.0
        %5796 = vmatpush1.msra.mxu0 0.0
        %5797 = vmatprep.subr.mxu0 0.0
        %5798 = vmatpush1.msra.mxu0 0.0
        %5799 = vmatprep.subr.mxu0 0.0
        %5800 = vmatpush1.msra.mxu0 0.0
        %5801 = vmatprep.subr.mxu0 0.0
        %5802 = vmatpush1.msra.mxu0 0.0
        %5803 = vmatprep.subr.mxu0 0.0
        %5804 = vmatpush1.msra.mxu0 0.0
        %5805 = vmatprep.subr.mxu0 0.0
        %5806 = vmatpush2.msra.mxu0 0.0
        %5807 = vmatprep.subr.mxu0 0.0
        %5808 = vmatpush2.msra.mxu0 0.0
        %5809 = vmatprep.subr.mxu0 0.0
        %5810 = vmatpush2.msra.mxu0 0.0
        %5811 = vmatprep.subr.mxu0 0.0
        %5812 = vmatpush2.msra.mxu0 0.0
        %5813 = vmatprep.subr.mxu0 0.0
        %5814 = vmatpush2.msra.mxu0 0.0
        %5815 = vmatprep.subr.mxu0 0.0
        %5816 = vmatpush2.msra.mxu0 0.0
        %5817 = vmatprep.subr.mxu0 0.0
        %5818 = vmatpush2.msra.mxu0 0.0
        %5819 = vmatprep.subr.mxu0 0.0
        %5820 = vmatpush2.msra.mxu0 0.0
        %5821 = vmatprep.subr.mxu0 0.0
        %5822 = vmatpush2.msra.mxu0 0.0
        %5823 = vmatprep.subr.mxu0 0.0
        %5824 = vmatpush2.msra.mxu0 0.0
        %5825 = vmatprep.subr.mxu0 0.0
        %5826 = vmatpush2.msra.mxu0 0.0
        %5827 = vmatprep.subr.mxu0 0.0
        %5828 = vmatpush2.msra.mxu0 0.0
        %5829 = vmatprep.subr.mxu0 0.0
        %5830 = vmatpush2.msra.mxu0 0.0
        %5831 = vmatprep.subr.mxu0 0.0
        %5832 = vmatpush2.msra.mxu0 0.0
        %5833 = vmatprep.subr.mxu0 0.0
        %5834 = vmatpush2.msra.mxu0 0.0
        %5835 = vmatprep.subr.mxu0 0.0
        %5836 = vmatpush2.msra.mxu0 0.0
        %5837 = vmatprep.mubr.f32.mxu0 0.0
        %5838 = vmatmul.mubr.f32.gmra.mxu0 %v5201
        %v5839 = vpop.f32.mrf.mxu0
        %v5840 = vadd.f32 %v5735, %v5839
        %v5841 = vpop.f32.mrf.mxu0
        %5842 = vmatprep.mubr.f32.mxu0 0.0
        %5843 = vmatmul.mubr.f32.gmra.mxu0 %v5204
        %v5844 = vpop.f32.mrf.mxu0
        %v5845 = vadd.f32 %v5740, %v5844
        %v5846 = vpop.f32.mrf.mxu0
        %5847 = vmatprep.mubr.f32.mxu0 0.0
        %5848 = vmatmul.mubr.f32.gmra.mxu0 %v5207
        %v5849 = vpop.f32.mrf.mxu0
        %v5850 = vadd.f32 %v5745, %v5849
        %v5851 = vpop.f32.mrf.mxu0
        %5852 = vmatprep.mubr.f32.mxu0 0.0
        %5853 = vmatmul.mubr.f32.gmra.mxu0 %v5210
        %v5854 = vpop.f32.mrf.mxu0
        %v5855 = vadd.f32 %v5750, %v5854
        %v5856 = vpop.f32.mrf.mxu0
        %5857 = vmatprep.mubr.f32.mxu0 0.0
        %5858 = vmatmul.mubr.f32.gmra.mxu0 %v5213
        %v5859 = vpop.f32.mrf.mxu0
        %v5860 = vadd.f32 %v5755, %v5859
        %v5861 = vpop.f32.mrf.mxu0
        %5862 = vmatprep.mubr.f32.mxu0 0.0
        %5863 = vmatmul.mubr.f32.gmra.mxu0 %v5216
        %v5864 = vpop.f32.mrf.mxu0
        %v5865 = vadd.f32 %v5760, %v5864
        %v5866 = vpop.f32.mrf.mxu0
        %5867 = vmatprep.mubr.f32.mxu0 0.0
        %5868 = vmatmul.mubr.f32.gmra.mxu0 %v5219
        %v5869 = vpop.f32.mrf.mxu0
        %v5870 = vadd.f32 %v5765, %v5869
        %v5871 = vpop.f32.mrf.mxu0
        %5872 = vmatprep.mubr.f32.mxu0 0.0
        %5873 = vmatmul.mubr.f32.gmra.mxu0 %v5222
        %v5874 = vpop.f32.mrf.mxu0
        %v5875 = vadd.f32 %v5770, %v5874
        %v5876 = vpop.f32.mrf.mxu0
        %5877 = vdwg.mxu0
        %v5878 = vmax.f32 %v5840, 0.0
        %v5879 = vmax.f32 %v5845, 0.0
        %v5880 = vmax.f32 %v5850, 0.0
        %v5881 = vmax.f32 %v5855, 0.0
        %v5882 = vmax.f32 %v5860, 0.0
        %v5883 = vmax.f32 %v5865, 0.0
        %v5884 = vmax.f32 %v5870, 0.0
        %v5885 = vmax.f32 %v5875, 0.0
        %v5886 = vadd.f32 %v5660, %v5878
        %v5887 = vadd.f32 %v5661, %v5879
        %v5888 = vadd.f32 %v5662, %v5880
        %v5889 = vadd.f32 %v5663, %v5881
        %v5890 = vadd.f32 %v5664, %v5882
        %v5891 = vadd.f32 %v5665, %v5883
        %v5892 = vadd.f32 %v5666, %v5884
        %v5893 = vadd.f32 %v5667, %v5885
        %5894 = vmatprep.subr.mxu0 0.0
        %5895 = vmatpush1.msra.mxu0 %v5122
        %5896 = vmatprep.subr.mxu0 0.0
        %5897 = vmatpush1.msra.mxu0 %v5121
        %5898 = vmatprep.subr.mxu0 0.0
        %5899 = vmatpush1.msra.mxu0 %v5120
        %5900 = vmatprep.subr.mxu0 0.0
        %5901 = vmatpush1.msra.mxu0 %v5119
        %5902 = vmatprep.subr.mxu0 0.0
        %5903 = vmatpush1.msra.mxu0 %v5118
        %5904 = vmatprep.subr.mxu0 0.0
        %5905 = vmatpush1.msra.mxu0 %v5117
        %5906 = vmatprep.subr.mxu0 0.0
        %5907 = vmatpush1.msra.mxu0 %v5116
        %5908 = vmatprep.subr.mxu0 0.0
        %5909 = vmatpush1.msra.mxu0 %v5115
        %5910 = vmatprep.subr.mxu0 0.0
        %5911 = vmatpush1.msra.mxu0 %v5114
        %5912 = vmatprep.subr.mxu0 0.0
        %5913 = vmatpush1.msra.mxu0 %v5113
        %5914 = vmatprep.subr.mxu0 0.0
        %5915 = vmatpush1.msra.mxu0 %v5112
        %5916 = vmatprep.subr.mxu0 0.0
        %5917 = vmatpush1.msra.mxu0 %v5111
        %5918 = vmatprep.subr.mxu0 0.0
        %5919 = vmatpush1.msra.mxu0 0.0
        %5920 = vmatprep.subr.mxu0 0.0
        %5921 = vmatpush1.msra.mxu0 0.0
        %5922 = vmatprep.subr.mxu0 0.0
        %5923 = vmatpush1.msra.mxu0 0.0
        %5924 = vmatprep.subr.mxu0 0.0
        %5925 = vmatpush1.msra.mxu0 0.0
        %5926 = vmatprep.subr.mxu0 0.0
        %5927 = vmatpush2.msra.mxu0 0.0
        %5928 = vmatprep.subr.mxu0 0.0
        %5929 = vmatpush2.msra.mxu0 0.0
        %5930 = vmatprep.subr.mxu0 0.0
        %5931 = vmatpush2.msra.mxu0 0.0
        %5932 = vmatprep.subr.mxu0 0.0
        %5933 = vmatpush2.msra.mxu0 0.0
        %5934 = vmatprep.subr.mxu0 0.0
        %5935 = vmatpush2.msra.mxu0 0.0
        %5936 = vmatprep.subr.mxu0 0.0
        %5937 = vmatpush2.msra.mxu0 0.0
        %5938 = vmatprep.subr.mxu0 0.0
        %5939 = vmatpush2.msra.mxu0 0.0
        %5940 = vmatprep.subr.mxu0 0.0
        %5941 = vmatpush2.msra.mxu0 0.0
        %5942 = vmatprep.subr.mxu0 0.0
        %5943 = vmatpush2.msra.mxu0 0.0
        %5944 = vmatprep.subr.mxu0 0.0
        %5945 = vmatpush2.msra.mxu0 0.0
        %5946 = vmatprep.subr.mxu0 0.0
        %5947 = vmatpush2.msra.mxu0 0.0
        %5948 = vmatprep.subr.mxu0 0.0
        %5949 = vmatpush2.msra.mxu0 0.0
        %5950 = vmatprep.subr.mxu0 0.0
        %5951 = vmatpush2.msra.mxu0 %v5126
        %5952 = vmatprep.subr.mxu0 0.0
        %5953 = vmatpush2.msra.mxu0 %v5125
        %5954 = vmatprep.subr.mxu0 0.0
        %5955 = vmatpush2.msra.mxu0 %v5124
        %5956 = vmatprep.subr.mxu0 0.0
        %5957 = vmatpush2.msra.mxu0 %v5123
        %5958 = vmatprep.mubr.f32.mxu0 %v5128
        %5959 = vmatmul.mubr.f32.gmra.mxu0 %v5127
        %v5960 = vpop.f32.mrf.mxu0
        %v5961 = vadd.f32 %v5162, %v5960
        %v5962 = vpop.f32.mrf.mxu0
        %5963 = vmatprep.mubr.f32.mxu0 %v5131
        %5964 = vmatmul.mubr.f32.gmra.mxu0 %v5130
        %v5965 = vpop.f32.mrf.mxu0
        %v5966 = vadd.f32 %v5167, %v5965
        %v5967 = vpop.f32.mrf.mxu0
        %5968 = vmatprep.mubr.f32.mxu0 %v5134
        %5969 = vmatmul.mubr.f32.gmra.mxu0 %v5133
        %v5970 = vpop.f32.mrf.mxu0
        %v5971 = vadd.f32 %v5172, %v5970
        %v5972 = vpop.f32.mrf.mxu0
        %5973 = vmatprep.mubr.f32.mxu0 %v5137
        %5974 = vmatmul.mubr.f32.gmra.mxu0 %v5136
        %v5975 = vpop.f32.mrf.mxu0
        %v5976 = vadd.f32 %v5177, %v5975
        %v5977 = vpop.f32.mrf.mxu0
        %5978 = vmatprep.mubr.f32.mxu0 %v5140
        %5979 = vmatmul.mubr.f32.gmra.mxu0 %v5139
        %v5980 = vpop.f32.mrf.mxu0
        %v5981 = vadd.f32 %v5182, %v5980
        %v5982 = vpop.f32.mrf.mxu0
        %5983 = vmatprep.mubr.f32.mxu0 %v5143
        %5984 = vmatmul.mubr.f32.gmra.mxu0 %v5142
        %v5985 = vpop.f32.mrf.mxu0
        %v5986 = vadd.f32 %v5187, %v5985
        %v5987 = vpop.f32.mrf.mxu0
        %5988 = vmatprep.mubr.f32.mxu0 %v5146
        %5989 = vmatmul.mubr.f32.gmra.mxu0 %v5145
        %v5990 = vpop.f32.mrf.mxu0
        %v5991 = vadd.f32 %v5192, %v5990
        %v5992 = vpop.f32.mrf.mxu0
        %5993 = vmatprep.mubr.f32.mxu0 %v5149
        %5994 = vmatmul.mubr.f32.gmra.mxu0 %v5148
        %v5995 = vpop.f32.mrf.mxu0
        %v5996 = vadd.f32 %v5197, %v5995
        %v5997 = vpop.f32.mrf.mxu0
        %5998 = vdwg.mxu0
        %5999 = vmatprep.subr.mxu0 0.0
        %6000 = vmatpush1.msra.mxu0 0.0
        %6001 = vmatprep.subr.mxu0 0.0
        %6002 = vmatpush1.msra.mxu0 0.0
        %6003 = vmatprep.subr.mxu0 0.0
        %6004 = vmatpush1.msra.mxu0 0.0
        %6005 = vmatprep.subr.mxu0 0.0
        %6006 = vmatpush1.msra.mxu0 0.0
        %6007 = vmatprep.subr.mxu0 0.0
        %6008 = vmatpush1.msra.mxu0 0.0
        %6009 = vmatprep.subr.mxu0 0.0
        %6010 = vmatpush1.msra.mxu0 0.0
        %6011 = vmatprep.subr.mxu0 0.0
        %6012 = vmatpush1.msra.mxu0 0.0
        %6013 = vmatprep.subr.mxu0 0.0
        %6014 = vmatpush1.msra.mxu0 0.0
        %6015 = vmatprep.subr.mxu0 0.0
        %6016 = vmatpush1.msra.mxu0 0.0
        %6017 = vmatprep.subr.mxu0 0.0
        %6018 = vmatpush1.msra.mxu0 0.0
        %6019 = vmatprep.subr.mxu0 0.0
        %6020 = vmatpush1.msra.mxu0 0.0
        %6021 = vmatprep.subr.mxu0 0.0
        %6022 = vmatpush1.msra.mxu0 0.0
        %6023 = vmatprep.subr.mxu0 0.0
        %6024 = vmatpush1.msra.mxu0 0.0
        %6025 = vmatprep.subr.mxu0 0.0
        %6026 = vmatpush1.msra.mxu0 0.0
        %6027 = vmatprep.subr.mxu0 0.0
        %6028 = vmatpush1.msra.mxu0 0.0
        %6029 = vmatprep.subr.mxu0 0.0
        %6030 = vmatpush1.msra.mxu0 0.0
        %6031 = vmatprep.subr.mxu0 0.0
        %6032 = vmatpush2.msra.mxu0 0.0
        %6033 = vmatprep.subr.mxu0 0.0
        %6034 = vmatpush2.msra.mxu0 0.0
        %6035 = vmatprep.subr.mxu0 0.0
        %6036 = vmatpush2.msra.mxu0 0.0
        %6037 = vmatprep.subr.mxu0 0.0
        %6038 = vmatpush2.msra.mxu0 0.0
        %6039 = vmatprep.subr.mxu0 0.0
        %6040 = vmatpush2.msra.mxu0 0.0
        %6041 = vmatprep.subr.mxu0 0.0
        %6042 = vmatpush2.msra.mxu0 0.0
        %6043 = vmatprep.subr.mxu0 0.0
        %6044 = vmatpush2.msra.mxu0 0.0
        %6045 = vmatprep.subr.mxu0 0.0
        %6046 = vmatpush2.msra.mxu0 0.0
        %6047 = vmatprep.subr.mxu0 0.0
        %6048 = vmatpush2.msra.mxu0 0.0
        %6049 = vmatprep.subr.mxu0 0.0
        %6050 = vmatpush2.msra.mxu0 0.0
        %6051 = vmatprep.subr.mxu0 0.0
        %6052 = vmatpush2.msra.mxu0 0.0
        %6053 = vmatprep.subr.mxu0 0.0
        %6054 = vmatpush2.msra.mxu0 0.0
        %6055 = vmatprep.subr.mxu0 0.0
        %6056 = vmatpush2.msra.mxu0 0.0
        %6057 = vmatprep.subr.mxu0 0.0
        %6058 = vmatpush2.msra.mxu0 0.0
        %6059 = vmatprep.subr.mxu0 0.0
        %6060 = vmatpush2.msra.mxu0 0.0
        %6061 = vmatprep.subr.mxu0 0.0
        %6062 = vmatpush2.msra.mxu0 0.0
        %6063 = vmatprep.mubr.f32.mxu0 0.0
        %6064 = vmatmul.mubr.f32.gmra.mxu0 %v5201
        %v6065 = vpop.f32.mrf.mxu0
        %v6066 = vadd.f32 %v5961, %v6065
        %v6067 = vpop.f32.mrf.mxu0
        %6068 = vmatprep.mubr.f32.mxu0 0.0
        %6069 = vmatmul.mubr.f32.gmra.mxu0 %v5204
        %v6070 = vpop.f32.mrf.mxu0
        %v6071 = vadd.f32 %v5966, %v6070
        %v6072 = vpop.f32.mrf.mxu0
        %6073 = vmatprep.mubr.f32.mxu0 0.0
        %6074 = vmatmul.mubr.f32.gmra.mxu0 %v5207
        %v6075 = vpop.f32.mrf.mxu0
        %v6076 = vadd.f32 %v5971, %v6075
        %v6077 = vpop.f32.mrf.mxu0
        %6078 = vmatprep.mubr.f32.mxu0 0.0
        %6079 = vmatmul.mubr.f32.gmra.mxu0 %v5210
        %v6080 = vpop.f32.mrf.mxu0
        %v6081 = vadd.f32 %v5976, %v6080
        %v6082 = vpop.f32.mrf.mxu0
        %6083 = vmatprep.mubr.f32.mxu0 0.0
        %6084 = vmatmul.mubr.f32.gmra.mxu0 %v5213
        %v6085 = vpop.f32.mrf.mxu0
        %v6086 = vadd.f32 %v5981, %v6085
        %v6087 = vpop.f32.mrf.mxu0
        %6088 = vmatprep.mubr.f32.mxu0 0.0
        %6089 = vmatmul.mubr.f32.gmra.mxu0 %v5216
        %v6090 = vpop.f32.mrf.mxu0
        %v6091 = vadd.f32 %v5986, %v6090
        %v6092 = vpop.f32.mrf.mxu0
        %6093 = vmatprep.mubr.f32.mxu0 0.0
        %6094 = vmatmul.mubr.f32.gmra.mxu0 %v5219
        %v6095 = vpop.f32.mrf.mxu0
        %v6096 = vadd.f32 %v5991, %v6095
        %v6097 = vpop.f32.mrf.mxu0
        %6098 = vmatprep.mubr.f32.mxu0 0.0
        %6099 = vmatmul.mubr.f32.gmra.mxu0 %v5222
        %v6100 = vpop.f32.mrf.mxu0
        %v6101 = vadd.f32 %v5996, %v6100
        %v6102 = vpop.f32.mrf.mxu0
        %6103 = vdwg.mxu0
        %v6104 = vmax.f32 %v6066, 0.0
        %v6105 = vmax.f32 %v6071, 0.0
        %v6106 = vmax.f32 %v6076, 0.0
        %v6107 = vmax.f32 %v6081, 0.0
        %v6108 = vmax.f32 %v6086, 0.0
        %v6109 = vmax.f32 %v6091, 0.0
        %v6110 = vmax.f32 %v6096, 0.0
        %v6111 = vmax.f32 %v6101, 0.0
        %v6112 = vadd.f32 %v5886, %v6104
        %v6113 = vadd.f32 %v5887, %v6105
        %v6114 = vadd.f32 %v5888, %v6106
        %v6115 = vadd.f32 %v5889, %v6107
        %v6116 = vadd.f32 %v5890, %v6108
        %v6117 = vadd.f32 %v5891, %v6109
        %v6118 = vadd.f32 %v5892, %v6110
        %v6119 = vadd.f32 %v5893, %v6111
        %v6120 = vmul.f32 %v6112, 0.25
        %v6121 = vmul.f32 %v6113, 0.25
        %v6122 = vmul.f32 %v6114, 0.25
        %v6123 = vmul.f32 %v6115, 0.25
        %v6124 = vmul.f32 %v6116, 0.25
        %v6125 = vmul.f32 %v6117, 0.25
        %v6126 = vmul.f32 %v6118, 0.25
        %v6127 = vmul.f32 %v6119, 0.25
        %v6128 = vld [vmem:[%s9] sm:$0xff]
        %v6129 = vld [vmem:[%s9 + $0x8] sm:$0xff]
        %v6130 = vld [vmem:[%s9 + $0x10] sm:$0xff]
        %v6131 = vld [vmem:[%s9 + $0x18] sm:$0xff]
        %v6132 = vld [vmem:[%s10] sm:$0xff]
        %v6133 = vld [vmem:[%s10 + $0x8] sm:$0xff]
        %v6134 = vld [vmem:[%s10 + $0x10] sm:$0xff]
        %v6135 = vld [vmem:[%s10 + $0x18] sm:$0xff]
        %6137 = vset.pattern.permute.xlu0 0
        %6138 = vperm.xlu0 %6137, %v6132
        %v6139 = vpop.permute.xlu0 %6138
        %6142 = vset.pattern.permute.xlu0 0
        %6143 = vperm.xlu0 %6142, %v6133
        %v6144 = vpop.permute.xlu0 %6143
        %6147 = vset.pattern.permute.xlu0 0
        %6148 = vperm.xlu0 %6147, %v6134
        %v6149 = vpop.permute.xlu0 %6148
        %6152 = vset.pattern.permute.xlu0 0
        %6153 = vperm.xlu0 %6152, %v6135
        %v6154 = vpop.permute.xlu0 %6153
        %vm6156 = vcmask 523264
        %v6158 = vsel %vm6156, %v6128, 0
        %v6161 = vsel %vm6156, %v6129, 0
        %v6164 = vsel %vm6156, %v6130, 0
        %v6167 = vsel %vm6156, %v6131, 0
        %6169 = vmatprep.subr.mxu0 0.0
        %6170 = vmatpush1.msra.mxu0 0.0
        %6171 = vmatprep.subr.mxu0 0.0
        %6172 = vmatpush1.msra.mxu0 0.0
        %6173 = vmatprep.subr.mxu0 0.0
        %6174 = vmatpush1.msra.mxu0 0.0
        %6175 = vmatprep.subr.mxu0 0.0
        %6176 = vmatpush1.msra.mxu0 0.0
        %6177 = vmatprep.subr.mxu0 0.0
        %6178 = vmatpush1.msra.mxu0 0.0
        %6179 = vmatprep.subr.mxu0 0.0
        %6180 = vmatpush1.msra.mxu0 0.0
        %6181 = vmatprep.subr.mxu0 0.0
        %6182 = vmatpush1.msra.mxu0 0.0
        %6183 = vmatprep.subr.mxu0 0.0
        %6184 = vmatpush1.msra.mxu0 0.0
        %6185 = vmatprep.subr.mxu0 0.0
        %6186 = vmatpush1.msra.mxu0 %v6127
        %6187 = vmatprep.subr.mxu0 0.0
        %6188 = vmatpush1.msra.mxu0 %v6126
        %6189 = vmatprep.subr.mxu0 0.0
        %6190 = vmatpush1.msra.mxu0 %v6125
        %6191 = vmatprep.subr.mxu0 0.0
        %6192 = vmatpush1.msra.mxu0 %v6124
        %6193 = vmatprep.subr.mxu0 0.0
        %6194 = vmatpush1.msra.mxu0 %v6123
        %6195 = vmatprep.subr.mxu0 0.0
        %6196 = vmatpush1.msra.mxu0 %v6122
        %6197 = vmatprep.subr.mxu0 0.0
        %6198 = vmatpush1.msra.mxu0 %v6121
        %6199 = vmatprep.subr.mxu0 0.0
        %6200 = vmatpush1.msra.mxu0 %v6120
        %6201 = vmatprep.subr.mxu0 0.0
        %6202 = vmatpush2.msra.mxu0 0.0
        %6203 = vmatprep.subr.mxu0 0.0
        %6204 = vmatpush2.msra.mxu0 0.0
        %6205 = vmatprep.subr.mxu0 0.0
        %6206 = vmatpush2.msra.mxu0 0.0
        %6207 = vmatprep.subr.mxu0 0.0
        %6208 = vmatpush2.msra.mxu0 0.0
        %6209 = vmatprep.subr.mxu0 0.0
        %6210 = vmatpush2.msra.mxu0 0.0
        %6211 = vmatprep.subr.mxu0 0.0
        %6212 = vmatpush2.msra.mxu0 0.0
        %6213 = vmatprep.subr.mxu0 0.0
        %6214 = vmatpush2.msra.mxu0 0.0
        %6215 = vmatprep.subr.mxu0 0.0
        %6216 = vmatpush2.msra.mxu0 0.0
        %6217 = vmatprep.subr.mxu0 0.0
        %6218 = vmatpush2.msra.mxu0 0.0
        %6219 = vmatprep.subr.mxu0 0.0
        %6220 = vmatpush2.msra.mxu0 0.0
        %6221 = vmatprep.subr.mxu0 0.0
        %6222 = vmatpush2.msra.mxu0 0.0
        %6223 = vmatprep.subr.mxu0 0.0
        %6224 = vmatpush2.msra.mxu0 0.0
        %6225 = vmatprep.subr.mxu0 0.0
        %6226 = vmatpush2.msra.mxu0 0.0
        %6227 = vmatprep.subr.mxu0 0.0
        %6228 = vmatpush2.msra.mxu0 0.0
        %6229 = vmatprep.subr.mxu0 0.0
        %6230 = vmatpush2.msra.mxu0 0.0
        %6231 = vmatprep.subr.mxu0 0.0
        %6232 = vmatpush2.msra.mxu0 0.0
        %6233 = vmatprep.mubr.f32.mxu0 0.0
        %6234 = vmatmul.mubr.f32.gmra.mxu0 %v6158
        %v6235 = vpop.f32.mrf.mxu0
        %v6236 = vadd.f32 %v6139, %v6235
        %v6237 = vpop.f32.mrf.mxu0
        %6238 = vmatprep.mubr.f32.mxu0 0.0
        %6239 = vmatmul.mubr.f32.gmra.mxu0 %v6161
        %v6240 = vpop.f32.mrf.mxu0
        %v6241 = vadd.f32 %v6144, %v6240
        %v6242 = vpop.f32.mrf.mxu0
        %6243 = vmatprep.mubr.f32.mxu0 0.0
        %6244 = vmatmul.mubr.f32.gmra.mxu0 %v6164
        %v6245 = vpop.f32.mrf.mxu0
        %v6246 = vadd.f32 %v6149, %v6245
        %v6247 = vpop.f32.mrf.mxu0
        %6248 = vmatprep.mubr.f32.mxu0 0.0
        %6249 = vmatmul.mubr.f32.gmra.mxu0 %v6167
        %v6250 = vpop.f32.mrf.mxu0
        %v6251 = vadd.f32 %v6154, %v6250
        %v6252 = vpop.f32.mrf.mxu0
        %6253 = vdwg.mxu0
        %v6254 = vmax.f32 %v6236, 0.0
        %v6255 = vmax.f32 %v6241, 0.0
        %v6256 = vmax.f32 %v6246, 0.0
        %v6257 = vmax.f32 %v6251, 0.0
        %v6258 = vld [vmem:[%s11] sm:$0x7]
        %v6259 = vld [vmem:[%s12] sm:$0x7]
        %6261 = vset.pattern.permute.xlu0 0
        %6262 = vperm.xlu0 %6261, %v6259
        %v6263 = vpop.permute.xlu0 %6262
        %v6266 = vsel %vm5199, %v6258, 0
        %6268 = vmatprep.subr.mxu0 0.0
        %6269 = vmatpush1.msra.mxu0 0.0
        %6270 = vmatprep.subr.mxu0 0.0
        %6271 = vmatpush1.msra.mxu0 0.0
        %6272 = vmatprep.subr.mxu0 0.0
        %6273 = vmatpush1.msra.mxu0 0.0
        %6274 = vmatprep.subr.mxu0 0.0
        %6275 = vmatpush1.msra.mxu0 0.0
        %6276 = vmatprep.subr.mxu0 0.0
        %6277 = vmatpush1.msra.mxu0 0.0
        %6278 = vmatprep.subr.mxu0 0.0
        %6279 = vmatpush1.msra.mxu0 0.0
        %6280 = vmatprep.subr.mxu0 0.0
        %6281 = vmatpush1.msra.mxu0 0.0
        %6282 = vmatprep.subr.mxu0 0.0
        %6283 = vmatpush1.msra.mxu0 0.0
        %6284 = vmatprep.subr.mxu0 0.0
        %6285 = vmatpush1.msra.mxu0 0.0
        %6286 = vmatprep.subr.mxu0 0.0
        %6287 = vmatpush1.msra.mxu0 0.0
        %6288 = vmatprep.subr.mxu0 0.0
        %6289 = vmatpush1.msra.mxu0 0.0
        %6290 = vmatprep.subr.mxu0 0.0
        %6291 = vmatpush1.msra.mxu0 0.0
        %6292 = vmatprep.subr.mxu0 0.0
        %6293 = vmatpush1.msra.mxu0 %v6257
        %6294 = vmatprep.subr.mxu0 0.0
        %6295 = vmatpush1.msra.mxu0 %v6256
        %6296 = vmatprep.subr.mxu0 0.0
        %6297 = vmatpush1.msra.mxu0 %v6255
        %6298 = vmatprep.subr.mxu0 0.0
        %6299 = vmatpush1.msra.mxu0 %v6254
        %6300 = vmatprep.subr.mxu0 0.0
        %6301 = vmatpush2.msra.mxu0 0.0
        %6302 = vmatprep.subr.mxu0 0.0
        %6303 = vmatpush2.msra.mxu0 0.0
        %6304 = vmatprep.subr.mxu0 0.0
        %6305 = vmatpush2.msra.mxu0 0.0
        %6306 = vmatprep.subr.mxu0 0.0
        %6307 = vmatpush2.msra.mxu0 0.0
        %6308 = vmatprep.subr.mxu0 0.0
        %6309 = vmatpush2.msra.mxu0 0.0
        %6310 = vmatprep.subr.mxu0 0.0
        %6311 = vmatpush2.msra.mxu0 0.0
        %6312 = vmatprep.subr.mxu0 0.0
        %6313 = vmatpush2.msra.mxu0 0.0
        %6314 = vmatprep.subr.mxu0 0.0
        %6315 = vmatpush2.msra.mxu0 0.0
        %6316 = vmatprep.subr.mxu0 0.0
        %6317 = vmatpush2.msra.mxu0 0.0
        %6318 = vmatprep.subr.mxu0 0.0
        %6319 = vmatpush2.msra.mxu0 0.0
        %6320 = vmatprep.subr.mxu0 0.0
        %6321 = vmatpush2.msra.mxu0 0.0
        %6322 = vmatprep.subr.mxu0 0.0
        %6323 = vmatpush2.msra.mxu0 0.0
        %6324 = vmatprep.subr.mxu0 0.0
        %6325 = vmatpush2.msra.mxu0 0.0
        %6326 = vmatprep.subr.mxu0 0.0
        %6327 = vmatpush2.msra.mxu0 0.0
        %6328 = vmatprep.subr.mxu0 0.0
        %6329 = vmatpush2.msra.mxu0 0.0
        %6330 = vmatprep.subr.mxu0 0.0
        %6331 = vmatpush2.msra.mxu0 0.0
        %6332 = vmatprep.mubr.f32.mxu0 0.0
        %6333 = vmatmul.mubr.f32.gmra.mxu0 %v6266
        %v6334 = vpop.f32.mrf.mxu0
        %v6335 = vadd.f32 %v6263, %v6334
        %v6336 = vpop.f32.mrf.mxu0
        %6337 = vdwg.mxu0
        %6338 = vst [vmem:[%s725] sm:$0x7] %v6335
        %s6339 = sand.u32 %s313, 1
        %s6340 = scalar_lea.sflag [#allocation4], %s6339
        %s6341 = sand.u32 %s313, 1
        %s6342 = smul.addr %s6341, 4
        %s6343 = scalar_lea.vmem [#allocation3], %s6342
        // Predicated region
        $region111: #{simple1dcnn_forward.1} parent=105 // pred_check
          %p6344 = pneg %p323
        $region112: #{simple1dcnn_forward.1} parent=105 // pred_check_branch
          %6346 = sbr.rel (%p6344) target = $region114
        $region113: #{simple1dcnn_forward.1} parent=105 // pred_region
          %s6348 = ssub.s32 64, 64
          %6349 = vsyncadd %s6340, %s6348
          %s6350 = smul.addr %s27, 64
          %s6351 = scalar_lea.hbm %s13, %s6350
          %s6353 = sshll.u32 %s6343, 4
          %s6354 = int_to_ptr.vmem [resolvable:$true] %s6353
          %6356 = dma.vmem_to_hbm [thread:$0]  %s6354, 64, %s6351, %s6340
        $region114: #{simple1dcnn_forward.1} parent=105 // pred_fallthru
          _
      $region106: #{simple1dcnn_forward.1} parent=5 // pred_fallthru
        _
      %p6357 = scmp.le.s32.totalorder 2, %s22
      // Predicated region
      $region115: #{simple1dcnn_forward.1} parent=5 // pred_check
        %p6358 = pneg %p6357
      $region116: #{simple1dcnn_forward.1} parent=5 // pred_check_branch
        %6360 = sbr.rel (%p6358) target = $region118
      $region117: #{simple1dcnn_forward.1} parent=5 // pred_region
        %s6361 = ssub.s32 %s22, 2
        // Predicated region
        $region119: #{simple1dcnn_forward.1} parent=117 // pred_check
          %p6362 = pneg %p329
        $region120: #{simple1dcnn_forward.1} parent=117 // pred_check_branch
          %6364 = sbr.rel (%p6362) target = $region122
        $region121: #{simple1dcnn_forward.1} parent=117 // pred_region
          %s6365 = sand.u32 %s314, 1
          %s6366 = scalar_lea.sflag [#allocation4], %s6365
          %s6367 = sand.u32 %s314, 1
          %s6368 = smul.addr %s6367, 4
          %s6369 = scalar_lea.vmem [#allocation3], %s6368
          %6370 = dma.done %s6366, 64
        $region122: #{simple1dcnn_forward.1} parent=117 // pred_fallthru
          _
      $region118: #{simple1dcnn_forward.1} parent=5 // pred_fallthru
        _
    $region6: #{simple1dcnn_forward.1} parent=1 // loop_footer
      %s26 = sadd.s32 1, %s22
    $region7: #{simple1dcnn_forward.1} parent=1 // loop_footer_branch
      %21 = sbr.rel target = $region3
    $region8: #{simple1dcnn_forward.1} parent=1 // loop_exit
      _
    %6371 = vsyncpa [#allocation4], 1
    %s6372 = scalar_lea.sflag [#allocation4], 1
    %6373 = vsyncpa %s6372, 1

</llo_original>
